<compile_context>
chip_gen: v6e
topology: v6e:2x2x1
jax: 0.10.0
libtpu: 0.0.40
codegen_flags: <defaults>
</compile_context>

<pallas_src>
import functools

import jax
import jax.numpy as jnp
import numpy as np
from jax import lax
from jax.experimental import pallas as pl
from jax.experimental.pallas import tpu as pltpu


def skconv_kernel(x_ref, wconv_ref, bconv_ref, wfc_ref, bfc_ref,
                  wf01_ref, bf01_ref, out_ref, xpad_ref, acc_ref,
                  *, Bt, H, W, C):
    WC = W * C
    WpC = (W + 4) * C
    R = Bt * H

    # ---- pad=2 zero padding: zero only the halo strips (interior is fully
    #      overwritten each step, so no cross-step dependence) --------------
    zrow = jnp.zeros((Bt, 2, WpC), jnp.float32)
    xpad_ref[:, 0:2, :] = zrow
    xpad_ref[:, H + 2:H + 4, :] = zrow
    zcol = jnp.zeros((Bt, H, 2 * C), jnp.float32)
    xpad_ref[:, 2:2 + H, 0:2 * C] = zcol
    xpad_ref[:, 2:2 + H, (2 + W) * C:(4 + W) * C] = zcol
    xpad_ref[:, 2:2 + H, 2 * C:(2 + W) * C] = x_ref[...]          # lane-dense copy

    # ---- both conv branches: 5 K-chunked row-matmuls against the
    #      block-Toeplitz weight; LHS of chunk ky is a sublane-shifted slice
    #      of xpad (no im2col, no patch scratch) ----------------------------
    acc_ref[...] = jnp.zeros_like(acc_ref)
    for ky in range(5):
        lhs = xpad_ref[:, ky:ky + H, :].reshape(R, WpC)            # (Bt*H, (W+4)*C)
        acc_ref[...] += jnp.dot(lhs, wconv_ref[ky],
                                preferred_element_type=jnp.float32)
    feats = acc_ref[...] + bconv_ref[...]                          # (Bt*H, 2*W*C)

    f3 = feats[:, :WC].reshape(Bt, H, WC)        # 3x3 branch, (w,c)-fused lanes
    f5 = feats[:, WC:].reshape(Bt, H, WC)        # 5x5 branch

    # ---- SK attention: pool -> squeeze -> fused excite -> 2-way softmax ----
    su = jnp.sum(f3 + f5, axis=1)                                  # (Bt, W*C)
    U = su[:, 0:C]
    for w in range(1, W):                                          # fold fused w lanes
        U = U + su[:, w * C:(w + 1) * C]
    U = U * (1.0 / float(H * W))                                   # (Bt, C) mean pool

    z = jnp.dot(U, wfc_ref[...], preferred_element_type=jnp.float32) + bfc_ref[...]
    l01 = jnp.dot(z, wf01_ref[...], preferred_element_type=jnp.float32) + bf01_ref[...]
    l0 = l01[:, :C]
    l1 = l01[:, C:]

    m = jnp.maximum(l0, l1)
    e0 = jnp.exp(l0 - m)
    e1 = jnp.exp(l1 - m)
    inv = pl.reciprocal(e0 + e1, approx=False)   # exact: stays within 1e-4 tolerance
    a0 = e0 * inv                                                  # (Bt, C)
    a1 = e1 * inv

    # broadcast per-channel weights across the fused w lanes (w-major, c-minor)
    a0t = jnp.concatenate([a0] * W, axis=-1)[:, None, :]           # (Bt, 1, W*C)
    a1t = jnp.concatenate([a1] * W, axis=-1)[:, None, :]

    out_ref[...] = f3 * a0t + f5 * a1t                             # lane-dense store


def _num_tensorcores():
    """Best-effort TensorCores-per-chip (v7x -> 2, v5e/v6e -> 1)."""
    try:
        info = pltpu.get_tpu_info()
        for attr in ("num_cores", "tensorcores_per_chip", "num_tensorcores",
                     "cores_per_chip", "core_count"):
            v = getattr(info, attr, None)
            if isinstance(v, int) and v > 0:
                return max(1, min(int(v), 2))
    except Exception:
        pass
    try:
        kind = jax.devices()[0].device_kind.lower()
        if "v7" in kind or "7x" in kind:
            return 2
    except Exception:
        pass
    return 1


def _pick_batch_tile(B, H, W, C, num_cores, vmem_budget=24 * 1024 * 1024):
    """Largest divisor-of-B batch tile whose per-step VMEM footprint fits.
    Single-TC chips may collapse the grid to 1 step; multi-TC chips keep
    >= num_cores 'parallel' steps so every TensorCore gets work."""
    WC = W * C
    wt_bytes = 2 * 5 * (W + 4) * C * 2 * WC * 4        # double-buffered Toeplitz weight

    def vmem_bytes(bt):
        io_blocks = 2 * (2 * bt * H * WC * 4)           # x + out blocks, double-buffered
        xpad = bt * (H + 4) * (W + 4) * C * 4           # padded-input scratch
        live = 3 * bt * H * 2 * WC * 4                  # acc/feats/V working values
        return wt_bytes + io_blocks + xpad + live

    divs = [t for t in range(1, B + 1) if B % t == 0 and vmem_bytes(t) <= vmem_budget]
    if not divs:
        divs = [1]
    if num_cores > 1:
        pref = [t for t in divs if B // t >= num_cores]
        if pref:
            return max(pref)
    return max(divs)


def skconv(x_nchw, params, r=16):
    """Pallas SKConv forward. x_nchw: (B, C, H, W) float32."""
    B, C, H, W = x_nchw.shape
    d = C // r
    WC = W * C
    Wp = W + 4
    w3, b3, w5, b5, wfc, bfc, wf0, bf0, wf1, bf1 = params

    # NHWC with the (W, C) dims fused into one lane-dense axis (W*C = 256 here).
    x = jnp.transpose(x_nchw, (0, 2, 3, 1)).reshape(B, H, WC).astype(jnp.float32)

    # Fuse both conv branches (3x3 zero-padded to 5x5 | 5x5) and fold the
    # sliding window over W into a block-Toeplitz weight:
    #   wconv[ky, win*C + i, br*W*C + w*C + c] = wcat[ky, win-w, i, br*C + c]
    #   for 0 <= win - w < 5, else 0.
    w3p = jnp.pad(w3, ((1, 1), (1, 1), (0, 0), (0, 0)))            # 3x3 -> 5x5
    wcat = jnp.concatenate([w3p, w5], axis=-1)                     # (5,5,C,2C)
    wcat5 = wcat.reshape(5, 5, C, 2, C).astype(jnp.float32)        # split branch dim
    T = jnp.zeros((5, Wp, C, 2, W, C), jnp.float32)
    for w in range(W):
        T = T.at[:, w:w + 5, :, :, w, :].set(wcat5)
    wconv = T.reshape(5, Wp * C, 2 * WC)                           # (5, (W+4)*C, 2*W*C)

    bconv = jnp.concatenate([jnp.tile(b3, W), jnp.tile(b5, W)])
    bconv = bconv.reshape(1, 2 * WC).astype(jnp.float32)

    wfc2 = wfc.astype(jnp.float32)
    bfc2 = bfc.reshape(1, d).astype(jnp.float32)
    wf01 = jnp.concatenate([wf0, wf1], axis=1).astype(jnp.float32)          # (d, 2C)
    bf01 = jnp.concatenate([bf0, bf1]).reshape(1, 2 * C).astype(jnp.float32)

    Bt = _pick_batch_tile(B, H, W, C, _num_tensorcores())
    kernel = functools.partial(skconv_kernel, Bt=Bt, H=H, W=W, C=C)

    out = pl.pallas_call(
        kernel,
        out_shape=jax.ShapeDtypeStruct((B, H, WC), jnp.float32),
        grid_spec=pltpu.PrefetchScalarGridSpec(
            num_scalar_prefetch=0,
            grid=(B // Bt,),
            in_specs=[
                pl.BlockSpec((Bt, H, WC), lambda i: (i, 0, 0)),          # x (lane-dense)
                # grid-invariant weights/biases (constant index map -> fetched once)
                pl.BlockSpec((5, Wp * C, 2 * WC), lambda i: (0, 0, 0)),  # Toeplitz conv W
                pl.BlockSpec((1, 2 * WC), lambda i: (0, 0)),             # conv bias (tiled)
                pl.BlockSpec((C, d), lambda i: (0, 0)),                  # squeeze FC W
                pl.BlockSpec((1, d), lambda i: (0, 0)),                  # squeeze FC b
                pl.BlockSpec((d, 2 * C), lambda i: (0, 0)),              # fused excite W
                pl.BlockSpec((1, 2 * C), lambda i: (0, 0)),              # fused excite b
            ],
            out_specs=pl.BlockSpec((Bt, H, WC), lambda i: (i, 0, 0)),    # lane-dense out
            scratch_shapes=[
                pltpu.VMEM((Bt, H + 4, Wp * C), jnp.float32),            # padded input
                pltpu.VMEM((Bt * H, 2 * WC), jnp.float32),               # matmul accumulator
            ],
        ),
        compiler_params=pltpu.CompilerParams(
            dimension_semantics=("parallel",),
            vmem_limit_bytes=32 * 1024 * 1024,
        ),
    )(x, wconv, bconv, wfc2, bfc2, wf01, bf01)

    # un-fuse lanes and return to NCHW
    return jnp.transpose(out.reshape(B, H, W, C), (0, 3, 1, 2))


def skconv_ref(x_nchw, params, r=16):
    """Pure-JAX reference (mirrors the PyTorch forward)."""
    B, C, H, W = x_nchw.shape
    w3, b3, w5, b5, wfc, bfc, wf0, bf0, wf1, bf1 = params
    x = jnp.transpose(x_nchw, (0, 2, 3, 1))
    dn = ('NHWC', 'HWIO', 'NHWC')
    f3 = lax.conv_general_dilated(x, w3, (1, 1), 'SAME', dimension_numbers=dn) + b3
    f5 = lax.conv_general_dilated(x, w5, (1, 1), 'SAME', dimension_numbers=dn) + b5
    U = (f3 + f5).mean(axis=(1, 2))                                 # (B, C)
    z = U @ wfc + bfc                                               # (B, d)
    l0 = z @ wf0 + bf0
    l1 = z @ wf1 + bf1
    w = jax.nn.softmax(jnp.stack([l0, l1], axis=1), axis=1)         # (B, 2, C)
    V = f3 * w[:, 0][:, None, None, :] + f5 * w[:, 1][:, None, None, :]
    return jnp.transpose(V, (0, 3, 1, 2))


if __name__ == "__main__":
    B, C, H, W, r = 8, 32, 8, 8, 16        # C must satisfy C // r >= 1
    d = C // r

    key = jax.random.PRNGKey(0)
    ks = jax.random.split(key, 11)
    x = jax.random.normal(ks[0], (B, C, H, W), jnp.float32)

    # Deterministic synthetic parameters (shapes match nn.Conv2d / nn.Linear of SKConv)
    w3 = jax.random.normal(ks[1], (3, 3, C, C), jnp.float32) * 0.1     # HWIO
    b3 = jax.random.normal(ks[2], (C,), jnp.float32) * 0.1
    w5 = jax.random.normal(ks[3], (5, 5, C, C), jnp.float32) * 0.05    # HWIO
    b5 = jax.random.normal(ks[4], (C,), jnp.float32) * 0.1
    wfc = jax.random.normal(ks[5], (C, d), jnp.float32) * 0.1
    bfc = jax.random.normal(ks[6], (d,), jnp.float32) * 0.1
    wf0 = jax.random.normal(ks[7], (d, C), jnp.float32) * 0.1
    bf0 = jax.random.normal(ks[8], (C,), jnp.float32) * 0.1
    wf1 = jax.random.normal(ks[9], (d, C), jnp.float32) * 0.1
    bf1 = jax.random.normal(ks[10], (C,), jnp.float32) * 0.1
    params = (w3, b3, w5, b5, wfc, bfc, wf0, bf0, wf1, bf1)

    out = jax.block_until_ready(skconv(x, params, r=r))
    ref = jax.block_until_ready(skconv_ref(x, params, r=r))

    assert out.shape == (B, C, H, W)
    np.testing.assert_allclose(np.asarray(out), np.asarray(ref), rtol=1e-4, atol=1e-4)
    print("KERNEL_OK")
</pallas_src>

<mosaic_0001>
module attributes {stable_mosaic.version = 11 : i64} {
  func.func @skconv_kernel(%arg0: i32, %arg1: memref<8x8x256xf32, #tpu.memory_space<vmem>>, %arg2: memref<5x384x512xf32, #tpu.memory_space<vmem>>, %arg3: memref<1x512xf32, #tpu.memory_space<vmem>>, %arg4: memref<32x2xf32, #tpu.memory_space<vmem>>, %arg5: memref<1x2xf32, #tpu.memory_space<vmem>>, %arg6: memref<2x64xf32, #tpu.memory_space<vmem>>, %arg7: memref<1x64xf32, #tpu.memory_space<vmem>>, %arg8: memref<8x8x256xf32, #tpu.memory_space<vmem>>, %arg9: memref<8x12x384xf32, #tpu.memory_space<vmem>>, %arg10: memref<64x512xf32, #tpu.memory_space<vmem>>) attributes {dimension_semantics = [#tpu.dimension_semantics<parallel>], iteration_bounds = array<i64: 1>, scalar_prefetch = 0 : i64, scratch_operands = 2 : i64, tpu.core_type = #tpu.core_type<tc>, window_params = [{transform_indices = @transform_0, window_bounds = array<i64: 8, 8, 256>}, {pipeline_mode = #tpu.pipeline_mode<synchronous>, transform_indices = @transform_1, window_bounds = array<i64: 5, 384, 512>}, {pipeline_mode = #tpu.pipeline_mode<synchronous>, transform_indices = @transform_2, window_bounds = array<i64: 1, 512>}, {pipeline_mode = #tpu.pipeline_mode<synchronous>, transform_indices = @transform_3, window_bounds = array<i64: 32, 2>}, {pipeline_mode = #tpu.pipeline_mode<synchronous>, transform_indices = @transform_4, window_bounds = array<i64: 1, 2>}, {pipeline_mode = #tpu.pipeline_mode<synchronous>, transform_indices = @transform_5, window_bounds = array<i64: 2, 64>}, {pipeline_mode = #tpu.pipeline_mode<synchronous>, transform_indices = @transform_6, window_bounds = array<i64: 1, 64>}, {transform_indices = @transform_7, window_bounds = array<i64: 8, 8, 256>}]} {
    %cst = arith.constant 0.000000e+00 : f32
    %0 = vector.broadcast %cst : f32 to vector<8x2x384xf32>
    %c0 = arith.constant 0 : index
    %c0_0 = arith.constant 0 : index
    %c0_1 = arith.constant 0 : index
    %1 = vector.load %arg9[%c0, %c0_0, %c0_1] : memref<8x12x384xf32, #tpu.memory_space<vmem>>, vector<8x2x384xf32>
    tpu.vector_store %arg9[%c0, %c0_0, %c0_1], %0 {strides = array<i32>} : memref<8x12x384xf32, #tpu.memory_space<vmem>>, vector<8x2x384xf32>,
    %c0_2 = arith.constant 0 : index
    %c10 = arith.constant 10 : index
    %c0_3 = arith.constant 0 : index
    %2 = vector.load %arg9[%c0_2, %c10, %c0_3] : memref<8x12x384xf32, #tpu.memory_space<vmem>>, vector<8x2x384xf32>
    tpu.vector_store %arg9[%c0_2, %c10, %c0_3], %0 {strides = array<i32>} : memref<8x12x384xf32, #tpu.memory_space<vmem>>, vector<8x2x384xf32>,
    %cst_4 = arith.constant 0.000000e+00 : f32
    %3 = vector.broadcast %cst_4 : f32 to vector<8x8x64xf32>
    %c0_5 = arith.constant 0 : index
    %c2 = arith.constant 2 : index
    %c0_6 = arith.constant 0 : index
    %4 = vector.load %arg9[%c0_5, %c2, %c0_6] : memref<8x12x384xf32, #tpu.memory_space<vmem>>, vector<8x8x64xf32>
    tpu.vector_store %arg9[%c0_5, %c2, %c0_6], %3 {strides = array<i32>} : memref<8x12x384xf32, #tpu.memory_space<vmem>>, vector<8x8x64xf32>,
    %c0_7 = arith.constant 0 : index
    %c2_8 = arith.constant 2 : index
    %c320 = arith.constant 320 : index
    %5 = vector.load %arg9[%c0_7, %c2_8, %c320] : memref<8x12x384xf32, #tpu.memory_space<vmem>>, vector<8x8x64xf32>
    tpu.vector_store %arg9[%c0_7, %c2_8, %c320], %3 {strides = array<i32>} : memref<8x12x384xf32, #tpu.memory_space<vmem>>, vector<8x8x64xf32>,
    %c0_9 = arith.constant 0 : index
    %c0_10 = arith.constant 0 : index
    %c0_11 = arith.constant 0 : index
    %6 = vector.load %arg1[%c0_9, %c0_10, %c0_11] : memref<8x8x256xf32, #tpu.memory_space<vmem>>, vector<8x8x256xf32>
    %c0_12 = arith.constant 0 : index
    %c2_13 = arith.constant 2 : index
    %c64 = arith.constant 64 : index
    %7 = vector.load %arg9[%c0_12, %c2_13, %c64] : memref<8x12x384xf32, #tpu.memory_space<vmem>>, vector<8x8x256xf32>
    tpu.vector_store %arg9[%c0_12, %c2_13, %c64], %6 {strides = array<i32>} : memref<8x12x384xf32, #tpu.memory_space<vmem>>, vector<8x8x256xf32>,
    %cst_14 = arith.constant 0.000000e+00 : f32
    %8 = vector.broadcast %cst_14 : f32 to vector<64x512xf32>
    %c0_15 = arith.constant 0 : index
    %c0_16 = arith.constant 0 : index
    %9 = vector.load %arg10[%c0_15, %c0_16] : memref<64x512xf32, #tpu.memory_space<vmem>>, vector<64x512xf32>
    tpu.vector_store %arg10[%c0_15, %c0_16], %8 {strides = array<i32>} : memref<64x512xf32, #tpu.memory_space<vmem>>, vector<64x512xf32>,
    %c0_17 = arith.constant 0 : index
    %c0_18 = arith.constant 0 : index
    %c0_19 = arith.constant 0 : index
    %10 = vector.load %arg9[%c0_17, %c0_18, %c0_19] : memref<8x12x384xf32, #tpu.memory_space<vmem>>, vector<8x8x384xf32>
    %11 = vector.shape_cast %10 : vector<8x8x384xf32> to vector<64x384xf32>
    %c0_20 = arith.constant 0 : index
    %c0_21 = arith.constant 0 : index
    %12 = vector.load %arg10[%c0_20, %c0_21] : memref<64x512xf32, #tpu.memory_space<vmem>>, vector<64x512xf32>
    %c0_22 = arith.constant 0 : index
    %c0_23 = arith.constant 0 : index
    %c0_24 = arith.constant 0 : index
    %13 = vector.load %arg2[%c0_22, %c0_23, %c0_24] : memref<5x384x512xf32, #tpu.memory_space<vmem>>, vector<1x384x512xf32>
    %14 = vector.shape_cast %13 : vector<1x384x512xf32> to vector<384x512xf32>
    %cst_25 = arith.constant dense<0.000000e+00> : vector<64x512xf32>
    %15 = tpu.matmul %11, %14, %cst_25 {dimension_numbers = #tpu.dot_dimension_numbers<[1], [0], [0], [1], [0, 0, 1, 1], [], []>} : vector<64x384xf32>, vector<384x512xf32>, vector<64x512xf32> -> vector<64x512xf32>
    %16 = arith.addf %12, %15 : vector<64x512xf32>
    %c0_26 = arith.constant 0 : index
    %c0_27 = arith.constant 0 : index
    %17 = vector.load %arg10[%c0_26, %c0_27] : memref<64x512xf32, #tpu.memory_space<vmem>>, vector<64x512xf32>
    tpu.vector_store %arg10[%c0_26, %c0_27], %16 {strides = array<i32>} : memref<64x512xf32, #tpu.memory_space<vmem>>, vector<64x512xf32>,
    %c0_28 = arith.constant 0 : index
    %c1 = arith.constant 1 : index
    %c0_29 = arith.constant 0 : index
    %18 = vector.load %arg9[%c0_28, %c1, %c0_29] : memref<8x12x384xf32, #tpu.memory_space<vmem>>, vector<8x8x384xf32>
    %19 = vector.shape_cast %18 : vector<8x8x384xf32> to vector<64x384xf32>
    %c0_30 = arith.constant 0 : index
    %c0_31 = arith.constant 0 : index
    %20 = vector.load %arg10[%c0_30, %c0_31] : memref<64x512xf32, #tpu.memory_space<vmem>>, vector<64x512xf32>
    %c1_32 = arith.constant 1 : index
    %c0_33 = arith.constant 0 : index
    %c0_34 = arith.constant 0 : index
    %21 = vector.load %arg2[%c1_32, %c0_33, %c0_34] : memref<5x384x512xf32, #tpu.memory_space<vmem>>, vector<1x384x512xf32>
    %22 = vector.shape_cast %21 : vector<1x384x512xf32> to vector<384x512xf32>
    %cst_35 = arith.constant dense<0.000000e+00> : vector<64x512xf32>
    %23 = tpu.matmul %19, %22, %cst_35 {dimension_numbers = #tpu.dot_dimension_numbers<[1], [0], [0], [1], [0, 0, 1, 1], [], []>} : vector<64x384xf32>, vector<384x512xf32>, vector<64x512xf32> -> vector<64x512xf32>
    %24 = arith.addf %20, %23 : vector<64x512xf32>
    %c0_36 = arith.constant 0 : index
    %c0_37 = arith.constant 0 : index
    %25 = vector.load %arg10[%c0_36, %c0_37] : memref<64x512xf32, #tpu.memory_space<vmem>>, vector<64x512xf32>
    tpu.vector_store %arg10[%c0_36, %c0_37], %24 {strides = array<i32>} : memref<64x512xf32, #tpu.memory_space<vmem>>, vector<64x512xf32>,
    %c0_38 = arith.constant 0 : index
    %c2_39 = arith.constant 2 : index
    %c0_40 = arith.constant 0 : index
    %26 = vector.load %arg9[%c0_38, %c2_39, %c0_40] : memref<8x12x384xf32, #tpu.memory_space<vmem>>, vector<8x8x384xf32>
    %27 = vector.shape_cast %26 : vector<8x8x384xf32> to vector<64x384xf32>
    %c0_41 = arith.constant 0 : index
    %c0_42 = arith.constant 0 : index
    %28 = vector.load %arg10[%c0_41, %c0_42] : memref<64x512xf32, #tpu.memory_space<vmem>>, vector<64x512xf32>
    %c2_43 = arith.constant 2 : index
    %c0_44 = arith.constant 0 : index
    %c0_45 = arith.constant 0 : index
    %29 = vector.load %arg2[%c2_43, %c0_44, %c0_45] : memref<5x384x512xf32, #tpu.memory_space<vmem>>, vector<1x384x512xf32>
    %30 = vector.shape_cast %29 : vector<1x384x512xf32> to vector<384x512xf32>
    %cst_46 = arith.constant dense<0.000000e+00> : vector<64x512xf32>
    %31 = tpu.matmul %27, %30, %cst_46 {dimension_numbers = #tpu.dot_dimension_numbers<[1], [0], [0], [1], [0, 0, 1, 1], [], []>} : vector<64x384xf32>, vector<384x512xf32>, vector<64x512xf32> -> vector<64x512xf32>
    %32 = arith.addf %28, %31 : vector<64x512xf32>
    %c0_47 = arith.constant 0 : index
    %c0_48 = arith.constant 0 : index
    %33 = vector.load %arg10[%c0_47, %c0_48] : memref<64x512xf32, #tpu.memory_space<vmem>>, vector<64x512xf32>
    tpu.vector_store %arg10[%c0_47, %c0_48], %32 {strides = array<i32>} : memref<64x512xf32, #tpu.memory_space<vmem>>, vector<64x512xf32>,
    %c0_49 = arith.constant 0 : index
    %c3 = arith.constant 3 : index
    %c0_50 = arith.constant 0 : index
    %34 = vector.load %arg9[%c0_49, %c3, %c0_50] : memref<8x12x384xf32, #tpu.memory_space<vmem>>, vector<8x8x384xf32>
    %35 = vector.shape_cast %34 : vector<8x8x384xf32> to vector<64x384xf32>
    %c0_51 = arith.constant 0 : index
    %c0_52 = arith.constant 0 : index
    %36 = vector.load %arg10[%c0_51, %c0_52] : memref<64x512xf32, #tpu.memory_space<vmem>>, vector<64x512xf32>
    %c3_53 = arith.constant 3 : index
    %c0_54 = arith.constant 0 : index
    %c0_55 = arith.constant 0 : index
    %37 = vector.load %arg2[%c3_53, %c0_54, %c0_55] : memref<5x384x512xf32, #tpu.memory_space<vmem>>, vector<1x384x512xf32>
    %38 = vector.shape_cast %37 : vector<1x384x512xf32> to vector<384x512xf32>
    %cst_56 = arith.constant dense<0.000000e+00> : vector<64x512xf32>
    %39 = tpu.matmul %35, %38, %cst_56 {dimension_numbers = #tpu.dot_dimension_numbers<[1], [0], [0], [1], [0, 0, 1, 1], [], []>} : vector<64x384xf32>, vector<384x512xf32>, vector<64x512xf32> -> vector<64x512xf32>
    %40 = arith.addf %36, %39 : vector<64x512xf32>
    %c0_57 = arith.constant 0 : index
    %c0_58 = arith.constant 0 : index
    %41 = vector.load %arg10[%c0_57, %c0_58] : memref<64x512xf32, #tpu.memory_space<vmem>>, vector<64x512xf32>
    tpu.vector_store %arg10[%c0_57, %c0_58], %40 {strides = array<i32>} : memref<64x512xf32, #tpu.memory_space<vmem>>, vector<64x512xf32>,
    %c0_59 = arith.constant 0 : index
    %c4 = arith.constant 4 : index
    %c0_60 = arith.constant 0 : index
    %42 = vector.load %arg9[%c0_59, %c4, %c0_60] : memref<8x12x384xf32, #tpu.memory_space<vmem>>, vector<8x8x384xf32>
    %43 = vector.shape_cast %42 : vector<8x8x384xf32> to vector<64x384xf32>
    %c0_61 = arith.constant 0 : index
    %c0_62 = arith.constant 0 : index
    %44 = vector.load %arg10[%c0_61, %c0_62] : memref<64x512xf32, #tpu.memory_space<vmem>>, vector<64x512xf32>
    %c4_63 = arith.constant 4 : index
    %c0_64 = arith.constant 0 : index
    %c0_65 = arith.constant 0 : index
    %45 = vector.load %arg2[%c4_63, %c0_64, %c0_65] : memref<5x384x512xf32, #tpu.memory_space<vmem>>, vector<1x384x512xf32>
    %46 = vector.shape_cast %45 : vector<1x384x512xf32> to vector<384x512xf32>
    %cst_66 = arith.constant dense<0.000000e+00> : vector<64x512xf32>
    %47 = tpu.matmul %43, %46, %cst_66 {dimension_numbers = #tpu.dot_dimension_numbers<[1], [0], [0], [1], [0, 0, 1, 1], [], []>} : vector<64x384xf32>, vector<384x512xf32>, vector<64x512xf32> -> vector<64x512xf32>
    %48 = arith.addf %44, %47 : vector<64x512xf32>
    %c0_67 = arith.constant 0 : index
    %c0_68 = arith.constant 0 : index
    %49 = vector.load %arg10[%c0_67, %c0_68] : memref<64x512xf32, #tpu.memory_space<vmem>>, vector<64x512xf32>
    tpu.vector_store %arg10[%c0_67, %c0_68], %48 {strides = array<i32>} : memref<64x512xf32, #tpu.memory_space<vmem>>, vector<64x512xf32>,
    %c0_69 = arith.constant 0 : index
    %c0_70 = arith.constant 0 : index
    %50 = vector.load %arg10[%c0_69, %c0_70] : memref<64x512xf32, #tpu.memory_space<vmem>>, vector<64x512xf32>
    %c0_71 = arith.constant 0 : index
    %c0_72 = arith.constant 0 : index
    %51 = vector.load %arg3[%c0_71, %c0_72] : memref<1x512xf32, #tpu.memory_space<vmem>>, vector<1x512xf32>
    %52 = vector.broadcast %51 : vector<1x512xf32> to vector<64x512xf32>
    %53 = arith.addf %50, %52 : vector<64x512xf32>
    %54 = vector.extract_strided_slice %53 {offsets = [0, 0], sizes = [64, 256], strides = [1, 1]} : vector<64x512xf32> to vector<64x256xf32>
    %55 = vector.shape_cast %54 : vector<64x256xf32> to vector<8x8x256xf32>
    %56 = vector.extract_strided_slice %53 {offsets = [0, 256], sizes = [64, 256], strides = [1, 1]} : vector<64x512xf32> to vector<64x256xf32>
    %57 = vector.shape_cast %56 : vector<64x256xf32> to vector<8x8x256xf32>
    %58 = arith.addf %55, %57 : vector<8x8x256xf32>
    %cst_73 = arith.constant dense<0.000000e+00> : vector<8x256xf32>
    %59 = vector.multi_reduction <add>, %58, %cst_73 [1] : vector<8x8x256xf32> to vector<8x256xf32>
    %60 = vector.extract_strided_slice %59 {offsets = [0, 0], sizes = [8, 32], strides = [1, 1]} : vector<8x256xf32> to vector<8x32xf32>
    %61 = vector.extract_strided_slice %59 {offsets = [0, 32], sizes = [8, 32], strides = [1, 1]} : vector<8x256xf32> to vector<8x32xf32>
    %62 = arith.addf %60, %61 : vector<8x32xf32>
    %63 = vector.extract_strided_slice %59 {offsets = [0, 64], sizes = [8, 32], strides = [1, 1]} : vector<8x256xf32> to vector<8x32xf32>
    %64 = arith.addf %62, %63 : vector<8x32xf32>
    %65 = vector.extract_strided_slice %59 {offsets = [0, 96], sizes = [8, 32], strides = [1, 1]} : vector<8x256xf32> to vector<8x32xf32>
    %66 = arith.addf %64, %65 : vector<8x32xf32>
    %67 = vector.extract_strided_slice %59 {offsets = [0, 128], sizes = [8, 32], strides = [1, 1]} : vector<8x256xf32> to vector<8x32xf32>
    %68 = arith.addf %66, %67 : vector<8x32xf32>
    %69 = vector.extract_strided_slice %59 {offsets = [0, 160], sizes = [8, 32], strides = [1, 1]} : vector<8x256xf32> to vector<8x32xf32>
    %70 = arith.addf %68, %69 : vector<8x32xf32>
    %71 = vector.extract_strided_slice %59 {offsets = [0, 192], sizes = [8, 32], strides = [1, 1]} : vector<8x256xf32> to vector<8x32xf32>
    %72 = arith.addf %70, %71 : vector<8x32xf32>
    %73 = vector.extract_strided_slice %59 {offsets = [0, 224], sizes = [8, 32], strides = [1, 1]} : vector<8x256xf32> to vector<8x32xf32>
    %74 = arith.addf %72, %73 : vector<8x32xf32>
    %cst_74 = arith.constant 1.562500e-02 : f32
    %75 = vector.broadcast %cst_74 : f32 to vector<8x32xf32>
    %76 = arith.mulf %74, %75 : vector<8x32xf32>
    %c0_75 = arith.constant 0 : index
    %c0_76 = arith.constant 0 : index
    %77 = vector.load %arg4[%c0_75, %c0_76] : memref<32x2xf32, #tpu.memory_space<vmem>>, vector<32x2xf32>
    %cst_77 = arith.constant dense<0.000000e+00> : vector<8x2xf32>
    %78 = tpu.matmul %76, %77, %cst_77 {dimension_numbers = #tpu.dot_dimension_numbers<[1], [0], [0], [1], [0, 0, 1, 1], [], []>} : vector<8x32xf32>, vector<32x2xf32>, vector<8x2xf32> -> vector<8x2xf32>
    %c0_78 = arith.constant 0 : index
    %c0_79 = arith.constant 0 : index
    %79 = vector.load %arg5[%c0_78, %c0_79] : memref<1x2xf32, #tpu.memory_space<vmem>>, vector<1x2xf32>
    %80 = vector.broadcast %79 : vector<1x2xf32> to vector<8x2xf32>
    %81 = arith.addf %78, %80 : vector<8x2xf32>
    %c0_80 = arith.constant 0 : index
    %c0_81 = arith.constant 0 : index
    %82 = vector.load %arg6[%c0_80, %c0_81] : memref<2x64xf32, #tpu.memory_space<vmem>>, vector<2x64xf32>
    %cst_82 = arith.constant dense<0.000000e+00> : vector<8x64xf32>
    %83 = tpu.matmul %81, %82, %cst_82 {dimension_numbers = #tpu.dot_dimension_numbers<[1], [0], [0], [1], [0, 0, 1, 1], [], []>} : vector<8x2xf32>, vector<2x64xf32>, vector<8x64xf32> -> vector<8x64xf32>
    %c0_83 = arith.constant 0 : index
    %c0_84 = arith.constant 0 : index
    %84 = vector.load %arg7[%c0_83, %c0_84] : memref<1x64xf32, #tpu.memory_space<vmem>>, vector<1x64xf32>
    %85 = vector.broadcast %84 : vector<1x64xf32> to vector<8x64xf32>
    %86 = arith.addf %83, %85 : vector<8x64xf32>
    %87 = vector.extract_strided_slice %86 {offsets = [0, 0], sizes = [8, 32], strides = [1, 1]} : vector<8x64xf32> to vector<8x32xf32>
    %88 = vector.extract_strided_slice %86 {offsets = [0, 32], sizes = [8, 32], strides = [1, 1]} : vector<8x64xf32> to vector<8x32xf32>
    %89 = arith.maximumf %87, %88 : vector<8x32xf32>
    %90 = arith.subf %87, %89 : vector<8x32xf32>
    %91 = math.exp %90 : vector<8x32xf32>
    %92 = arith.subf %88, %89 : vector<8x32xf32>
    %93 = math.exp %92 : vector<8x32xf32>
    %94 = arith.addf %91, %93 : vector<8x32xf32>
    %95 = tpu.reciprocal %94 : vector<8x32xf32> -> vector<8x32xf32>
    %96 = arith.mulf %91, %95 : vector<8x32xf32>
    %97 = arith.mulf %93, %95 : vector<8x32xf32>
    %98 = tpu.concatenate %96, %96, %96, %96, %96, %96, %96, %96 in 1 : vector<8x32xf32>, vector<8x32xf32>, vector<8x32xf32>, vector<8x32xf32>, vector<8x32xf32>, vector<8x32xf32>, vector<8x32xf32>, vector<8x32xf32> -> vector<8x256xf32>
    %99 = vector.shape_cast %98 : vector<8x256xf32> to vector<8x1x256xf32>
    %100 = tpu.concatenate %97, %97, %97, %97, %97, %97, %97, %97 in 1 : vector<8x32xf32>, vector<8x32xf32>, vector<8x32xf32>, vector<8x32xf32>, vector<8x32xf32>, vector<8x32xf32>, vector<8x32xf32>, vector<8x32xf32> -> vector<8x256xf32>
    %101 = vector.shape_cast %100 : vector<8x256xf32> to vector<8x1x256xf32>
    %102 = vector.broadcast %99 : vector<8x1x256xf32> to vector<8x8x256xf32>
    %103 = arith.mulf %55, %102 : vector<8x8x256xf32>
    %104 = vector.broadcast %101 : vector<8x1x256xf32> to vector<8x8x256xf32>
    %105 = arith.mulf %57, %104 : vector<8x8x256xf32>
    %106 = arith.addf %103, %105 : vector<8x8x256xf32>
    %c0_85 = arith.constant 0 : index
    %c0_86 = arith.constant 0 : index
    %c0_87 = arith.constant 0 : index
    %107 = vector.load %arg8[%c0_85, %c0_86, %c0_87] : memref<8x8x256xf32, #tpu.memory_space<vmem>>, vector<8x8x256xf32>
    tpu.vector_store %arg8[%c0_85, %c0_86, %c0_87], %106 {strides = array<i32>} : memref<8x8x256xf32, #tpu.memory_space<vmem>>, vector<8x8x256xf32>,
    return
  }
  func.func @transform_0(%arg0: i32) -> (i32, i32, i32) {
    %c0_i32 = arith.constant 0 : i32
    %c0_i32_0 = arith.constant 0 : i32
    %c0_i32_1 = arith.constant 0 : i32
    return %arg0, %c0_i32, %c0_i32_0 : i32, i32, i32
  }
  func.func @transform_1(%arg0: i32) -> (i32, i32, i32) {
    %c0_i32 = arith.constant 0 : i32
    %c0_i32_0 = arith.constant 0 : i32
    %c0_i32_1 = arith.constant 0 : i32
    %c0_i32_2 = arith.constant 0 : i32
    return %c0_i32, %c0_i32_0, %c0_i32_1 : i32, i32, i32
  }
  func.func @transform_2(%arg0: i32) -> (i32, i32) {
    %c0_i32 = arith.constant 0 : i32
    %c0_i32_0 = arith.constant 0 : i32
    %c0_i32_1 = arith.constant 0 : i32
    return %c0_i32, %c0_i32_0 : i32, i32
  }
  func.func @transform_3(%arg0: i32) -> (i32, i32) {
    %c0_i32 = arith.constant 0 : i32
    %c0_i32_0 = arith.constant 0 : i32
    %c0_i32_1 = arith.constant 0 : i32
    return %c0_i32, %c0_i32_0 : i32, i32
  }
  func.func @transform_4(%arg0: i32) -> (i32, i32) {
    %c0_i32 = arith.constant 0 : i32
    %c0_i32_0 = arith.constant 0 : i32
    %c0_i32_1 = arith.constant 0 : i32
    return %c0_i32, %c0_i32_0 : i32, i32
  }
  func.func @transform_5(%arg0: i32) -> (i32, i32) {
    %c0_i32 = arith.constant 0 : i32
    %c0_i32_0 = arith.constant 0 : i32
    %c0_i32_1 = arith.constant 0 : i32
    return %c0_i32, %c0_i32_0 : i32, i32
  }
  func.func @transform_6(%arg0: i32) -> (i32, i32) {
    %c0_i32 = arith.constant 0 : i32
    %c0_i32_0 = arith.constant 0 : i32
    %c0_i32_1 = arith.constant 0 : i32
    return %c0_i32, %c0_i32_0 : i32, i32
  }
  func.func @transform_7(%arg0: i32) -> (i32, i32, i32) {
    %c0_i32 = arith.constant 0 : i32
    %c0_i32_0 = arith.constant 0 : i32
    %c0_i32_1 = arith.constant 0 : i32
    return %arg0, %c0_i32, %c0_i32_0 : i32, i32, i32
  }
}

</mosaic_0001>

<llo_original>
// kernel: tpu_custom_call.1
$region0: #{tpu_custom_call.1}
  #allocation0 [shape = 'u32[]', space=smem, size = 0x4, offset = 0x4, fixed_abs, tag = 'smem constant byte address 0x4 - core index']
  #allocation1 [shape = 'u32[144,128]{1,0:T(1,128)}', space=vmem, size = 0x12000, scoped, tag = 'internal scratch']
  #allocation2 [shape = 'f32[8,12,384]{2,1,0:T(8,128)}', space=vmem, size = 0x30000, scoped, tag = 'scratch operand']
  #allocation3 [shape = 'f32[64,512]{1,0:T(8,128)}', space=vmem, size = 0x20000, scoped, tag = 'scratch operand']
  %s0 = inlined_call_operand.hbm [shape: f32[8,8,256], index: 0, kind: input, shape index: {}]
  %s1 = inlined_call_operand.hbm [shape: f32[5,384,512], index: 1, kind: input, shape index: {}]
  %s2 = inlined_call_operand.hbm [shape: f32[1,512], index: 2, kind: input, shape index: {}]
  %s3 = inlined_call_operand.vmem [shape: f32[32,2], index: 3, kind: input, shape index: {}]
  %s4 = inlined_call_operand.hbm [shape: f32[1,2], index: 4, kind: input, shape index: {}]
  %s5 = inlined_call_operand.hbm [shape: f32[2,64], index: 5, kind: input, shape index: {}]
  %s6 = inlined_call_operand.hbm [shape: f32[1,64], index: 6, kind: input, shape index: {}]
  %s7 = inlined_call_operand.hbm [shape: f32[8,8,256], index: 7, kind: output, shape index: {}]
  %s8 = sld [smem:[#allocation0]]
  $region62: #{tpu_custom_call.1} parent=0
    _
  %s10 = ssub.s32 1, %s8
  %s11 = scalar_select 0, %s10, %s8
  $region1: #{tpu_custom_call.1} parent=0
    #allocation4 [shape = 'u8[65536]{0}', space=vmem, size = 0x10000, scoped, tag = 'input window, operand 0, single buffered']
    #allocation5 [shape = 's32[1]{0}', space=sflag, size = 0x4, scoped, tag = 'scoped memory for tpu_custom_call.1']
    #allocation6 [shape = 's32[1]{0}', space=sflag, size = 0x4, scoped, tag = 'scoped memory for tpu_custom_call.1']
    #allocation7 [shape = 'u8[3932160]{0}', space=vmem, size = 0x3c0000, scoped, tag = 'input window, operand 1, single buffered']
    #allocation8 [shape = 's32[1]{0}', space=sflag, size = 0x4, scoped, tag = 'scoped memory for tpu_custom_call.1']
    #allocation9 [shape = 'u8[2048]{0}', space=vmem, size = 0x800, scoped, tag = 'input window, operand 2, single buffered']
    #allocation10 [shape = 'u8[512]{0}', space=vmem, size = 0x400, scoped, tag = 'input window, operand 4, single buffered']
    #allocation11 [shape = 's32[1]{0}', space=sflag, size = 0x4, scoped, tag = 'scoped memory for tpu_custom_call.1']
    #allocation12 [shape = 'u8[1024]{0}', space=vmem, size = 0x400, scoped, tag = 'input window, operand 5, single buffered']
    #allocation13 [shape = 'u8[512]{0}', space=vmem, size = 0x400, scoped, tag = 'input window, operand 6, single buffered']
    #allocation14 [shape = 's32[1]{0}', space=sflag, size = 0x4, scoped, tag = 'scoped memory for tpu_custom_call.1']
    #allocation15 [shape = 'u8[65536]{0}', space=vmem, size = 0x10000, scoped, tag = 'output window, operand 0, single buffered']
    %12 = vsyncpa [#allocation5], 0
    %13 = vsyncpa [#allocation8], 0
    %14 = vsyncpa [#allocation11], 0
    %15 = vsyncpa [#allocation14], 0
    %16 = vsyncpa [#allocation6], 0
    // Predicated region
    $region2: #{tpu_custom_call.1} parent=1 // pred_check
      _
    $region3: #{tpu_custom_call.1} parent=1 // pred_check_branch
      %18 = sbr.rel (0) target = $region5
    $region4: #{tpu_custom_call.1} parent=1 // pred_region
      %s20 = ssub.s32 2048, 2048
      %21 = vsyncadd [#allocation5], %s20
      %s22 = sshll.u32 [#allocation4], 4
      %s23 = int_to_ptr.vmem [resolvable:$true] %s22
      %28 = dma.hbm_to_vmem [thread:$0]  %s0, 2048, %s23, [#allocation5], 256, 256, 16
    $region5: #{tpu_custom_call.1} parent=1 // pred_fallthru
      _
    // Predicated region
    $region6: #{tpu_custom_call.1} parent=1 // pred_check
      _
    $region7: #{tpu_custom_call.1} parent=1 // pred_check_branch
      %30 = sbr.rel (0) target = $region9
    $region8: #{tpu_custom_call.1} parent=1 // pred_region
      %s32 = ssub.s32 122880, 122880
      %33 = vsyncadd [#allocation8], %s32
      %s34 = sshll.u32 [#allocation7], 4
      %s35 = int_to_ptr.vmem [resolvable:$true] %s34
      %40 = dma.hbm_to_vmem [thread:$0]  %s1, 122880, %s35, [#allocation8], 512, 512, 32
    $region9: #{tpu_custom_call.1} parent=1 // pred_fallthru
      _
    // Predicated region
    $region10: #{tpu_custom_call.1} parent=1 // pred_check
      _
    $region11: #{tpu_custom_call.1} parent=1 // pred_check_branch
      %42 = sbr.rel (0) target = $region13
    $region12: #{tpu_custom_call.1} parent=1 // pred_region
      %s44 = ssub.s32 64, 64
      %45 = vsyncadd [#allocation8], %s44
      %s47 = sshll.u32 [#allocation9], 4
      %s48 = int_to_ptr.vmem [resolvable:$true] %s47
      %50 = dma.hbm_to_vmem [thread:$0]  %s2, 64, %s48, [#allocation8]
    $region13: #{tpu_custom_call.1} parent=1 // pred_fallthru
      _
    // Predicated region
    $region14: #{tpu_custom_call.1} parent=1 // pred_check
      _
    $region15: #{tpu_custom_call.1} parent=1 // pred_check_branch
      %52 = sbr.rel (0) target = $region17
    $region16: #{tpu_custom_call.1} parent=1 // pred_region
      _
    $region17: #{tpu_custom_call.1} parent=1 // pred_fallthru
      _
    // Predicated region
    $region18: #{tpu_custom_call.1} parent=1 // pred_check
      _
    $region19: #{tpu_custom_call.1} parent=1 // pred_check_branch
      %54 = sbr.rel (0) target = $region21
    $region20: #{tpu_custom_call.1} parent=1 // pred_region
      %s56 = ssub.s32 16, 16
      %57 = vsyncadd [#allocation11], %s56
      %s59 = sshll.u32 [#allocation10], 4
      %s60 = int_to_ptr.vmem [resolvable:$true] %s59
      %62 = dma.hbm_to_vmem [thread:$0]  %s4, 16, %s60, [#allocation11]
    $region21: #{tpu_custom_call.1} parent=1 // pred_fallthru
      _
    // Predicated region
    $region22: #{tpu_custom_call.1} parent=1 // pred_check
      _
    $region23: #{tpu_custom_call.1} parent=1 // pred_check_branch
      %64 = sbr.rel (0) target = $region25
    $region24: #{tpu_custom_call.1} parent=1 // pred_region
      %s66 = ssub.s32 32, 32
      %67 = vsyncadd [#allocation11], %s66
      %s69 = sshll.u32 [#allocation12], 4
      %s70 = int_to_ptr.vmem [resolvable:$true] %s69
      %72 = dma.hbm_to_vmem [thread:$0]  %s5, 32, %s70, [#allocation11]
    $region25: #{tpu_custom_call.1} parent=1 // pred_fallthru
      _
    // Predicated region
    $region26: #{tpu_custom_call.1} parent=1 // pred_check
      _
    $region27: #{tpu_custom_call.1} parent=1 // pred_check_branch
      %74 = sbr.rel (0) target = $region29
    $region28: #{tpu_custom_call.1} parent=1 // pred_region
      %s76 = ssub.s32 16, 16
      %77 = vsyncadd [#allocation14], %s76
      %s79 = sshll.u32 [#allocation13], 4
      %s80 = int_to_ptr.vmem [resolvable:$true] %s79
      %82 = dma.hbm_to_vmem [thread:$0]  %s6, 16, %s80, [#allocation14]
    $region29: #{tpu_custom_call.1} parent=1 // pred_fallthru
      _
    // Predicated region
    $region30: #{tpu_custom_call.1} parent=1 // pred_check
      _
    $region31: #{tpu_custom_call.1} parent=1 // pred_check_branch
      %84 = sbr.rel (0) target = $region33
    $region32: #{tpu_custom_call.1} parent=1 // pred_region
      %85 = dma.done [#allocation5], 2048
    $region33: #{tpu_custom_call.1} parent=1 // pred_fallthru
      _
    // Predicated region
    $region34: #{tpu_custom_call.1} parent=1 // pred_check
      _
    $region35: #{tpu_custom_call.1} parent=1 // pred_check_branch
      %87 = sbr.rel (0) target = $region37
    $region36: #{tpu_custom_call.1} parent=1 // pred_region
      %88 = dma.done [#allocation8], 122880
    $region37: #{tpu_custom_call.1} parent=1 // pred_fallthru
      _
    // Predicated region
    $region38: #{tpu_custom_call.1} parent=1 // pred_check
      _
    $region39: #{tpu_custom_call.1} parent=1 // pred_check_branch
      %90 = sbr.rel (0) target = $region41
    $region40: #{tpu_custom_call.1} parent=1 // pred_region
      %91 = dma.done [#allocation8], 64
    $region41: #{tpu_custom_call.1} parent=1 // pred_fallthru
      _
    // Predicated region
    $region42: #{tpu_custom_call.1} parent=1 // pred_check
      _
    $region43: #{tpu_custom_call.1} parent=1 // pred_check_branch
      %93 = sbr.rel (0) target = $region45
    $region44: #{tpu_custom_call.1} parent=1 // pred_region
      %94 = dma.done [#allocation11], 16
    $region45: #{tpu_custom_call.1} parent=1 // pred_fallthru
      _
    // Predicated region
    $region46: #{tpu_custom_call.1} parent=1 // pred_check
      _
    $region47: #{tpu_custom_call.1} parent=1 // pred_check_branch
      %96 = sbr.rel (0) target = $region49
    $region48: #{tpu_custom_call.1} parent=1 // pred_region
      %97 = dma.done [#allocation11], 32
    $region49: #{tpu_custom_call.1} parent=1 // pred_fallthru
      _
    // Predicated region
    $region50: #{tpu_custom_call.1} parent=1 // pred_check
      _
    $region51: #{tpu_custom_call.1} parent=1 // pred_check_branch
      %99 = sbr.rel (0) target = $region53
    $region52: #{tpu_custom_call.1} parent=1 // pred_region
      %100 = dma.done [#allocation14], 16
    $region53: #{tpu_custom_call.1} parent=1 // pred_fallthru
      _
    %101 = vst [vmem:[#allocation2] sm:$0x3] 0.0
    %102 = vst [vmem:[#allocation2 + $0x8] sm:$0x3] 0.0
    %103 = vst [vmem:[#allocation2 + $0x10] sm:$0x3] 0.0
    %104 = vst [vmem:[#allocation2 + $0x30] sm:$0x3] 0.0
    %105 = vst [vmem:[#allocation2 + $0x38] sm:$0x3] 0.0
    %106 = vst [vmem:[#allocation2 + $0x40] sm:$0x3] 0.0
    %107 = vst [vmem:[#allocation2 + $0x60] sm:$0x3] 0.0
    %108 = vst [vmem:[#allocation2 + $0x68] sm:$0x3] 0.0
    %109 = vst [vmem:[#allocation2 + $0x70] sm:$0x3] 0.0
    %110 = vst [vmem:[#allocation2 + $0x90] sm:$0x3] 0.0
    %111 = vst [vmem:[#allocation2 + $0x98] sm:$0x3] 0.0
    %112 = vst [vmem:[#allocation2 + $0xa0] sm:$0x3] 0.0
    %113 = vst [vmem:[#allocation2 + $0xc0] sm:$0x3] 0.0
    %114 = vst [vmem:[#allocation2 + $0xc8] sm:$0x3] 0.0
    %115 = vst [vmem:[#allocation2 + $0xd0] sm:$0x3] 0.0
    %116 = vst [vmem:[#allocation2 + $0xf0] sm:$0x3] 0.0
    %117 = vst [vmem:[#allocation2 + $0xf8] sm:$0x3] 0.0
    %118 = vst [vmem:[#allocation2 + $0x100] sm:$0x3] 0.0
    %119 = vst [vmem:[#allocation2 + $0x120] sm:$0x3] 0.0
    %120 = vst [vmem:[#allocation2 + $0x128] sm:$0x3] 0.0
    %121 = vst [vmem:[#allocation2 + $0x130] sm:$0x3] 0.0
    %122 = vst [vmem:[#allocation2 + $0x150] sm:$0x3] 0.0
    %123 = vst [vmem:[#allocation2 + $0x158] sm:$0x3] 0.0
    %124 = vst [vmem:[#allocation2 + $0x160] sm:$0x3] 0.0
    %125 = vst [vmem:[#allocation2 + $0x18] sm:$0xc] 0.0
    %126 = vst [vmem:[#allocation2 + $0x20] sm:$0xc] 0.0
    %127 = vst [vmem:[#allocation2 + $0x28] sm:$0xc] 0.0
    %128 = vst [vmem:[#allocation2 + $0x48] sm:$0xc] 0.0
    %129 = vst [vmem:[#allocation2 + $0x50] sm:$0xc] 0.0
    %130 = vst [vmem:[#allocation2 + $0x58] sm:$0xc] 0.0
    %131 = vst [vmem:[#allocation2 + $0x78] sm:$0xc] 0.0
    %132 = vst [vmem:[#allocation2 + $0x80] sm:$0xc] 0.0
    %133 = vst [vmem:[#allocation2 + $0x88] sm:$0xc] 0.0
    %134 = vst [vmem:[#allocation2 + $0xa8] sm:$0xc] 0.0
    %135 = vst [vmem:[#allocation2 + $0xb0] sm:$0xc] 0.0
    %136 = vst [vmem:[#allocation2 + $0xb8] sm:$0xc] 0.0
    %137 = vst [vmem:[#allocation2 + $0xd8] sm:$0xc] 0.0
    %138 = vst [vmem:[#allocation2 + $0xe0] sm:$0xc] 0.0
    %139 = vst [vmem:[#allocation2 + $0xe8] sm:$0xc] 0.0
    %140 = vst [vmem:[#allocation2 + $0x108] sm:$0xc] 0.0
    %141 = vst [vmem:[#allocation2 + $0x110] sm:$0xc] 0.0
    %142 = vst [vmem:[#allocation2 + $0x118] sm:$0xc] 0.0
    %143 = vst [vmem:[#allocation2 + $0x138] sm:$0xc] 0.0
    %144 = vst [vmem:[#allocation2 + $0x140] sm:$0xc] 0.0
    %145 = vst [vmem:[#allocation2 + $0x148] sm:$0xc] 0.0
    %146 = vst [vmem:[#allocation2 + $0x168] sm:$0xc] 0.0
    %147 = vst [vmem:[#allocation2 + $0x170] sm:$0xc] 0.0
    %148 = vst [vmem:[#allocation2 + $0x178] sm:$0xc] 0.0
    %vm149 = vcmask 523266
    %150 = vst.msk [vmem:[#allocation2] sm:$0xfc] %vm149, 0.0
    %vm151 = vcmask 517120
    %152 = vst.msk [vmem:[#allocation2 + $0x18] sm:$0x3] %vm151, 0.0
    %153 = vst.msk [vmem:[#allocation2 + $0x30] sm:$0xfc] %vm149, 0.0
    %154 = vst.msk [vmem:[#allocation2 + $0x48] sm:$0x3] %vm151, 0.0
    %155 = vst.msk [vmem:[#allocation2 + $0x60] sm:$0xfc] %vm149, 0.0
    %156 = vst.msk [vmem:[#allocation2 + $0x78] sm:$0x3] %vm151, 0.0
    %157 = vst.msk [vmem:[#allocation2 + $0x90] sm:$0xfc] %vm149, 0.0
    %158 = vst.msk [vmem:[#allocation2 + $0xa8] sm:$0x3] %vm151, 0.0
    %159 = vst.msk [vmem:[#allocation2 + $0xc0] sm:$0xfc] %vm149, 0.0
    %160 = vst.msk [vmem:[#allocation2 + $0xd8] sm:$0x3] %vm151, 0.0
    %161 = vst.msk [vmem:[#allocation2 + $0xf0] sm:$0xfc] %vm149, 0.0
    %162 = vst.msk [vmem:[#allocation2 + $0x108] sm:$0x3] %vm151, 0.0
    %163 = vst.msk [vmem:[#allocation2 + $0x120] sm:$0xfc] %vm149, 0.0
    %164 = vst.msk [vmem:[#allocation2 + $0x138] sm:$0x3] %vm151, 0.0
    %165 = vst.msk [vmem:[#allocation2 + $0x150] sm:$0xfc] %vm149, 0.0
    %166 = vst.msk [vmem:[#allocation2 + $0x168] sm:$0x3] %vm151, 0.0
    %vm167 = vcmask 1048066
    %168 = vst.msk [vmem:[#allocation2 + $0x10] sm:$0xfc] %vm167, 0.0
    %vm169 = vcmask 1041920
    %170 = vst.msk [vmem:[#allocation2 + $0x28] sm:$0x3] %vm169, 0.0
    %171 = vst.msk [vmem:[#allocation2 + $0x40] sm:$0xfc] %vm167, 0.0
    %172 = vst.msk [vmem:[#allocation2 + $0x58] sm:$0x3] %vm169, 0.0
    %173 = vst.msk [vmem:[#allocation2 + $0x70] sm:$0xfc] %vm167, 0.0
    %174 = vst.msk [vmem:[#allocation2 + $0x88] sm:$0x3] %vm169, 0.0
    %175 = vst.msk [vmem:[#allocation2 + $0xa0] sm:$0xfc] %vm167, 0.0
    %176 = vst.msk [vmem:[#allocation2 + $0xb8] sm:$0x3] %vm169, 0.0
    %177 = vst.msk [vmem:[#allocation2 + $0xd0] sm:$0xfc] %vm167, 0.0
    %178 = vst.msk [vmem:[#allocation2 + $0xe8] sm:$0x3] %vm169, 0.0
    %179 = vst.msk [vmem:[#allocation2 + $0x100] sm:$0xfc] %vm167, 0.0
    %180 = vst.msk [vmem:[#allocation2 + $0x118] sm:$0x3] %vm169, 0.0
    %181 = vst.msk [vmem:[#allocation2 + $0x130] sm:$0xfc] %vm167, 0.0
    %182 = vst.msk [vmem:[#allocation2 + $0x148] sm:$0x3] %vm169, 0.0
    %183 = vst.msk [vmem:[#allocation2 + $0x160] sm:$0xfc] %vm167, 0.0
    %184 = vst.msk [vmem:[#allocation2 + $0x178] sm:$0x3] %vm169, 0.0
    %v185 = vld [vmem:[#allocation4] sm:$0xff]
    %v186 = vld [vmem:[#allocation4 + $0x8] sm:$0xff]
    %v187 = vld [vmem:[#allocation4 + $0x10] sm:$0xff]
    %v188 = vld [vmem:[#allocation4 + $0x18] sm:$0xff]
    %v189 = vld [vmem:[#allocation4 + $0x20] sm:$0xff]
    %v190 = vld [vmem:[#allocation4 + $0x28] sm:$0xff]
    %v191 = vld [vmem:[#allocation4 + $0x30] sm:$0xff]
    %v192 = vld [vmem:[#allocation4 + $0x38] sm:$0xff]
    %v193 = vld [vmem:[#allocation4 + $0x40] sm:$0xff]
    %v194 = vld [vmem:[#allocation4 + $0x48] sm:$0xff]
    %v195 = vld [vmem:[#allocation4 + $0x50] sm:$0xff]
    %v196 = vld [vmem:[#allocation4 + $0x58] sm:$0xff]
    %v197 = vld [vmem:[#allocation4 + $0x60] sm:$0xff]
    %v198 = vld [vmem:[#allocation4 + $0x68] sm:$0xff]
    %v199 = vld [vmem:[#allocation4 + $0x70] sm:$0xff]
    %v200 = vld [vmem:[#allocation4 + $0x78] sm:$0xff]
    %v217 = vrot.slane %v185, 6
    %v218 = vrot.slane %v186, 6
    %v219 = vrot.slane %v187, 6
    %v220 = vrot.slane %v188, 6
    %v221 = vrot.slane %v189, 6
    %v222 = vrot.slane %v190, 6
    %v223 = vrot.slane %v191, 6
    %v224 = vrot.slane %v192, 6
    %v225 = vrot.slane %v193, 6
    %v226 = vrot.slane %v194, 6
    %v227 = vrot.slane %v195, 6
    %v228 = vrot.slane %v196, 6
    %v229 = vrot.slane %v197, 6
    %v230 = vrot.slane %v198, 6
    %v231 = vrot.slane %v199, 6
    %v232 = vrot.slane %v200, 6
    %233 = vrot.lane.b32.xlu0 %v217, 64
    %v234 = vpop.permute.xlu0 %233
    %235 = vrot.lane.b32.xlu0 %v218, 64
    %v236 = vpop.permute.xlu0 %235
    %237 = vrot.lane.b32.xlu0 %v219, 64
    %v238 = vpop.permute.xlu0 %237
    %239 = vrot.lane.b32.xlu0 %v220, 64
    %v240 = vpop.permute.xlu0 %239
    %241 = vrot.lane.b32.xlu0 %v221, 64
    %v242 = vpop.permute.xlu0 %241
    %243 = vrot.lane.b32.xlu0 %v222, 64
    %v244 = vpop.permute.xlu0 %243
    %245 = vrot.lane.b32.xlu0 %v223, 64
    %v246 = vpop.permute.xlu0 %245
    %247 = vrot.lane.b32.xlu0 %v224, 64
    %v248 = vpop.permute.xlu0 %247
    %249 = vrot.lane.b32.xlu0 %v225, 64
    %v250 = vpop.permute.xlu0 %249
    %251 = vrot.lane.b32.xlu0 %v226, 64
    %v252 = vpop.permute.xlu0 %251
    %253 = vrot.lane.b32.xlu0 %v227, 64
    %v254 = vpop.permute.xlu0 %253
    %255 = vrot.lane.b32.xlu0 %v228, 64
    %v256 = vpop.permute.xlu0 %255
    %257 = vrot.lane.b32.xlu0 %v229, 64
    %v258 = vpop.permute.xlu0 %257
    %259 = vrot.lane.b32.xlu0 %v230, 64
    %v260 = vpop.permute.xlu0 %259
    %261 = vrot.lane.b32.xlu0 %v231, 64
    %v262 = vpop.permute.xlu0 %261
    %263 = vrot.lane.b32.xlu0 %v232, 64
    %v264 = vpop.permute.xlu0 %263
    %vm265 = vcmask 523264
    %v266 = vsel %vm265, %v234, %v236
    %v267 = vsel %vm265, %v238, %v240
    %v268 = vsel %vm265, %v242, %v244
    %v269 = vsel %vm265, %v246, %v248
    %v270 = vsel %vm265, %v250, %v252
    %v271 = vsel %vm265, %v254, %v256
    %v272 = vsel %vm265, %v258, %v260
    %v273 = vsel %vm265, %v262, %v264
    %298 = vst.msk [vmem:[#allocation2] sm:$0xfc] %vm167, %v234
    %299 = vst [vmem:[#allocation2 + $0x8] sm:$0xfc] %v266
    %300 = vst.msk [vmem:[#allocation2 + $0x10] sm:$0xfc] %vm149, %v236
    %301 = vst.msk [vmem:[#allocation2 + $0x18] sm:$0x3] %vm169, %v234
    %302 = vst [vmem:[#allocation2 + $0x20] sm:$0x3] %v266
    %303 = vst.msk [vmem:[#allocation2 + $0x28] sm:$0x3] %vm151, %v236
    %304 = vst.msk [vmem:[#allocation2 + $0x30] sm:$0xfc] %vm167, %v238
    %305 = vst [vmem:[#allocation2 + $0x38] sm:$0xfc] %v267
    %306 = vst.msk [vmem:[#allocation2 + $0x40] sm:$0xfc] %vm149, %v240
    %307 = vst.msk [vmem:[#allocation2 + $0x48] sm:$0x3] %vm169, %v238
    %308 = vst [vmem:[#allocation2 + $0x50] sm:$0x3] %v267
    %309 = vst.msk [vmem:[#allocation2 + $0x58] sm:$0x3] %vm151, %v240
    %310 = vst.msk [vmem:[#allocation2 + $0x60] sm:$0xfc] %vm167, %v242
    %311 = vst [vmem:[#allocation2 + $0x68] sm:$0xfc] %v268
    %312 = vst.msk [vmem:[#allocation2 + $0x70] sm:$0xfc] %vm149, %v244
    %313 = vst.msk [vmem:[#allocation2 + $0x78] sm:$0x3] %vm169, %v242
    %314 = vst [vmem:[#allocation2 + $0x80] sm:$0x3] %v268
    %315 = vst.msk [vmem:[#allocation2 + $0x88] sm:$0x3] %vm151, %v244
    %316 = vst.msk [vmem:[#allocation2 + $0x90] sm:$0xfc] %vm167, %v246
    %317 = vst [vmem:[#allocation2 + $0x98] sm:$0xfc] %v269
    %318 = vst.msk [vmem:[#allocation2 + $0xa0] sm:$0xfc] %vm149, %v248
    %319 = vst.msk [vmem:[#allocation2 + $0xa8] sm:$0x3] %vm169, %v246
    %320 = vst [vmem:[#allocation2 + $0xb0] sm:$0x3] %v269
    %321 = vst.msk [vmem:[#allocation2 + $0xb8] sm:$0x3] %vm151, %v248
    %322 = vst.msk [vmem:[#allocation2 + $0xc0] sm:$0xfc] %vm167, %v250
    %323 = vst [vmem:[#allocation2 + $0xc8] sm:$0xfc] %v270
    %324 = vst.msk [vmem:[#allocation2 + $0xd0] sm:$0xfc] %vm149, %v252
    %325 = vst.msk [vmem:[#allocation2 + $0xd8] sm:$0x3] %vm169, %v250
    %326 = vst [vmem:[#allocation2 + $0xe0] sm:$0x3] %v270
    %327 = vst.msk [vmem:[#allocation2 + $0xe8] sm:$0x3] %vm151, %v252
    %328 = vst.msk [vmem:[#allocation2 + $0xf0] sm:$0xfc] %vm167, %v254
    %329 = vst [vmem:[#allocation2 + $0xf8] sm:$0xfc] %v271
    %330 = vst.msk [vmem:[#allocation2 + $0x100] sm:$0xfc] %vm149, %v256
    %331 = vst.msk [vmem:[#allocation2 + $0x108] sm:$0x3] %vm169, %v254
    %332 = vst [vmem:[#allocation2 + $0x110] sm:$0x3] %v271
    %333 = vst.msk [vmem:[#allocation2 + $0x118] sm:$0x3] %vm151, %v256
    %334 = vst.msk [vmem:[#allocation2 + $0x120] sm:$0xfc] %vm167, %v258
    %335 = vst [vmem:[#allocation2 + $0x128] sm:$0xfc] %v272
    %336 = vst.msk [vmem:[#allocation2 + $0x130] sm:$0xfc] %vm149, %v260
    %337 = vst.msk [vmem:[#allocation2 + $0x138] sm:$0x3] %vm169, %v258
    %338 = vst [vmem:[#allocation2 + $0x140] sm:$0x3] %v272
    %339 = vst.msk [vmem:[#allocation2 + $0x148] sm:$0x3] %vm151, %v260
    %340 = vst.msk [vmem:[#allocation2 + $0x150] sm:$0xfc] %vm167, %v262
    %341 = vst [vmem:[#allocation2 + $0x158] sm:$0xfc] %v273
    %342 = vst.msk [vmem:[#allocation2 + $0x160] sm:$0xfc] %vm149, %v264
    %343 = vst.msk [vmem:[#allocation2 + $0x168] sm:$0x3] %vm169, %v262
    %344 = vst [vmem:[#allocation2 + $0x170] sm:$0x3] %v273
    %345 = vst.msk [vmem:[#allocation2 + $0x178] sm:$0x3] %vm151, %v264
    %346 = vst [vmem:[#allocation3] sm:$0xff] 0.0
    %347 = vst [vmem:[#allocation3 + $0x8] sm:$0xff] 0.0
    %348 = vst [vmem:[#allocation3 + $0x10] sm:$0xff] 0.0
    %349 = vst [vmem:[#allocation3 + $0x18] sm:$0xff] 0.0
    %350 = vst [vmem:[#allocation3 + $0x20] sm:$0xff] 0.0
    %351 = vst [vmem:[#allocation3 + $0x28] sm:$0xff] 0.0
    %352 = vst [vmem:[#allocation3 + $0x30] sm:$0xff] 0.0
    %353 = vst [vmem:[#allocation3 + $0x38] sm:$0xff] 0.0
    %354 = vst [vmem:[#allocation3 + $0x40] sm:$0xff] 0.0
    %355 = vst [vmem:[#allocation3 + $0x48] sm:$0xff] 0.0
    %356 = vst [vmem:[#allocation3 + $0x50] sm:$0xff] 0.0
    %357 = vst [vmem:[#allocation3 + $0x58] sm:$0xff] 0.0
    %358 = vst [vmem:[#allocation3 + $0x60] sm:$0xff] 0.0
    %359 = vst [vmem:[#allocation3 + $0x68] sm:$0xff] 0.0
    %360 = vst [vmem:[#allocation3 + $0x70] sm:$0xff] 0.0
    %361 = vst [vmem:[#allocation3 + $0x78] sm:$0xff] 0.0
    %362 = vst [vmem:[#allocation3 + $0x80] sm:$0xff] 0.0
    %363 = vst [vmem:[#allocation3 + $0x88] sm:$0xff] 0.0
    %364 = vst [vmem:[#allocation3 + $0x90] sm:$0xff] 0.0
    %365 = vst [vmem:[#allocation3 + $0x98] sm:$0xff] 0.0
    %366 = vst [vmem:[#allocation3 + $0xa0] sm:$0xff] 0.0
    %367 = vst [vmem:[#allocation3 + $0xa8] sm:$0xff] 0.0
    %368 = vst [vmem:[#allocation3 + $0xb0] sm:$0xff] 0.0
    %369 = vst [vmem:[#allocation3 + $0xb8] sm:$0xff] 0.0
    %370 = vst [vmem:[#allocation3 + $0xc0] sm:$0xff] 0.0
    %371 = vst [vmem:[#allocation3 + $0xc8] sm:$0xff] 0.0
    %372 = vst [vmem:[#allocation3 + $0xd0] sm:$0xff] 0.0
    %373 = vst [vmem:[#allocation3 + $0xd8] sm:$0xff] 0.0
    %374 = vst [vmem:[#allocation3 + $0xe0] sm:$0xff] 0.0
    %375 = vst [vmem:[#allocation3 + $0xe8] sm:$0xff] 0.0
    %376 = vst [vmem:[#allocation3 + $0xf0] sm:$0xff] 0.0
    %377 = vst [vmem:[#allocation3 + $0xf8] sm:$0xff] 0.0
    %v378 = vld [vmem:[#allocation2] sm:$0xff]
    %v379 = vld [vmem:[#allocation2 + $0x8] sm:$0xff]
    %v380 = vld [vmem:[#allocation2 + $0x10] sm:$0xff]
    %v381 = vld [vmem:[#allocation2 + $0x30] sm:$0xff]
    %v382 = vld [vmem:[#allocation2 + $0x38] sm:$0xff]
    %v383 = vld [vmem:[#allocation2 + $0x40] sm:$0xff]
    %v384 = vld [vmem:[#allocation2 + $0x60] sm:$0xff]
    %v385 = vld [vmem:[#allocation2 + $0x68] sm:$0xff]
    %v386 = vld [vmem:[#allocation2 + $0x70] sm:$0xff]
    %v387 = vld [vmem:[#allocation2 + $0x90] sm:$0xff]
    %v388 = vld [vmem:[#allocation2 + $0x98] sm:$0xff]
    %v389 = vld [vmem:[#allocation2 + $0xa0] sm:$0xff]
    %v390 = vld [vmem:[#allocation2 + $0xc0] sm:$0xff]
    %v391 = vld [vmem:[#allocation2 + $0xc8] sm:$0xff]
    %v392 = vld [vmem:[#allocation2 + $0xd0] sm:$0xff]
    %v393 = vld [vmem:[#allocation2 + $0xf0] sm:$0xff]
    %v394 = vld [vmem:[#allocation2 + $0xf8] sm:$0xff]
    %v395 = vld [vmem:[#allocation2 + $0x100] sm:$0xff]
    %v396 = vld [vmem:[#allocation2 + $0x120] sm:$0xff]
    %v397 = vld [vmem:[#allocation2 + $0x128] sm:$0xff]
    %v398 = vld [vmem:[#allocation2 + $0x130] sm:$0xff]
    %v399 = vld [vmem:[#allocation2 + $0x150] sm:$0xff]
    %v400 = vld [vmem:[#allocation2 + $0x158] sm:$0xff]
    %v401 = vld [vmem:[#allocation2 + $0x160] sm:$0xff]
    %v402 = vld [vmem:[#allocation3] sm:$0xff]
    %v403 = vld [vmem:[#allocation3 + $0x8] sm:$0xff]
    %v404 = vld [vmem:[#allocation3 + $0x10] sm:$0xff]
    %v405 = vld [vmem:[#allocation3 + $0x18] sm:$0xff]
    %v406 = vld [vmem:[#allocation3 + $0x20] sm:$0xff]
    %v407 = vld [vmem:[#allocation3 + $0x28] sm:$0xff]
    %v408 = vld [vmem:[#allocation3 + $0x30] sm:$0xff]
    %v409 = vld [vmem:[#allocation3 + $0x38] sm:$0xff]
    %v410 = vld [vmem:[#allocation3 + $0x40] sm:$0xff]
    %v411 = vld [vmem:[#allocation3 + $0x48] sm:$0xff]
    %v412 = vld [vmem:[#allocation3 + $0x50] sm:$0xff]
    %v413 = vld [vmem:[#allocation3 + $0x58] sm:$0xff]
    %v414 = vld [vmem:[#allocation3 + $0x60] sm:$0xff]
    %v415 = vld [vmem:[#allocation3 + $0x68] sm:$0xff]
    %v416 = vld [vmem:[#allocation3 + $0x70] sm:$0xff]
    %v417 = vld [vmem:[#allocation3 + $0x78] sm:$0xff]
    %v418 = vld [vmem:[#allocation3 + $0x80] sm:$0xff]
    %v419 = vld [vmem:[#allocation3 + $0x88] sm:$0xff]
    %v420 = vld [vmem:[#allocation3 + $0x90] sm:$0xff]
    %v421 = vld [vmem:[#allocation3 + $0x98] sm:$0xff]
    %v422 = vld [vmem:[#allocation3 + $0xa0] sm:$0xff]
    %v423 = vld [vmem:[#allocation3 + $0xa8] sm:$0xff]
    %v424 = vld [vmem:[#allocation3 + $0xb0] sm:$0xff]
    %v425 = vld [vmem:[#allocation3 + $0xb8] sm:$0xff]
    %v426 = vld [vmem:[#allocation3 + $0xc0] sm:$0xff]
    %v427 = vld [vmem:[#allocation3 + $0xc8] sm:$0xff]
    %v428 = vld [vmem:[#allocation3 + $0xd0] sm:$0xff]
    %v429 = vld [vmem:[#allocation3 + $0xd8] sm:$0xff]
    %v430 = vld [vmem:[#allocation3 + $0xe0] sm:$0xff]
    %v431 = vld [vmem:[#allocation3 + $0xe8] sm:$0xff]
    %v432 = vld [vmem:[#allocation3 + $0xf0] sm:$0xff]
    %v433 = vld [vmem:[#allocation3 + $0xf8] sm:$0xff]
    %v434 = vld [vmem:[#allocation7] sm:$0xff]
    %v435 = vld [vmem:[#allocation7 + $0x8] sm:$0xff]
    %v436 = vld [vmem:[#allocation7 + $0x10] sm:$0xff]
    %v437 = vld [vmem:[#allocation7 + $0x18] sm:$0xff]
    %v438 = vld [vmem:[#allocation7 + $0x20] sm:$0xff]
    %v439 = vld [vmem:[#allocation7 + $0x28] sm:$0xff]
    %v440 = vld [vmem:[#allocation7 + $0x30] sm:$0xff]
    %v441 = vld [vmem:[#allocation7 + $0x38] sm:$0xff]
    %v442 = vld [vmem:[#allocation7 + $0x40] sm:$0xff]
    %v443 = vld [vmem:[#allocation7 + $0x48] sm:$0xff]
    %v444 = vld [vmem:[#allocation7 + $0x50] sm:$0xff]
    %v445 = vld [vmem:[#allocation7 + $0x58] sm:$0xff]
    %v446 = vld [vmem:[#allocation7 + $0x60] sm:$0xff]
    %v447 = vld [vmem:[#allocation7 + $0x68] sm:$0xff]
    %v448 = vld [vmem:[#allocation7 + $0x70] sm:$0xff]
    %v449 = vld [vmem:[#allocation7 + $0x78] sm:$0xff]
    %v450 = vld [vmem:[#allocation7 + $0x80] sm:$0xff]
    %v451 = vld [vmem:[#allocation7 + $0x88] sm:$0xff]
    %v452 = vld [vmem:[#allocation7 + $0x90] sm:$0xff]
    %v453 = vld [vmem:[#allocation7 + $0x98] sm:$0xff]
    %v454 = vld [vmem:[#allocation7 + $0xa0] sm:$0xff]
    %v455 = vld [vmem:[#allocation7 + $0xa8] sm:$0xff]
    %v456 = vld [vmem:[#allocation7 + $0xb0] sm:$0xff]
    %v457 = vld [vmem:[#allocation7 + $0xb8] sm:$0xff]
    %v458 = vld [vmem:[#allocation7 + $0xc0] sm:$0xff]
    %v459 = vld [vmem:[#allocation7 + $0xc8] sm:$0xff]
    %v460 = vld [vmem:[#allocation7 + $0xd0] sm:$0xff]
    %v461 = vld [vmem:[#allocation7 + $0xd8] sm:$0xff]
    %v462 = vld [vmem:[#allocation7 + $0xe0] sm:$0xff]
    %v463 = vld [vmem:[#allocation7 + $0xe8] sm:$0xff]
    %v464 = vld [vmem:[#allocation7 + $0xf0] sm:$0xff]
    %v465 = vld [vmem:[#allocation7 + $0xf8] sm:$0xff]
    %v466 = vld [vmem:[#allocation7 + $0x100] sm:$0xff]
    %v467 = vld [vmem:[#allocation7 + $0x108] sm:$0xff]
    %v468 = vld [vmem:[#allocation7 + $0x110] sm:$0xff]
    %v469 = vld [vmem:[#allocation7 + $0x118] sm:$0xff]
    %v470 = vld [vmem:[#allocation7 + $0x120] sm:$0xff]
    %v471 = vld [vmem:[#allocation7 + $0x128] sm:$0xff]
    %v472 = vld [vmem:[#allocation7 + $0x130] sm:$0xff]
    %v473 = vld [vmem:[#allocation7 + $0x138] sm:$0xff]
    %v474 = vld [vmem:[#allocation7 + $0x140] sm:$0xff]
    %v475 = vld [vmem:[#allocation7 + $0x148] sm:$0xff]
    %v476 = vld [vmem:[#allocation7 + $0x150] sm:$0xff]
    %v477 = vld [vmem:[#allocation7 + $0x158] sm:$0xff]
    %v478 = vld [vmem:[#allocation7 + $0x160] sm:$0xff]
    %v479 = vld [vmem:[#allocation7 + $0x168] sm:$0xff]
    %v480 = vld [vmem:[#allocation7 + $0x170] sm:$0xff]
    %v481 = vld [vmem:[#allocation7 + $0x178] sm:$0xff]
    %v482 = vld [vmem:[#allocation7 + $0x180] sm:$0xff]
    %v483 = vld [vmem:[#allocation7 + $0x188] sm:$0xff]
    %v484 = vld [vmem:[#allocation7 + $0x190] sm:$0xff]
    %v485 = vld [vmem:[#allocation7 + $0x198] sm:$0xff]
    %v486 = vld [vmem:[#allocation7 + $0x1a0] sm:$0xff]
    %v487 = vld [vmem:[#allocation7 + $0x1a8] sm:$0xff]
    %v488 = vld [vmem:[#allocation7 + $0x1b0] sm:$0xff]
    %v489 = vld [vmem:[#allocation7 + $0x1b8] sm:$0xff]
    %v490 = vld [vmem:[#allocation7 + $0x1c0] sm:$0xff]
    %v491 = vld [vmem:[#allocation7 + $0x1c8] sm:$0xff]
    %v492 = vld [vmem:[#allocation7 + $0x1d0] sm:$0xff]
    %v493 = vld [vmem:[#allocation7 + $0x1d8] sm:$0xff]
    %v494 = vld [vmem:[#allocation7 + $0x1e0] sm:$0xff]
    %v495 = vld [vmem:[#allocation7 + $0x1e8] sm:$0xff]
    %v496 = vld [vmem:[#allocation7 + $0x1f0] sm:$0xff]
    %v497 = vld [vmem:[#allocation7 + $0x1f8] sm:$0xff]
    %v498 = vld [vmem:[#allocation7 + $0x200] sm:$0xff]
    %v499 = vld [vmem:[#allocation7 + $0x208] sm:$0xff]
    %v500 = vld [vmem:[#allocation7 + $0x210] sm:$0xff]
    %v501 = vld [vmem:[#allocation7 + $0x218] sm:$0xff]
    %v502 = vld [vmem:[#allocation7 + $0x220] sm:$0xff]
    %v503 = vld [vmem:[#allocation7 + $0x228] sm:$0xff]
    %v504 = vld [vmem:[#allocation7 + $0x230] sm:$0xff]
    %v505 = vld [vmem:[#allocation7 + $0x238] sm:$0xff]
    %v506 = vld [vmem:[#allocation7 + $0x240] sm:$0xff]
    %v507 = vld [vmem:[#allocation7 + $0x248] sm:$0xff]
    %v508 = vld [vmem:[#allocation7 + $0x250] sm:$0xff]
    %v509 = vld [vmem:[#allocation7 + $0x258] sm:$0xff]
    %v510 = vld [vmem:[#allocation7 + $0x260] sm:$0xff]
    %v511 = vld [vmem:[#allocation7 + $0x268] sm:$0xff]
    %v512 = vld [vmem:[#allocation7 + $0x270] sm:$0xff]
    %v513 = vld [vmem:[#allocation7 + $0x278] sm:$0xff]
    %v514 = vld [vmem:[#allocation7 + $0x280] sm:$0xff]
    %v515 = vld [vmem:[#allocation7 + $0x288] sm:$0xff]
    %v516 = vld [vmem:[#allocation7 + $0x290] sm:$0xff]
    %v517 = vld [vmem:[#allocation7 + $0x298] sm:$0xff]
    %v518 = vld [vmem:[#allocation7 + $0x2a0] sm:$0xff]
    %v519 = vld [vmem:[#allocation7 + $0x2a8] sm:$0xff]
    %v520 = vld [vmem:[#allocation7 + $0x2b0] sm:$0xff]
    %v521 = vld [vmem:[#allocation7 + $0x2b8] sm:$0xff]
    %v522 = vld [vmem:[#allocation7 + $0x2c0] sm:$0xff]
    %v523 = vld [vmem:[#allocation7 + $0x2c8] sm:$0xff]
    %v524 = vld [vmem:[#allocation7 + $0x2d0] sm:$0xff]
    %v525 = vld [vmem:[#allocation7 + $0x2d8] sm:$0xff]
    %v526 = vld [vmem:[#allocation7 + $0x2e0] sm:$0xff]
    %v527 = vld [vmem:[#allocation7 + $0x2e8] sm:$0xff]
    %v528 = vld [vmem:[#allocation7 + $0x2f0] sm:$0xff]
    %v529 = vld [vmem:[#allocation7 + $0x2f8] sm:$0xff]
    %v530 = vld [vmem:[#allocation7 + $0x300] sm:$0xff]
    %v531 = vld [vmem:[#allocation7 + $0x308] sm:$0xff]
    %v532 = vld [vmem:[#allocation7 + $0x310] sm:$0xff]
    %v533 = vld [vmem:[#allocation7 + $0x318] sm:$0xff]
    %v534 = vld [vmem:[#allocation7 + $0x320] sm:$0xff]
    %v535 = vld [vmem:[#allocation7 + $0x328] sm:$0xff]
    %v536 = vld [vmem:[#allocation7 + $0x330] sm:$0xff]
    %v537 = vld [vmem:[#allocation7 + $0x338] sm:$0xff]
    %v538 = vld [vmem:[#allocation7 + $0x340] sm:$0xff]
    %v539 = vld [vmem:[#allocation7 + $0x348] sm:$0xff]
    %v540 = vld [vmem:[#allocation7 + $0x350] sm:$0xff]
    %v541 = vld [vmem:[#allocation7 + $0x358] sm:$0xff]
    %v542 = vld [vmem:[#allocation7 + $0x360] sm:$0xff]
    %v543 = vld [vmem:[#allocation7 + $0x368] sm:$0xff]
    %v544 = vld [vmem:[#allocation7 + $0x370] sm:$0xff]
    %v545 = vld [vmem:[#allocation7 + $0x378] sm:$0xff]
    %v546 = vld [vmem:[#allocation7 + $0x380] sm:$0xff]
    %v547 = vld [vmem:[#allocation7 + $0x388] sm:$0xff]
    %v548 = vld [vmem:[#allocation7 + $0x390] sm:$0xff]
    %v549 = vld [vmem:[#allocation7 + $0x398] sm:$0xff]
    %v550 = vld [vmem:[#allocation7 + $0x3a0] sm:$0xff]
    %v551 = vld [vmem:[#allocation7 + $0x3a8] sm:$0xff]
    %v552 = vld [vmem:[#allocation7 + $0x3b0] sm:$0xff]
    %v553 = vld [vmem:[#allocation7 + $0x3b8] sm:$0xff]
    %v554 = vld [vmem:[#allocation7 + $0x3c0] sm:$0xff]
    %v555 = vld [vmem:[#allocation7 + $0x3c8] sm:$0xff]
    %v556 = vld [vmem:[#allocation7 + $0x3d0] sm:$0xff]
    %v557 = vld [vmem:[#allocation7 + $0x3d8] sm:$0xff]
    %v558 = vld [vmem:[#allocation7 + $0x3e0] sm:$0xff]
    %v559 = vld [vmem:[#allocation7 + $0x3e8] sm:$0xff]
    %v560 = vld [vmem:[#allocation7 + $0x3f0] sm:$0xff]
    %v561 = vld [vmem:[#allocation7 + $0x3f8] sm:$0xff]
    %v562 = vld [vmem:[#allocation7 + $0x400] sm:$0xff]
    %v563 = vld [vmem:[#allocation7 + $0x408] sm:$0xff]
    %v564 = vld [vmem:[#allocation7 + $0x410] sm:$0xff]
    %v565 = vld [vmem:[#allocation7 + $0x418] sm:$0xff]
    %v566 = vld [vmem:[#allocation7 + $0x420] sm:$0xff]
    %v567 = vld [vmem:[#allocation7 + $0x428] sm:$0xff]
    %v568 = vld [vmem:[#allocation7 + $0x430] sm:$0xff]
    %v569 = vld [vmem:[#allocation7 + $0x438] sm:$0xff]
    %v570 = vld [vmem:[#allocation7 + $0x440] sm:$0xff]
    %v571 = vld [vmem:[#allocation7 + $0x448] sm:$0xff]
    %v572 = vld [vmem:[#allocation7 + $0x450] sm:$0xff]
    %v573 = vld [vmem:[#allocation7 + $0x458] sm:$0xff]
    %v574 = vld [vmem:[#allocation7 + $0x460] sm:$0xff]
    %v575 = vld [vmem:[#allocation7 + $0x468] sm:$0xff]
    %v576 = vld [vmem:[#allocation7 + $0x470] sm:$0xff]
    %v577 = vld [vmem:[#allocation7 + $0x478] sm:$0xff]
    %v578 = vld [vmem:[#allocation7 + $0x480] sm:$0xff]
    %v579 = vld [vmem:[#allocation7 + $0x488] sm:$0xff]
    %v580 = vld [vmem:[#allocation7 + $0x490] sm:$0xff]
    %v581 = vld [vmem:[#allocation7 + $0x498] sm:$0xff]
    %v582 = vld [vmem:[#allocation7 + $0x4a0] sm:$0xff]
    %v583 = vld [vmem:[#allocation7 + $0x4a8] sm:$0xff]
    %v584 = vld [vmem:[#allocation7 + $0x4b0] sm:$0xff]
    %v585 = vld [vmem:[#allocation7 + $0x4b8] sm:$0xff]
    %v586 = vld [vmem:[#allocation7 + $0x4c0] sm:$0xff]
    %v587 = vld [vmem:[#allocation7 + $0x4c8] sm:$0xff]
    %v588 = vld [vmem:[#allocation7 + $0x4d0] sm:$0xff]
    %v589 = vld [vmem:[#allocation7 + $0x4d8] sm:$0xff]
    %v590 = vld [vmem:[#allocation7 + $0x4e0] sm:$0xff]
    %v591 = vld [vmem:[#allocation7 + $0x4e8] sm:$0xff]
    %v592 = vld [vmem:[#allocation7 + $0x4f0] sm:$0xff]
    %v593 = vld [vmem:[#allocation7 + $0x4f8] sm:$0xff]
    %v594 = vld [vmem:[#allocation7 + $0x500] sm:$0xff]
    %v595 = vld [vmem:[#allocation7 + $0x508] sm:$0xff]
    %v596 = vld [vmem:[#allocation7 + $0x510] sm:$0xff]
    %v597 = vld [vmem:[#allocation7 + $0x518] sm:$0xff]
    %v598 = vld [vmem:[#allocation7 + $0x520] sm:$0xff]
    %v599 = vld [vmem:[#allocation7 + $0x528] sm:$0xff]
    %v600 = vld [vmem:[#allocation7 + $0x530] sm:$0xff]
    %v601 = vld [vmem:[#allocation7 + $0x538] sm:$0xff]
    %v602 = vld [vmem:[#allocation7 + $0x540] sm:$0xff]
    %v603 = vld [vmem:[#allocation7 + $0x548] sm:$0xff]
    %v604 = vld [vmem:[#allocation7 + $0x550] sm:$0xff]
    %v605 = vld [vmem:[#allocation7 + $0x558] sm:$0xff]
    %v606 = vld [vmem:[#allocation7 + $0x560] sm:$0xff]
    %v607 = vld [vmem:[#allocation7 + $0x568] sm:$0xff]
    %v608 = vld [vmem:[#allocation7 + $0x570] sm:$0xff]
    %v609 = vld [vmem:[#allocation7 + $0x578] sm:$0xff]
    %v610 = vld [vmem:[#allocation7 + $0x580] sm:$0xff]
    %v611 = vld [vmem:[#allocation7 + $0x588] sm:$0xff]
    %v612 = vld [vmem:[#allocation7 + $0x590] sm:$0xff]
    %v613 = vld [vmem:[#allocation7 + $0x598] sm:$0xff]
    %v614 = vld [vmem:[#allocation7 + $0x5a0] sm:$0xff]
    %v615 = vld [vmem:[#allocation7 + $0x5a8] sm:$0xff]
    %v616 = vld [vmem:[#allocation7 + $0x5b0] sm:$0xff]
    %v617 = vld [vmem:[#allocation7 + $0x5b8] sm:$0xff]
    %v618 = vld [vmem:[#allocation7 + $0x5c0] sm:$0xff]
    %v619 = vld [vmem:[#allocation7 + $0x5c8] sm:$0xff]
    %v620 = vld [vmem:[#allocation7 + $0x5d0] sm:$0xff]
    %v621 = vld [vmem:[#allocation7 + $0x5d8] sm:$0xff]
    %v622 = vld [vmem:[#allocation7 + $0x5e0] sm:$0xff]
    %v623 = vld [vmem:[#allocation7 + $0x5e8] sm:$0xff]
    %v624 = vld [vmem:[#allocation7 + $0x5f0] sm:$0xff]
    %v625 = vld [vmem:[#allocation7 + $0x5f8] sm:$0xff]
    %626 = vmatprep.subr.mxu0 %v495
    %627 = vmatpush1.msra.mxu0 %v494
    %628 = vmatprep.subr.mxu0 %v491
    %629 = vmatpush1.msra.mxu0 %v490
    %630 = vmatprep.subr.mxu0 %v487
    %631 = vmatpush1.msra.mxu0 %v486
    %632 = vmatprep.subr.mxu0 %v483
    %633 = vmatpush1.msra.mxu0 %v482
    %634 = vmatprep.subr.mxu0 %v479
    %635 = vmatpush1.msra.mxu0 %v478
    %636 = vmatprep.subr.mxu0 %v475
    %637 = vmatpush1.msra.mxu0 %v474
    %638 = vmatprep.subr.mxu0 %v471
    %639 = vmatpush1.msra.mxu0 %v470
    %640 = vmatprep.subr.mxu0 %v467
    %641 = vmatpush1.msra.mxu0 %v466
    %642 = vmatprep.subr.mxu0 %v463
    %643 = vmatpush1.msra.mxu0 %v462
    %644 = vmatprep.subr.mxu0 %v459
    %645 = vmatpush1.msra.mxu0 %v458
    %646 = vmatprep.subr.mxu0 %v455
    %647 = vmatpush1.msra.mxu0 %v454
    %648 = vmatprep.subr.mxu0 %v451
    %649 = vmatpush1.msra.mxu0 %v450
    %650 = vmatprep.subr.mxu0 %v447
    %651 = vmatpush1.msra.mxu0 %v446
    %652 = vmatprep.subr.mxu0 %v443
    %653 = vmatpush1.msra.mxu0 %v442
    %654 = vmatprep.subr.mxu0 %v439
    %655 = vmatpush1.msra.mxu0 %v438
    %656 = vmatprep.subr.mxu0 %v435
    %657 = vmatpush1.msra.mxu0 %v434
    %658 = vmatprep.subr.mxu0 %v559
    %659 = vmatpush2.msra.mxu0 %v558
    %660 = vmatprep.subr.mxu0 %v555
    %661 = vmatpush2.msra.mxu0 %v554
    %662 = vmatprep.subr.mxu0 %v551
    %663 = vmatpush2.msra.mxu0 %v550
    %664 = vmatprep.subr.mxu0 %v547
    %665 = vmatpush2.msra.mxu0 %v546
    %666 = vmatprep.subr.mxu0 %v543
    %667 = vmatpush2.msra.mxu0 %v542
    %668 = vmatprep.subr.mxu0 %v539
    %669 = vmatpush2.msra.mxu0 %v538
    %670 = vmatprep.subr.mxu0 %v535
    %671 = vmatpush2.msra.mxu0 %v534
    %672 = vmatprep.subr.mxu0 %v531
    %673 = vmatpush2.msra.mxu0 %v530
    %674 = vmatprep.subr.mxu0 %v527
    %675 = vmatpush2.msra.mxu0 %v526
    %676 = vmatprep.subr.mxu0 %v523
    %677 = vmatpush2.msra.mxu0 %v522
    %678 = vmatprep.subr.mxu0 %v519
    %679 = vmatpush2.msra.mxu0 %v518
    %680 = vmatprep.subr.mxu0 %v515
    %681 = vmatpush2.msra.mxu0 %v514
    %682 = vmatprep.subr.mxu0 %v511
    %683 = vmatpush2.msra.mxu0 %v510
    %684 = vmatprep.subr.mxu0 %v507
    %685 = vmatpush2.msra.mxu0 %v506
    %686 = vmatprep.subr.mxu0 %v503
    %687 = vmatpush2.msra.mxu0 %v502
    %688 = vmatprep.subr.mxu0 %v499
    %689 = vmatpush2.msra.mxu0 %v498
    %690 = vmatprep.mubr.f32.mxu0 %v379
    %691 = vmatmul.mubr.f32.gmra.mxu0 %v378
    %v692 = vpop.f32.mrf.mxu0
    %v693 = vadd.f32 0.0, %v692
    %v694 = vpop.f32.mrf.mxu0
    %v695 = vadd.f32 0.0, %v694
    %696 = vmatprep.mubr.f32.mxu0 %v382
    %697 = vmatmul.mubr.f32.gmra.mxu0 %v381
    %v698 = vpop.f32.mrf.mxu0
    %v699 = vadd.f32 0.0, %v698
    %v700 = vpop.f32.mrf.mxu0
    %v701 = vadd.f32 0.0, %v700
    %702 = vmatprep.mubr.f32.mxu0 %v385
    %703 = vmatmul.mubr.f32.gmra.mxu0 %v384
    %v704 = vpop.f32.mrf.mxu0
    %v705 = vadd.f32 0.0, %v704
    %v706 = vpop.f32.mrf.mxu0
    %v707 = vadd.f32 0.0, %v706
    %708 = vmatprep.mubr.f32.mxu0 %v388
    %709 = vmatmul.mubr.f32.gmra.mxu0 %v387
    %v710 = vpop.f32.mrf.mxu0
    %v711 = vadd.f32 0.0, %v710
    %v712 = vpop.f32.mrf.mxu0
    %v713 = vadd.f32 0.0, %v712
    %714 = vmatprep.mubr.f32.mxu0 %v391
    %715 = vmatmul.mubr.f32.gmra.mxu0 %v390
    %v716 = vpop.f32.mrf.mxu0
    %v717 = vadd.f32 0.0, %v716
    %v718 = vpop.f32.mrf.mxu0
    %v719 = vadd.f32 0.0, %v718
    %720 = vmatprep.mubr.f32.mxu0 %v394
    %721 = vmatmul.mubr.f32.gmra.mxu0 %v393
    %v722 = vpop.f32.mrf.mxu0
    %v723 = vadd.f32 0.0, %v722
    %v724 = vpop.f32.mrf.mxu0
    %v725 = vadd.f32 0.0, %v724
    %726 = vmatprep.mubr.f32.mxu0 %v397
    %727 = vmatmul.mubr.f32.gmra.mxu0 %v396
    %v728 = vpop.f32.mrf.mxu0
    %v729 = vadd.f32 0.0, %v728
    %v730 = vpop.f32.mrf.mxu0
    %v731 = vadd.f32 0.0, %v730
    %732 = vmatprep.mubr.f32.mxu0 %v400
    %733 = vmatmul.mubr.f32.gmra.mxu0 %v399
    %v734 = vpop.f32.mrf.mxu0
    %v735 = vadd.f32 0.0, %v734
    %v736 = vpop.f32.mrf.mxu0
    %v737 = vadd.f32 0.0, %v736
    %738 = vdwg.mxu0
    %739 = vmatprep.subr.mxu0 %v623
    %740 = vmatpush1.msra.mxu0 %v622
    %741 = vmatprep.subr.mxu0 %v619
    %742 = vmatpush1.msra.mxu0 %v618
    %743 = vmatprep.subr.mxu0 %v615
    %744 = vmatpush1.msra.mxu0 %v614
    %745 = vmatprep.subr.mxu0 %v611
    %746 = vmatpush1.msra.mxu0 %v610
    %747 = vmatprep.subr.mxu0 %v607
    %748 = vmatpush1.msra.mxu0 %v606
    %749 = vmatprep.subr.mxu0 %v603
    %750 = vmatpush1.msra.mxu0 %v602
    %751 = vmatprep.subr.mxu0 %v599
    %752 = vmatpush1.msra.mxu0 %v598
    %753 = vmatprep.subr.mxu0 %v595
    %754 = vmatpush1.msra.mxu0 %v594
    %755 = vmatprep.subr.mxu0 %v591
    %756 = vmatpush1.msra.mxu0 %v590
    %757 = vmatprep.subr.mxu0 %v587
    %758 = vmatpush1.msra.mxu0 %v586
    %759 = vmatprep.subr.mxu0 %v583
    %760 = vmatpush1.msra.mxu0 %v582
    %761 = vmatprep.subr.mxu0 %v579
    %762 = vmatpush1.msra.mxu0 %v578
    %763 = vmatprep.subr.mxu0 %v575
    %764 = vmatpush1.msra.mxu0 %v574
    %765 = vmatprep.subr.mxu0 %v571
    %766 = vmatpush1.msra.mxu0 %v570
    %767 = vmatprep.subr.mxu0 %v567
    %768 = vmatpush1.msra.mxu0 %v566
    %769 = vmatprep.subr.mxu0 %v563
    %770 = vmatpush1.msra.mxu0 %v562
    %771 = vmatprep.subr.mxu0 0.0
    %772 = vmatpush2.msra.mxu0 0.0
    %773 = vmatprep.subr.mxu0 0.0
    %774 = vmatpush2.msra.mxu0 0.0
    %775 = vmatprep.subr.mxu0 0.0
    %776 = vmatpush2.msra.mxu0 0.0
    %777 = vmatprep.subr.mxu0 0.0
    %778 = vmatpush2.msra.mxu0 0.0
    %779 = vmatprep.subr.mxu0 0.0
    %780 = vmatpush2.msra.mxu0 0.0
    %781 = vmatprep.subr.mxu0 0.0
    %782 = vmatpush2.msra.mxu0 0.0
    %783 = vmatprep.subr.mxu0 0.0
    %784 = vmatpush2.msra.mxu0 0.0
    %785 = vmatprep.subr.mxu0 0.0
    %786 = vmatpush2.msra.mxu0 0.0
    %787 = vmatprep.subr.mxu0 0.0
    %788 = vmatpush2.msra.mxu0 0.0
    %789 = vmatprep.subr.mxu0 0.0
    %790 = vmatpush2.msra.mxu0 0.0
    %791 = vmatprep.subr.mxu0 0.0
    %792 = vmatpush2.msra.mxu0 0.0
    %793 = vmatprep.subr.mxu0 0.0
    %794 = vmatpush2.msra.mxu0 0.0
    %795 = vmatprep.subr.mxu0 0.0
    %796 = vmatpush2.msra.mxu0 0.0
    %797 = vmatprep.subr.mxu0 0.0
    %798 = vmatpush2.msra.mxu0 0.0
    %799 = vmatprep.subr.mxu0 0.0
    %800 = vmatpush2.msra.mxu0 0.0
    %801 = vmatprep.subr.mxu0 0.0
    %802 = vmatpush2.msra.mxu0 0.0
    %803 = vmatprep.mubr.f32.mxu0 0.0
    %804 = vmatmul.mubr.f32.gmra.mxu0 %v380
    %v805 = vpop.f32.mrf.mxu0
    %v806 = vadd.f32 %v693, %v805
    %v807 = vpop.f32.mrf.mxu0
    %v808 = vadd.f32 %v695, %v807
    %809 = vmatprep.mubr.f32.mxu0 0.0
    %810 = vmatmul.mubr.f32.gmra.mxu0 %v383
    %v811 = vpop.f32.mrf.mxu0
    %v812 = vadd.f32 %v699, %v811
    %v813 = vpop.f32.mrf.mxu0
    %v814 = vadd.f32 %v701, %v813
    %815 = vmatprep.mubr.f32.mxu0 0.0
    %816 = vmatmul.mubr.f32.gmra.mxu0 %v386
    %v817 = vpop.f32.mrf.mxu0
    %v818 = vadd.f32 %v705, %v817
    %v819 = vpop.f32.mrf.mxu0
    %v820 = vadd.f32 %v707, %v819
    %821 = vmatprep.mubr.f32.mxu0 0.0
    %822 = vmatmul.mubr.f32.gmra.mxu0 %v389
    %v823 = vpop.f32.mrf.mxu0
    %v824 = vadd.f32 %v711, %v823
    %v825 = vpop.f32.mrf.mxu0
    %v826 = vadd.f32 %v713, %v825
    %827 = vmatprep.mubr.f32.mxu0 0.0
    %828 = vmatmul.mubr.f32.gmra.mxu0 %v392
    %v829 = vpop.f32.mrf.mxu0
    %v830 = vadd.f32 %v717, %v829
    %v831 = vpop.f32.mrf.mxu0
    %v832 = vadd.f32 %v719, %v831
    %833 = vmatprep.mubr.f32.mxu0 0.0
    %834 = vmatmul.mubr.f32.gmra.mxu0 %v395
    %v835 = vpop.f32.mrf.mxu0
    %v836 = vadd.f32 %v723, %v835
    %v837 = vpop.f32.mrf.mxu0
    %v838 = vadd.f32 %v725, %v837
    %839 = vmatprep.mubr.f32.mxu0 0.0
    %840 = vmatmul.mubr.f32.gmra.mxu0 %v398
    %v841 = vpop.f32.mrf.mxu0
    %v842 = vadd.f32 %v729, %v841
    %v843 = vpop.f32.mrf.mxu0
    %v844 = vadd.f32 %v731, %v843
    %845 = vmatprep.mubr.f32.mxu0 0.0
    %846 = vmatmul.mubr.f32.gmra.mxu0 %v401
    %v847 = vpop.f32.mrf.mxu0
    %v848 = vadd.f32 %v735, %v847
    %v849 = vpop.f32.mrf.mxu0
    %v850 = vadd.f32 %v737, %v849
    %851 = vdwg.mxu0
    %852 = vmatprep.subr.mxu0 %v497
    %853 = vmatpush1.msra.mxu0 %v496
    %854 = vmatprep.subr.mxu0 %v493
    %855 = vmatpush1.msra.mxu0 %v492
    %856 = vmatprep.subr.mxu0 %v489
    %857 = vmatpush1.msra.mxu0 %v488
    %858 = vmatprep.subr.mxu0 %v485
    %859 = vmatpush1.msra.mxu0 %v484
    %860 = vmatprep.subr.mxu0 %v481
    %861 = vmatpush1.msra.mxu0 %v480
    %862 = vmatprep.subr.mxu0 %v477
    %863 = vmatpush1.msra.mxu0 %v476
    %864 = vmatprep.subr.mxu0 %v473
    %865 = vmatpush1.msra.mxu0 %v472
    %866 = vmatprep.subr.mxu0 %v469
    %867 = vmatpush1.msra.mxu0 %v468
    %868 = vmatprep.subr.mxu0 %v465
    %869 = vmatpush1.msra.mxu0 %v464
    %870 = vmatprep.subr.mxu0 %v461
    %871 = vmatpush1.msra.mxu0 %v460
    %872 = vmatprep.subr.mxu0 %v457
    %873 = vmatpush1.msra.mxu0 %v456
    %874 = vmatprep.subr.mxu0 %v453
    %875 = vmatpush1.msra.mxu0 %v452
    %876 = vmatprep.subr.mxu0 %v449
    %877 = vmatpush1.msra.mxu0 %v448
    %878 = vmatprep.subr.mxu0 %v445
    %879 = vmatpush1.msra.mxu0 %v444
    %880 = vmatprep.subr.mxu0 %v441
    %881 = vmatpush1.msra.mxu0 %v440
    %882 = vmatprep.subr.mxu0 %v437
    %883 = vmatpush1.msra.mxu0 %v436
    %884 = vmatprep.subr.mxu0 %v561
    %885 = vmatpush2.msra.mxu0 %v560
    %886 = vmatprep.subr.mxu0 %v557
    %887 = vmatpush2.msra.mxu0 %v556
    %888 = vmatprep.subr.mxu0 %v553
    %889 = vmatpush2.msra.mxu0 %v552
    %890 = vmatprep.subr.mxu0 %v549
    %891 = vmatpush2.msra.mxu0 %v548
    %892 = vmatprep.subr.mxu0 %v545
    %893 = vmatpush2.msra.mxu0 %v544
    %894 = vmatprep.subr.mxu0 %v541
    %895 = vmatpush2.msra.mxu0 %v540
    %896 = vmatprep.subr.mxu0 %v537
    %897 = vmatpush2.msra.mxu0 %v536
    %898 = vmatprep.subr.mxu0 %v533
    %899 = vmatpush2.msra.mxu0 %v532
    %900 = vmatprep.subr.mxu0 %v529
    %901 = vmatpush2.msra.mxu0 %v528
    %902 = vmatprep.subr.mxu0 %v525
    %903 = vmatpush2.msra.mxu0 %v524
    %904 = vmatprep.subr.mxu0 %v521
    %905 = vmatpush2.msra.mxu0 %v520
    %906 = vmatprep.subr.mxu0 %v517
    %907 = vmatpush2.msra.mxu0 %v516
    %908 = vmatprep.subr.mxu0 %v513
    %909 = vmatpush2.msra.mxu0 %v512
    %910 = vmatprep.subr.mxu0 %v509
    %911 = vmatpush2.msra.mxu0 %v508
    %912 = vmatprep.subr.mxu0 %v505
    %913 = vmatpush2.msra.mxu0 %v504
    %914 = vmatprep.subr.mxu0 %v501
    %915 = vmatpush2.msra.mxu0 %v500
    %916 = vmatprep.mubr.f32.mxu0 %v379
    %917 = vmatmul.mubr.f32.gmra.mxu0 %v378
    %v918 = vpop.f32.mrf.mxu0
    %v919 = vadd.f32 0.0, %v918
    %v920 = vpop.f32.mrf.mxu0
    %v921 = vadd.f32 0.0, %v920
    %922 = vmatprep.mubr.f32.mxu0 %v382
    %923 = vmatmul.mubr.f32.gmra.mxu0 %v381
    %v924 = vpop.f32.mrf.mxu0
    %v925 = vadd.f32 0.0, %v924
    %v926 = vpop.f32.mrf.mxu0
    %v927 = vadd.f32 0.0, %v926
    %928 = vmatprep.mubr.f32.mxu0 %v385
    %929 = vmatmul.mubr.f32.gmra.mxu0 %v384
    %v930 = vpop.f32.mrf.mxu0
    %v931 = vadd.f32 0.0, %v930
    %v932 = vpop.f32.mrf.mxu0
    %v933 = vadd.f32 0.0, %v932
    %934 = vmatprep.mubr.f32.mxu0 %v388
    %935 = vmatmul.mubr.f32.gmra.mxu0 %v387
    %v936 = vpop.f32.mrf.mxu0
    %v937 = vadd.f32 0.0, %v936
    %v938 = vpop.f32.mrf.mxu0
    %v939 = vadd.f32 0.0, %v938
    %940 = vmatprep.mubr.f32.mxu0 %v391
    %941 = vmatmul.mubr.f32.gmra.mxu0 %v390
    %v942 = vpop.f32.mrf.mxu0
    %v943 = vadd.f32 0.0, %v942
    %v944 = vpop.f32.mrf.mxu0
    %v945 = vadd.f32 0.0, %v944
    %946 = vmatprep.mubr.f32.mxu0 %v394
    %947 = vmatmul.mubr.f32.gmra.mxu0 %v393
    %v948 = vpop.f32.mrf.mxu0
    %v949 = vadd.f32 0.0, %v948
    %v950 = vpop.f32.mrf.mxu0
    %v951 = vadd.f32 0.0, %v950
    %952 = vmatprep.mubr.f32.mxu0 %v397
    %953 = vmatmul.mubr.f32.gmra.mxu0 %v396
    %v954 = vpop.f32.mrf.mxu0
    %v955 = vadd.f32 0.0, %v954
    %v956 = vpop.f32.mrf.mxu0
    %v957 = vadd.f32 0.0, %v956
    %958 = vmatprep.mubr.f32.mxu0 %v400
    %959 = vmatmul.mubr.f32.gmra.mxu0 %v399
    %v960 = vpop.f32.mrf.mxu0
    %v961 = vadd.f32 0.0, %v960
    %v962 = vpop.f32.mrf.mxu0
    %v963 = vadd.f32 0.0, %v962
    %964 = vdwg.mxu0
    %965 = vmatprep.subr.mxu0 %v625
    %966 = vmatpush1.msra.mxu0 %v624
    %967 = vmatprep.subr.mxu0 %v621
    %968 = vmatpush1.msra.mxu0 %v620
    %969 = vmatprep.subr.mxu0 %v617
    %970 = vmatpush1.msra.mxu0 %v616
    %971 = vmatprep.subr.mxu0 %v613
    %972 = vmatpush1.msra.mxu0 %v612
    %973 = vmatprep.subr.mxu0 %v609
    %974 = vmatpush1.msra.mxu0 %v608
    %975 = vmatprep.subr.mxu0 %v605
    %976 = vmatpush1.msra.mxu0 %v604
    %977 = vmatprep.subr.mxu0 %v601
    %978 = vmatpush1.msra.mxu0 %v600
    %979 = vmatprep.subr.mxu0 %v597
    %980 = vmatpush1.msra.mxu0 %v596
    %981 = vmatprep.subr.mxu0 %v593
    %982 = vmatpush1.msra.mxu0 %v592
    %983 = vmatprep.subr.mxu0 %v589
    %984 = vmatpush1.msra.mxu0 %v588
    %985 = vmatprep.subr.mxu0 %v585
    %986 = vmatpush1.msra.mxu0 %v584
    %987 = vmatprep.subr.mxu0 %v581
    %988 = vmatpush1.msra.mxu0 %v580
    %989 = vmatprep.subr.mxu0 %v577
    %990 = vmatpush1.msra.mxu0 %v576
    %991 = vmatprep.subr.mxu0 %v573
    %992 = vmatpush1.msra.mxu0 %v572
    %993 = vmatprep.subr.mxu0 %v569
    %994 = vmatpush1.msra.mxu0 %v568
    %995 = vmatprep.subr.mxu0 %v565
    %996 = vmatpush1.msra.mxu0 %v564
    %997 = vmatprep.subr.mxu0 0.0
    %998 = vmatpush2.msra.mxu0 0.0
    %999 = vmatprep.subr.mxu0 0.0
    %1000 = vmatpush2.msra.mxu0 0.0
    %1001 = vmatprep.subr.mxu0 0.0
    %1002 = vmatpush2.msra.mxu0 0.0
    %1003 = vmatprep.subr.mxu0 0.0
    %1004 = vmatpush2.msra.mxu0 0.0
    %1005 = vmatprep.subr.mxu0 0.0
    %1006 = vmatpush2.msra.mxu0 0.0
    %1007 = vmatprep.subr.mxu0 0.0
    %1008 = vmatpush2.msra.mxu0 0.0
    %1009 = vmatprep.subr.mxu0 0.0
    %1010 = vmatpush2.msra.mxu0 0.0
    %1011 = vmatprep.subr.mxu0 0.0
    %1012 = vmatpush2.msra.mxu0 0.0
    %1013 = vmatprep.subr.mxu0 0.0
    %1014 = vmatpush2.msra.mxu0 0.0
    %1015 = vmatprep.subr.mxu0 0.0
    %1016 = vmatpush2.msra.mxu0 0.0
    %1017 = vmatprep.subr.mxu0 0.0
    %1018 = vmatpush2.msra.mxu0 0.0
    %1019 = vmatprep.subr.mxu0 0.0
    %1020 = vmatpush2.msra.mxu0 0.0
    %1021 = vmatprep.subr.mxu0 0.0
    %1022 = vmatpush2.msra.mxu0 0.0
    %1023 = vmatprep.subr.mxu0 0.0
    %1024 = vmatpush2.msra.mxu0 0.0
    %1025 = vmatprep.subr.mxu0 0.0
    %1026 = vmatpush2.msra.mxu0 0.0
    %1027 = vmatprep.subr.mxu0 0.0
    %1028 = vmatpush2.msra.mxu0 0.0
    %1029 = vmatprep.mubr.f32.mxu0 0.0
    %1030 = vmatmul.mubr.f32.gmra.mxu0 %v380
    %v1031 = vpop.f32.mrf.mxu0
    %v1032 = vadd.f32 %v919, %v1031
    %v1033 = vpop.f32.mrf.mxu0
    %v1034 = vadd.f32 %v921, %v1033
    %1035 = vmatprep.mubr.f32.mxu0 0.0
    %1036 = vmatmul.mubr.f32.gmra.mxu0 %v383
    %v1037 = vpop.f32.mrf.mxu0
    %v1038 = vadd.f32 %v925, %v1037
    %v1039 = vpop.f32.mrf.mxu0
    %v1040 = vadd.f32 %v927, %v1039
    %1041 = vmatprep.mubr.f32.mxu0 0.0
    %1042 = vmatmul.mubr.f32.gmra.mxu0 %v386
    %v1043 = vpop.f32.mrf.mxu0
    %v1044 = vadd.f32 %v931, %v1043
    %v1045 = vpop.f32.mrf.mxu0
    %v1046 = vadd.f32 %v933, %v1045
    %1047 = vmatprep.mubr.f32.mxu0 0.0
    %1048 = vmatmul.mubr.f32.gmra.mxu0 %v389
    %v1049 = vpop.f32.mrf.mxu0
    %v1050 = vadd.f32 %v937, %v1049
    %v1051 = vpop.f32.mrf.mxu0
    %v1052 = vadd.f32 %v939, %v1051
    %1053 = vmatprep.mubr.f32.mxu0 0.0
    %1054 = vmatmul.mubr.f32.gmra.mxu0 %v392
    %v1055 = vpop.f32.mrf.mxu0
    %v1056 = vadd.f32 %v943, %v1055
    %v1057 = vpop.f32.mrf.mxu0
    %v1058 = vadd.f32 %v945, %v1057
    %1059 = vmatprep.mubr.f32.mxu0 0.0
    %1060 = vmatmul.mubr.f32.gmra.mxu0 %v395
    %v1061 = vpop.f32.mrf.mxu0
    %v1062 = vadd.f32 %v949, %v1061
    %v1063 = vpop.f32.mrf.mxu0
    %v1064 = vadd.f32 %v951, %v1063
    %1065 = vmatprep.mubr.f32.mxu0 0.0
    %1066 = vmatmul.mubr.f32.gmra.mxu0 %v398
    %v1067 = vpop.f32.mrf.mxu0
    %v1068 = vadd.f32 %v955, %v1067
    %v1069 = vpop.f32.mrf.mxu0
    %v1070 = vadd.f32 %v957, %v1069
    %1071 = vmatprep.mubr.f32.mxu0 0.0
    %1072 = vmatmul.mubr.f32.gmra.mxu0 %v401
    %v1073 = vpop.f32.mrf.mxu0
    %v1074 = vadd.f32 %v961, %v1073
    %v1075 = vpop.f32.mrf.mxu0
    %v1076 = vadd.f32 %v963, %v1075
    %1077 = vdwg.mxu0
    %v1078 = vadd.f32 %v402, %v806
    %v1079 = vadd.f32 %v403, %v808
    %v1080 = vadd.f32 %v404, %v1032
    %v1081 = vadd.f32 %v405, %v1034
    %v1082 = vadd.f32 %v406, %v812
    %v1083 = vadd.f32 %v407, %v814
    %v1084 = vadd.f32 %v408, %v1038
    %v1085 = vadd.f32 %v409, %v1040
    %v1086 = vadd.f32 %v410, %v818
    %v1087 = vadd.f32 %v411, %v820
    %v1088 = vadd.f32 %v412, %v1044
    %v1089 = vadd.f32 %v413, %v1046
    %v1090 = vadd.f32 %v414, %v824
    %v1091 = vadd.f32 %v415, %v826
    %v1092 = vadd.f32 %v416, %v1050
    %v1093 = vadd.f32 %v417, %v1052
    %v1094 = vadd.f32 %v418, %v830
    %v1095 = vadd.f32 %v419, %v832
    %v1096 = vadd.f32 %v420, %v1056
    %v1097 = vadd.f32 %v421, %v1058
    %v1098 = vadd.f32 %v422, %v836
    %v1099 = vadd.f32 %v423, %v838
    %v1100 = vadd.f32 %v424, %v1062
    %v1101 = vadd.f32 %v425, %v1064
    %v1102 = vadd.f32 %v426, %v842
    %v1103 = vadd.f32 %v427, %v844
    %v1104 = vadd.f32 %v428, %v1068
    %v1105 = vadd.f32 %v429, %v1070
    %v1106 = vadd.f32 %v430, %v848
    %v1107 = vadd.f32 %v431, %v850
    %v1108 = vadd.f32 %v432, %v1074
    %v1109 = vadd.f32 %v433, %v1076
    %1110 = vst [vmem:[#allocation3] sm:$0xff] %v1078
    %1111 = vst [vmem:[#allocation3 + $0x8] sm:$0xff] %v1079
    %1112 = vst [vmem:[#allocation3 + $0x10] sm:$0xff] %v1080
    %1113 = vst [vmem:[#allocation3 + $0x18] sm:$0xff] %v1081
    %1114 = vst [vmem:[#allocation3 + $0x20] sm:$0xff] %v1082
    %1115 = vst [vmem:[#allocation3 + $0x28] sm:$0xff] %v1083
    %1116 = vst [vmem:[#allocation3 + $0x30] sm:$0xff] %v1084
    %1117 = vst [vmem:[#allocation3 + $0x38] sm:$0xff] %v1085
    %1118 = vst [vmem:[#allocation3 + $0x40] sm:$0xff] %v1086
    %1119 = vst [vmem:[#allocation3 + $0x48] sm:$0xff] %v1087
    %1120 = vst [vmem:[#allocation3 + $0x50] sm:$0xff] %v1088
    %1121 = vst [vmem:[#allocation3 + $0x58] sm:$0xff] %v1089
    %1122 = vst [vmem:[#allocation3 + $0x60] sm:$0xff] %v1090
    %1123 = vst [vmem:[#allocation3 + $0x68] sm:$0xff] %v1091
    %1124 = vst [vmem:[#allocation3 + $0x70] sm:$0xff] %v1092
    %1125 = vst [vmem:[#allocation3 + $0x78] sm:$0xff] %v1093
    %1126 = vst [vmem:[#allocation3 + $0x80] sm:$0xff] %v1094
    %1127 = vst [vmem:[#allocation3 + $0x88] sm:$0xff] %v1095
    %1128 = vst [vmem:[#allocation3 + $0x90] sm:$0xff] %v1096
    %1129 = vst [vmem:[#allocation3 + $0x98] sm:$0xff] %v1097
    %1130 = vst [vmem:[#allocation3 + $0xa0] sm:$0xff] %v1098
    %1131 = vst [vmem:[#allocation3 + $0xa8] sm:$0xff] %v1099
    %1132 = vst [vmem:[#allocation3 + $0xb0] sm:$0xff] %v1100
    %1133 = vst [vmem:[#allocation3 + $0xb8] sm:$0xff] %v1101
    %1134 = vst [vmem:[#allocation3 + $0xc0] sm:$0xff] %v1102
    %1135 = vst [vmem:[#allocation3 + $0xc8] sm:$0xff] %v1103
    %1136 = vst [vmem:[#allocation3 + $0xd0] sm:$0xff] %v1104
    %1137 = vst [vmem:[#allocation3 + $0xd8] sm:$0xff] %v1105
    %1138 = vst [vmem:[#allocation3 + $0xe0] sm:$0xff] %v1106
    %1139 = vst [vmem:[#allocation3 + $0xe8] sm:$0xff] %v1107
    %1140 = vst [vmem:[#allocation3 + $0xf0] sm:$0xff] %v1108
    %1141 = vst [vmem:[#allocation3 + $0xf8] sm:$0xff] %v1109
    %v1142 = vld [vmem:[#allocation2] sm:$0xfe]
    %v1143 = vld [vmem:[#allocation2 + $0x8] sm:$0xfe]
    %v1144 = vld [vmem:[#allocation2 + $0x10] sm:$0xfe]
    %v1145 = vld [vmem:[#allocation2 + $0x18] sm:$0x1]
    %v1146 = vld [vmem:[#allocation2 + $0x20] sm:$0x1]
    %v1147 = vld [vmem:[#allocation2 + $0x28] sm:$0x1]
    %v1148 = vld [vmem:[#allocation2 + $0x30] sm:$0xfe]
    %v1149 = vld [vmem:[#allocation2 + $0x38] sm:$0xfe]
    %v1150 = vld [vmem:[#allocation2 + $0x40] sm:$0xfe]
    %v1151 = vld [vmem:[#allocation2 + $0x48] sm:$0x1]
    %v1152 = vld [vmem:[#allocation2 + $0x50] sm:$0x1]
    %v1153 = vld [vmem:[#allocation2 + $0x58] sm:$0x1]
    %v1154 = vld [vmem:[#allocation2 + $0x60] sm:$0xfe]
    %v1155 = vld [vmem:[#allocation2 + $0x68] sm:$0xfe]
    %v1156 = vld [vmem:[#allocation2 + $0x70] sm:$0xfe]
    %v1157 = vld [vmem:[#allocation2 + $0x78] sm:$0x1]
    %v1158 = vld [vmem:[#allocation2 + $0x80] sm:$0x1]
    %v1159 = vld [vmem:[#allocation2 + $0x88] sm:$0x1]
    %v1160 = vld [vmem:[#allocation2 + $0x90] sm:$0xfe]
    %v1161 = vld [vmem:[#allocation2 + $0x98] sm:$0xfe]
    %v1162 = vld [vmem:[#allocation2 + $0xa0] sm:$0xfe]
    %v1163 = vld [vmem:[#allocation2 + $0xa8] sm:$0x1]
    %v1164 = vld [vmem:[#allocation2 + $0xb0] sm:$0x1]
    %v1165 = vld [vmem:[#allocation2 + $0xb8] sm:$0x1]
    %v1166 = vld [vmem:[#allocation2 + $0xc0] sm:$0xfe]
    %v1167 = vld [vmem:[#allocation2 + $0xc8] sm:$0xfe]
    %v1168 = vld [vmem:[#allocation2 + $0xd0] sm:$0xfe]
    %v1169 = vld [vmem:[#allocation2 + $0xd8] sm:$0x1]
    %v1170 = vld [vmem:[#allocation2 + $0xe0] sm:$0x1]
    %v1171 = vld [vmem:[#allocation2 + $0xe8] sm:$0x1]
    %v1172 = vld [vmem:[#allocation2 + $0xf0] sm:$0xfe]
    %v1173 = vld [vmem:[#allocation2 + $0xf8] sm:$0xfe]
    %v1174 = vld [vmem:[#allocation2 + $0x100] sm:$0xfe]
    %v1175 = vld [vmem:[#allocation2 + $0x108] sm:$0x1]
    %v1176 = vld [vmem:[#allocation2 + $0x110] sm:$0x1]
    %v1177 = vld [vmem:[#allocation2 + $0x118] sm:$0x1]
    %v1178 = vld [vmem:[#allocation2 + $0x120] sm:$0xfe]
    %v1179 = vld [vmem:[#allocation2 + $0x128] sm:$0xfe]
    %v1180 = vld [vmem:[#allocation2 + $0x130] sm:$0xfe]
    %v1181 = vld [vmem:[#allocation2 + $0x138] sm:$0x1]
    %v1182 = vld [vmem:[#allocation2 + $0x140] sm:$0x1]
    %v1183 = vld [vmem:[#allocation2 + $0x148] sm:$0x1]
    %v1184 = vld [vmem:[#allocation2 + $0x150] sm:$0xfe]
    %v1185 = vld [vmem:[#allocation2 + $0x158] sm:$0xfe]
    %v1186 = vld [vmem:[#allocation2 + $0x160] sm:$0xfe]
    %v1187 = vld [vmem:[#allocation2 + $0x168] sm:$0x1]
    %v1188 = vld [vmem:[#allocation2 + $0x170] sm:$0x1]
    %v1189 = vld [vmem:[#allocation2 + $0x178] sm:$0x1]
    %vm1238 = vcmask 1046528
    %v1239 = vrot.slane %v1142, 1
    %v1240 = vrot.slane %v1145, 1
    %v1241 = vsel %vm1238, %v1239, %v1240
    %v1242 = vrot.slane %v1143, 1
    %v1243 = vrot.slane %v1146, 1
    %v1244 = vsel %vm1238, %v1242, %v1243
    %v1245 = vrot.slane %v1144, 1
    %v1246 = vrot.slane %v1147, 1
    %v1247 = vsel %vm1238, %v1245, %v1246
    %v1248 = vrot.slane %v1148, 1
    %v1249 = vrot.slane %v1151, 1
    %v1250 = vsel %vm1238, %v1248, %v1249
    %v1251 = vrot.slane %v1149, 1
    %v1252 = vrot.slane %v1152, 1
    %v1253 = vsel %vm1238, %v1251, %v1252
    %v1254 = vrot.slane %v1150, 1
    %v1255 = vrot.slane %v1153, 1
    %v1256 = vsel %vm1238, %v1254, %v1255
    %v1257 = vrot.slane %v1154, 1
    %v1258 = vrot.slane %v1157, 1
    %v1259 = vsel %vm1238, %v1257, %v1258
    %v1260 = vrot.slane %v1155, 1
    %v1261 = vrot.slane %v1158, 1
    %v1262 = vsel %vm1238, %v1260, %v1261
    %v1263 = vrot.slane %v1156, 1
    %v1264 = vrot.slane %v1159, 1
    %v1265 = vsel %vm1238, %v1263, %v1264
    %v1266 = vrot.slane %v1160, 1
    %v1267 = vrot.slane %v1163, 1
    %v1268 = vsel %vm1238, %v1266, %v1267
    %v1269 = vrot.slane %v1161, 1
    %v1270 = vrot.slane %v1164, 1
    %v1271 = vsel %vm1238, %v1269, %v1270
    %v1272 = vrot.slane %v1162, 1
    %v1273 = vrot.slane %v1165, 1
    %v1274 = vsel %vm1238, %v1272, %v1273
    %v1275 = vrot.slane %v1166, 1
    %v1276 = vrot.slane %v1169, 1
    %v1277 = vsel %vm1238, %v1275, %v1276
    %v1278 = vrot.slane %v1167, 1
    %v1279 = vrot.slane %v1170, 1
    %v1280 = vsel %vm1238, %v1278, %v1279
    %v1281 = vrot.slane %v1168, 1
    %v1282 = vrot.slane %v1171, 1
    %v1283 = vsel %vm1238, %v1281, %v1282
    %v1284 = vrot.slane %v1172, 1
    %v1285 = vrot.slane %v1175, 1
    %v1286 = vsel %vm1238, %v1284, %v1285
    %v1287 = vrot.slane %v1173, 1
    %v1288 = vrot.slane %v1176, 1
    %v1289 = vsel %vm1238, %v1287, %v1288
    %v1290 = vrot.slane %v1174, 1
    %v1291 = vrot.slane %v1177, 1
    %v1292 = vsel %vm1238, %v1290, %v1291
    %v1293 = vrot.slane %v1178, 1
    %v1294 = vrot.slane %v1181, 1
    %v1295 = vsel %vm1238, %v1293, %v1294
    %v1296 = vrot.slane %v1179, 1
    %v1297 = vrot.slane %v1182, 1
    %v1298 = vsel %vm1238, %v1296, %v1297
    %v1299 = vrot.slane %v1180, 1
    %v1300 = vrot.slane %v1183, 1
    %v1301 = vsel %vm1238, %v1299, %v1300
    %v1302 = vrot.slane %v1184, 1
    %v1303 = vrot.slane %v1187, 1
    %v1304 = vsel %vm1238, %v1302, %v1303
    %v1305 = vrot.slane %v1185, 1
    %v1306 = vrot.slane %v1188, 1
    %v1307 = vsel %vm1238, %v1305, %v1306
    %v1308 = vrot.slane %v1186, 1
    %v1309 = vrot.slane %v1189, 1
    %v1310 = vsel %vm1238, %v1308, %v1309
    %v1335 = vld [vmem:[#allocation3] sm:$0xff]
    %v1336 = vld [vmem:[#allocation3 + $0x8] sm:$0xff]
    %v1337 = vld [vmem:[#allocation3 + $0x10] sm:$0xff]
    %v1338 = vld [vmem:[#allocation3 + $0x18] sm:$0xff]
    %v1339 = vld [vmem:[#allocation3 + $0x20] sm:$0xff]
    %v1340 = vld [vmem:[#allocation3 + $0x28] sm:$0xff]
    %v1341 = vld [vmem:[#allocation3 + $0x30] sm:$0xff]
    %v1342 = vld [vmem:[#allocation3 + $0x38] sm:$0xff]
    %v1343 = vld [vmem:[#allocation3 + $0x40] sm:$0xff]
    %v1344 = vld [vmem:[#allocation3 + $0x48] sm:$0xff]
    %v1345 = vld [vmem:[#allocation3 + $0x50] sm:$0xff]
    %v1346 = vld [vmem:[#allocation3 + $0x58] sm:$0xff]
    %v1347 = vld [vmem:[#allocation3 + $0x60] sm:$0xff]
    %v1348 = vld [vmem:[#allocation3 + $0x68] sm:$0xff]
    %v1349 = vld [vmem:[#allocation3 + $0x70] sm:$0xff]
    %v1350 = vld [vmem:[#allocation3 + $0x78] sm:$0xff]
    %v1351 = vld [vmem:[#allocation3 + $0x80] sm:$0xff]
    %v1352 = vld [vmem:[#allocation3 + $0x88] sm:$0xff]
    %v1353 = vld [vmem:[#allocation3 + $0x90] sm:$0xff]
    %v1354 = vld [vmem:[#allocation3 + $0x98] sm:$0xff]
    %v1355 = vld [vmem:[#allocation3 + $0xa0] sm:$0xff]
    %v1356 = vld [vmem:[#allocation3 + $0xa8] sm:$0xff]
    %v1357 = vld [vmem:[#allocation3 + $0xb0] sm:$0xff]
    %v1358 = vld [vmem:[#allocation3 + $0xb8] sm:$0xff]
    %v1359 = vld [vmem:[#allocation3 + $0xc0] sm:$0xff]
    %v1360 = vld [vmem:[#allocation3 + $0xc8] sm:$0xff]
    %v1361 = vld [vmem:[#allocation3 + $0xd0] sm:$0xff]
    %v1362 = vld [vmem:[#allocation3 + $0xd8] sm:$0xff]
    %v1363 = vld [vmem:[#allocation3 + $0xe0] sm:$0xff]
    %v1364 = vld [vmem:[#allocation3 + $0xe8] sm:$0xff]
    %v1365 = vld [vmem:[#allocation3 + $0xf0] sm:$0xff]
    %v1366 = vld [vmem:[#allocation3 + $0xf8] sm:$0xff]
    %s1367 = scalar_lea.vmem [#allocation7], 1536
    %v1368 = vld [vmem:[%s1367] sm:$0xff]
    %v1369 = vld [vmem:[%s1367 + $0x8] sm:$0xff]
    %v1370 = vld [vmem:[%s1367 + $0x10] sm:$0xff]
    %v1371 = vld [vmem:[%s1367 + $0x18] sm:$0xff]
    %v1372 = vld [vmem:[%s1367 + $0x20] sm:$0xff]
    %v1373 = vld [vmem:[%s1367 + $0x28] sm:$0xff]
    %v1374 = vld [vmem:[%s1367 + $0x30] sm:$0xff]
    %v1375 = vld [vmem:[%s1367 + $0x38] sm:$0xff]
    %v1376 = vld [vmem:[%s1367 + $0x40] sm:$0xff]
    %v1377 = vld [vmem:[%s1367 + $0x48] sm:$0xff]
    %v1378 = vld [vmem:[%s1367 + $0x50] sm:$0xff]
    %v1379 = vld [vmem:[%s1367 + $0x58] sm:$0xff]
    %v1380 = vld [vmem:[%s1367 + $0x60] sm:$0xff]
    %v1381 = vld [vmem:[%s1367 + $0x68] sm:$0xff]
    %v1382 = vld [vmem:[%s1367 + $0x70] sm:$0xff]
    %v1383 = vld [vmem:[%s1367 + $0x78] sm:$0xff]
    %v1384 = vld [vmem:[%s1367 + $0x80] sm:$0xff]
    %v1385 = vld [vmem:[%s1367 + $0x88] sm:$0xff]
    %v1386 = vld [vmem:[%s1367 + $0x90] sm:$0xff]
    %v1387 = vld [vmem:[%s1367 + $0x98] sm:$0xff]
    %v1388 = vld [vmem:[%s1367 + $0xa0] sm:$0xff]
    %v1389 = vld [vmem:[%s1367 + $0xa8] sm:$0xff]
    %v1390 = vld [vmem:[%s1367 + $0xb0] sm:$0xff]
    %v1391 = vld [vmem:[%s1367 + $0xb8] sm:$0xff]
    %v1392 = vld [vmem:[%s1367 + $0xc0] sm:$0xff]
    %v1393 = vld [vmem:[%s1367 + $0xc8] sm:$0xff]
    %v1394 = vld [vmem:[%s1367 + $0xd0] sm:$0xff]
    %v1395 = vld [vmem:[%s1367 + $0xd8] sm:$0xff]
    %v1396 = vld [vmem:[%s1367 + $0xe0] sm:$0xff]
    %v1397 = vld [vmem:[%s1367 + $0xe8] sm:$0xff]
    %v1398 = vld [vmem:[%s1367 + $0xf0] sm:$0xff]
    %v1399 = vld [vmem:[%s1367 + $0xf8] sm:$0xff]
    %v1400 = vld [vmem:[%s1367 + $0x100] sm:$0xff]
    %v1401 = vld [vmem:[%s1367 + $0x108] sm:$0xff]
    %v1402 = vld [vmem:[%s1367 + $0x110] sm:$0xff]
    %v1403 = vld [vmem:[%s1367 + $0x118] sm:$0xff]
    %v1404 = vld [vmem:[%s1367 + $0x120] sm:$0xff]
    %v1405 = vld [vmem:[%s1367 + $0x128] sm:$0xff]
    %v1406 = vld [vmem:[%s1367 + $0x130] sm:$0xff]
    %v1407 = vld [vmem:[%s1367 + $0x138] sm:$0xff]
    %v1408 = vld [vmem:[%s1367 + $0x140] sm:$0xff]
    %v1409 = vld [vmem:[%s1367 + $0x148] sm:$0xff]
    %v1410 = vld [vmem:[%s1367 + $0x150] sm:$0xff]
    %v1411 = vld [vmem:[%s1367 + $0x158] sm:$0xff]
    %v1412 = vld [vmem:[%s1367 + $0x160] sm:$0xff]
    %v1413 = vld [vmem:[%s1367 + $0x168] sm:$0xff]
    %v1414 = vld [vmem:[%s1367 + $0x170] sm:$0xff]
    %v1415 = vld [vmem:[%s1367 + $0x178] sm:$0xff]
    %v1416 = vld [vmem:[%s1367 + $0x180] sm:$0xff]
    %v1417 = vld [vmem:[%s1367 + $0x188] sm:$0xff]
    %v1418 = vld [vmem:[%s1367 + $0x190] sm:$0xff]
    %v1419 = vld [vmem:[%s1367 + $0x198] sm:$0xff]
    %v1420 = vld [vmem:[%s1367 + $0x1a0] sm:$0xff]
    %v1421 = vld [vmem:[%s1367 + $0x1a8] sm:$0xff]
    %v1422 = vld [vmem:[%s1367 + $0x1b0] sm:$0xff]
    %v1423 = vld [vmem:[%s1367 + $0x1b8] sm:$0xff]
    %v1424 = vld [vmem:[%s1367 + $0x1c0] sm:$0xff]
    %v1425 = vld [vmem:[%s1367 + $0x1c8] sm:$0xff]
    %v1426 = vld [vmem:[%s1367 + $0x1d0] sm:$0xff]
    %v1427 = vld [vmem:[%s1367 + $0x1d8] sm:$0xff]
    %v1428 = vld [vmem:[%s1367 + $0x1e0] sm:$0xff]
    %v1429 = vld [vmem:[%s1367 + $0x1e8] sm:$0xff]
    %v1430 = vld [vmem:[%s1367 + $0x1f0] sm:$0xff]
    %v1431 = vld [vmem:[%s1367 + $0x1f8] sm:$0xff]
    %v1432 = vld [vmem:[%s1367 + $0x200] sm:$0xff]
    %v1433 = vld [vmem:[%s1367 + $0x208] sm:$0xff]
    %v1434 = vld [vmem:[%s1367 + $0x210] sm:$0xff]
    %v1435 = vld [vmem:[%s1367 + $0x218] sm:$0xff]
    %v1436 = vld [vmem:[%s1367 + $0x220] sm:$0xff]
    %v1437 = vld [vmem:[%s1367 + $0x228] sm:$0xff]
    %v1438 = vld [vmem:[%s1367 + $0x230] sm:$0xff]
    %v1439 = vld [vmem:[%s1367 + $0x238] sm:$0xff]
    %v1440 = vld [vmem:[%s1367 + $0x240] sm:$0xff]
    %v1441 = vld [vmem:[%s1367 + $0x248] sm:$0xff]
    %v1442 = vld [vmem:[%s1367 + $0x250] sm:$0xff]
    %v1443 = vld [vmem:[%s1367 + $0x258] sm:$0xff]
    %v1444 = vld [vmem:[%s1367 + $0x260] sm:$0xff]
    %v1445 = vld [vmem:[%s1367 + $0x268] sm:$0xff]
    %v1446 = vld [vmem:[%s1367 + $0x270] sm:$0xff]
    %v1447 = vld [vmem:[%s1367 + $0x278] sm:$0xff]
    %v1448 = vld [vmem:[%s1367 + $0x280] sm:$0xff]
    %v1449 = vld [vmem:[%s1367 + $0x288] sm:$0xff]
    %v1450 = vld [vmem:[%s1367 + $0x290] sm:$0xff]
    %v1451 = vld [vmem:[%s1367 + $0x298] sm:$0xff]
    %v1452 = vld [vmem:[%s1367 + $0x2a0] sm:$0xff]
    %v1453 = vld [vmem:[%s1367 + $0x2a8] sm:$0xff]
    %v1454 = vld [vmem:[%s1367 + $0x2b0] sm:$0xff]
    %v1455 = vld [vmem:[%s1367 + $0x2b8] sm:$0xff]
    %v1456 = vld [vmem:[%s1367 + $0x2c0] sm:$0xff]
    %v1457 = vld [vmem:[%s1367 + $0x2c8] sm:$0xff]
    %v1458 = vld [vmem:[%s1367 + $0x2d0] sm:$0xff]
    %v1459 = vld [vmem:[%s1367 + $0x2d8] sm:$0xff]
    %v1460 = vld [vmem:[%s1367 + $0x2e0] sm:$0xff]
    %v1461 = vld [vmem:[%s1367 + $0x2e8] sm:$0xff]
    %v1462 = vld [vmem:[%s1367 + $0x2f0] sm:$0xff]
    %v1463 = vld [vmem:[%s1367 + $0x2f8] sm:$0xff]
    %v1464 = vld [vmem:[%s1367 + $0x300] sm:$0xff]
    %v1465 = vld [vmem:[%s1367 + $0x308] sm:$0xff]
    %v1466 = vld [vmem:[%s1367 + $0x310] sm:$0xff]
    %v1467 = vld [vmem:[%s1367 + $0x318] sm:$0xff]
    %v1468 = vld [vmem:[%s1367 + $0x320] sm:$0xff]
    %v1469 = vld [vmem:[%s1367 + $0x328] sm:$0xff]
    %v1470 = vld [vmem:[%s1367 + $0x330] sm:$0xff]
    %v1471 = vld [vmem:[%s1367 + $0x338] sm:$0xff]
    %v1472 = vld [vmem:[%s1367 + $0x340] sm:$0xff]
    %v1473 = vld [vmem:[%s1367 + $0x348] sm:$0xff]
    %v1474 = vld [vmem:[%s1367 + $0x350] sm:$0xff]
    %v1475 = vld [vmem:[%s1367 + $0x358] sm:$0xff]
    %v1476 = vld [vmem:[%s1367 + $0x360] sm:$0xff]
    %v1477 = vld [vmem:[%s1367 + $0x368] sm:$0xff]
    %v1478 = vld [vmem:[%s1367 + $0x370] sm:$0xff]
    %v1479 = vld [vmem:[%s1367 + $0x378] sm:$0xff]
    %v1480 = vld [vmem:[%s1367 + $0x380] sm:$0xff]
    %v1481 = vld [vmem:[%s1367 + $0x388] sm:$0xff]
    %v1482 = vld [vmem:[%s1367 + $0x390] sm:$0xff]
    %v1483 = vld [vmem:[%s1367 + $0x398] sm:$0xff]
    %v1484 = vld [vmem:[%s1367 + $0x3a0] sm:$0xff]
    %v1485 = vld [vmem:[%s1367 + $0x3a8] sm:$0xff]
    %v1486 = vld [vmem:[%s1367 + $0x3b0] sm:$0xff]
    %v1487 = vld [vmem:[%s1367 + $0x3b8] sm:$0xff]
    %v1488 = vld [vmem:[%s1367 + $0x3c0] sm:$0xff]
    %v1489 = vld [vmem:[%s1367 + $0x3c8] sm:$0xff]
    %v1490 = vld [vmem:[%s1367 + $0x3d0] sm:$0xff]
    %v1491 = vld [vmem:[%s1367 + $0x3d8] sm:$0xff]
    %v1492 = vld [vmem:[%s1367 + $0x3e0] sm:$0xff]
    %v1493 = vld [vmem:[%s1367 + $0x3e8] sm:$0xff]
    %v1494 = vld [vmem:[%s1367 + $0x3f0] sm:$0xff]
    %v1495 = vld [vmem:[%s1367 + $0x3f8] sm:$0xff]
    %v1496 = vld [vmem:[%s1367 + $0x400] sm:$0xff]
    %v1497 = vld [vmem:[%s1367 + $0x408] sm:$0xff]
    %v1498 = vld [vmem:[%s1367 + $0x410] sm:$0xff]
    %v1499 = vld [vmem:[%s1367 + $0x418] sm:$0xff]
    %v1500 = vld [vmem:[%s1367 + $0x420] sm:$0xff]
    %v1501 = vld [vmem:[%s1367 + $0x428] sm:$0xff]
    %v1502 = vld [vmem:[%s1367 + $0x430] sm:$0xff]
    %v1503 = vld [vmem:[%s1367 + $0x438] sm:$0xff]
    %v1504 = vld [vmem:[%s1367 + $0x440] sm:$0xff]
    %v1505 = vld [vmem:[%s1367 + $0x448] sm:$0xff]
    %v1506 = vld [vmem:[%s1367 + $0x450] sm:$0xff]
    %v1507 = vld [vmem:[%s1367 + $0x458] sm:$0xff]
    %v1508 = vld [vmem:[%s1367 + $0x460] sm:$0xff]
    %v1509 = vld [vmem:[%s1367 + $0x468] sm:$0xff]
    %v1510 = vld [vmem:[%s1367 + $0x470] sm:$0xff]
    %v1511 = vld [vmem:[%s1367 + $0x478] sm:$0xff]
    %v1512 = vld [vmem:[%s1367 + $0x480] sm:$0xff]
    %v1513 = vld [vmem:[%s1367 + $0x488] sm:$0xff]
    %v1514 = vld [vmem:[%s1367 + $0x490] sm:$0xff]
    %v1515 = vld [vmem:[%s1367 + $0x498] sm:$0xff]
    %v1516 = vld [vmem:[%s1367 + $0x4a0] sm:$0xff]
    %v1517 = vld [vmem:[%s1367 + $0x4a8] sm:$0xff]
    %v1518 = vld [vmem:[%s1367 + $0x4b0] sm:$0xff]
    %v1519 = vld [vmem:[%s1367 + $0x4b8] sm:$0xff]
    %v1520 = vld [vmem:[%s1367 + $0x4c0] sm:$0xff]
    %v1521 = vld [vmem:[%s1367 + $0x4c8] sm:$0xff]
    %v1522 = vld [vmem:[%s1367 + $0x4d0] sm:$0xff]
    %v1523 = vld [vmem:[%s1367 + $0x4d8] sm:$0xff]
    %v1524 = vld [vmem:[%s1367 + $0x4e0] sm:$0xff]
    %v1525 = vld [vmem:[%s1367 + $0x4e8] sm:$0xff]
    %v1526 = vld [vmem:[%s1367 + $0x4f0] sm:$0xff]
    %v1527 = vld [vmem:[%s1367 + $0x4f8] sm:$0xff]
    %v1528 = vld [vmem:[%s1367 + $0x500] sm:$0xff]
    %v1529 = vld [vmem:[%s1367 + $0x508] sm:$0xff]
    %v1530 = vld [vmem:[%s1367 + $0x510] sm:$0xff]
    %v1531 = vld [vmem:[%s1367 + $0x518] sm:$0xff]
    %v1532 = vld [vmem:[%s1367 + $0x520] sm:$0xff]
    %v1533 = vld [vmem:[%s1367 + $0x528] sm:$0xff]
    %v1534 = vld [vmem:[%s1367 + $0x530] sm:$0xff]
    %v1535 = vld [vmem:[%s1367 + $0x538] sm:$0xff]
    %v1536 = vld [vmem:[%s1367 + $0x540] sm:$0xff]
    %v1537 = vld [vmem:[%s1367 + $0x548] sm:$0xff]
    %v1538 = vld [vmem:[%s1367 + $0x550] sm:$0xff]
    %v1539 = vld [vmem:[%s1367 + $0x558] sm:$0xff]
    %v1540 = vld [vmem:[%s1367 + $0x560] sm:$0xff]
    %v1541 = vld [vmem:[%s1367 + $0x568] sm:$0xff]
    %v1542 = vld [vmem:[%s1367 + $0x570] sm:$0xff]
    %v1543 = vld [vmem:[%s1367 + $0x578] sm:$0xff]
    %v1544 = vld [vmem:[%s1367 + $0x580] sm:$0xff]
    %v1545 = vld [vmem:[%s1367 + $0x588] sm:$0xff]
    %v1546 = vld [vmem:[%s1367 + $0x590] sm:$0xff]
    %v1547 = vld [vmem:[%s1367 + $0x598] sm:$0xff]
    %v1548 = vld [vmem:[%s1367 + $0x5a0] sm:$0xff]
    %v1549 = vld [vmem:[%s1367 + $0x5a8] sm:$0xff]
    %v1550 = vld [vmem:[%s1367 + $0x5b0] sm:$0xff]
    %v1551 = vld [vmem:[%s1367 + $0x5b8] sm:$0xff]
    %v1552 = vld [vmem:[%s1367 + $0x5c0] sm:$0xff]
    %v1553 = vld [vmem:[%s1367 + $0x5c8] sm:$0xff]
    %v1554 = vld [vmem:[%s1367 + $0x5d0] sm:$0xff]
    %v1555 = vld [vmem:[%s1367 + $0x5d8] sm:$0xff]
    %v1556 = vld [vmem:[%s1367 + $0x5e0] sm:$0xff]
    %v1557 = vld [vmem:[%s1367 + $0x5e8] sm:$0xff]
    %v1558 = vld [vmem:[%s1367 + $0x5f0] sm:$0xff]
    %v1559 = vld [vmem:[%s1367 + $0x5f8] sm:$0xff]
    %1560 = vmatprep.subr.mxu0 %v1429
    %1561 = vmatpush1.msra.mxu0 %v1428
    %1562 = vmatprep.subr.mxu0 %v1425
    %1563 = vmatpush1.msra.mxu0 %v1424
    %1564 = vmatprep.subr.mxu0 %v1421
    %1565 = vmatpush1.msra.mxu0 %v1420
    %1566 = vmatprep.subr.mxu0 %v1417
    %1567 = vmatpush1.msra.mxu0 %v1416
    %1568 = vmatprep.subr.mxu0 %v1413
    %1569 = vmatpush1.msra.mxu0 %v1412
    %1570 = vmatprep.subr.mxu0 %v1409
    %1571 = vmatpush1.msra.mxu0 %v1408
    %1572 = vmatprep.subr.mxu0 %v1405
    %1573 = vmatpush1.msra.mxu0 %v1404
    %1574 = vmatprep.subr.mxu0 %v1401
    %1575 = vmatpush1.msra.mxu0 %v1400
    %1576 = vmatprep.subr.mxu0 %v1397
    %1577 = vmatpush1.msra.mxu0 %v1396
    %1578 = vmatprep.subr.mxu0 %v1393
    %1579 = vmatpush1.msra.mxu0 %v1392
    %1580 = vmatprep.subr.mxu0 %v1389
    %1581 = vmatpush1.msra.mxu0 %v1388
    %1582 = vmatprep.subr.mxu0 %v1385
    %1583 = vmatpush1.msra.mxu0 %v1384
    %1584 = vmatprep.subr.mxu0 %v1381
    %1585 = vmatpush1.msra.mxu0 %v1380
    %1586 = vmatprep.subr.mxu0 %v1377
    %1587 = vmatpush1.msra.mxu0 %v1376
    %1588 = vmatprep.subr.mxu0 %v1373
    %1589 = vmatpush1.msra.mxu0 %v1372
    %1590 = vmatprep.subr.mxu0 %v1369
    %1591 = vmatpush1.msra.mxu0 %v1368
    %1592 = vmatprep.subr.mxu0 %v1493
    %1593 = vmatpush2.msra.mxu0 %v1492
    %1594 = vmatprep.subr.mxu0 %v1489
    %1595 = vmatpush2.msra.mxu0 %v1488
    %1596 = vmatprep.subr.mxu0 %v1485
    %1597 = vmatpush2.msra.mxu0 %v1484
    %1598 = vmatprep.subr.mxu0 %v1481
    %1599 = vmatpush2.msra.mxu0 %v1480
    %1600 = vmatprep.subr.mxu0 %v1477
    %1601 = vmatpush2.msra.mxu0 %v1476
    %1602 = vmatprep.subr.mxu0 %v1473
    %1603 = vmatpush2.msra.mxu0 %v1472
    %1604 = vmatprep.subr.mxu0 %v1469
    %1605 = vmatpush2.msra.mxu0 %v1468
    %1606 = vmatprep.subr.mxu0 %v1465
    %1607 = vmatpush2.msra.mxu0 %v1464
    %1608 = vmatprep.subr.mxu0 %v1461
    %1609 = vmatpush2.msra.mxu0 %v1460
    %1610 = vmatprep.subr.mxu0 %v1457
    %1611 = vmatpush2.msra.mxu0 %v1456
    %1612 = vmatprep.subr.mxu0 %v1453
    %1613 = vmatpush2.msra.mxu0 %v1452
    %1614 = vmatprep.subr.mxu0 %v1449
    %1615 = vmatpush2.msra.mxu0 %v1448
    %1616 = vmatprep.subr.mxu0 %v1445
    %1617 = vmatpush2.msra.mxu0 %v1444
    %1618 = vmatprep.subr.mxu0 %v1441
    %1619 = vmatpush2.msra.mxu0 %v1440
    %1620 = vmatprep.subr.mxu0 %v1437
    %1621 = vmatpush2.msra.mxu0 %v1436
    %1622 = vmatprep.subr.mxu0 %v1433
    %1623 = vmatpush2.msra.mxu0 %v1432
    %1624 = vmatprep.mubr.f32.mxu0 %v1244
    %1625 = vmatmul.mubr.f32.gmra.mxu0 %v1241
    %v1626 = vpop.f32.mrf.mxu0
    %v1627 = vadd.f32 0.0, %v1626
    %v1628 = vpop.f32.mrf.mxu0
    %v1629 = vadd.f32 0.0, %v1628
    %1630 = vmatprep.mubr.f32.mxu0 %v1253
    %1631 = vmatmul.mubr.f32.gmra.mxu0 %v1250
    %v1632 = vpop.f32.mrf.mxu0
    %v1633 = vadd.f32 0.0, %v1632
    %v1634 = vpop.f32.mrf.mxu0
    %v1635 = vadd.f32 0.0, %v1634
    %1636 = vmatprep.mubr.f32.mxu0 %v1262
    %1637 = vmatmul.mubr.f32.gmra.mxu0 %v1259
    %v1638 = vpop.f32.mrf.mxu0
    %v1639 = vadd.f32 0.0, %v1638
    %v1640 = vpop.f32.mrf.mxu0
    %v1641 = vadd.f32 0.0, %v1640
    %1642 = vmatprep.mubr.f32.mxu0 %v1271
    %1643 = vmatmul.mubr.f32.gmra.mxu0 %v1268
    %v1644 = vpop.f32.mrf.mxu0
    %v1645 = vadd.f32 0.0, %v1644
    %v1646 = vpop.f32.mrf.mxu0
    %v1647 = vadd.f32 0.0, %v1646
    %1648 = vmatprep.mubr.f32.mxu0 %v1280
    %1649 = vmatmul.mubr.f32.gmra.mxu0 %v1277
    %v1650 = vpop.f32.mrf.mxu0
    %v1651 = vadd.f32 0.0, %v1650
    %v1652 = vpop.f32.mrf.mxu0
    %v1653 = vadd.f32 0.0, %v1652
    %1654 = vmatprep.mubr.f32.mxu0 %v1289
    %1655 = vmatmul.mubr.f32.gmra.mxu0 %v1286
    %v1656 = vpop.f32.mrf.mxu0
    %v1657 = vadd.f32 0.0, %v1656
    %v1658 = vpop.f32.mrf.mxu0
    %v1659 = vadd.f32 0.0, %v1658
    %1660 = vmatprep.mubr.f32.mxu0 %v1298
    %1661 = vmatmul.mubr.f32.gmra.mxu0 %v1295
    %v1662 = vpop.f32.mrf.mxu0
    %v1663 = vadd.f32 0.0, %v1662
    %v1664 = vpop.f32.mrf.mxu0
    %v1665 = vadd.f32 0.0, %v1664
    %1666 = vmatprep.mubr.f32.mxu0 %v1307
    %1667 = vmatmul.mubr.f32.gmra.mxu0 %v1304
    %v1668 = vpop.f32.mrf.mxu0
    %v1669 = vadd.f32 0.0, %v1668
    %v1670 = vpop.f32.mrf.mxu0
    %v1671 = vadd.f32 0.0, %v1670
    %1672 = vdwg.mxu0
    %1673 = vmatprep.subr.mxu0 %v1557
    %1674 = vmatpush1.msra.mxu0 %v1556
    %1675 = vmatprep.subr.mxu0 %v1553
    %1676 = vmatpush1.msra.mxu0 %v1552
    %1677 = vmatprep.subr.mxu0 %v1549
    %1678 = vmatpush1.msra.mxu0 %v1548
    %1679 = vmatprep.subr.mxu0 %v1545
    %1680 = vmatpush1.msra.mxu0 %v1544
    %1681 = vmatprep.subr.mxu0 %v1541
    %1682 = vmatpush1.msra.mxu0 %v1540
    %1683 = vmatprep.subr.mxu0 %v1537
    %1684 = vmatpush1.msra.mxu0 %v1536
    %1685 = vmatprep.subr.mxu0 %v1533
    %1686 = vmatpush1.msra.mxu0 %v1532
    %1687 = vmatprep.subr.mxu0 %v1529
    %1688 = vmatpush1.msra.mxu0 %v1528
    %1689 = vmatprep.subr.mxu0 %v1525
    %1690 = vmatpush1.msra.mxu0 %v1524
    %1691 = vmatprep.subr.mxu0 %v1521
    %1692 = vmatpush1.msra.mxu0 %v1520
    %1693 = vmatprep.subr.mxu0 %v1517
    %1694 = vmatpush1.msra.mxu0 %v1516
    %1695 = vmatprep.subr.mxu0 %v1513
    %1696 = vmatpush1.msra.mxu0 %v1512
    %1697 = vmatprep.subr.mxu0 %v1509
    %1698 = vmatpush1.msra.mxu0 %v1508
    %1699 = vmatprep.subr.mxu0 %v1505
    %1700 = vmatpush1.msra.mxu0 %v1504
    %1701 = vmatprep.subr.mxu0 %v1501
    %1702 = vmatpush1.msra.mxu0 %v1500
    %1703 = vmatprep.subr.mxu0 %v1497
    %1704 = vmatpush1.msra.mxu0 %v1496
    %1705 = vmatprep.subr.mxu0 0.0
    %1706 = vmatpush2.msra.mxu0 0.0
    %1707 = vmatprep.subr.mxu0 0.0
    %1708 = vmatpush2.msra.mxu0 0.0
    %1709 = vmatprep.subr.mxu0 0.0
    %1710 = vmatpush2.msra.mxu0 0.0
    %1711 = vmatprep.subr.mxu0 0.0
    %1712 = vmatpush2.msra.mxu0 0.0
    %1713 = vmatprep.subr.mxu0 0.0
    %1714 = vmatpush2.msra.mxu0 0.0
    %1715 = vmatprep.subr.mxu0 0.0
    %1716 = vmatpush2.msra.mxu0 0.0
    %1717 = vmatprep.subr.mxu0 0.0
    %1718 = vmatpush2.msra.mxu0 0.0
    %1719 = vmatprep.subr.mxu0 0.0
    %1720 = vmatpush2.msra.mxu0 0.0
    %1721 = vmatprep.subr.mxu0 0.0
    %1722 = vmatpush2.msra.mxu0 0.0
    %1723 = vmatprep.subr.mxu0 0.0
    %1724 = vmatpush2.msra.mxu0 0.0
    %1725 = vmatprep.subr.mxu0 0.0
    %1726 = vmatpush2.msra.mxu0 0.0
    %1727 = vmatprep.subr.mxu0 0.0
    %1728 = vmatpush2.msra.mxu0 0.0
    %1729 = vmatprep.subr.mxu0 0.0
    %1730 = vmatpush2.msra.mxu0 0.0
    %1731 = vmatprep.subr.mxu0 0.0
    %1732 = vmatpush2.msra.mxu0 0.0
    %1733 = vmatprep.subr.mxu0 0.0
    %1734 = vmatpush2.msra.mxu0 0.0
    %1735 = vmatprep.subr.mxu0 0.0
    %1736 = vmatpush2.msra.mxu0 0.0
    %1737 = vmatprep.mubr.f32.mxu0 0.0
    %1738 = vmatmul.mubr.f32.gmra.mxu0 %v1247
    %v1739 = vpop.f32.mrf.mxu0
    %v1740 = vadd.f32 %v1627, %v1739
    %v1741 = vpop.f32.mrf.mxu0
    %v1742 = vadd.f32 %v1629, %v1741
    %1743 = vmatprep.mubr.f32.mxu0 0.0
    %1744 = vmatmul.mubr.f32.gmra.mxu0 %v1256
    %v1745 = vpop.f32.mrf.mxu0
    %v1746 = vadd.f32 %v1633, %v1745
    %v1747 = vpop.f32.mrf.mxu0
    %v1748 = vadd.f32 %v1635, %v1747
    %1749 = vmatprep.mubr.f32.mxu0 0.0
    %1750 = vmatmul.mubr.f32.gmra.mxu0 %v1265
    %v1751 = vpop.f32.mrf.mxu0
    %v1752 = vadd.f32 %v1639, %v1751
    %v1753 = vpop.f32.mrf.mxu0
    %v1754 = vadd.f32 %v1641, %v1753
    %1755 = vmatprep.mubr.f32.mxu0 0.0
    %1756 = vmatmul.mubr.f32.gmra.mxu0 %v1274
    %v1757 = vpop.f32.mrf.mxu0
    %v1758 = vadd.f32 %v1645, %v1757
    %v1759 = vpop.f32.mrf.mxu0
    %v1760 = vadd.f32 %v1647, %v1759
    %1761 = vmatprep.mubr.f32.mxu0 0.0
    %1762 = vmatmul.mubr.f32.gmra.mxu0 %v1283
    %v1763 = vpop.f32.mrf.mxu0
    %v1764 = vadd.f32 %v1651, %v1763
    %v1765 = vpop.f32.mrf.mxu0
    %v1766 = vadd.f32 %v1653, %v1765
    %1767 = vmatprep.mubr.f32.mxu0 0.0
    %1768 = vmatmul.mubr.f32.gmra.mxu0 %v1292
    %v1769 = vpop.f32.mrf.mxu0
    %v1770 = vadd.f32 %v1657, %v1769
    %v1771 = vpop.f32.mrf.mxu0
    %v1772 = vadd.f32 %v1659, %v1771
    %1773 = vmatprep.mubr.f32.mxu0 0.0
    %1774 = vmatmul.mubr.f32.gmra.mxu0 %v1301
    %v1775 = vpop.f32.mrf.mxu0
    %v1776 = vadd.f32 %v1663, %v1775
    %v1777 = vpop.f32.mrf.mxu0
    %v1778 = vadd.f32 %v1665, %v1777
    %1779 = vmatprep.mubr.f32.mxu0 0.0
    %1780 = vmatmul.mubr.f32.gmra.mxu0 %v1310
    %v1781 = vpop.f32.mrf.mxu0
    %v1782 = vadd.f32 %v1669, %v1781
    %v1783 = vpop.f32.mrf.mxu0
    %v1784 = vadd.f32 %v1671, %v1783
    %1785 = vdwg.mxu0
    %1786 = vmatprep.subr.mxu0 %v1431
    %1787 = vmatpush1.msra.mxu0 %v1430
    %1788 = vmatprep.subr.mxu0 %v1427
    %1789 = vmatpush1.msra.mxu0 %v1426
    %1790 = vmatprep.subr.mxu0 %v1423
    %1791 = vmatpush1.msra.mxu0 %v1422
    %1792 = vmatprep.subr.mxu0 %v1419
    %1793 = vmatpush1.msra.mxu0 %v1418
    %1794 = vmatprep.subr.mxu0 %v1415
    %1795 = vmatpush1.msra.mxu0 %v1414
    %1796 = vmatprep.subr.mxu0 %v1411
    %1797 = vmatpush1.msra.mxu0 %v1410
    %1798 = vmatprep.subr.mxu0 %v1407
    %1799 = vmatpush1.msra.mxu0 %v1406
    %1800 = vmatprep.subr.mxu0 %v1403
    %1801 = vmatpush1.msra.mxu0 %v1402
    %1802 = vmatprep.subr.mxu0 %v1399
    %1803 = vmatpush1.msra.mxu0 %v1398
    %1804 = vmatprep.subr.mxu0 %v1395
    %1805 = vmatpush1.msra.mxu0 %v1394
    %1806 = vmatprep.subr.mxu0 %v1391
    %1807 = vmatpush1.msra.mxu0 %v1390
    %1808 = vmatprep.subr.mxu0 %v1387
    %1809 = vmatpush1.msra.mxu0 %v1386
    %1810 = vmatprep.subr.mxu0 %v1383
    %1811 = vmatpush1.msra.mxu0 %v1382
    %1812 = vmatprep.subr.mxu0 %v1379
    %1813 = vmatpush1.msra.mxu0 %v1378
    %1814 = vmatprep.subr.mxu0 %v1375
    %1815 = vmatpush1.msra.mxu0 %v1374
    %1816 = vmatprep.subr.mxu0 %v1371
    %1817 = vmatpush1.msra.mxu0 %v1370
    %1818 = vmatprep.subr.mxu0 %v1495
    %1819 = vmatpush2.msra.mxu0 %v1494
    %1820 = vmatprep.subr.mxu0 %v1491
    %1821 = vmatpush2.msra.mxu0 %v1490
    %1822 = vmatprep.subr.mxu0 %v1487
    %1823 = vmatpush2.msra.mxu0 %v1486
    %1824 = vmatprep.subr.mxu0 %v1483
    %1825 = vmatpush2.msra.mxu0 %v1482
    %1826 = vmatprep.subr.mxu0 %v1479
    %1827 = vmatpush2.msra.mxu0 %v1478
    %1828 = vmatprep.subr.mxu0 %v1475
    %1829 = vmatpush2.msra.mxu0 %v1474
    %1830 = vmatprep.subr.mxu0 %v1471
    %1831 = vmatpush2.msra.mxu0 %v1470
    %1832 = vmatprep.subr.mxu0 %v1467
    %1833 = vmatpush2.msra.mxu0 %v1466
    %1834 = vmatprep.subr.mxu0 %v1463
    %1835 = vmatpush2.msra.mxu0 %v1462
    %1836 = vmatprep.subr.mxu0 %v1459
    %1837 = vmatpush2.msra.mxu0 %v1458
    %1838 = vmatprep.subr.mxu0 %v1455
    %1839 = vmatpush2.msra.mxu0 %v1454
    %1840 = vmatprep.subr.mxu0 %v1451
    %1841 = vmatpush2.msra.mxu0 %v1450
    %1842 = vmatprep.subr.mxu0 %v1447
    %1843 = vmatpush2.msra.mxu0 %v1446
    %1844 = vmatprep.subr.mxu0 %v1443
    %1845 = vmatpush2.msra.mxu0 %v1442
    %1846 = vmatprep.subr.mxu0 %v1439
    %1847 = vmatpush2.msra.mxu0 %v1438
    %1848 = vmatprep.subr.mxu0 %v1435
    %1849 = vmatpush2.msra.mxu0 %v1434
    %1850 = vmatprep.mubr.f32.mxu0 %v1244
    %1851 = vmatmul.mubr.f32.gmra.mxu0 %v1241
    %v1852 = vpop.f32.mrf.mxu0
    %v1853 = vadd.f32 0.0, %v1852
    %v1854 = vpop.f32.mrf.mxu0
    %v1855 = vadd.f32 0.0, %v1854
    %1856 = vmatprep.mubr.f32.mxu0 %v1253
    %1857 = vmatmul.mubr.f32.gmra.mxu0 %v1250
    %v1858 = vpop.f32.mrf.mxu0
    %v1859 = vadd.f32 0.0, %v1858
    %v1860 = vpop.f32.mrf.mxu0
    %v1861 = vadd.f32 0.0, %v1860
    %1862 = vmatprep.mubr.f32.mxu0 %v1262
    %1863 = vmatmul.mubr.f32.gmra.mxu0 %v1259
    %v1864 = vpop.f32.mrf.mxu0
    %v1865 = vadd.f32 0.0, %v1864
    %v1866 = vpop.f32.mrf.mxu0
    %v1867 = vadd.f32 0.0, %v1866
    %1868 = vmatprep.mubr.f32.mxu0 %v1271
    %1869 = vmatmul.mubr.f32.gmra.mxu0 %v1268
    %v1870 = vpop.f32.mrf.mxu0
    %v1871 = vadd.f32 0.0, %v1870
    %v1872 = vpop.f32.mrf.mxu0
    %v1873 = vadd.f32 0.0, %v1872
    %1874 = vmatprep.mubr.f32.mxu0 %v1280
    %1875 = vmatmul.mubr.f32.gmra.mxu0 %v1277
    %v1876 = vpop.f32.mrf.mxu0
    %v1877 = vadd.f32 0.0, %v1876
    %v1878 = vpop.f32.mrf.mxu0
    %v1879 = vadd.f32 0.0, %v1878
    %1880 = vmatprep.mubr.f32.mxu0 %v1289
    %1881 = vmatmul.mubr.f32.gmra.mxu0 %v1286
    %v1882 = vpop.f32.mrf.mxu0
    %v1883 = vadd.f32 0.0, %v1882
    %v1884 = vpop.f32.mrf.mxu0
    %v1885 = vadd.f32 0.0, %v1884
    %1886 = vmatprep.mubr.f32.mxu0 %v1298
    %1887 = vmatmul.mubr.f32.gmra.mxu0 %v1295
    %v1888 = vpop.f32.mrf.mxu0
    %v1889 = vadd.f32 0.0, %v1888
    %v1890 = vpop.f32.mrf.mxu0
    %v1891 = vadd.f32 0.0, %v1890
    %1892 = vmatprep.mubr.f32.mxu0 %v1307
    %1893 = vmatmul.mubr.f32.gmra.mxu0 %v1304
    %v1894 = vpop.f32.mrf.mxu0
    %v1895 = vadd.f32 0.0, %v1894
    %v1896 = vpop.f32.mrf.mxu0
    %v1897 = vadd.f32 0.0, %v1896
    %1898 = vdwg.mxu0
    %1899 = vmatprep.subr.mxu0 %v1559
    %1900 = vmatpush1.msra.mxu0 %v1558
    %1901 = vmatprep.subr.mxu0 %v1555
    %1902 = vmatpush1.msra.mxu0 %v1554
    %1903 = vmatprep.subr.mxu0 %v1551
    %1904 = vmatpush1.msra.mxu0 %v1550
    %1905 = vmatprep.subr.mxu0 %v1547
    %1906 = vmatpush1.msra.mxu0 %v1546
    %1907 = vmatprep.subr.mxu0 %v1543
    %1908 = vmatpush1.msra.mxu0 %v1542
    %1909 = vmatprep.subr.mxu0 %v1539
    %1910 = vmatpush1.msra.mxu0 %v1538
    %1911 = vmatprep.subr.mxu0 %v1535
    %1912 = vmatpush1.msra.mxu0 %v1534
    %1913 = vmatprep.subr.mxu0 %v1531
    %1914 = vmatpush1.msra.mxu0 %v1530
    %1915 = vmatprep.subr.mxu0 %v1527
    %1916 = vmatpush1.msra.mxu0 %v1526
    %1917 = vmatprep.subr.mxu0 %v1523
    %1918 = vmatpush1.msra.mxu0 %v1522
    %1919 = vmatprep.subr.mxu0 %v1519
    %1920 = vmatpush1.msra.mxu0 %v1518
    %1921 = vmatprep.subr.mxu0 %v1515
    %1922 = vmatpush1.msra.mxu0 %v1514
    %1923 = vmatprep.subr.mxu0 %v1511
    %1924 = vmatpush1.msra.mxu0 %v1510
    %1925 = vmatprep.subr.mxu0 %v1507
    %1926 = vmatpush1.msra.mxu0 %v1506
    %1927 = vmatprep.subr.mxu0 %v1503
    %1928 = vmatpush1.msra.mxu0 %v1502
    %1929 = vmatprep.subr.mxu0 %v1499
    %1930 = vmatpush1.msra.mxu0 %v1498
    %1931 = vmatprep.subr.mxu0 0.0
    %1932 = vmatpush2.msra.mxu0 0.0
    %1933 = vmatprep.subr.mxu0 0.0
    %1934 = vmatpush2.msra.mxu0 0.0
    %1935 = vmatprep.subr.mxu0 0.0
    %1936 = vmatpush2.msra.mxu0 0.0
    %1937 = vmatprep.subr.mxu0 0.0
    %1938 = vmatpush2.msra.mxu0 0.0
    %1939 = vmatprep.subr.mxu0 0.0
    %1940 = vmatpush2.msra.mxu0 0.0
    %1941 = vmatprep.subr.mxu0 0.0
    %1942 = vmatpush2.msra.mxu0 0.0
    %1943 = vmatprep.subr.mxu0 0.0
    %1944 = vmatpush2.msra.mxu0 0.0
    %1945 = vmatprep.subr.mxu0 0.0
    %1946 = vmatpush2.msra.mxu0 0.0
    %1947 = vmatprep.subr.mxu0 0.0
    %1948 = vmatpush2.msra.mxu0 0.0
    %1949 = vmatprep.subr.mxu0 0.0
    %1950 = vmatpush2.msra.mxu0 0.0
    %1951 = vmatprep.subr.mxu0 0.0
    %1952 = vmatpush2.msra.mxu0 0.0
    %1953 = vmatprep.subr.mxu0 0.0
    %1954 = vmatpush2.msra.mxu0 0.0
    %1955 = vmatprep.subr.mxu0 0.0
    %1956 = vmatpush2.msra.mxu0 0.0
    %1957 = vmatprep.subr.mxu0 0.0
    %1958 = vmatpush2.msra.mxu0 0.0
    %1959 = vmatprep.subr.mxu0 0.0
    %1960 = vmatpush2.msra.mxu0 0.0
    %1961 = vmatprep.subr.mxu0 0.0
    %1962 = vmatpush2.msra.mxu0 0.0
    %1963 = vmatprep.mubr.f32.mxu0 0.0
    %1964 = vmatmul.mubr.f32.gmra.mxu0 %v1247
    %v1965 = vpop.f32.mrf.mxu0
    %v1966 = vadd.f32 %v1853, %v1965
    %v1967 = vpop.f32.mrf.mxu0
    %v1968 = vadd.f32 %v1855, %v1967
    %1969 = vmatprep.mubr.f32.mxu0 0.0
    %1970 = vmatmul.mubr.f32.gmra.mxu0 %v1256
    %v1971 = vpop.f32.mrf.mxu0
    %v1972 = vadd.f32 %v1859, %v1971
    %v1973 = vpop.f32.mrf.mxu0
    %v1974 = vadd.f32 %v1861, %v1973
    %1975 = vmatprep.mubr.f32.mxu0 0.0
    %1976 = vmatmul.mubr.f32.gmra.mxu0 %v1265
    %v1977 = vpop.f32.mrf.mxu0
    %v1978 = vadd.f32 %v1865, %v1977
    %v1979 = vpop.f32.mrf.mxu0
    %v1980 = vadd.f32 %v1867, %v1979
    %1981 = vmatprep.mubr.f32.mxu0 0.0
    %1982 = vmatmul.mubr.f32.gmra.mxu0 %v1274
    %v1983 = vpop.f32.mrf.mxu0
    %v1984 = vadd.f32 %v1871, %v1983
    %v1985 = vpop.f32.mrf.mxu0
    %v1986 = vadd.f32 %v1873, %v1985
    %1987 = vmatprep.mubr.f32.mxu0 0.0
    %1988 = vmatmul.mubr.f32.gmra.mxu0 %v1283
    %v1989 = vpop.f32.mrf.mxu0
    %v1990 = vadd.f32 %v1877, %v1989
    %v1991 = vpop.f32.mrf.mxu0
    %v1992 = vadd.f32 %v1879, %v1991
    %1993 = vmatprep.mubr.f32.mxu0 0.0
    %1994 = vmatmul.mubr.f32.gmra.mxu0 %v1292
    %v1995 = vpop.f32.mrf.mxu0
    %v1996 = vadd.f32 %v1883, %v1995
    %v1997 = vpop.f32.mrf.mxu0
    %v1998 = vadd.f32 %v1885, %v1997
    %1999 = vmatprep.mubr.f32.mxu0 0.0
    %2000 = vmatmul.mubr.f32.gmra.mxu0 %v1301
    %v2001 = vpop.f32.mrf.mxu0
    %v2002 = vadd.f32 %v1889, %v2001
    %v2003 = vpop.f32.mrf.mxu0
    %v2004 = vadd.f32 %v1891, %v2003
    %2005 = vmatprep.mubr.f32.mxu0 0.0
    %2006 = vmatmul.mubr.f32.gmra.mxu0 %v1310
    %v2007 = vpop.f32.mrf.mxu0
    %v2008 = vadd.f32 %v1895, %v2007
    %v2009 = vpop.f32.mrf.mxu0
    %v2010 = vadd.f32 %v1897, %v2009
    %2011 = vdwg.mxu0
    %v2012 = vadd.f32 %v1335, %v1740
    %v2013 = vadd.f32 %v1336, %v1742
    %v2014 = vadd.f32 %v1337, %v1966
    %v2015 = vadd.f32 %v1338, %v1968
    %v2016 = vadd.f32 %v1339, %v1746
    %v2017 = vadd.f32 %v1340, %v1748
    %v2018 = vadd.f32 %v1341, %v1972
    %v2019 = vadd.f32 %v1342, %v1974
    %v2020 = vadd.f32 %v1343, %v1752
    %v2021 = vadd.f32 %v1344, %v1754
    %v2022 = vadd.f32 %v1345, %v1978
    %v2023 = vadd.f32 %v1346, %v1980
    %v2024 = vadd.f32 %v1347, %v1758
    %v2025 = vadd.f32 %v1348, %v1760
    %v2026 = vadd.f32 %v1349, %v1984
    %v2027 = vadd.f32 %v1350, %v1986
    %v2028 = vadd.f32 %v1351, %v1764
    %v2029 = vadd.f32 %v1352, %v1766
    %v2030 = vadd.f32 %v1353, %v1990
    %v2031 = vadd.f32 %v1354, %v1992
    %v2032 = vadd.f32 %v1355, %v1770
    %v2033 = vadd.f32 %v1356, %v1772
    %v2034 = vadd.f32 %v1357, %v1996
    %v2035 = vadd.f32 %v1358, %v1998
    %v2036 = vadd.f32 %v1359, %v1776
    %v2037 = vadd.f32 %v1360, %v1778
    %v2038 = vadd.f32 %v1361, %v2002
    %v2039 = vadd.f32 %v1362, %v2004
    %v2040 = vadd.f32 %v1363, %v1782
    %v2041 = vadd.f32 %v1364, %v1784
    %v2042 = vadd.f32 %v1365, %v2008
    %v2043 = vadd.f32 %v1366, %v2010
    %2044 = vst [vmem:[#allocation3] sm:$0xff] %v2012
    %2045 = vst [vmem:[#allocation3 + $0x8] sm:$0xff] %v2013
    %2046 = vst [vmem:[#allocation3 + $0x10] sm:$0xff] %v2014
    %2047 = vst [vmem:[#allocation3 + $0x18] sm:$0xff] %v2015
    %2048 = vst [vmem:[#allocation3 + $0x20] sm:$0xff] %v2016
    %2049 = vst [vmem:[#allocation3 + $0x28] sm:$0xff] %v2017
    %2050 = vst [vmem:[#allocation3 + $0x30] sm:$0xff] %v2018
    %2051 = vst [vmem:[#allocation3 + $0x38] sm:$0xff] %v2019
    %2052 = vst [vmem:[#allocation3 + $0x40] sm:$0xff] %v2020
    %2053 = vst [vmem:[#allocation3 + $0x48] sm:$0xff] %v2021
    %2054 = vst [vmem:[#allocation3 + $0x50] sm:$0xff] %v2022
    %2055 = vst [vmem:[#allocation3 + $0x58] sm:$0xff] %v2023
    %2056 = vst [vmem:[#allocation3 + $0x60] sm:$0xff] %v2024
    %2057 = vst [vmem:[#allocation3 + $0x68] sm:$0xff] %v2025
    %2058 = vst [vmem:[#allocation3 + $0x70] sm:$0xff] %v2026
    %2059 = vst [vmem:[#allocation3 + $0x78] sm:$0xff] %v2027
    %2060 = vst [vmem:[#allocation3 + $0x80] sm:$0xff] %v2028
    %2061 = vst [vmem:[#allocation3 + $0x88] sm:$0xff] %v2029
    %2062 = vst [vmem:[#allocation3 + $0x90] sm:$0xff] %v2030
    %2063 = vst [vmem:[#allocation3 + $0x98] sm:$0xff] %v2031
    %2064 = vst [vmem:[#allocation3 + $0xa0] sm:$0xff] %v2032
    %2065 = vst [vmem:[#allocation3 + $0xa8] sm:$0xff] %v2033
    %2066 = vst [vmem:[#allocation3 + $0xb0] sm:$0xff] %v2034
    %2067 = vst [vmem:[#allocation3 + $0xb8] sm:$0xff] %v2035
    %2068 = vst [vmem:[#allocation3 + $0xc0] sm:$0xff] %v2036
    %2069 = vst [vmem:[#allocation3 + $0xc8] sm:$0xff] %v2037
    %2070 = vst [vmem:[#allocation3 + $0xd0] sm:$0xff] %v2038
    %2071 = vst [vmem:[#allocation3 + $0xd8] sm:$0xff] %v2039
    %2072 = vst [vmem:[#allocation3 + $0xe0] sm:$0xff] %v2040
    %2073 = vst [vmem:[#allocation3 + $0xe8] sm:$0xff] %v2041
    %2074 = vst [vmem:[#allocation3 + $0xf0] sm:$0xff] %v2042
    %2075 = vst [vmem:[#allocation3 + $0xf8] sm:$0xff] %v2043
    %v2076 = vld [vmem:[#allocation2] sm:$0xfc]
    %v2077 = vld [vmem:[#allocation2 + $0x8] sm:$0xfc]
    %v2078 = vld [vmem:[#allocation2 + $0x10] sm:$0xfc]
    %v2079 = vld [vmem:[#allocation2 + $0x18] sm:$0x3]
    %v2080 = vld [vmem:[#allocation2 + $0x20] sm:$0x3]
    %v2081 = vld [vmem:[#allocation2 + $0x28] sm:$0x3]
    %v2082 = vld [vmem:[#allocation2 + $0x30] sm:$0xfc]
    %v2083 = vld [vmem:[#allocation2 + $0x38] sm:$0xfc]
    %v2084 = vld [vmem:[#allocation2 + $0x40] sm:$0xfc]
    %v2085 = vld [vmem:[#allocation2 + $0x48] sm:$0x3]
    %v2086 = vld [vmem:[#allocation2 + $0x50] sm:$0x3]
    %v2087 = vld [vmem:[#allocation2 + $0x58] sm:$0x3]
    %v2088 = vld [vmem:[#allocation2 + $0x60] sm:$0xfc]
    %v2089 = vld [vmem:[#allocation2 + $0x68] sm:$0xfc]
    %v2090 = vld [vmem:[#allocation2 + $0x70] sm:$0xfc]
    %v2091 = vld [vmem:[#allocation2 + $0x78] sm:$0x3]
    %v2092 = vld [vmem:[#allocation2 + $0x80] sm:$0x3]
    %v2093 = vld [vmem:[#allocation2 + $0x88] sm:$0x3]
    %v2094 = vld [vmem:[#allocation2 + $0x90] sm:$0xfc]
    %v2095 = vld [vmem:[#allocation2 + $0x98] sm:$0xfc]
    %v2096 = vld [vmem:[#allocation2 + $0xa0] sm:$0xfc]
    %v2097 = vld [vmem:[#allocation2 + $0xa8] sm:$0x3]
    %v2098 = vld [vmem:[#allocation2 + $0xb0] sm:$0x3]
    %v2099 = vld [vmem:[#allocation2 + $0xb8] sm:$0x3]
    %v2100 = vld [vmem:[#allocation2 + $0xc0] sm:$0xfc]
    %v2101 = vld [vmem:[#allocation2 + $0xc8] sm:$0xfc]
    %v2102 = vld [vmem:[#allocation2 + $0xd0] sm:$0xfc]
    %v2103 = vld [vmem:[#allocation2 + $0xd8] sm:$0x3]
    %v2104 = vld [vmem:[#allocation2 + $0xe0] sm:$0x3]
    %v2105 = vld [vmem:[#allocation2 + $0xe8] sm:$0x3]
    %v2106 = vld [vmem:[#allocation2 + $0xf0] sm:$0xfc]
    %v2107 = vld [vmem:[#allocation2 + $0xf8] sm:$0xfc]
    %v2108 = vld [vmem:[#allocation2 + $0x100] sm:$0xfc]
    %v2109 = vld [vmem:[#allocation2 + $0x108] sm:$0x3]
    %v2110 = vld [vmem:[#allocation2 + $0x110] sm:$0x3]
    %v2111 = vld [vmem:[#allocation2 + $0x118] sm:$0x3]
    %v2112 = vld [vmem:[#allocation2 + $0x120] sm:$0xfc]
    %v2113 = vld [vmem:[#allocation2 + $0x128] sm:$0xfc]
    %v2114 = vld [vmem:[#allocation2 + $0x130] sm:$0xfc]
    %v2115 = vld [vmem:[#allocation2 + $0x138] sm:$0x3]
    %v2116 = vld [vmem:[#allocation2 + $0x140] sm:$0x3]
    %v2117 = vld [vmem:[#allocation2 + $0x148] sm:$0x3]
    %v2118 = vld [vmem:[#allocation2 + $0x150] sm:$0xfc]
    %v2119 = vld [vmem:[#allocation2 + $0x158] sm:$0xfc]
    %v2120 = vld [vmem:[#allocation2 + $0x160] sm:$0xfc]
    %v2121 = vld [vmem:[#allocation2 + $0x168] sm:$0x3]
    %v2122 = vld [vmem:[#allocation2 + $0x170] sm:$0x3]
    %v2123 = vld [vmem:[#allocation2 + $0x178] sm:$0x3]
    %vm2172 = vcmask 1045504
    %v2173 = vrot.slane %v2076, 2
    %v2174 = vrot.slane %v2079, 2
    %v2175 = vsel %vm2172, %v2173, %v2174
    %v2176 = vrot.slane %v2077, 2
    %v2177 = vrot.slane %v2080, 2
    %v2178 = vsel %vm2172, %v2176, %v2177
    %v2179 = vrot.slane %v2078, 2
    %v2180 = vrot.slane %v2081, 2
    %v2181 = vsel %vm2172, %v2179, %v2180
    %v2182 = vrot.slane %v2082, 2
    %v2183 = vrot.slane %v2085, 2
    %v2184 = vsel %vm2172, %v2182, %v2183
    %v2185 = vrot.slane %v2083, 2
    %v2186 = vrot.slane %v2086, 2
    %v2187 = vsel %vm2172, %v2185, %v2186
    %v2188 = vrot.slane %v2084, 2
    %v2189 = vrot.slane %v2087, 2
    %v2190 = vsel %vm2172, %v2188, %v2189
    %v2191 = vrot.slane %v2088, 2
    %v2192 = vrot.slane %v2091, 2
    %v2193 = vsel %vm2172, %v2191, %v2192
    %v2194 = vrot.slane %v2089, 2
    %v2195 = vrot.slane %v2092, 2
    %v2196 = vsel %vm2172, %v2194, %v2195
    %v2197 = vrot.slane %v2090, 2
    %v2198 = vrot.slane %v2093, 2
    %v2199 = vsel %vm2172, %v2197, %v2198
    %v2200 = vrot.slane %v2094, 2
    %v2201 = vrot.slane %v2097, 2
    %v2202 = vsel %vm2172, %v2200, %v2201
    %v2203 = vrot.slane %v2095, 2
    %v2204 = vrot.slane %v2098, 2
    %v2205 = vsel %vm2172, %v2203, %v2204
    %v2206 = vrot.slane %v2096, 2
    %v2207 = vrot.slane %v2099, 2
    %v2208 = vsel %vm2172, %v2206, %v2207
    %v2209 = vrot.slane %v2100, 2
    %v2210 = vrot.slane %v2103, 2
    %v2211 = vsel %vm2172, %v2209, %v2210
    %v2212 = vrot.slane %v2101, 2
    %v2213 = vrot.slane %v2104, 2
    %v2214 = vsel %vm2172, %v2212, %v2213
    %v2215 = vrot.slane %v2102, 2
    %v2216 = vrot.slane %v2105, 2
    %v2217 = vsel %vm2172, %v2215, %v2216
    %v2218 = vrot.slane %v2106, 2
    %v2219 = vrot.slane %v2109, 2
    %v2220 = vsel %vm2172, %v2218, %v2219
    %v2221 = vrot.slane %v2107, 2
    %v2222 = vrot.slane %v2110, 2
    %v2223 = vsel %vm2172, %v2221, %v2222
    %v2224 = vrot.slane %v2108, 2
    %v2225 = vrot.slane %v2111, 2
    %v2226 = vsel %vm2172, %v2224, %v2225
    %v2227 = vrot.slane %v2112, 2
    %v2228 = vrot.slane %v2115, 2
    %v2229 = vsel %vm2172, %v2227, %v2228
    %v2230 = vrot.slane %v2113, 2
    %v2231 = vrot.slane %v2116, 2
    %v2232 = vsel %vm2172, %v2230, %v2231
    %v2233 = vrot.slane %v2114, 2
    %v2234 = vrot.slane %v2117, 2
    %v2235 = vsel %vm2172, %v2233, %v2234
    %v2236 = vrot.slane %v2118, 2
    %v2237 = vrot.slane %v2121, 2
    %v2238 = vsel %vm2172, %v2236, %v2237
    %v2239 = vrot.slane %v2119, 2
    %v2240 = vrot.slane %v2122, 2
    %v2241 = vsel %vm2172, %v2239, %v2240
    %v2242 = vrot.slane %v2120, 2
    %v2243 = vrot.slane %v2123, 2
    %v2244 = vsel %vm2172, %v2242, %v2243
    %v2269 = vld [vmem:[#allocation3] sm:$0xff]
    %v2270 = vld [vmem:[#allocation3 + $0x8] sm:$0xff]
    %v2271 = vld [vmem:[#allocation3 + $0x10] sm:$0xff]
    %v2272 = vld [vmem:[#allocation3 + $0x18] sm:$0xff]
    %v2273 = vld [vmem:[#allocation3 + $0x20] sm:$0xff]
    %v2274 = vld [vmem:[#allocation3 + $0x28] sm:$0xff]
    %v2275 = vld [vmem:[#allocation3 + $0x30] sm:$0xff]
    %v2276 = vld [vmem:[#allocation3 + $0x38] sm:$0xff]
    %v2277 = vld [vmem:[#allocation3 + $0x40] sm:$0xff]
    %v2278 = vld [vmem:[#allocation3 + $0x48] sm:$0xff]
    %v2279 = vld [vmem:[#allocation3 + $0x50] sm:$0xff]
    %v2280 = vld [vmem:[#allocation3 + $0x58] sm:$0xff]
    %v2281 = vld [vmem:[#allocation3 + $0x60] sm:$0xff]
    %v2282 = vld [vmem:[#allocation3 + $0x68] sm:$0xff]
    %v2283 = vld [vmem:[#allocation3 + $0x70] sm:$0xff]
    %v2284 = vld [vmem:[#allocation3 + $0x78] sm:$0xff]
    %v2285 = vld [vmem:[#allocation3 + $0x80] sm:$0xff]
    %v2286 = vld [vmem:[#allocation3 + $0x88] sm:$0xff]
    %v2287 = vld [vmem:[#allocation3 + $0x90] sm:$0xff]
    %v2288 = vld [vmem:[#allocation3 + $0x98] sm:$0xff]
    %v2289 = vld [vmem:[#allocation3 + $0xa0] sm:$0xff]
    %v2290 = vld [vmem:[#allocation3 + $0xa8] sm:$0xff]
    %v2291 = vld [vmem:[#allocation3 + $0xb0] sm:$0xff]
    %v2292 = vld [vmem:[#allocation3 + $0xb8] sm:$0xff]
    %v2293 = vld [vmem:[#allocation3 + $0xc0] sm:$0xff]
    %v2294 = vld [vmem:[#allocation3 + $0xc8] sm:$0xff]
    %v2295 = vld [vmem:[#allocation3 + $0xd0] sm:$0xff]
    %v2296 = vld [vmem:[#allocation3 + $0xd8] sm:$0xff]
    %v2297 = vld [vmem:[#allocation3 + $0xe0] sm:$0xff]
    %v2298 = vld [vmem:[#allocation3 + $0xe8] sm:$0xff]
    %v2299 = vld [vmem:[#allocation3 + $0xf0] sm:$0xff]
    %v2300 = vld [vmem:[#allocation3 + $0xf8] sm:$0xff]
    %s2301 = scalar_lea.vmem [#allocation7], 3072
    %v2302 = vld [vmem:[%s2301] sm:$0xff]
    %v2303 = vld [vmem:[%s2301 + $0x8] sm:$0xff]
    %v2304 = vld [vmem:[%s2301 + $0x10] sm:$0xff]
    %v2305 = vld [vmem:[%s2301 + $0x18] sm:$0xff]
    %v2306 = vld [vmem:[%s2301 + $0x20] sm:$0xff]
    %v2307 = vld [vmem:[%s2301 + $0x28] sm:$0xff]
    %v2308 = vld [vmem:[%s2301 + $0x30] sm:$0xff]
    %v2309 = vld [vmem:[%s2301 + $0x38] sm:$0xff]
    %v2310 = vld [vmem:[%s2301 + $0x40] sm:$0xff]
    %v2311 = vld [vmem:[%s2301 + $0x48] sm:$0xff]
    %v2312 = vld [vmem:[%s2301 + $0x50] sm:$0xff]
    %v2313 = vld [vmem:[%s2301 + $0x58] sm:$0xff]
    %v2314 = vld [vmem:[%s2301 + $0x60] sm:$0xff]
    %v2315 = vld [vmem:[%s2301 + $0x68] sm:$0xff]
    %v2316 = vld [vmem:[%s2301 + $0x70] sm:$0xff]
    %v2317 = vld [vmem:[%s2301 + $0x78] sm:$0xff]
    %v2318 = vld [vmem:[%s2301 + $0x80] sm:$0xff]
    %v2319 = vld [vmem:[%s2301 + $0x88] sm:$0xff]
    %v2320 = vld [vmem:[%s2301 + $0x90] sm:$0xff]
    %v2321 = vld [vmem:[%s2301 + $0x98] sm:$0xff]
    %v2322 = vld [vmem:[%s2301 + $0xa0] sm:$0xff]
    %v2323 = vld [vmem:[%s2301 + $0xa8] sm:$0xff]
    %v2324 = vld [vmem:[%s2301 + $0xb0] sm:$0xff]
    %v2325 = vld [vmem:[%s2301 + $0xb8] sm:$0xff]
    %v2326 = vld [vmem:[%s2301 + $0xc0] sm:$0xff]
    %v2327 = vld [vmem:[%s2301 + $0xc8] sm:$0xff]
    %v2328 = vld [vmem:[%s2301 + $0xd0] sm:$0xff]
    %v2329 = vld [vmem:[%s2301 + $0xd8] sm:$0xff]
    %v2330 = vld [vmem:[%s2301 + $0xe0] sm:$0xff]
    %v2331 = vld [vmem:[%s2301 + $0xe8] sm:$0xff]
    %v2332 = vld [vmem:[%s2301 + $0xf0] sm:$0xff]
    %v2333 = vld [vmem:[%s2301 + $0xf8] sm:$0xff]
    %v2334 = vld [vmem:[%s2301 + $0x100] sm:$0xff]
    %v2335 = vld [vmem:[%s2301 + $0x108] sm:$0xff]
    %v2336 = vld [vmem:[%s2301 + $0x110] sm:$0xff]
    %v2337 = vld [vmem:[%s2301 + $0x118] sm:$0xff]
    %v2338 = vld [vmem:[%s2301 + $0x120] sm:$0xff]
    %v2339 = vld [vmem:[%s2301 + $0x128] sm:$0xff]
    %v2340 = vld [vmem:[%s2301 + $0x130] sm:$0xff]
    %v2341 = vld [vmem:[%s2301 + $0x138] sm:$0xff]
    %v2342 = vld [vmem:[%s2301 + $0x140] sm:$0xff]
    %v2343 = vld [vmem:[%s2301 + $0x148] sm:$0xff]
    %v2344 = vld [vmem:[%s2301 + $0x150] sm:$0xff]
    %v2345 = vld [vmem:[%s2301 + $0x158] sm:$0xff]
    %v2346 = vld [vmem:[%s2301 + $0x160] sm:$0xff]
    %v2347 = vld [vmem:[%s2301 + $0x168] sm:$0xff]
    %v2348 = vld [vmem:[%s2301 + $0x170] sm:$0xff]
    %v2349 = vld [vmem:[%s2301 + $0x178] sm:$0xff]
    %v2350 = vld [vmem:[%s2301 + $0x180] sm:$0xff]
    %v2351 = vld [vmem:[%s2301 + $0x188] sm:$0xff]
    %v2352 = vld [vmem:[%s2301 + $0x190] sm:$0xff]
    %v2353 = vld [vmem:[%s2301 + $0x198] sm:$0xff]
    %v2354 = vld [vmem:[%s2301 + $0x1a0] sm:$0xff]
    %v2355 = vld [vmem:[%s2301 + $0x1a8] sm:$0xff]
    %v2356 = vld [vmem:[%s2301 + $0x1b0] sm:$0xff]
    %v2357 = vld [vmem:[%s2301 + $0x1b8] sm:$0xff]
    %v2358 = vld [vmem:[%s2301 + $0x1c0] sm:$0xff]
    %v2359 = vld [vmem:[%s2301 + $0x1c8] sm:$0xff]
    %v2360 = vld [vmem:[%s2301 + $0x1d0] sm:$0xff]
    %v2361 = vld [vmem:[%s2301 + $0x1d8] sm:$0xff]
    %v2362 = vld [vmem:[%s2301 + $0x1e0] sm:$0xff]
    %v2363 = vld [vmem:[%s2301 + $0x1e8] sm:$0xff]
    %v2364 = vld [vmem:[%s2301 + $0x1f0] sm:$0xff]
    %v2365 = vld [vmem:[%s2301 + $0x1f8] sm:$0xff]
    %v2366 = vld [vmem:[%s2301 + $0x200] sm:$0xff]
    %v2367 = vld [vmem:[%s2301 + $0x208] sm:$0xff]
    %v2368 = vld [vmem:[%s2301 + $0x210] sm:$0xff]
    %v2369 = vld [vmem:[%s2301 + $0x218] sm:$0xff]
    %v2370 = vld [vmem:[%s2301 + $0x220] sm:$0xff]
    %v2371 = vld [vmem:[%s2301 + $0x228] sm:$0xff]
    %v2372 = vld [vmem:[%s2301 + $0x230] sm:$0xff]
    %v2373 = vld [vmem:[%s2301 + $0x238] sm:$0xff]
    %v2374 = vld [vmem:[%s2301 + $0x240] sm:$0xff]
    %v2375 = vld [vmem:[%s2301 + $0x248] sm:$0xff]
    %v2376 = vld [vmem:[%s2301 + $0x250] sm:$0xff]
    %v2377 = vld [vmem:[%s2301 + $0x258] sm:$0xff]
    %v2378 = vld [vmem:[%s2301 + $0x260] sm:$0xff]
    %v2379 = vld [vmem:[%s2301 + $0x268] sm:$0xff]
    %v2380 = vld [vmem:[%s2301 + $0x270] sm:$0xff]
    %v2381 = vld [vmem:[%s2301 + $0x278] sm:$0xff]
    %v2382 = vld [vmem:[%s2301 + $0x280] sm:$0xff]
    %v2383 = vld [vmem:[%s2301 + $0x288] sm:$0xff]
    %v2384 = vld [vmem:[%s2301 + $0x290] sm:$0xff]
    %v2385 = vld [vmem:[%s2301 + $0x298] sm:$0xff]
    %v2386 = vld [vmem:[%s2301 + $0x2a0] sm:$0xff]
    %v2387 = vld [vmem:[%s2301 + $0x2a8] sm:$0xff]
    %v2388 = vld [vmem:[%s2301 + $0x2b0] sm:$0xff]
    %v2389 = vld [vmem:[%s2301 + $0x2b8] sm:$0xff]
    %v2390 = vld [vmem:[%s2301 + $0x2c0] sm:$0xff]
    %v2391 = vld [vmem:[%s2301 + $0x2c8] sm:$0xff]
    %v2392 = vld [vmem:[%s2301 + $0x2d0] sm:$0xff]
    %v2393 = vld [vmem:[%s2301 + $0x2d8] sm:$0xff]
    %v2394 = vld [vmem:[%s2301 + $0x2e0] sm:$0xff]
    %v2395 = vld [vmem:[%s2301 + $0x2e8] sm:$0xff]
    %v2396 = vld [vmem:[%s2301 + $0x2f0] sm:$0xff]
    %v2397 = vld [vmem:[%s2301 + $0x2f8] sm:$0xff]
    %v2398 = vld [vmem:[%s2301 + $0x300] sm:$0xff]
    %v2399 = vld [vmem:[%s2301 + $0x308] sm:$0xff]
    %v2400 = vld [vmem:[%s2301 + $0x310] sm:$0xff]
    %v2401 = vld [vmem:[%s2301 + $0x318] sm:$0xff]
    %v2402 = vld [vmem:[%s2301 + $0x320] sm:$0xff]
    %v2403 = vld [vmem:[%s2301 + $0x328] sm:$0xff]
    %v2404 = vld [vmem:[%s2301 + $0x330] sm:$0xff]
    %v2405 = vld [vmem:[%s2301 + $0x338] sm:$0xff]
    %v2406 = vld [vmem:[%s2301 + $0x340] sm:$0xff]
    %v2407 = vld [vmem:[%s2301 + $0x348] sm:$0xff]
    %v2408 = vld [vmem:[%s2301 + $0x350] sm:$0xff]
    %v2409 = vld [vmem:[%s2301 + $0x358] sm:$0xff]
    %v2410 = vld [vmem:[%s2301 + $0x360] sm:$0xff]
    %v2411 = vld [vmem:[%s2301 + $0x368] sm:$0xff]
    %v2412 = vld [vmem:[%s2301 + $0x370] sm:$0xff]
    %v2413 = vld [vmem:[%s2301 + $0x378] sm:$0xff]
    %v2414 = vld [vmem:[%s2301 + $0x380] sm:$0xff]
    %v2415 = vld [vmem:[%s2301 + $0x388] sm:$0xff]
    %v2416 = vld [vmem:[%s2301 + $0x390] sm:$0xff]
    %v2417 = vld [vmem:[%s2301 + $0x398] sm:$0xff]
    %v2418 = vld [vmem:[%s2301 + $0x3a0] sm:$0xff]
    %v2419 = vld [vmem:[%s2301 + $0x3a8] sm:$0xff]
    %v2420 = vld [vmem:[%s2301 + $0x3b0] sm:$0xff]
    %v2421 = vld [vmem:[%s2301 + $0x3b8] sm:$0xff]
    %v2422 = vld [vmem:[%s2301 + $0x3c0] sm:$0xff]
    %v2423 = vld [vmem:[%s2301 + $0x3c8] sm:$0xff]
    %v2424 = vld [vmem:[%s2301 + $0x3d0] sm:$0xff]
    %v2425 = vld [vmem:[%s2301 + $0x3d8] sm:$0xff]
    %v2426 = vld [vmem:[%s2301 + $0x3e0] sm:$0xff]
    %v2427 = vld [vmem:[%s2301 + $0x3e8] sm:$0xff]
    %v2428 = vld [vmem:[%s2301 + $0x3f0] sm:$0xff]
    %v2429 = vld [vmem:[%s2301 + $0x3f8] sm:$0xff]
    %v2430 = vld [vmem:[%s2301 + $0x400] sm:$0xff]
    %v2431 = vld [vmem:[%s2301 + $0x408] sm:$0xff]
    %v2432 = vld [vmem:[%s2301 + $0x410] sm:$0xff]
    %v2433 = vld [vmem:[%s2301 + $0x418] sm:$0xff]
    %v2434 = vld [vmem:[%s2301 + $0x420] sm:$0xff]
    %v2435 = vld [vmem:[%s2301 + $0x428] sm:$0xff]
    %v2436 = vld [vmem:[%s2301 + $0x430] sm:$0xff]
    %v2437 = vld [vmem:[%s2301 + $0x438] sm:$0xff]
    %v2438 = vld [vmem:[%s2301 + $0x440] sm:$0xff]
    %v2439 = vld [vmem:[%s2301 + $0x448] sm:$0xff]
    %v2440 = vld [vmem:[%s2301 + $0x450] sm:$0xff]
    %v2441 = vld [vmem:[%s2301 + $0x458] sm:$0xff]
    %v2442 = vld [vmem:[%s2301 + $0x460] sm:$0xff]
    %v2443 = vld [vmem:[%s2301 + $0x468] sm:$0xff]
    %v2444 = vld [vmem:[%s2301 + $0x470] sm:$0xff]
    %v2445 = vld [vmem:[%s2301 + $0x478] sm:$0xff]
    %v2446 = vld [vmem:[%s2301 + $0x480] sm:$0xff]
    %v2447 = vld [vmem:[%s2301 + $0x488] sm:$0xff]
    %v2448 = vld [vmem:[%s2301 + $0x490] sm:$0xff]
    %v2449 = vld [vmem:[%s2301 + $0x498] sm:$0xff]
    %v2450 = vld [vmem:[%s2301 + $0x4a0] sm:$0xff]
    %v2451 = vld [vmem:[%s2301 + $0x4a8] sm:$0xff]
    %v2452 = vld [vmem:[%s2301 + $0x4b0] sm:$0xff]
    %v2453 = vld [vmem:[%s2301 + $0x4b8] sm:$0xff]
    %v2454 = vld [vmem:[%s2301 + $0x4c0] sm:$0xff]
    %v2455 = vld [vmem:[%s2301 + $0x4c8] sm:$0xff]
    %v2456 = vld [vmem:[%s2301 + $0x4d0] sm:$0xff]
    %v2457 = vld [vmem:[%s2301 + $0x4d8] sm:$0xff]
    %v2458 = vld [vmem:[%s2301 + $0x4e0] sm:$0xff]
    %v2459 = vld [vmem:[%s2301 + $0x4e8] sm:$0xff]
    %v2460 = vld [vmem:[%s2301 + $0x4f0] sm:$0xff]
    %v2461 = vld [vmem:[%s2301 + $0x4f8] sm:$0xff]
    %v2462 = vld [vmem:[%s2301 + $0x500] sm:$0xff]
    %v2463 = vld [vmem:[%s2301 + $0x508] sm:$0xff]
    %v2464 = vld [vmem:[%s2301 + $0x510] sm:$0xff]
    %v2465 = vld [vmem:[%s2301 + $0x518] sm:$0xff]
    %v2466 = vld [vmem:[%s2301 + $0x520] sm:$0xff]
    %v2467 = vld [vmem:[%s2301 + $0x528] sm:$0xff]
    %v2468 = vld [vmem:[%s2301 + $0x530] sm:$0xff]
    %v2469 = vld [vmem:[%s2301 + $0x538] sm:$0xff]
    %v2470 = vld [vmem:[%s2301 + $0x540] sm:$0xff]
    %v2471 = vld [vmem:[%s2301 + $0x548] sm:$0xff]
    %v2472 = vld [vmem:[%s2301 + $0x550] sm:$0xff]
    %v2473 = vld [vmem:[%s2301 + $0x558] sm:$0xff]
    %v2474 = vld [vmem:[%s2301 + $0x560] sm:$0xff]
    %v2475 = vld [vmem:[%s2301 + $0x568] sm:$0xff]
    %v2476 = vld [vmem:[%s2301 + $0x570] sm:$0xff]
    %v2477 = vld [vmem:[%s2301 + $0x578] sm:$0xff]
    %v2478 = vld [vmem:[%s2301 + $0x580] sm:$0xff]
    %v2479 = vld [vmem:[%s2301 + $0x588] sm:$0xff]
    %v2480 = vld [vmem:[%s2301 + $0x590] sm:$0xff]
    %v2481 = vld [vmem:[%s2301 + $0x598] sm:$0xff]
    %v2482 = vld [vmem:[%s2301 + $0x5a0] sm:$0xff]
    %v2483 = vld [vmem:[%s2301 + $0x5a8] sm:$0xff]
    %v2484 = vld [vmem:[%s2301 + $0x5b0] sm:$0xff]
    %v2485 = vld [vmem:[%s2301 + $0x5b8] sm:$0xff]
    %v2486 = vld [vmem:[%s2301 + $0x5c0] sm:$0xff]
    %v2487 = vld [vmem:[%s2301 + $0x5c8] sm:$0xff]
    %v2488 = vld [vmem:[%s2301 + $0x5d0] sm:$0xff]
    %v2489 = vld [vmem:[%s2301 + $0x5d8] sm:$0xff]
    %v2490 = vld [vmem:[%s2301 + $0x5e0] sm:$0xff]
    %v2491 = vld [vmem:[%s2301 + $0x5e8] sm:$0xff]
    %v2492 = vld [vmem:[%s2301 + $0x5f0] sm:$0xff]
    %v2493 = vld [vmem:[%s2301 + $0x5f8] sm:$0xff]
    %2494 = vmatprep.subr.mxu0 %v2363
    %2495 = vmatpush1.msra.mxu0 %v2362
    %2496 = vmatprep.subr.mxu0 %v2359
    %2497 = vmatpush1.msra.mxu0 %v2358
    %2498 = vmatprep.subr.mxu0 %v2355
    %2499 = vmatpush1.msra.mxu0 %v2354
    %2500 = vmatprep.subr.mxu0 %v2351
    %2501 = vmatpush1.msra.mxu0 %v2350
    %2502 = vmatprep.subr.mxu0 %v2347
    %2503 = vmatpush1.msra.mxu0 %v2346
    %2504 = vmatprep.subr.mxu0 %v2343
    %2505 = vmatpush1.msra.mxu0 %v2342
    %2506 = vmatprep.subr.mxu0 %v2339
    %2507 = vmatpush1.msra.mxu0 %v2338
    %2508 = vmatprep.subr.mxu0 %v2335
    %2509 = vmatpush1.msra.mxu0 %v2334
    %2510 = vmatprep.subr.mxu0 %v2331
    %2511 = vmatpush1.msra.mxu0 %v2330
    %2512 = vmatprep.subr.mxu0 %v2327
    %2513 = vmatpush1.msra.mxu0 %v2326
    %2514 = vmatprep.subr.mxu0 %v2323
    %2515 = vmatpush1.msra.mxu0 %v2322
    %2516 = vmatprep.subr.mxu0 %v2319
    %2517 = vmatpush1.msra.mxu0 %v2318
    %2518 = vmatprep.subr.mxu0 %v2315
    %2519 = vmatpush1.msra.mxu0 %v2314
    %2520 = vmatprep.subr.mxu0 %v2311
    %2521 = vmatpush1.msra.mxu0 %v2310
    %2522 = vmatprep.subr.mxu0 %v2307
    %2523 = vmatpush1.msra.mxu0 %v2306
    %2524 = vmatprep.subr.mxu0 %v2303
    %2525 = vmatpush1.msra.mxu0 %v2302
    %2526 = vmatprep.subr.mxu0 %v2427
    %2527 = vmatpush2.msra.mxu0 %v2426
    %2528 = vmatprep.subr.mxu0 %v2423
    %2529 = vmatpush2.msra.mxu0 %v2422
    %2530 = vmatprep.subr.mxu0 %v2419
    %2531 = vmatpush2.msra.mxu0 %v2418
    %2532 = vmatprep.subr.mxu0 %v2415
    %2533 = vmatpush2.msra.mxu0 %v2414
    %2534 = vmatprep.subr.mxu0 %v2411
    %2535 = vmatpush2.msra.mxu0 %v2410
    %2536 = vmatprep.subr.mxu0 %v2407
    %2537 = vmatpush2.msra.mxu0 %v2406
    %2538 = vmatprep.subr.mxu0 %v2403
    %2539 = vmatpush2.msra.mxu0 %v2402
    %2540 = vmatprep.subr.mxu0 %v2399
    %2541 = vmatpush2.msra.mxu0 %v2398
    %2542 = vmatprep.subr.mxu0 %v2395
    %2543 = vmatpush2.msra.mxu0 %v2394
    %2544 = vmatprep.subr.mxu0 %v2391
    %2545 = vmatpush2.msra.mxu0 %v2390
    %2546 = vmatprep.subr.mxu0 %v2387
    %2547 = vmatpush2.msra.mxu0 %v2386
    %2548 = vmatprep.subr.mxu0 %v2383
    %2549 = vmatpush2.msra.mxu0 %v2382
    %2550 = vmatprep.subr.mxu0 %v2379
    %2551 = vmatpush2.msra.mxu0 %v2378
    %2552 = vmatprep.subr.mxu0 %v2375
    %2553 = vmatpush2.msra.mxu0 %v2374
    %2554 = vmatprep.subr.mxu0 %v2371
    %2555 = vmatpush2.msra.mxu0 %v2370
    %2556 = vmatprep.subr.mxu0 %v2367
    %2557 = vmatpush2.msra.mxu0 %v2366
    %2558 = vmatprep.mubr.f32.mxu0 %v2178
    %2559 = vmatmul.mubr.f32.gmra.mxu0 %v2175
    %v2560 = vpop.f32.mrf.mxu0
    %v2561 = vadd.f32 0.0, %v2560
    %v2562 = vpop.f32.mrf.mxu0
    %v2563 = vadd.f32 0.0, %v2562
    %2564 = vmatprep.mubr.f32.mxu0 %v2187
    %2565 = vmatmul.mubr.f32.gmra.mxu0 %v2184
    %v2566 = vpop.f32.mrf.mxu0
    %v2567 = vadd.f32 0.0, %v2566
    %v2568 = vpop.f32.mrf.mxu0
    %v2569 = vadd.f32 0.0, %v2568
    %2570 = vmatprep.mubr.f32.mxu0 %v2196
    %2571 = vmatmul.mubr.f32.gmra.mxu0 %v2193
    %v2572 = vpop.f32.mrf.mxu0
    %v2573 = vadd.f32 0.0, %v2572
    %v2574 = vpop.f32.mrf.mxu0
    %v2575 = vadd.f32 0.0, %v2574
    %2576 = vmatprep.mubr.f32.mxu0 %v2205
    %2577 = vmatmul.mubr.f32.gmra.mxu0 %v2202
    %v2578 = vpop.f32.mrf.mxu0
    %v2579 = vadd.f32 0.0, %v2578
    %v2580 = vpop.f32.mrf.mxu0
    %v2581 = vadd.f32 0.0, %v2580
    %2582 = vmatprep.mubr.f32.mxu0 %v2214
    %2583 = vmatmul.mubr.f32.gmra.mxu0 %v2211
    %v2584 = vpop.f32.mrf.mxu0
    %v2585 = vadd.f32 0.0, %v2584
    %v2586 = vpop.f32.mrf.mxu0
    %v2587 = vadd.f32 0.0, %v2586
    %2588 = vmatprep.mubr.f32.mxu0 %v2223
    %2589 = vmatmul.mubr.f32.gmra.mxu0 %v2220
    %v2590 = vpop.f32.mrf.mxu0
    %v2591 = vadd.f32 0.0, %v2590
    %v2592 = vpop.f32.mrf.mxu0
    %v2593 = vadd.f32 0.0, %v2592
    %2594 = vmatprep.mubr.f32.mxu0 %v2232
    %2595 = vmatmul.mubr.f32.gmra.mxu0 %v2229
    %v2596 = vpop.f32.mrf.mxu0
    %v2597 = vadd.f32 0.0, %v2596
    %v2598 = vpop.f32.mrf.mxu0
    %v2599 = vadd.f32 0.0, %v2598
    %2600 = vmatprep.mubr.f32.mxu0 %v2241
    %2601 = vmatmul.mubr.f32.gmra.mxu0 %v2238
    %v2602 = vpop.f32.mrf.mxu0
    %v2603 = vadd.f32 0.0, %v2602
    %v2604 = vpop.f32.mrf.mxu0
    %v2605 = vadd.f32 0.0, %v2604
    %2606 = vdwg.mxu0
    %2607 = vmatprep.subr.mxu0 %v2491
    %2608 = vmatpush1.msra.mxu0 %v2490
    %2609 = vmatprep.subr.mxu0 %v2487
    %2610 = vmatpush1.msra.mxu0 %v2486
    %2611 = vmatprep.subr.mxu0 %v2483
    %2612 = vmatpush1.msra.mxu0 %v2482
    %2613 = vmatprep.subr.mxu0 %v2479
    %2614 = vmatpush1.msra.mxu0 %v2478
    %2615 = vmatprep.subr.mxu0 %v2475
    %2616 = vmatpush1.msra.mxu0 %v2474
    %2617 = vmatprep.subr.mxu0 %v2471
    %2618 = vmatpush1.msra.mxu0 %v2470
    %2619 = vmatprep.subr.mxu0 %v2467
    %2620 = vmatpush1.msra.mxu0 %v2466
    %2621 = vmatprep.subr.mxu0 %v2463
    %2622 = vmatpush1.msra.mxu0 %v2462
    %2623 = vmatprep.subr.mxu0 %v2459
    %2624 = vmatpush1.msra.mxu0 %v2458
    %2625 = vmatprep.subr.mxu0 %v2455
    %2626 = vmatpush1.msra.mxu0 %v2454
    %2627 = vmatprep.subr.mxu0 %v2451
    %2628 = vmatpush1.msra.mxu0 %v2450
    %2629 = vmatprep.subr.mxu0 %v2447
    %2630 = vmatpush1.msra.mxu0 %v2446
    %2631 = vmatprep.subr.mxu0 %v2443
    %2632 = vmatpush1.msra.mxu0 %v2442
    %2633 = vmatprep.subr.mxu0 %v2439
    %2634 = vmatpush1.msra.mxu0 %v2438
    %2635 = vmatprep.subr.mxu0 %v2435
    %2636 = vmatpush1.msra.mxu0 %v2434
    %2637 = vmatprep.subr.mxu0 %v2431
    %2638 = vmatpush1.msra.mxu0 %v2430
    %2639 = vmatprep.subr.mxu0 0.0
    %2640 = vmatpush2.msra.mxu0 0.0
    %2641 = vmatprep.subr.mxu0 0.0
    %2642 = vmatpush2.msra.mxu0 0.0
    %2643 = vmatprep.subr.mxu0 0.0
    %2644 = vmatpush2.msra.mxu0 0.0
    %2645 = vmatprep.subr.mxu0 0.0
    %2646 = vmatpush2.msra.mxu0 0.0
    %2647 = vmatprep.subr.mxu0 0.0
    %2648 = vmatpush2.msra.mxu0 0.0
    %2649 = vmatprep.subr.mxu0 0.0
    %2650 = vmatpush2.msra.mxu0 0.0
    %2651 = vmatprep.subr.mxu0 0.0
    %2652 = vmatpush2.msra.mxu0 0.0
    %2653 = vmatprep.subr.mxu0 0.0
    %2654 = vmatpush2.msra.mxu0 0.0
    %2655 = vmatprep.subr.mxu0 0.0
    %2656 = vmatpush2.msra.mxu0 0.0
    %2657 = vmatprep.subr.mxu0 0.0
    %2658 = vmatpush2.msra.mxu0 0.0
    %2659 = vmatprep.subr.mxu0 0.0
    %2660 = vmatpush2.msra.mxu0 0.0
    %2661 = vmatprep.subr.mxu0 0.0
    %2662 = vmatpush2.msra.mxu0 0.0
    %2663 = vmatprep.subr.mxu0 0.0
    %2664 = vmatpush2.msra.mxu0 0.0
    %2665 = vmatprep.subr.mxu0 0.0
    %2666 = vmatpush2.msra.mxu0 0.0
    %2667 = vmatprep.subr.mxu0 0.0
    %2668 = vmatpush2.msra.mxu0 0.0
    %2669 = vmatprep.subr.mxu0 0.0
    %2670 = vmatpush2.msra.mxu0 0.0
    %2671 = vmatprep.mubr.f32.mxu0 0.0
    %2672 = vmatmul.mubr.f32.gmra.mxu0 %v2181
    %v2673 = vpop.f32.mrf.mxu0
    %v2674 = vadd.f32 %v2561, %v2673
    %v2675 = vpop.f32.mrf.mxu0
    %v2676 = vadd.f32 %v2563, %v2675
    %2677 = vmatprep.mubr.f32.mxu0 0.0
    %2678 = vmatmul.mubr.f32.gmra.mxu0 %v2190
    %v2679 = vpop.f32.mrf.mxu0
    %v2680 = vadd.f32 %v2567, %v2679
    %v2681 = vpop.f32.mrf.mxu0
    %v2682 = vadd.f32 %v2569, %v2681
    %2683 = vmatprep.mubr.f32.mxu0 0.0
    %2684 = vmatmul.mubr.f32.gmra.mxu0 %v2199
    %v2685 = vpop.f32.mrf.mxu0
    %v2686 = vadd.f32 %v2573, %v2685
    %v2687 = vpop.f32.mrf.mxu0
    %v2688 = vadd.f32 %v2575, %v2687
    %2689 = vmatprep.mubr.f32.mxu0 0.0
    %2690 = vmatmul.mubr.f32.gmra.mxu0 %v2208
    %v2691 = vpop.f32.mrf.mxu0
    %v2692 = vadd.f32 %v2579, %v2691
    %v2693 = vpop.f32.mrf.mxu0
    %v2694 = vadd.f32 %v2581, %v2693
    %2695 = vmatprep.mubr.f32.mxu0 0.0
    %2696 = vmatmul.mubr.f32.gmra.mxu0 %v2217
    %v2697 = vpop.f32.mrf.mxu0
    %v2698 = vadd.f32 %v2585, %v2697
    %v2699 = vpop.f32.mrf.mxu0
    %v2700 = vadd.f32 %v2587, %v2699
    %2701 = vmatprep.mubr.f32.mxu0 0.0
    %2702 = vmatmul.mubr.f32.gmra.mxu0 %v2226
    %v2703 = vpop.f32.mrf.mxu0
    %v2704 = vadd.f32 %v2591, %v2703
    %v2705 = vpop.f32.mrf.mxu0
    %v2706 = vadd.f32 %v2593, %v2705
    %2707 = vmatprep.mubr.f32.mxu0 0.0
    %2708 = vmatmul.mubr.f32.gmra.mxu0 %v2235
    %v2709 = vpop.f32.mrf.mxu0
    %v2710 = vadd.f32 %v2597, %v2709
    %v2711 = vpop.f32.mrf.mxu0
    %v2712 = vadd.f32 %v2599, %v2711
    %2713 = vmatprep.mubr.f32.mxu0 0.0
    %2714 = vmatmul.mubr.f32.gmra.mxu0 %v2244
    %v2715 = vpop.f32.mrf.mxu0
    %v2716 = vadd.f32 %v2603, %v2715
    %v2717 = vpop.f32.mrf.mxu0
    %v2718 = vadd.f32 %v2605, %v2717
    %2719 = vdwg.mxu0
    %2720 = vmatprep.subr.mxu0 %v2365
    %2721 = vmatpush1.msra.mxu0 %v2364
    %2722 = vmatprep.subr.mxu0 %v2361
    %2723 = vmatpush1.msra.mxu0 %v2360
    %2724 = vmatprep.subr.mxu0 %v2357
    %2725 = vmatpush1.msra.mxu0 %v2356
    %2726 = vmatprep.subr.mxu0 %v2353
    %2727 = vmatpush1.msra.mxu0 %v2352
    %2728 = vmatprep.subr.mxu0 %v2349
    %2729 = vmatpush1.msra.mxu0 %v2348
    %2730 = vmatprep.subr.mxu0 %v2345
    %2731 = vmatpush1.msra.mxu0 %v2344
    %2732 = vmatprep.subr.mxu0 %v2341
    %2733 = vmatpush1.msra.mxu0 %v2340
    %2734 = vmatprep.subr.mxu0 %v2337
    %2735 = vmatpush1.msra.mxu0 %v2336
    %2736 = vmatprep.subr.mxu0 %v2333
    %2737 = vmatpush1.msra.mxu0 %v2332
    %2738 = vmatprep.subr.mxu0 %v2329
    %2739 = vmatpush1.msra.mxu0 %v2328
    %2740 = vmatprep.subr.mxu0 %v2325
    %2741 = vmatpush1.msra.mxu0 %v2324
    %2742 = vmatprep.subr.mxu0 %v2321
    %2743 = vmatpush1.msra.mxu0 %v2320
    %2744 = vmatprep.subr.mxu0 %v2317
    %2745 = vmatpush1.msra.mxu0 %v2316
    %2746 = vmatprep.subr.mxu0 %v2313
    %2747 = vmatpush1.msra.mxu0 %v2312
    %2748 = vmatprep.subr.mxu0 %v2309
    %2749 = vmatpush1.msra.mxu0 %v2308
    %2750 = vmatprep.subr.mxu0 %v2305
    %2751 = vmatpush1.msra.mxu0 %v2304
    %2752 = vmatprep.subr.mxu0 %v2429
    %2753 = vmatpush2.msra.mxu0 %v2428
    %2754 = vmatprep.subr.mxu0 %v2425
    %2755 = vmatpush2.msra.mxu0 %v2424
    %2756 = vmatprep.subr.mxu0 %v2421
    %2757 = vmatpush2.msra.mxu0 %v2420
    %2758 = vmatprep.subr.mxu0 %v2417
    %2759 = vmatpush2.msra.mxu0 %v2416
    %2760 = vmatprep.subr.mxu0 %v2413
    %2761 = vmatpush2.msra.mxu0 %v2412
    %2762 = vmatprep.subr.mxu0 %v2409
    %2763 = vmatpush2.msra.mxu0 %v2408
    %2764 = vmatprep.subr.mxu0 %v2405
    %2765 = vmatpush2.msra.mxu0 %v2404
    %2766 = vmatprep.subr.mxu0 %v2401
    %2767 = vmatpush2.msra.mxu0 %v2400
    %2768 = vmatprep.subr.mxu0 %v2397
    %2769 = vmatpush2.msra.mxu0 %v2396
    %2770 = vmatprep.subr.mxu0 %v2393
    %2771 = vmatpush2.msra.mxu0 %v2392
    %2772 = vmatprep.subr.mxu0 %v2389
    %2773 = vmatpush2.msra.mxu0 %v2388
    %2774 = vmatprep.subr.mxu0 %v2385
    %2775 = vmatpush2.msra.mxu0 %v2384
    %2776 = vmatprep.subr.mxu0 %v2381
    %2777 = vmatpush2.msra.mxu0 %v2380
    %2778 = vmatprep.subr.mxu0 %v2377
    %2779 = vmatpush2.msra.mxu0 %v2376
    %2780 = vmatprep.subr.mxu0 %v2373
    %2781 = vmatpush2.msra.mxu0 %v2372
    %2782 = vmatprep.subr.mxu0 %v2369
    %2783 = vmatpush2.msra.mxu0 %v2368
    %2784 = vmatprep.mubr.f32.mxu0 %v2178
    %2785 = vmatmul.mubr.f32.gmra.mxu0 %v2175
    %v2786 = vpop.f32.mrf.mxu0
    %v2787 = vadd.f32 0.0, %v2786
    %v2788 = vpop.f32.mrf.mxu0
    %v2789 = vadd.f32 0.0, %v2788
    %2790 = vmatprep.mubr.f32.mxu0 %v2187
    %2791 = vmatmul.mubr.f32.gmra.mxu0 %v2184
    %v2792 = vpop.f32.mrf.mxu0
    %v2793 = vadd.f32 0.0, %v2792
    %v2794 = vpop.f32.mrf.mxu0
    %v2795 = vadd.f32 0.0, %v2794
    %2796 = vmatprep.mubr.f32.mxu0 %v2196
    %2797 = vmatmul.mubr.f32.gmra.mxu0 %v2193
    %v2798 = vpop.f32.mrf.mxu0
    %v2799 = vadd.f32 0.0, %v2798
    %v2800 = vpop.f32.mrf.mxu0
    %v2801 = vadd.f32 0.0, %v2800
    %2802 = vmatprep.mubr.f32.mxu0 %v2205
    %2803 = vmatmul.mubr.f32.gmra.mxu0 %v2202
    %v2804 = vpop.f32.mrf.mxu0
    %v2805 = vadd.f32 0.0, %v2804
    %v2806 = vpop.f32.mrf.mxu0
    %v2807 = vadd.f32 0.0, %v2806
    %2808 = vmatprep.mubr.f32.mxu0 %v2214
    %2809 = vmatmul.mubr.f32.gmra.mxu0 %v2211
    %v2810 = vpop.f32.mrf.mxu0
    %v2811 = vadd.f32 0.0, %v2810
    %v2812 = vpop.f32.mrf.mxu0
    %v2813 = vadd.f32 0.0, %v2812
    %2814 = vmatprep.mubr.f32.mxu0 %v2223
    %2815 = vmatmul.mubr.f32.gmra.mxu0 %v2220
    %v2816 = vpop.f32.mrf.mxu0
    %v2817 = vadd.f32 0.0, %v2816
    %v2818 = vpop.f32.mrf.mxu0
    %v2819 = vadd.f32 0.0, %v2818
    %2820 = vmatprep.mubr.f32.mxu0 %v2232
    %2821 = vmatmul.mubr.f32.gmra.mxu0 %v2229
    %v2822 = vpop.f32.mrf.mxu0
    %v2823 = vadd.f32 0.0, %v2822
    %v2824 = vpop.f32.mrf.mxu0
    %v2825 = vadd.f32 0.0, %v2824
    %2826 = vmatprep.mubr.f32.mxu0 %v2241
    %2827 = vmatmul.mubr.f32.gmra.mxu0 %v2238
    %v2828 = vpop.f32.mrf.mxu0
    %v2829 = vadd.f32 0.0, %v2828
    %v2830 = vpop.f32.mrf.mxu0
    %v2831 = vadd.f32 0.0, %v2830
    %2832 = vdwg.mxu0
    %2833 = vmatprep.subr.mxu0 %v2493
    %2834 = vmatpush1.msra.mxu0 %v2492
    %2835 = vmatprep.subr.mxu0 %v2489
    %2836 = vmatpush1.msra.mxu0 %v2488
    %2837 = vmatprep.subr.mxu0 %v2485
    %2838 = vmatpush1.msra.mxu0 %v2484
    %2839 = vmatprep.subr.mxu0 %v2481
    %2840 = vmatpush1.msra.mxu0 %v2480
    %2841 = vmatprep.subr.mxu0 %v2477
    %2842 = vmatpush1.msra.mxu0 %v2476
    %2843 = vmatprep.subr.mxu0 %v2473
    %2844 = vmatpush1.msra.mxu0 %v2472
    %2845 = vmatprep.subr.mxu0 %v2469
    %2846 = vmatpush1.msra.mxu0 %v2468
    %2847 = vmatprep.subr.mxu0 %v2465
    %2848 = vmatpush1.msra.mxu0 %v2464
    %2849 = vmatprep.subr.mxu0 %v2461
    %2850 = vmatpush1.msra.mxu0 %v2460
    %2851 = vmatprep.subr.mxu0 %v2457
    %2852 = vmatpush1.msra.mxu0 %v2456
    %2853 = vmatprep.subr.mxu0 %v2453
    %2854 = vmatpush1.msra.mxu0 %v2452
    %2855 = vmatprep.subr.mxu0 %v2449
    %2856 = vmatpush1.msra.mxu0 %v2448
    %2857 = vmatprep.subr.mxu0 %v2445
    %2858 = vmatpush1.msra.mxu0 %v2444
    %2859 = vmatprep.subr.mxu0 %v2441
    %2860 = vmatpush1.msra.mxu0 %v2440
    %2861 = vmatprep.subr.mxu0 %v2437
    %2862 = vmatpush1.msra.mxu0 %v2436
    %2863 = vmatprep.subr.mxu0 %v2433
    %2864 = vmatpush1.msra.mxu0 %v2432
    %2865 = vmatprep.subr.mxu0 0.0
    %2866 = vmatpush2.msra.mxu0 0.0
    %2867 = vmatprep.subr.mxu0 0.0
    %2868 = vmatpush2.msra.mxu0 0.0
    %2869 = vmatprep.subr.mxu0 0.0
    %2870 = vmatpush2.msra.mxu0 0.0
    %2871 = vmatprep.subr.mxu0 0.0
    %2872 = vmatpush2.msra.mxu0 0.0
    %2873 = vmatprep.subr.mxu0 0.0
    %2874 = vmatpush2.msra.mxu0 0.0
    %2875 = vmatprep.subr.mxu0 0.0
    %2876 = vmatpush2.msra.mxu0 0.0
    %2877 = vmatprep.subr.mxu0 0.0
    %2878 = vmatpush2.msra.mxu0 0.0
    %2879 = vmatprep.subr.mxu0 0.0
    %2880 = vmatpush2.msra.mxu0 0.0
    %2881 = vmatprep.subr.mxu0 0.0
    %2882 = vmatpush2.msra.mxu0 0.0
    %2883 = vmatprep.subr.mxu0 0.0
    %2884 = vmatpush2.msra.mxu0 0.0
    %2885 = vmatprep.subr.mxu0 0.0
    %2886 = vmatpush2.msra.mxu0 0.0
    %2887 = vmatprep.subr.mxu0 0.0
    %2888 = vmatpush2.msra.mxu0 0.0
    %2889 = vmatprep.subr.mxu0 0.0
    %2890 = vmatpush2.msra.mxu0 0.0
    %2891 = vmatprep.subr.mxu0 0.0
    %2892 = vmatpush2.msra.mxu0 0.0
    %2893 = vmatprep.subr.mxu0 0.0
    %2894 = vmatpush2.msra.mxu0 0.0
    %2895 = vmatprep.subr.mxu0 0.0
    %2896 = vmatpush2.msra.mxu0 0.0
    %2897 = vmatprep.mubr.f32.mxu0 0.0
    %2898 = vmatmul.mubr.f32.gmra.mxu0 %v2181
    %v2899 = vpop.f32.mrf.mxu0
    %v2900 = vadd.f32 %v2787, %v2899
    %v2901 = vpop.f32.mrf.mxu0
    %v2902 = vadd.f32 %v2789, %v2901
    %2903 = vmatprep.mubr.f32.mxu0 0.0
    %2904 = vmatmul.mubr.f32.gmra.mxu0 %v2190
    %v2905 = vpop.f32.mrf.mxu0
    %v2906 = vadd.f32 %v2793, %v2905
    %v2907 = vpop.f32.mrf.mxu0
    %v2908 = vadd.f32 %v2795, %v2907
    %2909 = vmatprep.mubr.f32.mxu0 0.0
    %2910 = vmatmul.mubr.f32.gmra.mxu0 %v2199
    %v2911 = vpop.f32.mrf.mxu0
    %v2912 = vadd.f32 %v2799, %v2911
    %v2913 = vpop.f32.mrf.mxu0
    %v2914 = vadd.f32 %v2801, %v2913
    %2915 = vmatprep.mubr.f32.mxu0 0.0
    %2916 = vmatmul.mubr.f32.gmra.mxu0 %v2208
    %v2917 = vpop.f32.mrf.mxu0
    %v2918 = vadd.f32 %v2805, %v2917
    %v2919 = vpop.f32.mrf.mxu0
    %v2920 = vadd.f32 %v2807, %v2919
    %2921 = vmatprep.mubr.f32.mxu0 0.0
    %2922 = vmatmul.mubr.f32.gmra.mxu0 %v2217
    %v2923 = vpop.f32.mrf.mxu0
    %v2924 = vadd.f32 %v2811, %v2923
    %v2925 = vpop.f32.mrf.mxu0
    %v2926 = vadd.f32 %v2813, %v2925
    %2927 = vmatprep.mubr.f32.mxu0 0.0
    %2928 = vmatmul.mubr.f32.gmra.mxu0 %v2226
    %v2929 = vpop.f32.mrf.mxu0
    %v2930 = vadd.f32 %v2817, %v2929
    %v2931 = vpop.f32.mrf.mxu0
    %v2932 = vadd.f32 %v2819, %v2931
    %2933 = vmatprep.mubr.f32.mxu0 0.0
    %2934 = vmatmul.mubr.f32.gmra.mxu0 %v2235
    %v2935 = vpop.f32.mrf.mxu0
    %v2936 = vadd.f32 %v2823, %v2935
    %v2937 = vpop.f32.mrf.mxu0
    %v2938 = vadd.f32 %v2825, %v2937
    %2939 = vmatprep.mubr.f32.mxu0 0.0
    %2940 = vmatmul.mubr.f32.gmra.mxu0 %v2244
    %v2941 = vpop.f32.mrf.mxu0
    %v2942 = vadd.f32 %v2829, %v2941
    %v2943 = vpop.f32.mrf.mxu0
    %v2944 = vadd.f32 %v2831, %v2943
    %2945 = vdwg.mxu0
    %v2946 = vadd.f32 %v2269, %v2674
    %v2947 = vadd.f32 %v2270, %v2676
    %v2948 = vadd.f32 %v2271, %v2900
    %v2949 = vadd.f32 %v2272, %v2902
    %v2950 = vadd.f32 %v2273, %v2680
    %v2951 = vadd.f32 %v2274, %v2682
    %v2952 = vadd.f32 %v2275, %v2906
    %v2953 = vadd.f32 %v2276, %v2908
    %v2954 = vadd.f32 %v2277, %v2686
    %v2955 = vadd.f32 %v2278, %v2688
    %v2956 = vadd.f32 %v2279, %v2912
    %v2957 = vadd.f32 %v2280, %v2914
    %v2958 = vadd.f32 %v2281, %v2692
    %v2959 = vadd.f32 %v2282, %v2694
    %v2960 = vadd.f32 %v2283, %v2918
    %v2961 = vadd.f32 %v2284, %v2920
    %v2962 = vadd.f32 %v2285, %v2698
    %v2963 = vadd.f32 %v2286, %v2700
    %v2964 = vadd.f32 %v2287, %v2924
    %v2965 = vadd.f32 %v2288, %v2926
    %v2966 = vadd.f32 %v2289, %v2704
    %v2967 = vadd.f32 %v2290, %v2706
    %v2968 = vadd.f32 %v2291, %v2930
    %v2969 = vadd.f32 %v2292, %v2932
    %v2970 = vadd.f32 %v2293, %v2710
    %v2971 = vadd.f32 %v2294, %v2712
    %v2972 = vadd.f32 %v2295, %v2936
    %v2973 = vadd.f32 %v2296, %v2938
    %v2974 = vadd.f32 %v2297, %v2716
    %v2975 = vadd.f32 %v2298, %v2718
    %v2976 = vadd.f32 %v2299, %v2942
    %v2977 = vadd.f32 %v2300, %v2944
    %2978 = vst [vmem:[#allocation3] sm:$0xff] %v2946
    %2979 = vst [vmem:[#allocation3 + $0x8] sm:$0xff] %v2947
    %2980 = vst [vmem:[#allocation3 + $0x10] sm:$0xff] %v2948
    %2981 = vst [vmem:[#allocation3 + $0x18] sm:$0xff] %v2949
    %2982 = vst [vmem:[#allocation3 + $0x20] sm:$0xff] %v2950
    %2983 = vst [vmem:[#allocation3 + $0x28] sm:$0xff] %v2951
    %2984 = vst [vmem:[#allocation3 + $0x30] sm:$0xff] %v2952
    %2985 = vst [vmem:[#allocation3 + $0x38] sm:$0xff] %v2953
    %2986 = vst [vmem:[#allocation3 + $0x40] sm:$0xff] %v2954
    %2987 = vst [vmem:[#allocation3 + $0x48] sm:$0xff] %v2955
    %2988 = vst [vmem:[#allocation3 + $0x50] sm:$0xff] %v2956
    %2989 = vst [vmem:[#allocation3 + $0x58] sm:$0xff] %v2957
    %2990 = vst [vmem:[#allocation3 + $0x60] sm:$0xff] %v2958
    %2991 = vst [vmem:[#allocation3 + $0x68] sm:$0xff] %v2959
    %2992 = vst [vmem:[#allocation3 + $0x70] sm:$0xff] %v2960
    %2993 = vst [vmem:[#allocation3 + $0x78] sm:$0xff] %v2961
    %2994 = vst [vmem:[#allocation3 + $0x80] sm:$0xff] %v2962
    %2995 = vst [vmem:[#allocation3 + $0x88] sm:$0xff] %v2963
    %2996 = vst [vmem:[#allocation3 + $0x90] sm:$0xff] %v2964
    %2997 = vst [vmem:[#allocation3 + $0x98] sm:$0xff] %v2965
    %2998 = vst [vmem:[#allocation3 + $0xa0] sm:$0xff] %v2966
    %2999 = vst [vmem:[#allocation3 + $0xa8] sm:$0xff] %v2967
    %3000 = vst [vmem:[#allocation3 + $0xb0] sm:$0xff] %v2968
    %3001 = vst [vmem:[#allocation3 + $0xb8] sm:$0xff] %v2969
    %3002 = vst [vmem:[#allocation3 + $0xc0] sm:$0xff] %v2970
    %3003 = vst [vmem:[#allocation3 + $0xc8] sm:$0xff] %v2971
    %3004 = vst [vmem:[#allocation3 + $0xd0] sm:$0xff] %v2972
    %3005 = vst [vmem:[#allocation3 + $0xd8] sm:$0xff] %v2973
    %3006 = vst [vmem:[#allocation3 + $0xe0] sm:$0xff] %v2974
    %3007 = vst [vmem:[#allocation3 + $0xe8] sm:$0xff] %v2975
    %3008 = vst [vmem:[#allocation3 + $0xf0] sm:$0xff] %v2976
    %3009 = vst [vmem:[#allocation3 + $0xf8] sm:$0xff] %v2977
    %v3010 = vld [vmem:[#allocation2] sm:$0xf8]
    %v3011 = vld [vmem:[#allocation2 + $0x8] sm:$0xf8]
    %v3012 = vld [vmem:[#allocation2 + $0x10] sm:$0xf8]
    %v3013 = vld [vmem:[#allocation2 + $0x18] sm:$0x7]
    %v3014 = vld [vmem:[#allocation2 + $0x20] sm:$0x7]
    %v3015 = vld [vmem:[#allocation2 + $0x28] sm:$0x7]
    %v3016 = vld [vmem:[#allocation2 + $0x30] sm:$0xf8]
    %v3017 = vld [vmem:[#allocation2 + $0x38] sm:$0xf8]
    %v3018 = vld [vmem:[#allocation2 + $0x40] sm:$0xf8]
    %v3019 = vld [vmem:[#allocation2 + $0x48] sm:$0x7]
    %v3020 = vld [vmem:[#allocation2 + $0x50] sm:$0x7]
    %v3021 = vld [vmem:[#allocation2 + $0x58] sm:$0x7]
    %v3022 = vld [vmem:[#allocation2 + $0x60] sm:$0xf8]
    %v3023 = vld [vmem:[#allocation2 + $0x68] sm:$0xf8]
    %v3024 = vld [vmem:[#allocation2 + $0x70] sm:$0xf8]
    %v3025 = vld [vmem:[#allocation2 + $0x78] sm:$0x7]
    %v3026 = vld [vmem:[#allocation2 + $0x80] sm:$0x7]
    %v3027 = vld [vmem:[#allocation2 + $0x88] sm:$0x7]
    %v3028 = vld [vmem:[#allocation2 + $0x90] sm:$0xf8]
    %v3029 = vld [vmem:[#allocation2 + $0x98] sm:$0xf8]
    %v3030 = vld [vmem:[#allocation2 + $0xa0] sm:$0xf8]
    %v3031 = vld [vmem:[#allocation2 + $0xa8] sm:$0x7]
    %v3032 = vld [vmem:[#allocation2 + $0xb0] sm:$0x7]
    %v3033 = vld [vmem:[#allocation2 + $0xb8] sm:$0x7]
    %v3034 = vld [vmem:[#allocation2 + $0xc0] sm:$0xf8]
    %v3035 = vld [vmem:[#allocation2 + $0xc8] sm:$0xf8]
    %v3036 = vld [vmem:[#allocation2 + $0xd0] sm:$0xf8]
    %v3037 = vld [vmem:[#allocation2 + $0xd8] sm:$0x7]
    %v3038 = vld [vmem:[#allocation2 + $0xe0] sm:$0x7]
    %v3039 = vld [vmem:[#allocation2 + $0xe8] sm:$0x7]
    %v3040 = vld [vmem:[#allocation2 + $0xf0] sm:$0xf8]
    %v3041 = vld [vmem:[#allocation2 + $0xf8] sm:$0xf8]
    %v3042 = vld [vmem:[#allocation2 + $0x100] sm:$0xf8]
    %v3043 = vld [vmem:[#allocation2 + $0x108] sm:$0x7]
    %v3044 = vld [vmem:[#allocation2 + $0x110] sm:$0x7]
    %v3045 = vld [vmem:[#allocation2 + $0x118] sm:$0x7]
    %v3046 = vld [vmem:[#allocation2 + $0x120] sm:$0xf8]
    %v3047 = vld [vmem:[#allocation2 + $0x128] sm:$0xf8]
    %v3048 = vld [vmem:[#allocation2 + $0x130] sm:$0xf8]
    %v3049 = vld [vmem:[#allocation2 + $0x138] sm:$0x7]
    %v3050 = vld [vmem:[#allocation2 + $0x140] sm:$0x7]
    %v3051 = vld [vmem:[#allocation2 + $0x148] sm:$0x7]
    %v3052 = vld [vmem:[#allocation2 + $0x150] sm:$0xf8]
    %v3053 = vld [vmem:[#allocation2 + $0x158] sm:$0xf8]
    %v3054 = vld [vmem:[#allocation2 + $0x160] sm:$0xf8]
    %v3055 = vld [vmem:[#allocation2 + $0x168] sm:$0x7]
    %v3056 = vld [vmem:[#allocation2 + $0x170] sm:$0x7]
    %v3057 = vld [vmem:[#allocation2 + $0x178] sm:$0x7]
    %vm3106 = vcmask 1044480
    %v3107 = vrot.slane %v3010, 3
    %v3108 = vrot.slane %v3013, 3
    %v3109 = vsel %vm3106, %v3107, %v3108
    %v3110 = vrot.slane %v3011, 3
    %v3111 = vrot.slane %v3014, 3
    %v3112 = vsel %vm3106, %v3110, %v3111
    %v3113 = vrot.slane %v3012, 3
    %v3114 = vrot.slane %v3015, 3
    %v3115 = vsel %vm3106, %v3113, %v3114
    %v3116 = vrot.slane %v3016, 3
    %v3117 = vrot.slane %v3019, 3
    %v3118 = vsel %vm3106, %v3116, %v3117
    %v3119 = vrot.slane %v3017, 3
    %v3120 = vrot.slane %v3020, 3
    %v3121 = vsel %vm3106, %v3119, %v3120
    %v3122 = vrot.slane %v3018, 3
    %v3123 = vrot.slane %v3021, 3
    %v3124 = vsel %vm3106, %v3122, %v3123
    %v3125 = vrot.slane %v3022, 3
    %v3126 = vrot.slane %v3025, 3
    %v3127 = vsel %vm3106, %v3125, %v3126
    %v3128 = vrot.slane %v3023, 3
    %v3129 = vrot.slane %v3026, 3
    %v3130 = vsel %vm3106, %v3128, %v3129
    %v3131 = vrot.slane %v3024, 3
    %v3132 = vrot.slane %v3027, 3
    %v3133 = vsel %vm3106, %v3131, %v3132
    %v3134 = vrot.slane %v3028, 3
    %v3135 = vrot.slane %v3031, 3
    %v3136 = vsel %vm3106, %v3134, %v3135
    %v3137 = vrot.slane %v3029, 3
    %v3138 = vrot.slane %v3032, 3
    %v3139 = vsel %vm3106, %v3137, %v3138
    %v3140 = vrot.slane %v3030, 3
    %v3141 = vrot.slane %v3033, 3
    %v3142 = vsel %vm3106, %v3140, %v3141
    %v3143 = vrot.slane %v3034, 3
    %v3144 = vrot.slane %v3037, 3
    %v3145 = vsel %vm3106, %v3143, %v3144
    %v3146 = vrot.slane %v3035, 3
    %v3147 = vrot.slane %v3038, 3
    %v3148 = vsel %vm3106, %v3146, %v3147
    %v3149 = vrot.slane %v3036, 3
    %v3150 = vrot.slane %v3039, 3
    %v3151 = vsel %vm3106, %v3149, %v3150
    %v3152 = vrot.slane %v3040, 3
    %v3153 = vrot.slane %v3043, 3
    %v3154 = vsel %vm3106, %v3152, %v3153
    %v3155 = vrot.slane %v3041, 3
    %v3156 = vrot.slane %v3044, 3
    %v3157 = vsel %vm3106, %v3155, %v3156
    %v3158 = vrot.slane %v3042, 3
    %v3159 = vrot.slane %v3045, 3
    %v3160 = vsel %vm3106, %v3158, %v3159
    %v3161 = vrot.slane %v3046, 3
    %v3162 = vrot.slane %v3049, 3
    %v3163 = vsel %vm3106, %v3161, %v3162
    %v3164 = vrot.slane %v3047, 3
    %v3165 = vrot.slane %v3050, 3
    %v3166 = vsel %vm3106, %v3164, %v3165
    %v3167 = vrot.slane %v3048, 3
    %v3168 = vrot.slane %v3051, 3
    %v3169 = vsel %vm3106, %v3167, %v3168
    %v3170 = vrot.slane %v3052, 3
    %v3171 = vrot.slane %v3055, 3
    %v3172 = vsel %vm3106, %v3170, %v3171
    %v3173 = vrot.slane %v3053, 3
    %v3174 = vrot.slane %v3056, 3
    %v3175 = vsel %vm3106, %v3173, %v3174
    %v3176 = vrot.slane %v3054, 3
    %v3177 = vrot.slane %v3057, 3
    %v3178 = vsel %vm3106, %v3176, %v3177
    %v3203 = vld [vmem:[#allocation3] sm:$0xff]
    %v3204 = vld [vmem:[#allocation3 + $0x8] sm:$0xff]
    %v3205 = vld [vmem:[#allocation3 + $0x10] sm:$0xff]
    %v3206 = vld [vmem:[#allocation3 + $0x18] sm:$0xff]
    %v3207 = vld [vmem:[#allocation3 + $0x20] sm:$0xff]
    %v3208 = vld [vmem:[#allocation3 + $0x28] sm:$0xff]
    %v3209 = vld [vmem:[#allocation3 + $0x30] sm:$0xff]
    %v3210 = vld [vmem:[#allocation3 + $0x38] sm:$0xff]
    %v3211 = vld [vmem:[#allocation3 + $0x40] sm:$0xff]
    %v3212 = vld [vmem:[#allocation3 + $0x48] sm:$0xff]
    %v3213 = vld [vmem:[#allocation3 + $0x50] sm:$0xff]
    %v3214 = vld [vmem:[#allocation3 + $0x58] sm:$0xff]
    %v3215 = vld [vmem:[#allocation3 + $0x60] sm:$0xff]
    %v3216 = vld [vmem:[#allocation3 + $0x68] sm:$0xff]
    %v3217 = vld [vmem:[#allocation3 + $0x70] sm:$0xff]
    %v3218 = vld [vmem:[#allocation3 + $0x78] sm:$0xff]
    %v3219 = vld [vmem:[#allocation3 + $0x80] sm:$0xff]
    %v3220 = vld [vmem:[#allocation3 + $0x88] sm:$0xff]
    %v3221 = vld [vmem:[#allocation3 + $0x90] sm:$0xff]
    %v3222 = vld [vmem:[#allocation3 + $0x98] sm:$0xff]
    %v3223 = vld [vmem:[#allocation3 + $0xa0] sm:$0xff]
    %v3224 = vld [vmem:[#allocation3 + $0xa8] sm:$0xff]
    %v3225 = vld [vmem:[#allocation3 + $0xb0] sm:$0xff]
    %v3226 = vld [vmem:[#allocation3 + $0xb8] sm:$0xff]
    %v3227 = vld [vmem:[#allocation3 + $0xc0] sm:$0xff]
    %v3228 = vld [vmem:[#allocation3 + $0xc8] sm:$0xff]
    %v3229 = vld [vmem:[#allocation3 + $0xd0] sm:$0xff]
    %v3230 = vld [vmem:[#allocation3 + $0xd8] sm:$0xff]
    %v3231 = vld [vmem:[#allocation3 + $0xe0] sm:$0xff]
    %v3232 = vld [vmem:[#allocation3 + $0xe8] sm:$0xff]
    %v3233 = vld [vmem:[#allocation3 + $0xf0] sm:$0xff]
    %v3234 = vld [vmem:[#allocation3 + $0xf8] sm:$0xff]
    %s3235 = scalar_lea.vmem [#allocation7], 4608
    %v3236 = vld [vmem:[%s3235] sm:$0xff]
    %v3237 = vld [vmem:[%s3235 + $0x8] sm:$0xff]
    %v3238 = vld [vmem:[%s3235 + $0x10] sm:$0xff]
    %v3239 = vld [vmem:[%s3235 + $0x18] sm:$0xff]
    %v3240 = vld [vmem:[%s3235 + $0x20] sm:$0xff]
    %v3241 = vld [vmem:[%s3235 + $0x28] sm:$0xff]
    %v3242 = vld [vmem:[%s3235 + $0x30] sm:$0xff]
    %v3243 = vld [vmem:[%s3235 + $0x38] sm:$0xff]
    %v3244 = vld [vmem:[%s3235 + $0x40] sm:$0xff]
    %v3245 = vld [vmem:[%s3235 + $0x48] sm:$0xff]
    %v3246 = vld [vmem:[%s3235 + $0x50] sm:$0xff]
    %v3247 = vld [vmem:[%s3235 + $0x58] sm:$0xff]
    %v3248 = vld [vmem:[%s3235 + $0x60] sm:$0xff]
    %v3249 = vld [vmem:[%s3235 + $0x68] sm:$0xff]
    %v3250 = vld [vmem:[%s3235 + $0x70] sm:$0xff]
    %v3251 = vld [vmem:[%s3235 + $0x78] sm:$0xff]
    %v3252 = vld [vmem:[%s3235 + $0x80] sm:$0xff]
    %v3253 = vld [vmem:[%s3235 + $0x88] sm:$0xff]
    %v3254 = vld [vmem:[%s3235 + $0x90] sm:$0xff]
    %v3255 = vld [vmem:[%s3235 + $0x98] sm:$0xff]
    %v3256 = vld [vmem:[%s3235 + $0xa0] sm:$0xff]
    %v3257 = vld [vmem:[%s3235 + $0xa8] sm:$0xff]
    %v3258 = vld [vmem:[%s3235 + $0xb0] sm:$0xff]
    %v3259 = vld [vmem:[%s3235 + $0xb8] sm:$0xff]
    %v3260 = vld [vmem:[%s3235 + $0xc0] sm:$0xff]
    %v3261 = vld [vmem:[%s3235 + $0xc8] sm:$0xff]
    %v3262 = vld [vmem:[%s3235 + $0xd0] sm:$0xff]
    %v3263 = vld [vmem:[%s3235 + $0xd8] sm:$0xff]
    %v3264 = vld [vmem:[%s3235 + $0xe0] sm:$0xff]
    %v3265 = vld [vmem:[%s3235 + $0xe8] sm:$0xff]
    %v3266 = vld [vmem:[%s3235 + $0xf0] sm:$0xff]
    %v3267 = vld [vmem:[%s3235 + $0xf8] sm:$0xff]
    %v3268 = vld [vmem:[%s3235 + $0x100] sm:$0xff]
    %v3269 = vld [vmem:[%s3235 + $0x108] sm:$0xff]
    %v3270 = vld [vmem:[%s3235 + $0x110] sm:$0xff]
    %v3271 = vld [vmem:[%s3235 + $0x118] sm:$0xff]
    %v3272 = vld [vmem:[%s3235 + $0x120] sm:$0xff]
    %v3273 = vld [vmem:[%s3235 + $0x128] sm:$0xff]
    %v3274 = vld [vmem:[%s3235 + $0x130] sm:$0xff]
    %v3275 = vld [vmem:[%s3235 + $0x138] sm:$0xff]
    %v3276 = vld [vmem:[%s3235 + $0x140] sm:$0xff]
    %v3277 = vld [vmem:[%s3235 + $0x148] sm:$0xff]
    %v3278 = vld [vmem:[%s3235 + $0x150] sm:$0xff]
    %v3279 = vld [vmem:[%s3235 + $0x158] sm:$0xff]
    %v3280 = vld [vmem:[%s3235 + $0x160] sm:$0xff]
    %v3281 = vld [vmem:[%s3235 + $0x168] sm:$0xff]
    %v3282 = vld [vmem:[%s3235 + $0x170] sm:$0xff]
    %v3283 = vld [vmem:[%s3235 + $0x178] sm:$0xff]
    %v3284 = vld [vmem:[%s3235 + $0x180] sm:$0xff]
    %v3285 = vld [vmem:[%s3235 + $0x188] sm:$0xff]
    %v3286 = vld [vmem:[%s3235 + $0x190] sm:$0xff]
    %v3287 = vld [vmem:[%s3235 + $0x198] sm:$0xff]
    %v3288 = vld [vmem:[%s3235 + $0x1a0] sm:$0xff]
    %v3289 = vld [vmem:[%s3235 + $0x1a8] sm:$0xff]
    %v3290 = vld [vmem:[%s3235 + $0x1b0] sm:$0xff]
    %v3291 = vld [vmem:[%s3235 + $0x1b8] sm:$0xff]
    %v3292 = vld [vmem:[%s3235 + $0x1c0] sm:$0xff]
    %v3293 = vld [vmem:[%s3235 + $0x1c8] sm:$0xff]
    %v3294 = vld [vmem:[%s3235 + $0x1d0] sm:$0xff]
    %v3295 = vld [vmem:[%s3235 + $0x1d8] sm:$0xff]
    %v3296 = vld [vmem:[%s3235 + $0x1e0] sm:$0xff]
    %v3297 = vld [vmem:[%s3235 + $0x1e8] sm:$0xff]
    %v3298 = vld [vmem:[%s3235 + $0x1f0] sm:$0xff]
    %v3299 = vld [vmem:[%s3235 + $0x1f8] sm:$0xff]
    %v3300 = vld [vmem:[%s3235 + $0x200] sm:$0xff]
    %v3301 = vld [vmem:[%s3235 + $0x208] sm:$0xff]
    %v3302 = vld [vmem:[%s3235 + $0x210] sm:$0xff]
    %v3303 = vld [vmem:[%s3235 + $0x218] sm:$0xff]
    %v3304 = vld [vmem:[%s3235 + $0x220] sm:$0xff]
    %v3305 = vld [vmem:[%s3235 + $0x228] sm:$0xff]
    %v3306 = vld [vmem:[%s3235 + $0x230] sm:$0xff]
    %v3307 = vld [vmem:[%s3235 + $0x238] sm:$0xff]
    %v3308 = vld [vmem:[%s3235 + $0x240] sm:$0xff]
    %v3309 = vld [vmem:[%s3235 + $0x248] sm:$0xff]
    %v3310 = vld [vmem:[%s3235 + $0x250] sm:$0xff]
    %v3311 = vld [vmem:[%s3235 + $0x258] sm:$0xff]
    %v3312 = vld [vmem:[%s3235 + $0x260] sm:$0xff]
    %v3313 = vld [vmem:[%s3235 + $0x268] sm:$0xff]
    %v3314 = vld [vmem:[%s3235 + $0x270] sm:$0xff]
    %v3315 = vld [vmem:[%s3235 + $0x278] sm:$0xff]
    %v3316 = vld [vmem:[%s3235 + $0x280] sm:$0xff]
    %v3317 = vld [vmem:[%s3235 + $0x288] sm:$0xff]
    %v3318 = vld [vmem:[%s3235 + $0x290] sm:$0xff]
    %v3319 = vld [vmem:[%s3235 + $0x298] sm:$0xff]
    %v3320 = vld [vmem:[%s3235 + $0x2a0] sm:$0xff]
    %v3321 = vld [vmem:[%s3235 + $0x2a8] sm:$0xff]
    %v3322 = vld [vmem:[%s3235 + $0x2b0] sm:$0xff]
    %v3323 = vld [vmem:[%s3235 + $0x2b8] sm:$0xff]
    %v3324 = vld [vmem:[%s3235 + $0x2c0] sm:$0xff]
    %v3325 = vld [vmem:[%s3235 + $0x2c8] sm:$0xff]
    %v3326 = vld [vmem:[%s3235 + $0x2d0] sm:$0xff]
    %v3327 = vld [vmem:[%s3235 + $0x2d8] sm:$0xff]
    %v3328 = vld [vmem:[%s3235 + $0x2e0] sm:$0xff]
    %v3329 = vld [vmem:[%s3235 + $0x2e8] sm:$0xff]
    %v3330 = vld [vmem:[%s3235 + $0x2f0] sm:$0xff]
    %v3331 = vld [vmem:[%s3235 + $0x2f8] sm:$0xff]
    %v3332 = vld [vmem:[%s3235 + $0x300] sm:$0xff]
    %v3333 = vld [vmem:[%s3235 + $0x308] sm:$0xff]
    %v3334 = vld [vmem:[%s3235 + $0x310] sm:$0xff]
    %v3335 = vld [vmem:[%s3235 + $0x318] sm:$0xff]
    %v3336 = vld [vmem:[%s3235 + $0x320] sm:$0xff]
    %v3337 = vld [vmem:[%s3235 + $0x328] sm:$0xff]
    %v3338 = vld [vmem:[%s3235 + $0x330] sm:$0xff]
    %v3339 = vld [vmem:[%s3235 + $0x338] sm:$0xff]
    %v3340 = vld [vmem:[%s3235 + $0x340] sm:$0xff]
    %v3341 = vld [vmem:[%s3235 + $0x348] sm:$0xff]
    %v3342 = vld [vmem:[%s3235 + $0x350] sm:$0xff]
    %v3343 = vld [vmem:[%s3235 + $0x358] sm:$0xff]
    %v3344 = vld [vmem:[%s3235 + $0x360] sm:$0xff]
    %v3345 = vld [vmem:[%s3235 + $0x368] sm:$0xff]
    %v3346 = vld [vmem:[%s3235 + $0x370] sm:$0xff]
    %v3347 = vld [vmem:[%s3235 + $0x378] sm:$0xff]
    %v3348 = vld [vmem:[%s3235 + $0x380] sm:$0xff]
    %v3349 = vld [vmem:[%s3235 + $0x388] sm:$0xff]
    %v3350 = vld [vmem:[%s3235 + $0x390] sm:$0xff]
    %v3351 = vld [vmem:[%s3235 + $0x398] sm:$0xff]
    %v3352 = vld [vmem:[%s3235 + $0x3a0] sm:$0xff]
    %v3353 = vld [vmem:[%s3235 + $0x3a8] sm:$0xff]
    %v3354 = vld [vmem:[%s3235 + $0x3b0] sm:$0xff]
    %v3355 = vld [vmem:[%s3235 + $0x3b8] sm:$0xff]
    %v3356 = vld [vmem:[%s3235 + $0x3c0] sm:$0xff]
    %v3357 = vld [vmem:[%s3235 + $0x3c8] sm:$0xff]
    %v3358 = vld [vmem:[%s3235 + $0x3d0] sm:$0xff]
    %v3359 = vld [vmem:[%s3235 + $0x3d8] sm:$0xff]
    %v3360 = vld [vmem:[%s3235 + $0x3e0] sm:$0xff]
    %v3361 = vld [vmem:[%s3235 + $0x3e8] sm:$0xff]
    %v3362 = vld [vmem:[%s3235 + $0x3f0] sm:$0xff]
    %v3363 = vld [vmem:[%s3235 + $0x3f8] sm:$0xff]
    %v3364 = vld [vmem:[%s3235 + $0x400] sm:$0xff]
    %v3365 = vld [vmem:[%s3235 + $0x408] sm:$0xff]
    %v3366 = vld [vmem:[%s3235 + $0x410] sm:$0xff]
    %v3367 = vld [vmem:[%s3235 + $0x418] sm:$0xff]
    %v3368 = vld [vmem:[%s3235 + $0x420] sm:$0xff]
    %v3369 = vld [vmem:[%s3235 + $0x428] sm:$0xff]
    %v3370 = vld [vmem:[%s3235 + $0x430] sm:$0xff]
    %v3371 = vld [vmem:[%s3235 + $0x438] sm:$0xff]
    %v3372 = vld [vmem:[%s3235 + $0x440] sm:$0xff]
    %v3373 = vld [vmem:[%s3235 + $0x448] sm:$0xff]
    %v3374 = vld [vmem:[%s3235 + $0x450] sm:$0xff]
    %v3375 = vld [vmem:[%s3235 + $0x458] sm:$0xff]
    %v3376 = vld [vmem:[%s3235 + $0x460] sm:$0xff]
    %v3377 = vld [vmem:[%s3235 + $0x468] sm:$0xff]
    %v3378 = vld [vmem:[%s3235 + $0x470] sm:$0xff]
    %v3379 = vld [vmem:[%s3235 + $0x478] sm:$0xff]
    %v3380 = vld [vmem:[%s3235 + $0x480] sm:$0xff]
    %v3381 = vld [vmem:[%s3235 + $0x488] sm:$0xff]
    %v3382 = vld [vmem:[%s3235 + $0x490] sm:$0xff]
    %v3383 = vld [vmem:[%s3235 + $0x498] sm:$0xff]
    %v3384 = vld [vmem:[%s3235 + $0x4a0] sm:$0xff]
    %v3385 = vld [vmem:[%s3235 + $0x4a8] sm:$0xff]
    %v3386 = vld [vmem:[%s3235 + $0x4b0] sm:$0xff]
    %v3387 = vld [vmem:[%s3235 + $0x4b8] sm:$0xff]
    %v3388 = vld [vmem:[%s3235 + $0x4c0] sm:$0xff]
    %v3389 = vld [vmem:[%s3235 + $0x4c8] sm:$0xff]
    %v3390 = vld [vmem:[%s3235 + $0x4d0] sm:$0xff]
    %v3391 = vld [vmem:[%s3235 + $0x4d8] sm:$0xff]
    %v3392 = vld [vmem:[%s3235 + $0x4e0] sm:$0xff]
    %v3393 = vld [vmem:[%s3235 + $0x4e8] sm:$0xff]
    %v3394 = vld [vmem:[%s3235 + $0x4f0] sm:$0xff]
    %v3395 = vld [vmem:[%s3235 + $0x4f8] sm:$0xff]
    %v3396 = vld [vmem:[%s3235 + $0x500] sm:$0xff]
    %v3397 = vld [vmem:[%s3235 + $0x508] sm:$0xff]
    %v3398 = vld [vmem:[%s3235 + $0x510] sm:$0xff]
    %v3399 = vld [vmem:[%s3235 + $0x518] sm:$0xff]
    %v3400 = vld [vmem:[%s3235 + $0x520] sm:$0xff]
    %v3401 = vld [vmem:[%s3235 + $0x528] sm:$0xff]
    %v3402 = vld [vmem:[%s3235 + $0x530] sm:$0xff]
    %v3403 = vld [vmem:[%s3235 + $0x538] sm:$0xff]
    %v3404 = vld [vmem:[%s3235 + $0x540] sm:$0xff]
    %v3405 = vld [vmem:[%s3235 + $0x548] sm:$0xff]
    %v3406 = vld [vmem:[%s3235 + $0x550] sm:$0xff]
    %v3407 = vld [vmem:[%s3235 + $0x558] sm:$0xff]
    %v3408 = vld [vmem:[%s3235 + $0x560] sm:$0xff]
    %v3409 = vld [vmem:[%s3235 + $0x568] sm:$0xff]
    %v3410 = vld [vmem:[%s3235 + $0x570] sm:$0xff]
    %v3411 = vld [vmem:[%s3235 + $0x578] sm:$0xff]
    %v3412 = vld [vmem:[%s3235 + $0x580] sm:$0xff]
    %v3413 = vld [vmem:[%s3235 + $0x588] sm:$0xff]
    %v3414 = vld [vmem:[%s3235 + $0x590] sm:$0xff]
    %v3415 = vld [vmem:[%s3235 + $0x598] sm:$0xff]
    %v3416 = vld [vmem:[%s3235 + $0x5a0] sm:$0xff]
    %v3417 = vld [vmem:[%s3235 + $0x5a8] sm:$0xff]
    %v3418 = vld [vmem:[%s3235 + $0x5b0] sm:$0xff]
    %v3419 = vld [vmem:[%s3235 + $0x5b8] sm:$0xff]
    %v3420 = vld [vmem:[%s3235 + $0x5c0] sm:$0xff]
    %v3421 = vld [vmem:[%s3235 + $0x5c8] sm:$0xff]
    %v3422 = vld [vmem:[%s3235 + $0x5d0] sm:$0xff]
    %v3423 = vld [vmem:[%s3235 + $0x5d8] sm:$0xff]
    %v3424 = vld [vmem:[%s3235 + $0x5e0] sm:$0xff]
    %v3425 = vld [vmem:[%s3235 + $0x5e8] sm:$0xff]
    %v3426 = vld [vmem:[%s3235 + $0x5f0] sm:$0xff]
    %v3427 = vld [vmem:[%s3235 + $0x5f8] sm:$0xff]
    %3428 = vmatprep.subr.mxu0 %v3297
    %3429 = vmatpush1.msra.mxu0 %v3296
    %3430 = vmatprep.subr.mxu0 %v3293
    %3431 = vmatpush1.msra.mxu0 %v3292
    %3432 = vmatprep.subr.mxu0 %v3289
    %3433 = vmatpush1.msra.mxu0 %v3288
    %3434 = vmatprep.subr.mxu0 %v3285
    %3435 = vmatpush1.msra.mxu0 %v3284
    %3436 = vmatprep.subr.mxu0 %v3281
    %3437 = vmatpush1.msra.mxu0 %v3280
    %3438 = vmatprep.subr.mxu0 %v3277
    %3439 = vmatpush1.msra.mxu0 %v3276
    %3440 = vmatprep.subr.mxu0 %v3273
    %3441 = vmatpush1.msra.mxu0 %v3272
    %3442 = vmatprep.subr.mxu0 %v3269
    %3443 = vmatpush1.msra.mxu0 %v3268
    %3444 = vmatprep.subr.mxu0 %v3265
    %3445 = vmatpush1.msra.mxu0 %v3264
    %3446 = vmatprep.subr.mxu0 %v3261
    %3447 = vmatpush1.msra.mxu0 %v3260
    %3448 = vmatprep.subr.mxu0 %v3257
    %3449 = vmatpush1.msra.mxu0 %v3256
    %3450 = vmatprep.subr.mxu0 %v3253
    %3451 = vmatpush1.msra.mxu0 %v3252
    %3452 = vmatprep.subr.mxu0 %v3249
    %3453 = vmatpush1.msra.mxu0 %v3248
    %3454 = vmatprep.subr.mxu0 %v3245
    %3455 = vmatpush1.msra.mxu0 %v3244
    %3456 = vmatprep.subr.mxu0 %v3241
    %3457 = vmatpush1.msra.mxu0 %v3240
    %3458 = vmatprep.subr.mxu0 %v3237
    %3459 = vmatpush1.msra.mxu0 %v3236
    %3460 = vmatprep.subr.mxu0 %v3361
    %3461 = vmatpush2.msra.mxu0 %v3360
    %3462 = vmatprep.subr.mxu0 %v3357
    %3463 = vmatpush2.msra.mxu0 %v3356
    %3464 = vmatprep.subr.mxu0 %v3353
    %3465 = vmatpush2.msra.mxu0 %v3352
    %3466 = vmatprep.subr.mxu0 %v3349
    %3467 = vmatpush2.msra.mxu0 %v3348
    %3468 = vmatprep.subr.mxu0 %v3345
    %3469 = vmatpush2.msra.mxu0 %v3344
    %3470 = vmatprep.subr.mxu0 %v3341
    %3471 = vmatpush2.msra.mxu0 %v3340
    %3472 = vmatprep.subr.mxu0 %v3337
    %3473 = vmatpush2.msra.mxu0 %v3336
    %3474 = vmatprep.subr.mxu0 %v3333
    %3475 = vmatpush2.msra.mxu0 %v3332
    %3476 = vmatprep.subr.mxu0 %v3329
    %3477 = vmatpush2.msra.mxu0 %v3328
    %3478 = vmatprep.subr.mxu0 %v3325
    %3479 = vmatpush2.msra.mxu0 %v3324
    %3480 = vmatprep.subr.mxu0 %v3321
    %3481 = vmatpush2.msra.mxu0 %v3320
    %3482 = vmatprep.subr.mxu0 %v3317
    %3483 = vmatpush2.msra.mxu0 %v3316
    %3484 = vmatprep.subr.mxu0 %v3313
    %3485 = vmatpush2.msra.mxu0 %v3312
    %3486 = vmatprep.subr.mxu0 %v3309
    %3487 = vmatpush2.msra.mxu0 %v3308
    %3488 = vmatprep.subr.mxu0 %v3305
    %3489 = vmatpush2.msra.mxu0 %v3304
    %3490 = vmatprep.subr.mxu0 %v3301
    %3491 = vmatpush2.msra.mxu0 %v3300
    %3492 = vmatprep.mubr.f32.mxu0 %v3112
    %3493 = vmatmul.mubr.f32.gmra.mxu0 %v3109
    %v3494 = vpop.f32.mrf.mxu0
    %v3495 = vadd.f32 0.0, %v3494
    %v3496 = vpop.f32.mrf.mxu0
    %v3497 = vadd.f32 0.0, %v3496
    %3498 = vmatprep.mubr.f32.mxu0 %v3121
    %3499 = vmatmul.mubr.f32.gmra.mxu0 %v3118
    %v3500 = vpop.f32.mrf.mxu0
    %v3501 = vadd.f32 0.0, %v3500
    %v3502 = vpop.f32.mrf.mxu0
    %v3503 = vadd.f32 0.0, %v3502
    %3504 = vmatprep.mubr.f32.mxu0 %v3130
    %3505 = vmatmul.mubr.f32.gmra.mxu0 %v3127
    %v3506 = vpop.f32.mrf.mxu0
    %v3507 = vadd.f32 0.0, %v3506
    %v3508 = vpop.f32.mrf.mxu0
    %v3509 = vadd.f32 0.0, %v3508
    %3510 = vmatprep.mubr.f32.mxu0 %v3139
    %3511 = vmatmul.mubr.f32.gmra.mxu0 %v3136
    %v3512 = vpop.f32.mrf.mxu0
    %v3513 = vadd.f32 0.0, %v3512
    %v3514 = vpop.f32.mrf.mxu0
    %v3515 = vadd.f32 0.0, %v3514
    %3516 = vmatprep.mubr.f32.mxu0 %v3148
    %3517 = vmatmul.mubr.f32.gmra.mxu0 %v3145
    %v3518 = vpop.f32.mrf.mxu0
    %v3519 = vadd.f32 0.0, %v3518
    %v3520 = vpop.f32.mrf.mxu0
    %v3521 = vadd.f32 0.0, %v3520
    %3522 = vmatprep.mubr.f32.mxu0 %v3157
    %3523 = vmatmul.mubr.f32.gmra.mxu0 %v3154
    %v3524 = vpop.f32.mrf.mxu0
    %v3525 = vadd.f32 0.0, %v3524
    %v3526 = vpop.f32.mrf.mxu0
    %v3527 = vadd.f32 0.0, %v3526
    %3528 = vmatprep.mubr.f32.mxu0 %v3166
    %3529 = vmatmul.mubr.f32.gmra.mxu0 %v3163
    %v3530 = vpop.f32.mrf.mxu0
    %v3531 = vadd.f32 0.0, %v3530
    %v3532 = vpop.f32.mrf.mxu0
    %v3533 = vadd.f32 0.0, %v3532
    %3534 = vmatprep.mubr.f32.mxu0 %v3175
    %3535 = vmatmul.mubr.f32.gmra.mxu0 %v3172
    %v3536 = vpop.f32.mrf.mxu0
    %v3537 = vadd.f32 0.0, %v3536
    %v3538 = vpop.f32.mrf.mxu0
    %v3539 = vadd.f32 0.0, %v3538
    %3540 = vdwg.mxu0
    %3541 = vmatprep.subr.mxu0 %v3425
    %3542 = vmatpush1.msra.mxu0 %v3424
    %3543 = vmatprep.subr.mxu0 %v3421
    %3544 = vmatpush1.msra.mxu0 %v3420
    %3545 = vmatprep.subr.mxu0 %v3417
    %3546 = vmatpush1.msra.mxu0 %v3416
    %3547 = vmatprep.subr.mxu0 %v3413
    %3548 = vmatpush1.msra.mxu0 %v3412
    %3549 = vmatprep.subr.mxu0 %v3409
    %3550 = vmatpush1.msra.mxu0 %v3408
    %3551 = vmatprep.subr.mxu0 %v3405
    %3552 = vmatpush1.msra.mxu0 %v3404
    %3553 = vmatprep.subr.mxu0 %v3401
    %3554 = vmatpush1.msra.mxu0 %v3400
    %3555 = vmatprep.subr.mxu0 %v3397
    %3556 = vmatpush1.msra.mxu0 %v3396
    %3557 = vmatprep.subr.mxu0 %v3393
    %3558 = vmatpush1.msra.mxu0 %v3392
    %3559 = vmatprep.subr.mxu0 %v3389
    %3560 = vmatpush1.msra.mxu0 %v3388
    %3561 = vmatprep.subr.mxu0 %v3385
    %3562 = vmatpush1.msra.mxu0 %v3384
    %3563 = vmatprep.subr.mxu0 %v3381
    %3564 = vmatpush1.msra.mxu0 %v3380
    %3565 = vmatprep.subr.mxu0 %v3377
    %3566 = vmatpush1.msra.mxu0 %v3376
    %3567 = vmatprep.subr.mxu0 %v3373
    %3568 = vmatpush1.msra.mxu0 %v3372
    %3569 = vmatprep.subr.mxu0 %v3369
    %3570 = vmatpush1.msra.mxu0 %v3368
    %3571 = vmatprep.subr.mxu0 %v3365
    %3572 = vmatpush1.msra.mxu0 %v3364
    %3573 = vmatprep.subr.mxu0 0.0
    %3574 = vmatpush2.msra.mxu0 0.0
    %3575 = vmatprep.subr.mxu0 0.0
    %3576 = vmatpush2.msra.mxu0 0.0
    %3577 = vmatprep.subr.mxu0 0.0
    %3578 = vmatpush2.msra.mxu0 0.0
    %3579 = vmatprep.subr.mxu0 0.0
    %3580 = vmatpush2.msra.mxu0 0.0
    %3581 = vmatprep.subr.mxu0 0.0
    %3582 = vmatpush2.msra.mxu0 0.0
    %3583 = vmatprep.subr.mxu0 0.0
    %3584 = vmatpush2.msra.mxu0 0.0
    %3585 = vmatprep.subr.mxu0 0.0
    %3586 = vmatpush2.msra.mxu0 0.0
    %3587 = vmatprep.subr.mxu0 0.0
    %3588 = vmatpush2.msra.mxu0 0.0
    %3589 = vmatprep.subr.mxu0 0.0
    %3590 = vmatpush2.msra.mxu0 0.0
    %3591 = vmatprep.subr.mxu0 0.0
    %3592 = vmatpush2.msra.mxu0 0.0
    %3593 = vmatprep.subr.mxu0 0.0
    %3594 = vmatpush2.msra.mxu0 0.0
    %3595 = vmatprep.subr.mxu0 0.0
    %3596 = vmatpush2.msra.mxu0 0.0
    %3597 = vmatprep.subr.mxu0 0.0
    %3598 = vmatpush2.msra.mxu0 0.0
    %3599 = vmatprep.subr.mxu0 0.0
    %3600 = vmatpush2.msra.mxu0 0.0
    %3601 = vmatprep.subr.mxu0 0.0
    %3602 = vmatpush2.msra.mxu0 0.0
    %3603 = vmatprep.subr.mxu0 0.0
    %3604 = vmatpush2.msra.mxu0 0.0
    %3605 = vmatprep.mubr.f32.mxu0 0.0
    %3606 = vmatmul.mubr.f32.gmra.mxu0 %v3115
    %v3607 = vpop.f32.mrf.mxu0
    %v3608 = vadd.f32 %v3495, %v3607
    %v3609 = vpop.f32.mrf.mxu0
    %v3610 = vadd.f32 %v3497, %v3609
    %3611 = vmatprep.mubr.f32.mxu0 0.0
    %3612 = vmatmul.mubr.f32.gmra.mxu0 %v3124
    %v3613 = vpop.f32.mrf.mxu0
    %v3614 = vadd.f32 %v3501, %v3613
    %v3615 = vpop.f32.mrf.mxu0
    %v3616 = vadd.f32 %v3503, %v3615
    %3617 = vmatprep.mubr.f32.mxu0 0.0
    %3618 = vmatmul.mubr.f32.gmra.mxu0 %v3133
    %v3619 = vpop.f32.mrf.mxu0
    %v3620 = vadd.f32 %v3507, %v3619
    %v3621 = vpop.f32.mrf.mxu0
    %v3622 = vadd.f32 %v3509, %v3621
    %3623 = vmatprep.mubr.f32.mxu0 0.0
    %3624 = vmatmul.mubr.f32.gmra.mxu0 %v3142
    %v3625 = vpop.f32.mrf.mxu0
    %v3626 = vadd.f32 %v3513, %v3625
    %v3627 = vpop.f32.mrf.mxu0
    %v3628 = vadd.f32 %v3515, %v3627
    %3629 = vmatprep.mubr.f32.mxu0 0.0
    %3630 = vmatmul.mubr.f32.gmra.mxu0 %v3151
    %v3631 = vpop.f32.mrf.mxu0
    %v3632 = vadd.f32 %v3519, %v3631
    %v3633 = vpop.f32.mrf.mxu0
    %v3634 = vadd.f32 %v3521, %v3633
    %3635 = vmatprep.mubr.f32.mxu0 0.0
    %3636 = vmatmul.mubr.f32.gmra.mxu0 %v3160
    %v3637 = vpop.f32.mrf.mxu0
    %v3638 = vadd.f32 %v3525, %v3637
    %v3639 = vpop.f32.mrf.mxu0
    %v3640 = vadd.f32 %v3527, %v3639
    %3641 = vmatprep.mubr.f32.mxu0 0.0
    %3642 = vmatmul.mubr.f32.gmra.mxu0 %v3169
    %v3643 = vpop.f32.mrf.mxu0
    %v3644 = vadd.f32 %v3531, %v3643
    %v3645 = vpop.f32.mrf.mxu0
    %v3646 = vadd.f32 %v3533, %v3645
    %3647 = vmatprep.mubr.f32.mxu0 0.0
    %3648 = vmatmul.mubr.f32.gmra.mxu0 %v3178
    %v3649 = vpop.f32.mrf.mxu0
    %v3650 = vadd.f32 %v3537, %v3649
    %v3651 = vpop.f32.mrf.mxu0
    %v3652 = vadd.f32 %v3539, %v3651
    %3653 = vdwg.mxu0
    %3654 = vmatprep.subr.mxu0 %v3299
    %3655 = vmatpush1.msra.mxu0 %v3298
    %3656 = vmatprep.subr.mxu0 %v3295
    %3657 = vmatpush1.msra.mxu0 %v3294
    %3658 = vmatprep.subr.mxu0 %v3291
    %3659 = vmatpush1.msra.mxu0 %v3290
    %3660 = vmatprep.subr.mxu0 %v3287
    %3661 = vmatpush1.msra.mxu0 %v3286
    %3662 = vmatprep.subr.mxu0 %v3283
    %3663 = vmatpush1.msra.mxu0 %v3282
    %3664 = vmatprep.subr.mxu0 %v3279
    %3665 = vmatpush1.msra.mxu0 %v3278
    %3666 = vmatprep.subr.mxu0 %v3275
    %3667 = vmatpush1.msra.mxu0 %v3274
    %3668 = vmatprep.subr.mxu0 %v3271
    %3669 = vmatpush1.msra.mxu0 %v3270
    %3670 = vmatprep.subr.mxu0 %v3267
    %3671 = vmatpush1.msra.mxu0 %v3266
    %3672 = vmatprep.subr.mxu0 %v3263
    %3673 = vmatpush1.msra.mxu0 %v3262
    %3674 = vmatprep.subr.mxu0 %v3259
    %3675 = vmatpush1.msra.mxu0 %v3258
    %3676 = vmatprep.subr.mxu0 %v3255
    %3677 = vmatpush1.msra.mxu0 %v3254
    %3678 = vmatprep.subr.mxu0 %v3251
    %3679 = vmatpush1.msra.mxu0 %v3250
    %3680 = vmatprep.subr.mxu0 %v3247
    %3681 = vmatpush1.msra.mxu0 %v3246
    %3682 = vmatprep.subr.mxu0 %v3243
    %3683 = vmatpush1.msra.mxu0 %v3242
    %3684 = vmatprep.subr.mxu0 %v3239
    %3685 = vmatpush1.msra.mxu0 %v3238
    %3686 = vmatprep.subr.mxu0 %v3363
    %3687 = vmatpush2.msra.mxu0 %v3362
    %3688 = vmatprep.subr.mxu0 %v3359
    %3689 = vmatpush2.msra.mxu0 %v3358
    %3690 = vmatprep.subr.mxu0 %v3355
    %3691 = vmatpush2.msra.mxu0 %v3354
    %3692 = vmatprep.subr.mxu0 %v3351
    %3693 = vmatpush2.msra.mxu0 %v3350
    %3694 = vmatprep.subr.mxu0 %v3347
    %3695 = vmatpush2.msra.mxu0 %v3346
    %3696 = vmatprep.subr.mxu0 %v3343
    %3697 = vmatpush2.msra.mxu0 %v3342
    %3698 = vmatprep.subr.mxu0 %v3339
    %3699 = vmatpush2.msra.mxu0 %v3338
    %3700 = vmatprep.subr.mxu0 %v3335
    %3701 = vmatpush2.msra.mxu0 %v3334
    %3702 = vmatprep.subr.mxu0 %v3331
    %3703 = vmatpush2.msra.mxu0 %v3330
    %3704 = vmatprep.subr.mxu0 %v3327
    %3705 = vmatpush2.msra.mxu0 %v3326
    %3706 = vmatprep.subr.mxu0 %v3323
    %3707 = vmatpush2.msra.mxu0 %v3322
    %3708 = vmatprep.subr.mxu0 %v3319
    %3709 = vmatpush2.msra.mxu0 %v3318
    %3710 = vmatprep.subr.mxu0 %v3315
    %3711 = vmatpush2.msra.mxu0 %v3314
    %3712 = vmatprep.subr.mxu0 %v3311
    %3713 = vmatpush2.msra.mxu0 %v3310
    %3714 = vmatprep.subr.mxu0 %v3307
    %3715 = vmatpush2.msra.mxu0 %v3306
    %3716 = vmatprep.subr.mxu0 %v3303
    %3717 = vmatpush2.msra.mxu0 %v3302
    %3718 = vmatprep.mubr.f32.mxu0 %v3112
    %3719 = vmatmul.mubr.f32.gmra.mxu0 %v3109
    %v3720 = vpop.f32.mrf.mxu0
    %v3721 = vadd.f32 0.0, %v3720
    %v3722 = vpop.f32.mrf.mxu0
    %v3723 = vadd.f32 0.0, %v3722
    %3724 = vmatprep.mubr.f32.mxu0 %v3121
    %3725 = vmatmul.mubr.f32.gmra.mxu0 %v3118
    %v3726 = vpop.f32.mrf.mxu0
    %v3727 = vadd.f32 0.0, %v3726
    %v3728 = vpop.f32.mrf.mxu0
    %v3729 = vadd.f32 0.0, %v3728
    %3730 = vmatprep.mubr.f32.mxu0 %v3130
    %3731 = vmatmul.mubr.f32.gmra.mxu0 %v3127
    %v3732 = vpop.f32.mrf.mxu0
    %v3733 = vadd.f32 0.0, %v3732
    %v3734 = vpop.f32.mrf.mxu0
    %v3735 = vadd.f32 0.0, %v3734
    %3736 = vmatprep.mubr.f32.mxu0 %v3139
    %3737 = vmatmul.mubr.f32.gmra.mxu0 %v3136
    %v3738 = vpop.f32.mrf.mxu0
    %v3739 = vadd.f32 0.0, %v3738
    %v3740 = vpop.f32.mrf.mxu0
    %v3741 = vadd.f32 0.0, %v3740
    %3742 = vmatprep.mubr.f32.mxu0 %v3148
    %3743 = vmatmul.mubr.f32.gmra.mxu0 %v3145
    %v3744 = vpop.f32.mrf.mxu0
    %v3745 = vadd.f32 0.0, %v3744
    %v3746 = vpop.f32.mrf.mxu0
    %v3747 = vadd.f32 0.0, %v3746
    %3748 = vmatprep.mubr.f32.mxu0 %v3157
    %3749 = vmatmul.mubr.f32.gmra.mxu0 %v3154
    %v3750 = vpop.f32.mrf.mxu0
    %v3751 = vadd.f32 0.0, %v3750
    %v3752 = vpop.f32.mrf.mxu0
    %v3753 = vadd.f32 0.0, %v3752
    %3754 = vmatprep.mubr.f32.mxu0 %v3166
    %3755 = vmatmul.mubr.f32.gmra.mxu0 %v3163
    %v3756 = vpop.f32.mrf.mxu0
    %v3757 = vadd.f32 0.0, %v3756
    %v3758 = vpop.f32.mrf.mxu0
    %v3759 = vadd.f32 0.0, %v3758
    %3760 = vmatprep.mubr.f32.mxu0 %v3175
    %3761 = vmatmul.mubr.f32.gmra.mxu0 %v3172
    %v3762 = vpop.f32.mrf.mxu0
    %v3763 = vadd.f32 0.0, %v3762
    %v3764 = vpop.f32.mrf.mxu0
    %v3765 = vadd.f32 0.0, %v3764
    %3766 = vdwg.mxu0
    %3767 = vmatprep.subr.mxu0 %v3427
    %3768 = vmatpush1.msra.mxu0 %v3426
    %3769 = vmatprep.subr.mxu0 %v3423
    %3770 = vmatpush1.msra.mxu0 %v3422
    %3771 = vmatprep.subr.mxu0 %v3419
    %3772 = vmatpush1.msra.mxu0 %v3418
    %3773 = vmatprep.subr.mxu0 %v3415
    %3774 = vmatpush1.msra.mxu0 %v3414
    %3775 = vmatprep.subr.mxu0 %v3411
    %3776 = vmatpush1.msra.mxu0 %v3410
    %3777 = vmatprep.subr.mxu0 %v3407
    %3778 = vmatpush1.msra.mxu0 %v3406
    %3779 = vmatprep.subr.mxu0 %v3403
    %3780 = vmatpush1.msra.mxu0 %v3402
    %3781 = vmatprep.subr.mxu0 %v3399
    %3782 = vmatpush1.msra.mxu0 %v3398
    %3783 = vmatprep.subr.mxu0 %v3395
    %3784 = vmatpush1.msra.mxu0 %v3394
    %3785 = vmatprep.subr.mxu0 %v3391
    %3786 = vmatpush1.msra.mxu0 %v3390
    %3787 = vmatprep.subr.mxu0 %v3387
    %3788 = vmatpush1.msra.mxu0 %v3386
    %3789 = vmatprep.subr.mxu0 %v3383
    %3790 = vmatpush1.msra.mxu0 %v3382
    %3791 = vmatprep.subr.mxu0 %v3379
    %3792 = vmatpush1.msra.mxu0 %v3378
    %3793 = vmatprep.subr.mxu0 %v3375
    %3794 = vmatpush1.msra.mxu0 %v3374
    %3795 = vmatprep.subr.mxu0 %v3371
    %3796 = vmatpush1.msra.mxu0 %v3370
    %3797 = vmatprep.subr.mxu0 %v3367
    %3798 = vmatpush1.msra.mxu0 %v3366
    %3799 = vmatprep.subr.mxu0 0.0
    %3800 = vmatpush2.msra.mxu0 0.0
    %3801 = vmatprep.subr.mxu0 0.0
    %3802 = vmatpush2.msra.mxu0 0.0
    %3803 = vmatprep.subr.mxu0 0.0
    %3804 = vmatpush2.msra.mxu0 0.0
    %3805 = vmatprep.subr.mxu0 0.0
    %3806 = vmatpush2.msra.mxu0 0.0
    %3807 = vmatprep.subr.mxu0 0.0
    %3808 = vmatpush2.msra.mxu0 0.0
    %3809 = vmatprep.subr.mxu0 0.0
    %3810 = vmatpush2.msra.mxu0 0.0
    %3811 = vmatprep.subr.mxu0 0.0
    %3812 = vmatpush2.msra.mxu0 0.0
    %3813 = vmatprep.subr.mxu0 0.0
    %3814 = vmatpush2.msra.mxu0 0.0
    %3815 = vmatprep.subr.mxu0 0.0
    %3816 = vmatpush2.msra.mxu0 0.0
    %3817 = vmatprep.subr.mxu0 0.0
    %3818 = vmatpush2.msra.mxu0 0.0
    %3819 = vmatprep.subr.mxu0 0.0
    %3820 = vmatpush2.msra.mxu0 0.0
    %3821 = vmatprep.subr.mxu0 0.0
    %3822 = vmatpush2.msra.mxu0 0.0
    %3823 = vmatprep.subr.mxu0 0.0
    %3824 = vmatpush2.msra.mxu0 0.0
    %3825 = vmatprep.subr.mxu0 0.0
    %3826 = vmatpush2.msra.mxu0 0.0
    %3827 = vmatprep.subr.mxu0 0.0
    %3828 = vmatpush2.msra.mxu0 0.0
    %3829 = vmatprep.subr.mxu0 0.0
    %3830 = vmatpush2.msra.mxu0 0.0
    %3831 = vmatprep.mubr.f32.mxu0 0.0
    %3832 = vmatmul.mubr.f32.gmra.mxu0 %v3115
    %v3833 = vpop.f32.mrf.mxu0
    %v3834 = vadd.f32 %v3721, %v3833
    %v3835 = vpop.f32.mrf.mxu0
    %v3836 = vadd.f32 %v3723, %v3835
    %3837 = vmatprep.mubr.f32.mxu0 0.0
    %3838 = vmatmul.mubr.f32.gmra.mxu0 %v3124
    %v3839 = vpop.f32.mrf.mxu0
    %v3840 = vadd.f32 %v3727, %v3839
    %v3841 = vpop.f32.mrf.mxu0
    %v3842 = vadd.f32 %v3729, %v3841
    %3843 = vmatprep.mubr.f32.mxu0 0.0
    %3844 = vmatmul.mubr.f32.gmra.mxu0 %v3133
    %v3845 = vpop.f32.mrf.mxu0
    %v3846 = vadd.f32 %v3733, %v3845
    %v3847 = vpop.f32.mrf.mxu0
    %v3848 = vadd.f32 %v3735, %v3847
    %3849 = vmatprep.mubr.f32.mxu0 0.0
    %3850 = vmatmul.mubr.f32.gmra.mxu0 %v3142
    %v3851 = vpop.f32.mrf.mxu0
    %v3852 = vadd.f32 %v3739, %v3851
    %v3853 = vpop.f32.mrf.mxu0
    %v3854 = vadd.f32 %v3741, %v3853
    %3855 = vmatprep.mubr.f32.mxu0 0.0
    %3856 = vmatmul.mubr.f32.gmra.mxu0 %v3151
    %v3857 = vpop.f32.mrf.mxu0
    %v3858 = vadd.f32 %v3745, %v3857
    %v3859 = vpop.f32.mrf.mxu0
    %v3860 = vadd.f32 %v3747, %v3859
    %3861 = vmatprep.mubr.f32.mxu0 0.0
    %3862 = vmatmul.mubr.f32.gmra.mxu0 %v3160
    %v3863 = vpop.f32.mrf.mxu0
    %v3864 = vadd.f32 %v3751, %v3863
    %v3865 = vpop.f32.mrf.mxu0
    %v3866 = vadd.f32 %v3753, %v3865
    %3867 = vmatprep.mubr.f32.mxu0 0.0
    %3868 = vmatmul.mubr.f32.gmra.mxu0 %v3169
    %v3869 = vpop.f32.mrf.mxu0
    %v3870 = vadd.f32 %v3757, %v3869
    %v3871 = vpop.f32.mrf.mxu0
    %v3872 = vadd.f32 %v3759, %v3871
    %3873 = vmatprep.mubr.f32.mxu0 0.0
    %3874 = vmatmul.mubr.f32.gmra.mxu0 %v3178
    %v3875 = vpop.f32.mrf.mxu0
    %v3876 = vadd.f32 %v3763, %v3875
    %v3877 = vpop.f32.mrf.mxu0
    %v3878 = vadd.f32 %v3765, %v3877
    %3879 = vdwg.mxu0
    %v3880 = vadd.f32 %v3203, %v3608
    %v3881 = vadd.f32 %v3204, %v3610
    %v3882 = vadd.f32 %v3205, %v3834
    %v3883 = vadd.f32 %v3206, %v3836
    %v3884 = vadd.f32 %v3207, %v3614
    %v3885 = vadd.f32 %v3208, %v3616
    %v3886 = vadd.f32 %v3209, %v3840
    %v3887 = vadd.f32 %v3210, %v3842
    %v3888 = vadd.f32 %v3211, %v3620
    %v3889 = vadd.f32 %v3212, %v3622
    %v3890 = vadd.f32 %v3213, %v3846
    %v3891 = vadd.f32 %v3214, %v3848
    %v3892 = vadd.f32 %v3215, %v3626
    %v3893 = vadd.f32 %v3216, %v3628
    %v3894 = vadd.f32 %v3217, %v3852
    %v3895 = vadd.f32 %v3218, %v3854
    %v3896 = vadd.f32 %v3219, %v3632
    %v3897 = vadd.f32 %v3220, %v3634
    %v3898 = vadd.f32 %v3221, %v3858
    %v3899 = vadd.f32 %v3222, %v3860
    %v3900 = vadd.f32 %v3223, %v3638
    %v3901 = vadd.f32 %v3224, %v3640
    %v3902 = vadd.f32 %v3225, %v3864
    %v3903 = vadd.f32 %v3226, %v3866
    %v3904 = vadd.f32 %v3227, %v3644
    %v3905 = vadd.f32 %v3228, %v3646
    %v3906 = vadd.f32 %v3229, %v3870
    %v3907 = vadd.f32 %v3230, %v3872
    %v3908 = vadd.f32 %v3231, %v3650
    %v3909 = vadd.f32 %v3232, %v3652
    %v3910 = vadd.f32 %v3233, %v3876
    %v3911 = vadd.f32 %v3234, %v3878
    %3912 = vst [vmem:[#allocation3] sm:$0xff] %v3880
    %3913 = vst [vmem:[#allocation3 + $0x8] sm:$0xff] %v3881
    %3914 = vst [vmem:[#allocation3 + $0x10] sm:$0xff] %v3882
    %3915 = vst [vmem:[#allocation3 + $0x18] sm:$0xff] %v3883
    %3916 = vst [vmem:[#allocation3 + $0x20] sm:$0xff] %v3884
    %3917 = vst [vmem:[#allocation3 + $0x28] sm:$0xff] %v3885
    %3918 = vst [vmem:[#allocation3 + $0x30] sm:$0xff] %v3886
    %3919 = vst [vmem:[#allocation3 + $0x38] sm:$0xff] %v3887
    %3920 = vst [vmem:[#allocation3 + $0x40] sm:$0xff] %v3888
    %3921 = vst [vmem:[#allocation3 + $0x48] sm:$0xff] %v3889
    %3922 = vst [vmem:[#allocation3 + $0x50] sm:$0xff] %v3890
    %3923 = vst [vmem:[#allocation3 + $0x58] sm:$0xff] %v3891
    %3924 = vst [vmem:[#allocation3 + $0x60] sm:$0xff] %v3892
    %3925 = vst [vmem:[#allocation3 + $0x68] sm:$0xff] %v3893
    %3926 = vst [vmem:[#allocation3 + $0x70] sm:$0xff] %v3894
    %3927 = vst [vmem:[#allocation3 + $0x78] sm:$0xff] %v3895
    %3928 = vst [vmem:[#allocation3 + $0x80] sm:$0xff] %v3896
    %3929 = vst [vmem:[#allocation3 + $0x88] sm:$0xff] %v3897
    %3930 = vst [vmem:[#allocation3 + $0x90] sm:$0xff] %v3898
    %3931 = vst [vmem:[#allocation3 + $0x98] sm:$0xff] %v3899
    %3932 = vst [vmem:[#allocation3 + $0xa0] sm:$0xff] %v3900
    %3933 = vst [vmem:[#allocation3 + $0xa8] sm:$0xff] %v3901
    %3934 = vst [vmem:[#allocation3 + $0xb0] sm:$0xff] %v3902
    %3935 = vst [vmem:[#allocation3 + $0xb8] sm:$0xff] %v3903
    %3936 = vst [vmem:[#allocation3 + $0xc0] sm:$0xff] %v3904
    %3937 = vst [vmem:[#allocation3 + $0xc8] sm:$0xff] %v3905
    %3938 = vst [vmem:[#allocation3 + $0xd0] sm:$0xff] %v3906
    %3939 = vst [vmem:[#allocation3 + $0xd8] sm:$0xff] %v3907
    %3940 = vst [vmem:[#allocation3 + $0xe0] sm:$0xff] %v3908
    %3941 = vst [vmem:[#allocation3 + $0xe8] sm:$0xff] %v3909
    %3942 = vst [vmem:[#allocation3 + $0xf0] sm:$0xff] %v3910
    %3943 = vst [vmem:[#allocation3 + $0xf8] sm:$0xff] %v3911
    %v3944 = vld [vmem:[#allocation2] sm:$0xf0]
    %v3945 = vld [vmem:[#allocation2 + $0x8] sm:$0xf0]
    %v3946 = vld [vmem:[#allocation2 + $0x10] sm:$0xf0]
    %v3947 = vld [vmem:[#allocation2 + $0x18] sm:$0xf]
    %v3948 = vld [vmem:[#allocation2 + $0x20] sm:$0xf]
    %v3949 = vld [vmem:[#allocation2 + $0x28] sm:$0xf]
    %v3950 = vld [vmem:[#allocation2 + $0x30] sm:$0xf0]
    %v3951 = vld [vmem:[#allocation2 + $0x38] sm:$0xf0]
    %v3952 = vld [vmem:[#allocation2 + $0x40] sm:$0xf0]
    %v3953 = vld [vmem:[#allocation2 + $0x48] sm:$0xf]
    %v3954 = vld [vmem:[#allocation2 + $0x50] sm:$0xf]
    %v3955 = vld [vmem:[#allocation2 + $0x58] sm:$0xf]
    %v3956 = vld [vmem:[#allocation2 + $0x60] sm:$0xf0]
    %v3957 = vld [vmem:[#allocation2 + $0x68] sm:$0xf0]
    %v3958 = vld [vmem:[#allocation2 + $0x70] sm:$0xf0]
    %v3959 = vld [vmem:[#allocation2 + $0x78] sm:$0xf]
    %v3960 = vld [vmem:[#allocation2 + $0x80] sm:$0xf]
    %v3961 = vld [vmem:[#allocation2 + $0x88] sm:$0xf]
    %v3962 = vld [vmem:[#allocation2 + $0x90] sm:$0xf0]
    %v3963 = vld [vmem:[#allocation2 + $0x98] sm:$0xf0]
    %v3964 = vld [vmem:[#allocation2 + $0xa0] sm:$0xf0]
    %v3965 = vld [vmem:[#allocation2 + $0xa8] sm:$0xf]
    %v3966 = vld [vmem:[#allocation2 + $0xb0] sm:$0xf]
    %v3967 = vld [vmem:[#allocation2 + $0xb8] sm:$0xf]
    %v3968 = vld [vmem:[#allocation2 + $0xc0] sm:$0xf0]
    %v3969 = vld [vmem:[#allocation2 + $0xc8] sm:$0xf0]
    %v3970 = vld [vmem:[#allocation2 + $0xd0] sm:$0xf0]
    %v3971 = vld [vmem:[#allocation2 + $0xd8] sm:$0xf]
    %v3972 = vld [vmem:[#allocation2 + $0xe0] sm:$0xf]
    %v3973 = vld [vmem:[#allocation2 + $0xe8] sm:$0xf]
    %v3974 = vld [vmem:[#allocation2 + $0xf0] sm:$0xf0]
    %v3975 = vld [vmem:[#allocation2 + $0xf8] sm:$0xf0]
    %v3976 = vld [vmem:[#allocation2 + $0x100] sm:$0xf0]
    %v3977 = vld [vmem:[#allocation2 + $0x108] sm:$0xf]
    %v3978 = vld [vmem:[#allocation2 + $0x110] sm:$0xf]
    %v3979 = vld [vmem:[#allocation2 + $0x118] sm:$0xf]
    %v3980 = vld [vmem:[#allocation2 + $0x120] sm:$0xf0]
    %v3981 = vld [vmem:[#allocation2 + $0x128] sm:$0xf0]
    %v3982 = vld [vmem:[#allocation2 + $0x130] sm:$0xf0]
    %v3983 = vld [vmem:[#allocation2 + $0x138] sm:$0xf]
    %v3984 = vld [vmem:[#allocation2 + $0x140] sm:$0xf]
    %v3985 = vld [vmem:[#allocation2 + $0x148] sm:$0xf]
    %v3986 = vld [vmem:[#allocation2 + $0x150] sm:$0xf0]
    %v3987 = vld [vmem:[#allocation2 + $0x158] sm:$0xf0]
    %v3988 = vld [vmem:[#allocation2 + $0x160] sm:$0xf0]
    %v3989 = vld [vmem:[#allocation2 + $0x168] sm:$0xf]
    %v3990 = vld [vmem:[#allocation2 + $0x170] sm:$0xf]
    %v3991 = vld [vmem:[#allocation2 + $0x178] sm:$0xf]
    %vm4040 = vcmask 1043456
    %v4041 = vrot.slane %v3944, 4
    %v4042 = vrot.slane %v3947, 4
    %v4043 = vsel %vm4040, %v4041, %v4042
    %v4044 = vrot.slane %v3945, 4
    %v4045 = vrot.slane %v3948, 4
    %v4046 = vsel %vm4040, %v4044, %v4045
    %v4047 = vrot.slane %v3946, 4
    %v4048 = vrot.slane %v3949, 4
    %v4049 = vsel %vm4040, %v4047, %v4048
    %v4050 = vrot.slane %v3950, 4
    %v4051 = vrot.slane %v3953, 4
    %v4052 = vsel %vm4040, %v4050, %v4051
    %v4053 = vrot.slane %v3951, 4
    %v4054 = vrot.slane %v3954, 4
    %v4055 = vsel %vm4040, %v4053, %v4054
    %v4056 = vrot.slane %v3952, 4
    %v4057 = vrot.slane %v3955, 4
    %v4058 = vsel %vm4040, %v4056, %v4057
    %v4059 = vrot.slane %v3956, 4
    %v4060 = vrot.slane %v3959, 4
    %v4061 = vsel %vm4040, %v4059, %v4060
    %v4062 = vrot.slane %v3957, 4
    %v4063 = vrot.slane %v3960, 4
    %v4064 = vsel %vm4040, %v4062, %v4063
    %v4065 = vrot.slane %v3958, 4
    %v4066 = vrot.slane %v3961, 4
    %v4067 = vsel %vm4040, %v4065, %v4066
    %v4068 = vrot.slane %v3962, 4
    %v4069 = vrot.slane %v3965, 4
    %v4070 = vsel %vm4040, %v4068, %v4069
    %v4071 = vrot.slane %v3963, 4
    %v4072 = vrot.slane %v3966, 4
    %v4073 = vsel %vm4040, %v4071, %v4072
    %v4074 = vrot.slane %v3964, 4
    %v4075 = vrot.slane %v3967, 4
    %v4076 = vsel %vm4040, %v4074, %v4075
    %v4077 = vrot.slane %v3968, 4
    %v4078 = vrot.slane %v3971, 4
    %v4079 = vsel %vm4040, %v4077, %v4078
    %v4080 = vrot.slane %v3969, 4
    %v4081 = vrot.slane %v3972, 4
    %v4082 = vsel %vm4040, %v4080, %v4081
    %v4083 = vrot.slane %v3970, 4
    %v4084 = vrot.slane %v3973, 4
    %v4085 = vsel %vm4040, %v4083, %v4084
    %v4086 = vrot.slane %v3974, 4
    %v4087 = vrot.slane %v3977, 4
    %v4088 = vsel %vm4040, %v4086, %v4087
    %v4089 = vrot.slane %v3975, 4
    %v4090 = vrot.slane %v3978, 4
    %v4091 = vsel %vm4040, %v4089, %v4090
    %v4092 = vrot.slane %v3976, 4
    %v4093 = vrot.slane %v3979, 4
    %v4094 = vsel %vm4040, %v4092, %v4093
    %v4095 = vrot.slane %v3980, 4
    %v4096 = vrot.slane %v3983, 4
    %v4097 = vsel %vm4040, %v4095, %v4096
    %v4098 = vrot.slane %v3981, 4
    %v4099 = vrot.slane %v3984, 4
    %v4100 = vsel %vm4040, %v4098, %v4099
    %v4101 = vrot.slane %v3982, 4
    %v4102 = vrot.slane %v3985, 4
    %v4103 = vsel %vm4040, %v4101, %v4102
    %v4104 = vrot.slane %v3986, 4
    %v4105 = vrot.slane %v3989, 4
    %v4106 = vsel %vm4040, %v4104, %v4105
    %v4107 = vrot.slane %v3987, 4
    %v4108 = vrot.slane %v3990, 4
    %v4109 = vsel %vm4040, %v4107, %v4108
    %v4110 = vrot.slane %v3988, 4
    %v4111 = vrot.slane %v3991, 4
    %v4112 = vsel %vm4040, %v4110, %v4111
    %v4137 = vld [vmem:[#allocation3] sm:$0xff]
    %v4138 = vld [vmem:[#allocation3 + $0x8] sm:$0xff]
    %v4139 = vld [vmem:[#allocation3 + $0x10] sm:$0xff]
    %v4140 = vld [vmem:[#allocation3 + $0x18] sm:$0xff]
    %v4141 = vld [vmem:[#allocation3 + $0x20] sm:$0xff]
    %v4142 = vld [vmem:[#allocation3 + $0x28] sm:$0xff]
    %v4143 = vld [vmem:[#allocation3 + $0x30] sm:$0xff]
    %v4144 = vld [vmem:[#allocation3 + $0x38] sm:$0xff]
    %v4145 = vld [vmem:[#allocation3 + $0x40] sm:$0xff]
    %v4146 = vld [vmem:[#allocation3 + $0x48] sm:$0xff]
    %v4147 = vld [vmem:[#allocation3 + $0x50] sm:$0xff]
    %v4148 = vld [vmem:[#allocation3 + $0x58] sm:$0xff]
    %v4149 = vld [vmem:[#allocation3 + $0x60] sm:$0xff]
    %v4150 = vld [vmem:[#allocation3 + $0x68] sm:$0xff]
    %v4151 = vld [vmem:[#allocation3 + $0x70] sm:$0xff]
    %v4152 = vld [vmem:[#allocation3 + $0x78] sm:$0xff]
    %v4153 = vld [vmem:[#allocation3 + $0x80] sm:$0xff]
    %v4154 = vld [vmem:[#allocation3 + $0x88] sm:$0xff]
    %v4155 = vld [vmem:[#allocation3 + $0x90] sm:$0xff]
    %v4156 = vld [vmem:[#allocation3 + $0x98] sm:$0xff]
    %v4157 = vld [vmem:[#allocation3 + $0xa0] sm:$0xff]
    %v4158 = vld [vmem:[#allocation3 + $0xa8] sm:$0xff]
    %v4159 = vld [vmem:[#allocation3 + $0xb0] sm:$0xff]
    %v4160 = vld [vmem:[#allocation3 + $0xb8] sm:$0xff]
    %v4161 = vld [vmem:[#allocation3 + $0xc0] sm:$0xff]
    %v4162 = vld [vmem:[#allocation3 + $0xc8] sm:$0xff]
    %v4163 = vld [vmem:[#allocation3 + $0xd0] sm:$0xff]
    %v4164 = vld [vmem:[#allocation3 + $0xd8] sm:$0xff]
    %v4165 = vld [vmem:[#allocation3 + $0xe0] sm:$0xff]
    %v4166 = vld [vmem:[#allocation3 + $0xe8] sm:$0xff]
    %v4167 = vld [vmem:[#allocation3 + $0xf0] sm:$0xff]
    %v4168 = vld [vmem:[#allocation3 + $0xf8] sm:$0xff]
    %s4169 = scalar_lea.vmem [#allocation7], 6144
    %v4170 = vld [vmem:[%s4169] sm:$0xff]
    %v4171 = vld [vmem:[%s4169 + $0x8] sm:$0xff]
    %v4172 = vld [vmem:[%s4169 + $0x10] sm:$0xff]
    %v4173 = vld [vmem:[%s4169 + $0x18] sm:$0xff]
    %v4174 = vld [vmem:[%s4169 + $0x20] sm:$0xff]
    %v4175 = vld [vmem:[%s4169 + $0x28] sm:$0xff]
    %v4176 = vld [vmem:[%s4169 + $0x30] sm:$0xff]
    %v4177 = vld [vmem:[%s4169 + $0x38] sm:$0xff]
    %v4178 = vld [vmem:[%s4169 + $0x40] sm:$0xff]
    %v4179 = vld [vmem:[%s4169 + $0x48] sm:$0xff]
    %v4180 = vld [vmem:[%s4169 + $0x50] sm:$0xff]
    %v4181 = vld [vmem:[%s4169 + $0x58] sm:$0xff]
    %v4182 = vld [vmem:[%s4169 + $0x60] sm:$0xff]
    %v4183 = vld [vmem:[%s4169 + $0x68] sm:$0xff]
    %v4184 = vld [vmem:[%s4169 + $0x70] sm:$0xff]
    %v4185 = vld [vmem:[%s4169 + $0x78] sm:$0xff]
    %v4186 = vld [vmem:[%s4169 + $0x80] sm:$0xff]
    %v4187 = vld [vmem:[%s4169 + $0x88] sm:$0xff]
    %v4188 = vld [vmem:[%s4169 + $0x90] sm:$0xff]
    %v4189 = vld [vmem:[%s4169 + $0x98] sm:$0xff]
    %v4190 = vld [vmem:[%s4169 + $0xa0] sm:$0xff]
    %v4191 = vld [vmem:[%s4169 + $0xa8] sm:$0xff]
    %v4192 = vld [vmem:[%s4169 + $0xb0] sm:$0xff]
    %v4193 = vld [vmem:[%s4169 + $0xb8] sm:$0xff]
    %v4194 = vld [vmem:[%s4169 + $0xc0] sm:$0xff]
    %v4195 = vld [vmem:[%s4169 + $0xc8] sm:$0xff]
    %v4196 = vld [vmem:[%s4169 + $0xd0] sm:$0xff]
    %v4197 = vld [vmem:[%s4169 + $0xd8] sm:$0xff]
    %v4198 = vld [vmem:[%s4169 + $0xe0] sm:$0xff]
    %v4199 = vld [vmem:[%s4169 + $0xe8] sm:$0xff]
    %v4200 = vld [vmem:[%s4169 + $0xf0] sm:$0xff]
    %v4201 = vld [vmem:[%s4169 + $0xf8] sm:$0xff]
    %v4202 = vld [vmem:[%s4169 + $0x100] sm:$0xff]
    %v4203 = vld [vmem:[%s4169 + $0x108] sm:$0xff]
    %v4204 = vld [vmem:[%s4169 + $0x110] sm:$0xff]
    %v4205 = vld [vmem:[%s4169 + $0x118] sm:$0xff]
    %v4206 = vld [vmem:[%s4169 + $0x120] sm:$0xff]
    %v4207 = vld [vmem:[%s4169 + $0x128] sm:$0xff]
    %v4208 = vld [vmem:[%s4169 + $0x130] sm:$0xff]
    %v4209 = vld [vmem:[%s4169 + $0x138] sm:$0xff]
    %v4210 = vld [vmem:[%s4169 + $0x140] sm:$0xff]
    %v4211 = vld [vmem:[%s4169 + $0x148] sm:$0xff]
    %v4212 = vld [vmem:[%s4169 + $0x150] sm:$0xff]
    %v4213 = vld [vmem:[%s4169 + $0x158] sm:$0xff]
    %v4214 = vld [vmem:[%s4169 + $0x160] sm:$0xff]
    %v4215 = vld [vmem:[%s4169 + $0x168] sm:$0xff]
    %v4216 = vld [vmem:[%s4169 + $0x170] sm:$0xff]
    %v4217 = vld [vmem:[%s4169 + $0x178] sm:$0xff]
    %v4218 = vld [vmem:[%s4169 + $0x180] sm:$0xff]
    %v4219 = vld [vmem:[%s4169 + $0x188] sm:$0xff]
    %v4220 = vld [vmem:[%s4169 + $0x190] sm:$0xff]
    %v4221 = vld [vmem:[%s4169 + $0x198] sm:$0xff]
    %v4222 = vld [vmem:[%s4169 + $0x1a0] sm:$0xff]
    %v4223 = vld [vmem:[%s4169 + $0x1a8] sm:$0xff]
    %v4224 = vld [vmem:[%s4169 + $0x1b0] sm:$0xff]
    %v4225 = vld [vmem:[%s4169 + $0x1b8] sm:$0xff]
    %v4226 = vld [vmem:[%s4169 + $0x1c0] sm:$0xff]
    %v4227 = vld [vmem:[%s4169 + $0x1c8] sm:$0xff]
    %v4228 = vld [vmem:[%s4169 + $0x1d0] sm:$0xff]
    %v4229 = vld [vmem:[%s4169 + $0x1d8] sm:$0xff]
    %v4230 = vld [vmem:[%s4169 + $0x1e0] sm:$0xff]
    %v4231 = vld [vmem:[%s4169 + $0x1e8] sm:$0xff]
    %v4232 = vld [vmem:[%s4169 + $0x1f0] sm:$0xff]
    %v4233 = vld [vmem:[%s4169 + $0x1f8] sm:$0xff]
    %v4234 = vld [vmem:[%s4169 + $0x200] sm:$0xff]
    %v4235 = vld [vmem:[%s4169 + $0x208] sm:$0xff]
    %v4236 = vld [vmem:[%s4169 + $0x210] sm:$0xff]
    %v4237 = vld [vmem:[%s4169 + $0x218] sm:$0xff]
    %v4238 = vld [vmem:[%s4169 + $0x220] sm:$0xff]
    %v4239 = vld [vmem:[%s4169 + $0x228] sm:$0xff]
    %v4240 = vld [vmem:[%s4169 + $0x230] sm:$0xff]
    %v4241 = vld [vmem:[%s4169 + $0x238] sm:$0xff]
    %v4242 = vld [vmem:[%s4169 + $0x240] sm:$0xff]
    %v4243 = vld [vmem:[%s4169 + $0x248] sm:$0xff]
    %v4244 = vld [vmem:[%s4169 + $0x250] sm:$0xff]
    %v4245 = vld [vmem:[%s4169 + $0x258] sm:$0xff]
    %v4246 = vld [vmem:[%s4169 + $0x260] sm:$0xff]
    %v4247 = vld [vmem:[%s4169 + $0x268] sm:$0xff]
    %v4248 = vld [vmem:[%s4169 + $0x270] sm:$0xff]
    %v4249 = vld [vmem:[%s4169 + $0x278] sm:$0xff]
    %v4250 = vld [vmem:[%s4169 + $0x280] sm:$0xff]
    %v4251 = vld [vmem:[%s4169 + $0x288] sm:$0xff]
    %v4252 = vld [vmem:[%s4169 + $0x290] sm:$0xff]
    %v4253 = vld [vmem:[%s4169 + $0x298] sm:$0xff]
    %v4254 = vld [vmem:[%s4169 + $0x2a0] sm:$0xff]
    %v4255 = vld [vmem:[%s4169 + $0x2a8] sm:$0xff]
    %v4256 = vld [vmem:[%s4169 + $0x2b0] sm:$0xff]
    %v4257 = vld [vmem:[%s4169 + $0x2b8] sm:$0xff]
    %v4258 = vld [vmem:[%s4169 + $0x2c0] sm:$0xff]
    %v4259 = vld [vmem:[%s4169 + $0x2c8] sm:$0xff]
    %v4260 = vld [vmem:[%s4169 + $0x2d0] sm:$0xff]
    %v4261 = vld [vmem:[%s4169 + $0x2d8] sm:$0xff]
    %v4262 = vld [vmem:[%s4169 + $0x2e0] sm:$0xff]
    %v4263 = vld [vmem:[%s4169 + $0x2e8] sm:$0xff]
    %v4264 = vld [vmem:[%s4169 + $0x2f0] sm:$0xff]
    %v4265 = vld [vmem:[%s4169 + $0x2f8] sm:$0xff]
    %v4266 = vld [vmem:[%s4169 + $0x300] sm:$0xff]
    %v4267 = vld [vmem:[%s4169 + $0x308] sm:$0xff]
    %v4268 = vld [vmem:[%s4169 + $0x310] sm:$0xff]
    %v4269 = vld [vmem:[%s4169 + $0x318] sm:$0xff]
    %v4270 = vld [vmem:[%s4169 + $0x320] sm:$0xff]
    %v4271 = vld [vmem:[%s4169 + $0x328] sm:$0xff]
    %v4272 = vld [vmem:[%s4169 + $0x330] sm:$0xff]
    %v4273 = vld [vmem:[%s4169 + $0x338] sm:$0xff]
    %v4274 = vld [vmem:[%s4169 + $0x340] sm:$0xff]
    %v4275 = vld [vmem:[%s4169 + $0x348] sm:$0xff]
    %v4276 = vld [vmem:[%s4169 + $0x350] sm:$0xff]
    %v4277 = vld [vmem:[%s4169 + $0x358] sm:$0xff]
    %v4278 = vld [vmem:[%s4169 + $0x360] sm:$0xff]
    %v4279 = vld [vmem:[%s4169 + $0x368] sm:$0xff]
    %v4280 = vld [vmem:[%s4169 + $0x370] sm:$0xff]
    %v4281 = vld [vmem:[%s4169 + $0x378] sm:$0xff]
    %v4282 = vld [vmem:[%s4169 + $0x380] sm:$0xff]
    %v4283 = vld [vmem:[%s4169 + $0x388] sm:$0xff]
    %v4284 = vld [vmem:[%s4169 + $0x390] sm:$0xff]
    %v4285 = vld [vmem:[%s4169 + $0x398] sm:$0xff]
    %v4286 = vld [vmem:[%s4169 + $0x3a0] sm:$0xff]
    %v4287 = vld [vmem:[%s4169 + $0x3a8] sm:$0xff]
    %v4288 = vld [vmem:[%s4169 + $0x3b0] sm:$0xff]
    %v4289 = vld [vmem:[%s4169 + $0x3b8] sm:$0xff]
    %v4290 = vld [vmem:[%s4169 + $0x3c0] sm:$0xff]
    %v4291 = vld [vmem:[%s4169 + $0x3c8] sm:$0xff]
    %v4292 = vld [vmem:[%s4169 + $0x3d0] sm:$0xff]
    %v4293 = vld [vmem:[%s4169 + $0x3d8] sm:$0xff]
    %v4294 = vld [vmem:[%s4169 + $0x3e0] sm:$0xff]
    %v4295 = vld [vmem:[%s4169 + $0x3e8] sm:$0xff]
    %v4296 = vld [vmem:[%s4169 + $0x3f0] sm:$0xff]
    %v4297 = vld [vmem:[%s4169 + $0x3f8] sm:$0xff]
    %v4298 = vld [vmem:[%s4169 + $0x400] sm:$0xff]
    %v4299 = vld [vmem:[%s4169 + $0x408] sm:$0xff]
    %v4300 = vld [vmem:[%s4169 + $0x410] sm:$0xff]
    %v4301 = vld [vmem:[%s4169 + $0x418] sm:$0xff]
    %v4302 = vld [vmem:[%s4169 + $0x420] sm:$0xff]
    %v4303 = vld [vmem:[%s4169 + $0x428] sm:$0xff]
    %v4304 = vld [vmem:[%s4169 + $0x430] sm:$0xff]
    %v4305 = vld [vmem:[%s4169 + $0x438] sm:$0xff]
    %v4306 = vld [vmem:[%s4169 + $0x440] sm:$0xff]
    %v4307 = vld [vmem:[%s4169 + $0x448] sm:$0xff]
    %v4308 = vld [vmem:[%s4169 + $0x450] sm:$0xff]
    %v4309 = vld [vmem:[%s4169 + $0x458] sm:$0xff]
    %v4310 = vld [vmem:[%s4169 + $0x460] sm:$0xff]
    %v4311 = vld [vmem:[%s4169 + $0x468] sm:$0xff]
    %v4312 = vld [vmem:[%s4169 + $0x470] sm:$0xff]
    %v4313 = vld [vmem:[%s4169 + $0x478] sm:$0xff]
    %v4314 = vld [vmem:[%s4169 + $0x480] sm:$0xff]
    %v4315 = vld [vmem:[%s4169 + $0x488] sm:$0xff]
    %v4316 = vld [vmem:[%s4169 + $0x490] sm:$0xff]
    %v4317 = vld [vmem:[%s4169 + $0x498] sm:$0xff]
    %v4318 = vld [vmem:[%s4169 + $0x4a0] sm:$0xff]
    %v4319 = vld [vmem:[%s4169 + $0x4a8] sm:$0xff]
    %v4320 = vld [vmem:[%s4169 + $0x4b0] sm:$0xff]
    %v4321 = vld [vmem:[%s4169 + $0x4b8] sm:$0xff]
    %v4322 = vld [vmem:[%s4169 + $0x4c0] sm:$0xff]
    %v4323 = vld [vmem:[%s4169 + $0x4c8] sm:$0xff]
    %v4324 = vld [vmem:[%s4169 + $0x4d0] sm:$0xff]
    %v4325 = vld [vmem:[%s4169 + $0x4d8] sm:$0xff]
    %v4326 = vld [vmem:[%s4169 + $0x4e0] sm:$0xff]
    %v4327 = vld [vmem:[%s4169 + $0x4e8] sm:$0xff]
    %v4328 = vld [vmem:[%s4169 + $0x4f0] sm:$0xff]
    %v4329 = vld [vmem:[%s4169 + $0x4f8] sm:$0xff]
    %v4330 = vld [vmem:[%s4169 + $0x500] sm:$0xff]
    %v4331 = vld [vmem:[%s4169 + $0x508] sm:$0xff]
    %v4332 = vld [vmem:[%s4169 + $0x510] sm:$0xff]
    %v4333 = vld [vmem:[%s4169 + $0x518] sm:$0xff]
    %v4334 = vld [vmem:[%s4169 + $0x520] sm:$0xff]
    %v4335 = vld [vmem:[%s4169 + $0x528] sm:$0xff]
    %v4336 = vld [vmem:[%s4169 + $0x530] sm:$0xff]
    %v4337 = vld [vmem:[%s4169 + $0x538] sm:$0xff]
    %v4338 = vld [vmem:[%s4169 + $0x540] sm:$0xff]
    %v4339 = vld [vmem:[%s4169 + $0x548] sm:$0xff]
    %v4340 = vld [vmem:[%s4169 + $0x550] sm:$0xff]
    %v4341 = vld [vmem:[%s4169 + $0x558] sm:$0xff]
    %v4342 = vld [vmem:[%s4169 + $0x560] sm:$0xff]
    %v4343 = vld [vmem:[%s4169 + $0x568] sm:$0xff]
    %v4344 = vld [vmem:[%s4169 + $0x570] sm:$0xff]
    %v4345 = vld [vmem:[%s4169 + $0x578] sm:$0xff]
    %v4346 = vld [vmem:[%s4169 + $0x580] sm:$0xff]
    %v4347 = vld [vmem:[%s4169 + $0x588] sm:$0xff]
    %v4348 = vld [vmem:[%s4169 + $0x590] sm:$0xff]
    %v4349 = vld [vmem:[%s4169 + $0x598] sm:$0xff]
    %v4350 = vld [vmem:[%s4169 + $0x5a0] sm:$0xff]
    %v4351 = vld [vmem:[%s4169 + $0x5a8] sm:$0xff]
    %v4352 = vld [vmem:[%s4169 + $0x5b0] sm:$0xff]
    %v4353 = vld [vmem:[%s4169 + $0x5b8] sm:$0xff]
    %v4354 = vld [vmem:[%s4169 + $0x5c0] sm:$0xff]
    %v4355 = vld [vmem:[%s4169 + $0x5c8] sm:$0xff]
    %v4356 = vld [vmem:[%s4169 + $0x5d0] sm:$0xff]
    %v4357 = vld [vmem:[%s4169 + $0x5d8] sm:$0xff]
    %v4358 = vld [vmem:[%s4169 + $0x5e0] sm:$0xff]
    %v4359 = vld [vmem:[%s4169 + $0x5e8] sm:$0xff]
    %v4360 = vld [vmem:[%s4169 + $0x5f0] sm:$0xff]
    %v4361 = vld [vmem:[%s4169 + $0x5f8] sm:$0xff]
    %4362 = vmatprep.subr.mxu0 %v4231
    %4363 = vmatpush1.msra.mxu0 %v4230
    %4364 = vmatprep.subr.mxu0 %v4227
    %4365 = vmatpush1.msra.mxu0 %v4226
    %4366 = vmatprep.subr.mxu0 %v4223
    %4367 = vmatpush1.msra.mxu0 %v4222
    %4368 = vmatprep.subr.mxu0 %v4219
    %4369 = vmatpush1.msra.mxu0 %v4218
    %4370 = vmatprep.subr.mxu0 %v4215
    %4371 = vmatpush1.msra.mxu0 %v4214
    %4372 = vmatprep.subr.mxu0 %v4211
    %4373 = vmatpush1.msra.mxu0 %v4210
    %4374 = vmatprep.subr.mxu0 %v4207
    %4375 = vmatpush1.msra.mxu0 %v4206
    %4376 = vmatprep.subr.mxu0 %v4203
    %4377 = vmatpush1.msra.mxu0 %v4202
    %4378 = vmatprep.subr.mxu0 %v4199
    %4379 = vmatpush1.msra.mxu0 %v4198
    %4380 = vmatprep.subr.mxu0 %v4195
    %4381 = vmatpush1.msra.mxu0 %v4194
    %4382 = vmatprep.subr.mxu0 %v4191
    %4383 = vmatpush1.msra.mxu0 %v4190
    %4384 = vmatprep.subr.mxu0 %v4187
    %4385 = vmatpush1.msra.mxu0 %v4186
    %4386 = vmatprep.subr.mxu0 %v4183
    %4387 = vmatpush1.msra.mxu0 %v4182
    %4388 = vmatprep.subr.mxu0 %v4179
    %4389 = vmatpush1.msra.mxu0 %v4178
    %4390 = vmatprep.subr.mxu0 %v4175
    %4391 = vmatpush1.msra.mxu0 %v4174
    %4392 = vmatprep.subr.mxu0 %v4171
    %4393 = vmatpush1.msra.mxu0 %v4170
    %4394 = vmatprep.subr.mxu0 %v4295
    %4395 = vmatpush2.msra.mxu0 %v4294
    %4396 = vmatprep.subr.mxu0 %v4291
    %4397 = vmatpush2.msra.mxu0 %v4290
    %4398 = vmatprep.subr.mxu0 %v4287
    %4399 = vmatpush2.msra.mxu0 %v4286
    %4400 = vmatprep.subr.mxu0 %v4283
    %4401 = vmatpush2.msra.mxu0 %v4282
    %4402 = vmatprep.subr.mxu0 %v4279
    %4403 = vmatpush2.msra.mxu0 %v4278
    %4404 = vmatprep.subr.mxu0 %v4275
    %4405 = vmatpush2.msra.mxu0 %v4274
    %4406 = vmatprep.subr.mxu0 %v4271
    %4407 = vmatpush2.msra.mxu0 %v4270
    %4408 = vmatprep.subr.mxu0 %v4267
    %4409 = vmatpush2.msra.mxu0 %v4266
    %4410 = vmatprep.subr.mxu0 %v4263
    %4411 = vmatpush2.msra.mxu0 %v4262
    %4412 = vmatprep.subr.mxu0 %v4259
    %4413 = vmatpush2.msra.mxu0 %v4258
    %4414 = vmatprep.subr.mxu0 %v4255
    %4415 = vmatpush2.msra.mxu0 %v4254
    %4416 = vmatprep.subr.mxu0 %v4251
    %4417 = vmatpush2.msra.mxu0 %v4250
    %4418 = vmatprep.subr.mxu0 %v4247
    %4419 = vmatpush2.msra.mxu0 %v4246
    %4420 = vmatprep.subr.mxu0 %v4243
    %4421 = vmatpush2.msra.mxu0 %v4242
    %4422 = vmatprep.subr.mxu0 %v4239
    %4423 = vmatpush2.msra.mxu0 %v4238
    %4424 = vmatprep.subr.mxu0 %v4235
    %4425 = vmatpush2.msra.mxu0 %v4234
    %4426 = vmatprep.mubr.f32.mxu0 %v4046
    %4427 = vmatmul.mubr.f32.gmra.mxu0 %v4043
    %v4428 = vpop.f32.mrf.mxu0
    %v4429 = vadd.f32 0.0, %v4428
    %v4430 = vpop.f32.mrf.mxu0
    %v4431 = vadd.f32 0.0, %v4430
    %4432 = vmatprep.mubr.f32.mxu0 %v4055
    %4433 = vmatmul.mubr.f32.gmra.mxu0 %v4052
    %v4434 = vpop.f32.mrf.mxu0
    %v4435 = vadd.f32 0.0, %v4434
    %v4436 = vpop.f32.mrf.mxu0
    %v4437 = vadd.f32 0.0, %v4436
    %4438 = vmatprep.mubr.f32.mxu0 %v4064
    %4439 = vmatmul.mubr.f32.gmra.mxu0 %v4061
    %v4440 = vpop.f32.mrf.mxu0
    %v4441 = vadd.f32 0.0, %v4440
    %v4442 = vpop.f32.mrf.mxu0
    %v4443 = vadd.f32 0.0, %v4442
    %4444 = vmatprep.mubr.f32.mxu0 %v4073
    %4445 = vmatmul.mubr.f32.gmra.mxu0 %v4070
    %v4446 = vpop.f32.mrf.mxu0
    %v4447 = vadd.f32 0.0, %v4446
    %v4448 = vpop.f32.mrf.mxu0
    %v4449 = vadd.f32 0.0, %v4448
    %4450 = vmatprep.mubr.f32.mxu0 %v4082
    %4451 = vmatmul.mubr.f32.gmra.mxu0 %v4079
    %v4452 = vpop.f32.mrf.mxu0
    %v4453 = vadd.f32 0.0, %v4452
    %v4454 = vpop.f32.mrf.mxu0
    %v4455 = vadd.f32 0.0, %v4454
    %4456 = vmatprep.mubr.f32.mxu0 %v4091
    %4457 = vmatmul.mubr.f32.gmra.mxu0 %v4088
    %v4458 = vpop.f32.mrf.mxu0
    %v4459 = vadd.f32 0.0, %v4458
    %v4460 = vpop.f32.mrf.mxu0
    %v4461 = vadd.f32 0.0, %v4460
    %4462 = vmatprep.mubr.f32.mxu0 %v4100
    %4463 = vmatmul.mubr.f32.gmra.mxu0 %v4097
    %v4464 = vpop.f32.mrf.mxu0
    %v4465 = vadd.f32 0.0, %v4464
    %v4466 = vpop.f32.mrf.mxu0
    %v4467 = vadd.f32 0.0, %v4466
    %4468 = vmatprep.mubr.f32.mxu0 %v4109
    %4469 = vmatmul.mubr.f32.gmra.mxu0 %v4106
    %v4470 = vpop.f32.mrf.mxu0
    %v4471 = vadd.f32 0.0, %v4470
    %v4472 = vpop.f32.mrf.mxu0
    %v4473 = vadd.f32 0.0, %v4472
    %4474 = vdwg.mxu0
    %4475 = vmatprep.subr.mxu0 %v4359
    %4476 = vmatpush1.msra.mxu0 %v4358
    %4477 = vmatprep.subr.mxu0 %v4355
    %4478 = vmatpush1.msra.mxu0 %v4354
    %4479 = vmatprep.subr.mxu0 %v4351
    %4480 = vmatpush1.msra.mxu0 %v4350
    %4481 = vmatprep.subr.mxu0 %v4347
    %4482 = vmatpush1.msra.mxu0 %v4346
    %4483 = vmatprep.subr.mxu0 %v4343
    %4484 = vmatpush1.msra.mxu0 %v4342
    %4485 = vmatprep.subr.mxu0 %v4339
    %4486 = vmatpush1.msra.mxu0 %v4338
    %4487 = vmatprep.subr.mxu0 %v4335
    %4488 = vmatpush1.msra.mxu0 %v4334
    %4489 = vmatprep.subr.mxu0 %v4331
    %4490 = vmatpush1.msra.mxu0 %v4330
    %4491 = vmatprep.subr.mxu0 %v4327
    %4492 = vmatpush1.msra.mxu0 %v4326
    %4493 = vmatprep.subr.mxu0 %v4323
    %4494 = vmatpush1.msra.mxu0 %v4322
    %4495 = vmatprep.subr.mxu0 %v4319
    %4496 = vmatpush1.msra.mxu0 %v4318
    %4497 = vmatprep.subr.mxu0 %v4315
    %4498 = vmatpush1.msra.mxu0 %v4314
    %4499 = vmatprep.subr.mxu0 %v4311
    %4500 = vmatpush1.msra.mxu0 %v4310
    %4501 = vmatprep.subr.mxu0 %v4307
    %4502 = vmatpush1.msra.mxu0 %v4306
    %4503 = vmatprep.subr.mxu0 %v4303
    %4504 = vmatpush1.msra.mxu0 %v4302
    %4505 = vmatprep.subr.mxu0 %v4299
    %4506 = vmatpush1.msra.mxu0 %v4298
    %4507 = vmatprep.subr.mxu0 0.0
    %4508 = vmatpush2.msra.mxu0 0.0
    %4509 = vmatprep.subr.mxu0 0.0
    %4510 = vmatpush2.msra.mxu0 0.0
    %4511 = vmatprep.subr.mxu0 0.0
    %4512 = vmatpush2.msra.mxu0 0.0
    %4513 = vmatprep.subr.mxu0 0.0
    %4514 = vmatpush2.msra.mxu0 0.0
    %4515 = vmatprep.subr.mxu0 0.0
    %4516 = vmatpush2.msra.mxu0 0.0
    %4517 = vmatprep.subr.mxu0 0.0
    %4518 = vmatpush2.msra.mxu0 0.0
    %4519 = vmatprep.subr.mxu0 0.0
    %4520 = vmatpush2.msra.mxu0 0.0
    %4521 = vmatprep.subr.mxu0 0.0
    %4522 = vmatpush2.msra.mxu0 0.0
    %4523 = vmatprep.subr.mxu0 0.0
    %4524 = vmatpush2.msra.mxu0 0.0
    %4525 = vmatprep.subr.mxu0 0.0
    %4526 = vmatpush2.msra.mxu0 0.0
    %4527 = vmatprep.subr.mxu0 0.0
    %4528 = vmatpush2.msra.mxu0 0.0
    %4529 = vmatprep.subr.mxu0 0.0
    %4530 = vmatpush2.msra.mxu0 0.0
    %4531 = vmatprep.subr.mxu0 0.0
    %4532 = vmatpush2.msra.mxu0 0.0
    %4533 = vmatprep.subr.mxu0 0.0
    %4534 = vmatpush2.msra.mxu0 0.0
    %4535 = vmatprep.subr.mxu0 0.0
    %4536 = vmatpush2.msra.mxu0 0.0
    %4537 = vmatprep.subr.mxu0 0.0
    %4538 = vmatpush2.msra.mxu0 0.0
    %4539 = vmatprep.mubr.f32.mxu0 0.0
    %4540 = vmatmul.mubr.f32.gmra.mxu0 %v4049
    %v4541 = vpop.f32.mrf.mxu0
    %v4542 = vadd.f32 %v4429, %v4541
    %v4543 = vpop.f32.mrf.mxu0
    %v4544 = vadd.f32 %v4431, %v4543
    %4545 = vmatprep.mubr.f32.mxu0 0.0
    %4546 = vmatmul.mubr.f32.gmra.mxu0 %v4058
    %v4547 = vpop.f32.mrf.mxu0
    %v4548 = vadd.f32 %v4435, %v4547
    %v4549 = vpop.f32.mrf.mxu0
    %v4550 = vadd.f32 %v4437, %v4549
    %4551 = vmatprep.mubr.f32.mxu0 0.0
    %4552 = vmatmul.mubr.f32.gmra.mxu0 %v4067
    %v4553 = vpop.f32.mrf.mxu0
    %v4554 = vadd.f32 %v4441, %v4553
    %v4555 = vpop.f32.mrf.mxu0
    %v4556 = vadd.f32 %v4443, %v4555
    %4557 = vmatprep.mubr.f32.mxu0 0.0
    %4558 = vmatmul.mubr.f32.gmra.mxu0 %v4076
    %v4559 = vpop.f32.mrf.mxu0
    %v4560 = vadd.f32 %v4447, %v4559
    %v4561 = vpop.f32.mrf.mxu0
    %v4562 = vadd.f32 %v4449, %v4561
    %4563 = vmatprep.mubr.f32.mxu0 0.0
    %4564 = vmatmul.mubr.f32.gmra.mxu0 %v4085
    %v4565 = vpop.f32.mrf.mxu0
    %v4566 = vadd.f32 %v4453, %v4565
    %v4567 = vpop.f32.mrf.mxu0
    %v4568 = vadd.f32 %v4455, %v4567
    %4569 = vmatprep.mubr.f32.mxu0 0.0
    %4570 = vmatmul.mubr.f32.gmra.mxu0 %v4094
    %v4571 = vpop.f32.mrf.mxu0
    %v4572 = vadd.f32 %v4459, %v4571
    %v4573 = vpop.f32.mrf.mxu0
    %v4574 = vadd.f32 %v4461, %v4573
    %4575 = vmatprep.mubr.f32.mxu0 0.0
    %4576 = vmatmul.mubr.f32.gmra.mxu0 %v4103
    %v4577 = vpop.f32.mrf.mxu0
    %v4578 = vadd.f32 %v4465, %v4577
    %v4579 = vpop.f32.mrf.mxu0
    %v4580 = vadd.f32 %v4467, %v4579
    %4581 = vmatprep.mubr.f32.mxu0 0.0
    %4582 = vmatmul.mubr.f32.gmra.mxu0 %v4112
    %v4583 = vpop.f32.mrf.mxu0
    %v4584 = vadd.f32 %v4471, %v4583
    %v4585 = vpop.f32.mrf.mxu0
    %v4586 = vadd.f32 %v4473, %v4585
    %4587 = vdwg.mxu0
    %4588 = vmatprep.subr.mxu0 %v4233
    %4589 = vmatpush1.msra.mxu0 %v4232
    %4590 = vmatprep.subr.mxu0 %v4229
    %4591 = vmatpush1.msra.mxu0 %v4228
    %4592 = vmatprep.subr.mxu0 %v4225
    %4593 = vmatpush1.msra.mxu0 %v4224
    %4594 = vmatprep.subr.mxu0 %v4221
    %4595 = vmatpush1.msra.mxu0 %v4220
    %4596 = vmatprep.subr.mxu0 %v4217
    %4597 = vmatpush1.msra.mxu0 %v4216
    %4598 = vmatprep.subr.mxu0 %v4213
    %4599 = vmatpush1.msra.mxu0 %v4212
    %4600 = vmatprep.subr.mxu0 %v4209
    %4601 = vmatpush1.msra.mxu0 %v4208
    %4602 = vmatprep.subr.mxu0 %v4205
    %4603 = vmatpush1.msra.mxu0 %v4204
    %4604 = vmatprep.subr.mxu0 %v4201
    %4605 = vmatpush1.msra.mxu0 %v4200
    %4606 = vmatprep.subr.mxu0 %v4197
    %4607 = vmatpush1.msra.mxu0 %v4196
    %4608 = vmatprep.subr.mxu0 %v4193
    %4609 = vmatpush1.msra.mxu0 %v4192
    %4610 = vmatprep.subr.mxu0 %v4189
    %4611 = vmatpush1.msra.mxu0 %v4188
    %4612 = vmatprep.subr.mxu0 %v4185
    %4613 = vmatpush1.msra.mxu0 %v4184
    %4614 = vmatprep.subr.mxu0 %v4181
    %4615 = vmatpush1.msra.mxu0 %v4180
    %4616 = vmatprep.subr.mxu0 %v4177
    %4617 = vmatpush1.msra.mxu0 %v4176
    %4618 = vmatprep.subr.mxu0 %v4173
    %4619 = vmatpush1.msra.mxu0 %v4172
    %4620 = vmatprep.subr.mxu0 %v4297
    %4621 = vmatpush2.msra.mxu0 %v4296
    %4622 = vmatprep.subr.mxu0 %v4293
    %4623 = vmatpush2.msra.mxu0 %v4292
    %4624 = vmatprep.subr.mxu0 %v4289
    %4625 = vmatpush2.msra.mxu0 %v4288
    %4626 = vmatprep.subr.mxu0 %v4285
    %4627 = vmatpush2.msra.mxu0 %v4284
    %4628 = vmatprep.subr.mxu0 %v4281
    %4629 = vmatpush2.msra.mxu0 %v4280
    %4630 = vmatprep.subr.mxu0 %v4277
    %4631 = vmatpush2.msra.mxu0 %v4276
    %4632 = vmatprep.subr.mxu0 %v4273
    %4633 = vmatpush2.msra.mxu0 %v4272
    %4634 = vmatprep.subr.mxu0 %v4269
    %4635 = vmatpush2.msra.mxu0 %v4268
    %4636 = vmatprep.subr.mxu0 %v4265
    %4637 = vmatpush2.msra.mxu0 %v4264
    %4638 = vmatprep.subr.mxu0 %v4261
    %4639 = vmatpush2.msra.mxu0 %v4260
    %4640 = vmatprep.subr.mxu0 %v4257
    %4641 = vmatpush2.msra.mxu0 %v4256
    %4642 = vmatprep.subr.mxu0 %v4253
    %4643 = vmatpush2.msra.mxu0 %v4252
    %4644 = vmatprep.subr.mxu0 %v4249
    %4645 = vmatpush2.msra.mxu0 %v4248
    %4646 = vmatprep.subr.mxu0 %v4245
    %4647 = vmatpush2.msra.mxu0 %v4244
    %4648 = vmatprep.subr.mxu0 %v4241
    %4649 = vmatpush2.msra.mxu0 %v4240
    %4650 = vmatprep.subr.mxu0 %v4237
    %4651 = vmatpush2.msra.mxu0 %v4236
    %4652 = vmatprep.mubr.f32.mxu0 %v4046
    %4653 = vmatmul.mubr.f32.gmra.mxu0 %v4043
    %v4654 = vpop.f32.mrf.mxu0
    %v4655 = vadd.f32 0.0, %v4654
    %v4656 = vpop.f32.mrf.mxu0
    %v4657 = vadd.f32 0.0, %v4656
    %4658 = vmatprep.mubr.f32.mxu0 %v4055
    %4659 = vmatmul.mubr.f32.gmra.mxu0 %v4052
    %v4660 = vpop.f32.mrf.mxu0
    %v4661 = vadd.f32 0.0, %v4660
    %v4662 = vpop.f32.mrf.mxu0
    %v4663 = vadd.f32 0.0, %v4662
    %4664 = vmatprep.mubr.f32.mxu0 %v4064
    %4665 = vmatmul.mubr.f32.gmra.mxu0 %v4061
    %v4666 = vpop.f32.mrf.mxu0
    %v4667 = vadd.f32 0.0, %v4666
    %v4668 = vpop.f32.mrf.mxu0
    %v4669 = vadd.f32 0.0, %v4668
    %4670 = vmatprep.mubr.f32.mxu0 %v4073
    %4671 = vmatmul.mubr.f32.gmra.mxu0 %v4070
    %v4672 = vpop.f32.mrf.mxu0
    %v4673 = vadd.f32 0.0, %v4672
    %v4674 = vpop.f32.mrf.mxu0
    %v4675 = vadd.f32 0.0, %v4674
    %4676 = vmatprep.mubr.f32.mxu0 %v4082
    %4677 = vmatmul.mubr.f32.gmra.mxu0 %v4079
    %v4678 = vpop.f32.mrf.mxu0
    %v4679 = vadd.f32 0.0, %v4678
    %v4680 = vpop.f32.mrf.mxu0
    %v4681 = vadd.f32 0.0, %v4680
    %4682 = vmatprep.mubr.f32.mxu0 %v4091
    %4683 = vmatmul.mubr.f32.gmra.mxu0 %v4088
    %v4684 = vpop.f32.mrf.mxu0
    %v4685 = vadd.f32 0.0, %v4684
    %v4686 = vpop.f32.mrf.mxu0
    %v4687 = vadd.f32 0.0, %v4686
    %4688 = vmatprep.mubr.f32.mxu0 %v4100
    %4689 = vmatmul.mubr.f32.gmra.mxu0 %v4097
    %v4690 = vpop.f32.mrf.mxu0
    %v4691 = vadd.f32 0.0, %v4690
    %v4692 = vpop.f32.mrf.mxu0
    %v4693 = vadd.f32 0.0, %v4692
    %4694 = vmatprep.mubr.f32.mxu0 %v4109
    %4695 = vmatmul.mubr.f32.gmra.mxu0 %v4106
    %v4696 = vpop.f32.mrf.mxu0
    %v4697 = vadd.f32 0.0, %v4696
    %v4698 = vpop.f32.mrf.mxu0
    %v4699 = vadd.f32 0.0, %v4698
    %4700 = vdwg.mxu0
    %4701 = vmatprep.subr.mxu0 %v4361
    %4702 = vmatpush1.msra.mxu0 %v4360
    %4703 = vmatprep.subr.mxu0 %v4357
    %4704 = vmatpush1.msra.mxu0 %v4356
    %4705 = vmatprep.subr.mxu0 %v4353
    %4706 = vmatpush1.msra.mxu0 %v4352
    %4707 = vmatprep.subr.mxu0 %v4349
    %4708 = vmatpush1.msra.mxu0 %v4348
    %4709 = vmatprep.subr.mxu0 %v4345
    %4710 = vmatpush1.msra.mxu0 %v4344
    %4711 = vmatprep.subr.mxu0 %v4341
    %4712 = vmatpush1.msra.mxu0 %v4340
    %4713 = vmatprep.subr.mxu0 %v4337
    %4714 = vmatpush1.msra.mxu0 %v4336
    %4715 = vmatprep.subr.mxu0 %v4333
    %4716 = vmatpush1.msra.mxu0 %v4332
    %4717 = vmatprep.subr.mxu0 %v4329
    %4718 = vmatpush1.msra.mxu0 %v4328
    %4719 = vmatprep.subr.mxu0 %v4325
    %4720 = vmatpush1.msra.mxu0 %v4324
    %4721 = vmatprep.subr.mxu0 %v4321
    %4722 = vmatpush1.msra.mxu0 %v4320
    %4723 = vmatprep.subr.mxu0 %v4317
    %4724 = vmatpush1.msra.mxu0 %v4316
    %4725 = vmatprep.subr.mxu0 %v4313
    %4726 = vmatpush1.msra.mxu0 %v4312
    %4727 = vmatprep.subr.mxu0 %v4309
    %4728 = vmatpush1.msra.mxu0 %v4308
    %4729 = vmatprep.subr.mxu0 %v4305
    %4730 = vmatpush1.msra.mxu0 %v4304
    %4731 = vmatprep.subr.mxu0 %v4301
    %4732 = vmatpush1.msra.mxu0 %v4300
    %4733 = vmatprep.subr.mxu0 0.0
    %4734 = vmatpush2.msra.mxu0 0.0
    %4735 = vmatprep.subr.mxu0 0.0
    %4736 = vmatpush2.msra.mxu0 0.0
    %4737 = vmatprep.subr.mxu0 0.0
    %4738 = vmatpush2.msra.mxu0 0.0
    %4739 = vmatprep.subr.mxu0 0.0
    %4740 = vmatpush2.msra.mxu0 0.0
    %4741 = vmatprep.subr.mxu0 0.0
    %4742 = vmatpush2.msra.mxu0 0.0
    %4743 = vmatprep.subr.mxu0 0.0
    %4744 = vmatpush2.msra.mxu0 0.0
    %4745 = vmatprep.subr.mxu0 0.0
    %4746 = vmatpush2.msra.mxu0 0.0
    %4747 = vmatprep.subr.mxu0 0.0
    %4748 = vmatpush2.msra.mxu0 0.0
    %4749 = vmatprep.subr.mxu0 0.0
    %4750 = vmatpush2.msra.mxu0 0.0
    %4751 = vmatprep.subr.mxu0 0.0
    %4752 = vmatpush2.msra.mxu0 0.0
    %4753 = vmatprep.subr.mxu0 0.0
    %4754 = vmatpush2.msra.mxu0 0.0
    %4755 = vmatprep.subr.mxu0 0.0
    %4756 = vmatpush2.msra.mxu0 0.0
    %4757 = vmatprep.subr.mxu0 0.0
    %4758 = vmatpush2.msra.mxu0 0.0
    %4759 = vmatprep.subr.mxu0 0.0
    %4760 = vmatpush2.msra.mxu0 0.0
    %4761 = vmatprep.subr.mxu0 0.0
    %4762 = vmatpush2.msra.mxu0 0.0
    %4763 = vmatprep.subr.mxu0 0.0
    %4764 = vmatpush2.msra.mxu0 0.0
    %4765 = vmatprep.mubr.f32.mxu0 0.0
    %4766 = vmatmul.mubr.f32.gmra.mxu0 %v4049
    %v4767 = vpop.f32.mrf.mxu0
    %v4768 = vadd.f32 %v4655, %v4767
    %v4769 = vpop.f32.mrf.mxu0
    %v4770 = vadd.f32 %v4657, %v4769
    %4771 = vmatprep.mubr.f32.mxu0 0.0
    %4772 = vmatmul.mubr.f32.gmra.mxu0 %v4058
    %v4773 = vpop.f32.mrf.mxu0
    %v4774 = vadd.f32 %v4661, %v4773
    %v4775 = vpop.f32.mrf.mxu0
    %v4776 = vadd.f32 %v4663, %v4775
    %4777 = vmatprep.mubr.f32.mxu0 0.0
    %4778 = vmatmul.mubr.f32.gmra.mxu0 %v4067
    %v4779 = vpop.f32.mrf.mxu0
    %v4780 = vadd.f32 %v4667, %v4779
    %v4781 = vpop.f32.mrf.mxu0
    %v4782 = vadd.f32 %v4669, %v4781
    %4783 = vmatprep.mubr.f32.mxu0 0.0
    %4784 = vmatmul.mubr.f32.gmra.mxu0 %v4076
    %v4785 = vpop.f32.mrf.mxu0
    %v4786 = vadd.f32 %v4673, %v4785
    %v4787 = vpop.f32.mrf.mxu0
    %v4788 = vadd.f32 %v4675, %v4787
    %4789 = vmatprep.mubr.f32.mxu0 0.0
    %4790 = vmatmul.mubr.f32.gmra.mxu0 %v4085
    %v4791 = vpop.f32.mrf.mxu0
    %v4792 = vadd.f32 %v4679, %v4791
    %v4793 = vpop.f32.mrf.mxu0
    %v4794 = vadd.f32 %v4681, %v4793
    %4795 = vmatprep.mubr.f32.mxu0 0.0
    %4796 = vmatmul.mubr.f32.gmra.mxu0 %v4094
    %v4797 = vpop.f32.mrf.mxu0
    %v4798 = vadd.f32 %v4685, %v4797
    %v4799 = vpop.f32.mrf.mxu0
    %v4800 = vadd.f32 %v4687, %v4799
    %4801 = vmatprep.mubr.f32.mxu0 0.0
    %4802 = vmatmul.mubr.f32.gmra.mxu0 %v4103
    %v4803 = vpop.f32.mrf.mxu0
    %v4804 = vadd.f32 %v4691, %v4803
    %v4805 = vpop.f32.mrf.mxu0
    %v4806 = vadd.f32 %v4693, %v4805
    %4807 = vmatprep.mubr.f32.mxu0 0.0
    %4808 = vmatmul.mubr.f32.gmra.mxu0 %v4112
    %v4809 = vpop.f32.mrf.mxu0
    %v4810 = vadd.f32 %v4697, %v4809
    %v4811 = vpop.f32.mrf.mxu0
    %v4812 = vadd.f32 %v4699, %v4811
    %4813 = vdwg.mxu0
    %v4814 = vadd.f32 %v4137, %v4542
    %v4815 = vadd.f32 %v4138, %v4544
    %v4816 = vadd.f32 %v4139, %v4768
    %v4817 = vadd.f32 %v4140, %v4770
    %v4818 = vadd.f32 %v4141, %v4548
    %v4819 = vadd.f32 %v4142, %v4550
    %v4820 = vadd.f32 %v4143, %v4774
    %v4821 = vadd.f32 %v4144, %v4776
    %v4822 = vadd.f32 %v4145, %v4554
    %v4823 = vadd.f32 %v4146, %v4556
    %v4824 = vadd.f32 %v4147, %v4780
    %v4825 = vadd.f32 %v4148, %v4782
    %v4826 = vadd.f32 %v4149, %v4560
    %v4827 = vadd.f32 %v4150, %v4562
    %v4828 = vadd.f32 %v4151, %v4786
    %v4829 = vadd.f32 %v4152, %v4788
    %v4830 = vadd.f32 %v4153, %v4566
    %v4831 = vadd.f32 %v4154, %v4568
    %v4832 = vadd.f32 %v4155, %v4792
    %v4833 = vadd.f32 %v4156, %v4794
    %v4834 = vadd.f32 %v4157, %v4572
    %v4835 = vadd.f32 %v4158, %v4574
    %v4836 = vadd.f32 %v4159, %v4798
    %v4837 = vadd.f32 %v4160, %v4800
    %v4838 = vadd.f32 %v4161, %v4578
    %v4839 = vadd.f32 %v4162, %v4580
    %v4840 = vadd.f32 %v4163, %v4804
    %v4841 = vadd.f32 %v4164, %v4806
    %v4842 = vadd.f32 %v4165, %v4584
    %v4843 = vadd.f32 %v4166, %v4586
    %v4844 = vadd.f32 %v4167, %v4810
    %v4845 = vadd.f32 %v4168, %v4812
    %4846 = vst [vmem:[#allocation3] sm:$0xff] %v4814
    %4847 = vst [vmem:[#allocation3 + $0x8] sm:$0xff] %v4815
    %4848 = vst [vmem:[#allocation3 + $0x10] sm:$0xff] %v4816
    %4849 = vst [vmem:[#allocation3 + $0x18] sm:$0xff] %v4817
    %4850 = vst [vmem:[#allocation3 + $0x20] sm:$0xff] %v4818
    %4851 = vst [vmem:[#allocation3 + $0x28] sm:$0xff] %v4819
    %4852 = vst [vmem:[#allocation3 + $0x30] sm:$0xff] %v4820
    %4853 = vst [vmem:[#allocation3 + $0x38] sm:$0xff] %v4821
    %4854 = vst [vmem:[#allocation3 + $0x40] sm:$0xff] %v4822
    %4855 = vst [vmem:[#allocation3 + $0x48] sm:$0xff] %v4823
    %4856 = vst [vmem:[#allocation3 + $0x50] sm:$0xff] %v4824
    %4857 = vst [vmem:[#allocation3 + $0x58] sm:$0xff] %v4825
    %4858 = vst [vmem:[#allocation3 + $0x60] sm:$0xff] %v4826
    %4859 = vst [vmem:[#allocation3 + $0x68] sm:$0xff] %v4827
    %4860 = vst [vmem:[#allocation3 + $0x70] sm:$0xff] %v4828
    %4861 = vst [vmem:[#allocation3 + $0x78] sm:$0xff] %v4829
    %4862 = vst [vmem:[#allocation3 + $0x80] sm:$0xff] %v4830
    %4863 = vst [vmem:[#allocation3 + $0x88] sm:$0xff] %v4831
    %4864 = vst [vmem:[#allocation3 + $0x90] sm:$0xff] %v4832
    %4865 = vst [vmem:[#allocation3 + $0x98] sm:$0xff] %v4833
    %4866 = vst [vmem:[#allocation3 + $0xa0] sm:$0xff] %v4834
    %4867 = vst [vmem:[#allocation3 + $0xa8] sm:$0xff] %v4835
    %4868 = vst [vmem:[#allocation3 + $0xb0] sm:$0xff] %v4836
    %4869 = vst [vmem:[#allocation3 + $0xb8] sm:$0xff] %v4837
    %4870 = vst [vmem:[#allocation3 + $0xc0] sm:$0xff] %v4838
    %4871 = vst [vmem:[#allocation3 + $0xc8] sm:$0xff] %v4839
    %4872 = vst [vmem:[#allocation3 + $0xd0] sm:$0xff] %v4840
    %4873 = vst [vmem:[#allocation3 + $0xd8] sm:$0xff] %v4841
    %4874 = vst [vmem:[#allocation3 + $0xe0] sm:$0xff] %v4842
    %4875 = vst [vmem:[#allocation3 + $0xe8] sm:$0xff] %v4843
    %4876 = vst [vmem:[#allocation3 + $0xf0] sm:$0xff] %v4844
    %4877 = vst [vmem:[#allocation3 + $0xf8] sm:$0xff] %v4845
    %v4878 = vld [vmem:[#allocation3] sm:$0xff]
    %v4879 = vld [vmem:[#allocation3 + $0x8] sm:$0xff]
    %v4880 = vld [vmem:[#allocation3 + $0x10] sm:$0xff]
    %v4881 = vld [vmem:[#allocation3 + $0x18] sm:$0xff]
    %v4882 = vld [vmem:[#allocation3 + $0x20] sm:$0xff]
    %v4883 = vld [vmem:[#allocation3 + $0x28] sm:$0xff]
    %v4884 = vld [vmem:[#allocation3 + $0x30] sm:$0xff]
    %v4885 = vld [vmem:[#allocation3 + $0x38] sm:$0xff]
    %v4886 = vld [vmem:[#allocation3 + $0x40] sm:$0xff]
    %v4887 = vld [vmem:[#allocation3 + $0x48] sm:$0xff]
    %v4888 = vld [vmem:[#allocation3 + $0x50] sm:$0xff]
    %v4889 = vld [vmem:[#allocation3 + $0x58] sm:$0xff]
    %v4890 = vld [vmem:[#allocation3 + $0x60] sm:$0xff]
    %v4891 = vld [vmem:[#allocation3 + $0x68] sm:$0xff]
    %v4892 = vld [vmem:[#allocation3 + $0x70] sm:$0xff]
    %v4893 = vld [vmem:[#allocation3 + $0x78] sm:$0xff]
    %v4894 = vld [vmem:[#allocation3 + $0x80] sm:$0xff]
    %v4895 = vld [vmem:[#allocation3 + $0x88] sm:$0xff]
    %v4896 = vld [vmem:[#allocation3 + $0x90] sm:$0xff]
    %v4897 = vld [vmem:[#allocation3 + $0x98] sm:$0xff]
    %v4898 = vld [vmem:[#allocation3 + $0xa0] sm:$0xff]
    %v4899 = vld [vmem:[#allocation3 + $0xa8] sm:$0xff]
    %v4900 = vld [vmem:[#allocation3 + $0xb0] sm:$0xff]
    %v4901 = vld [vmem:[#allocation3 + $0xb8] sm:$0xff]
    %v4902 = vld [vmem:[#allocation3 + $0xc0] sm:$0xff]
    %v4903 = vld [vmem:[#allocation3 + $0xc8] sm:$0xff]
    %v4904 = vld [vmem:[#allocation3 + $0xd0] sm:$0xff]
    %v4905 = vld [vmem:[#allocation3 + $0xd8] sm:$0xff]
    %v4906 = vld [vmem:[#allocation3 + $0xe0] sm:$0xff]
    %v4907 = vld [vmem:[#allocation3 + $0xe8] sm:$0xff]
    %v4908 = vld [vmem:[#allocation3 + $0xf0] sm:$0xff]
    %v4909 = vld [vmem:[#allocation3 + $0xf8] sm:$0xff]
    %v4910 = vld [vmem:[#allocation9] sm:$0xf]
    %v4912 = vlaneseq
    %v4913 = vshrl.u32 %v4912, 7
    %v4914 = vsub.s32 0, %v4913
    %v4915 = vrot.slane %v4910, %v4914
    %v4916 = vlaneseq
    %v4917 = vshrl.u32 %v4916, 7
    %v4918 = vsub.s32 1, %v4917
    %v4919 = vrot.slane %v4910, %v4918
    %v4920 = vlaneseq
    %v4921 = vshrl.u32 %v4920, 7
    %v4922 = vsub.s32 2, %v4921
    %v4923 = vrot.slane %v4910, %v4922
    %v4924 = vlaneseq
    %v4925 = vshrl.u32 %v4924, 7
    %v4926 = vsub.s32 3, %v4925
    %v4927 = vrot.slane %v4910, %v4926
    %v4932 = vadd.f32 %v4878, %v4915
    %v4933 = vadd.f32 %v4879, %v4919
    %v4934 = vadd.f32 %v4880, %v4923
    %v4935 = vadd.f32 %v4881, %v4927
    %v4936 = vadd.f32 %v4882, %v4915
    %v4937 = vadd.f32 %v4883, %v4919
    %v4938 = vadd.f32 %v4884, %v4923
    %v4939 = vadd.f32 %v4885, %v4927
    %v4940 = vadd.f32 %v4886, %v4915
    %v4941 = vadd.f32 %v4887, %v4919
    %v4942 = vadd.f32 %v4888, %v4923
    %v4943 = vadd.f32 %v4889, %v4927
    %v4944 = vadd.f32 %v4890, %v4915
    %v4945 = vadd.f32 %v4891, %v4919
    %v4946 = vadd.f32 %v4892, %v4923
    %v4947 = vadd.f32 %v4893, %v4927
    %v4948 = vadd.f32 %v4894, %v4915
    %v4949 = vadd.f32 %v4895, %v4919
    %v4950 = vadd.f32 %v4896, %v4923
    %v4951 = vadd.f32 %v4897, %v4927
    %v4952 = vadd.f32 %v4898, %v4915
    %v4953 = vadd.f32 %v4899, %v4919
    %v4954 = vadd.f32 %v4900, %v4923
    %v4955 = vadd.f32 %v4901, %v4927
    %v4956 = vadd.f32 %v4902, %v4915
    %v4957 = vadd.f32 %v4903, %v4919
    %v4958 = vadd.f32 %v4904, %v4923
    %v4959 = vadd.f32 %v4905, %v4927
    %v4960 = vadd.f32 %v4906, %v4915
    %v4961 = vadd.f32 %v4907, %v4919
    %v4962 = vadd.f32 %v4908, %v4923
    %v4963 = vadd.f32 %v4909, %v4927
    %v4964 = vadd.f32 %v4932, %v4934
    %v4965 = vadd.f32 %v4933, %v4935
    %v4966 = vadd.f32 %v4936, %v4938
    %v4967 = vadd.f32 %v4937, %v4939
    %v4968 = vadd.f32 %v4940, %v4942
    %v4969 = vadd.f32 %v4941, %v4943
    %v4970 = vadd.f32 %v4944, %v4946
    %v4971 = vadd.f32 %v4945, %v4947
    %v4972 = vadd.f32 %v4948, %v4950
    %v4973 = vadd.f32 %v4949, %v4951
    %v4974 = vadd.f32 %v4952, %v4954
    %v4975 = vadd.f32 %v4953, %v4955
    %v4976 = vadd.f32 %v4956, %v4958
    %v4977 = vadd.f32 %v4957, %v4959
    %v4978 = vadd.f32 %v4960, %v4962
    %v4979 = vadd.f32 %v4961, %v4963
    %v4980 = vrot.slane %v4964, 4
    %v4981 = vadd.f32 %v4964, %v4980
    %v4982 = vrot.slane %v4981, 2
    %v4983 = vadd.f32 %v4981, %v4982
    %v4984 = vrot.slane %v4983, 1
    %v4985 = vadd.f32 %v4983, %v4984
    %v4986 = vrot.slane %v4965, 4
    %v4987 = vadd.f32 %v4965, %v4986
    %v4988 = vrot.slane %v4987, 2
    %v4989 = vadd.f32 %v4987, %v4988
    %v4990 = vrot.slane %v4989, 1
    %v4991 = vadd.f32 %v4989, %v4990
    %v4992 = vrot.slane %v4966, 4
    %v4993 = vadd.f32 %v4966, %v4992
    %v4994 = vrot.slane %v4993, 2
    %v4995 = vadd.f32 %v4993, %v4994
    %v4996 = vrot.slane %v4995, 1
    %v4997 = vadd.f32 %v4995, %v4996
    %v4998 = vrot.slane %v4967, 4
    %v4999 = vadd.f32 %v4967, %v4998
    %v5000 = vrot.slane %v4999, 2
    %v5001 = vadd.f32 %v4999, %v5000
    %v5002 = vrot.slane %v5001, 1
    %v5003 = vadd.f32 %v5001, %v5002
    %v5004 = vrot.slane %v4968, 4
    %v5005 = vadd.f32 %v4968, %v5004
    %v5006 = vrot.slane %v5005, 2
    %v5007 = vadd.f32 %v5005, %v5006
    %v5008 = vrot.slane %v5007, 1
    %v5009 = vadd.f32 %v5007, %v5008
    %v5010 = vrot.slane %v4969, 4
    %v5011 = vadd.f32 %v4969, %v5010
    %v5012 = vrot.slane %v5011, 2
    %v5013 = vadd.f32 %v5011, %v5012
    %v5014 = vrot.slane %v5013, 1
    %v5015 = vadd.f32 %v5013, %v5014
    %v5016 = vrot.slane %v4970, 4
    %v5017 = vadd.f32 %v4970, %v5016
    %v5018 = vrot.slane %v5017, 2
    %v5019 = vadd.f32 %v5017, %v5018
    %v5020 = vrot.slane %v5019, 1
    %v5021 = vadd.f32 %v5019, %v5020
    %v5022 = vrot.slane %v4971, 4
    %v5023 = vadd.f32 %v4971, %v5022
    %v5024 = vrot.slane %v5023, 2
    %v5025 = vadd.f32 %v5023, %v5024
    %v5026 = vrot.slane %v5025, 1
    %v5027 = vadd.f32 %v5025, %v5026
    %v5028 = vrot.slane %v4972, 4
    %v5029 = vadd.f32 %v4972, %v5028
    %v5030 = vrot.slane %v5029, 2
    %v5031 = vadd.f32 %v5029, %v5030
    %v5032 = vrot.slane %v5031, 1
    %v5033 = vadd.f32 %v5031, %v5032
    %v5034 = vrot.slane %v4973, 4
    %v5035 = vadd.f32 %v4973, %v5034
    %v5036 = vrot.slane %v5035, 2
    %v5037 = vadd.f32 %v5035, %v5036
    %v5038 = vrot.slane %v5037, 1
    %v5039 = vadd.f32 %v5037, %v5038
    %v5040 = vrot.slane %v4974, 4
    %v5041 = vadd.f32 %v4974, %v5040
    %v5042 = vrot.slane %v5041, 2
    %v5043 = vadd.f32 %v5041, %v5042
    %v5044 = vrot.slane %v5043, 1
    %v5045 = vadd.f32 %v5043, %v5044
    %v5046 = vrot.slane %v4975, 4
    %v5047 = vadd.f32 %v4975, %v5046
    %v5048 = vrot.slane %v5047, 2
    %v5049 = vadd.f32 %v5047, %v5048
    %v5050 = vrot.slane %v5049, 1
    %v5051 = vadd.f32 %v5049, %v5050
    %v5052 = vrot.slane %v4976, 4
    %v5053 = vadd.f32 %v4976, %v5052
    %v5054 = vrot.slane %v5053, 2
    %v5055 = vadd.f32 %v5053, %v5054
    %v5056 = vrot.slane %v5055, 1
    %v5057 = vadd.f32 %v5055, %v5056
    %v5058 = vrot.slane %v4977, 4
    %v5059 = vadd.f32 %v4977, %v5058
    %v5060 = vrot.slane %v5059, 2
    %v5061 = vadd.f32 %v5059, %v5060
    %v5062 = vrot.slane %v5061, 1
    %v5063 = vadd.f32 %v5061, %v5062
    %v5064 = vrot.slane %v4978, 4
    %v5065 = vadd.f32 %v4978, %v5064
    %v5066 = vrot.slane %v5065, 2
    %v5067 = vadd.f32 %v5065, %v5066
    %v5068 = vrot.slane %v5067, 1
    %v5069 = vadd.f32 %v5067, %v5068
    %v5070 = vrot.slane %v4979, 4
    %v5071 = vadd.f32 %v4979, %v5070
    %v5072 = vrot.slane %v5071, 2
    %v5073 = vadd.f32 %v5071, %v5072
    %v5074 = vrot.slane %v5073, 1
    %v5075 = vadd.f32 %v5073, %v5074
    %5084 = vrot.lane.b32.xlu0 %v4985, 96
    %v5085 = vpop.permute.xlu0 %5084
    %5086 = vrot.lane.b32.xlu0 %v4997, 96
    %v5087 = vpop.permute.xlu0 %5086
    %5088 = vrot.lane.b32.xlu0 %v5009, 96
    %v5089 = vpop.permute.xlu0 %5088
    %5090 = vrot.lane.b32.xlu0 %v5021, 96
    %v5091 = vpop.permute.xlu0 %5090
    %5092 = vrot.lane.b32.xlu0 %v5033, 96
    %v5093 = vpop.permute.xlu0 %5092
    %5094 = vrot.lane.b32.xlu0 %v5045, 96
    %v5095 = vpop.permute.xlu0 %5094
    %5096 = vrot.lane.b32.xlu0 %v5057, 96
    %v5097 = vpop.permute.xlu0 %5096
    %5098 = vrot.lane.b32.xlu0 %v5069, 96
    %v5099 = vpop.permute.xlu0 %5098
    %v5108 = vadd.f32 %v4985, %v5085
    %v5109 = vadd.f32 %v4997, %v5087
    %v5110 = vadd.f32 %v5009, %v5089
    %v5111 = vadd.f32 %v5021, %v5091
    %v5112 = vadd.f32 %v5033, %v5093
    %v5113 = vadd.f32 %v5045, %v5095
    %v5114 = vadd.f32 %v5057, %v5097
    %v5115 = vadd.f32 %v5069, %v5099
    %5116 = vrot.lane.b32.xlu0 %v4985, 64
    %v5117 = vpop.permute.xlu0 %5116
    %5118 = vrot.lane.b32.xlu0 %v4997, 64
    %v5119 = vpop.permute.xlu0 %5118
    %5120 = vrot.lane.b32.xlu0 %v5009, 64
    %v5121 = vpop.permute.xlu0 %5120
    %5122 = vrot.lane.b32.xlu0 %v5021, 64
    %v5123 = vpop.permute.xlu0 %5122
    %5124 = vrot.lane.b32.xlu0 %v5033, 64
    %v5125 = vpop.permute.xlu0 %5124
    %5126 = vrot.lane.b32.xlu0 %v5045, 64
    %v5127 = vpop.permute.xlu0 %5126
    %5128 = vrot.lane.b32.xlu0 %v5057, 64
    %v5129 = vpop.permute.xlu0 %5128
    %5130 = vrot.lane.b32.xlu0 %v5069, 64
    %v5131 = vpop.permute.xlu0 %5130
    %v5140 = vadd.f32 %v5108, %v5117
    %v5141 = vadd.f32 %v5109, %v5119
    %v5142 = vadd.f32 %v5110, %v5121
    %v5143 = vadd.f32 %v5111, %v5123
    %v5144 = vadd.f32 %v5112, %v5125
    %v5145 = vadd.f32 %v5113, %v5127
    %v5146 = vadd.f32 %v5114, %v5129
    %v5147 = vadd.f32 %v5115, %v5131
    %5148 = vrot.lane.b32.xlu0 %v4985, 32
    %v5149 = vpop.permute.xlu0 %5148
    %5150 = vrot.lane.b32.xlu0 %v4997, 32
    %v5151 = vpop.permute.xlu0 %5150
    %5152 = vrot.lane.b32.xlu0 %v5009, 32
    %v5153 = vpop.permute.xlu0 %5152
    %5154 = vrot.lane.b32.xlu0 %v5021, 32
    %v5155 = vpop.permute.xlu0 %5154
    %5156 = vrot.lane.b32.xlu0 %v5033, 32
    %v5157 = vpop.permute.xlu0 %5156
    %5158 = vrot.lane.b32.xlu0 %v5045, 32
    %v5159 = vpop.permute.xlu0 %5158
    %5160 = vrot.lane.b32.xlu0 %v5057, 32
    %v5161 = vpop.permute.xlu0 %5160
    %5162 = vrot.lane.b32.xlu0 %v5069, 32
    %v5163 = vpop.permute.xlu0 %5162
    %v5172 = vadd.f32 %v5140, %v5149
    %v5173 = vadd.f32 %v5141, %v5151
    %v5174 = vadd.f32 %v5142, %v5153
    %v5175 = vadd.f32 %v5143, %v5155
    %v5176 = vadd.f32 %v5144, %v5157
    %v5177 = vadd.f32 %v5145, %v5159
    %v5178 = vadd.f32 %v5146, %v5161
    %v5179 = vadd.f32 %v5147, %v5163
    %v5180 = vadd.f32 %v5172, %v4991
    %v5181 = vadd.f32 %v5173, %v5003
    %v5182 = vadd.f32 %v5174, %v5015
    %v5183 = vadd.f32 %v5175, %v5027
    %v5184 = vadd.f32 %v5176, %v5039
    %v5185 = vadd.f32 %v5177, %v5051
    %v5186 = vadd.f32 %v5178, %v5063
    %v5187 = vadd.f32 %v5179, %v5075
    %5196 = vrot.lane.b32.xlu0 %v4991, 96
    %v5197 = vpop.permute.xlu0 %5196
    %5198 = vrot.lane.b32.xlu0 %v5003, 96
    %v5199 = vpop.permute.xlu0 %5198
    %5200 = vrot.lane.b32.xlu0 %v5015, 96
    %v5201 = vpop.permute.xlu0 %5200
    %5202 = vrot.lane.b32.xlu0 %v5027, 96
    %v5203 = vpop.permute.xlu0 %5202
    %5204 = vrot.lane.b32.xlu0 %v5039, 96
    %v5205 = vpop.permute.xlu0 %5204
    %5206 = vrot.lane.b32.xlu0 %v5051, 96
    %v5207 = vpop.permute.xlu0 %5206
    %5208 = vrot.lane.b32.xlu0 %v5063, 96
    %v5209 = vpop.permute.xlu0 %5208
    %5210 = vrot.lane.b32.xlu0 %v5075, 96
    %v5211 = vpop.permute.xlu0 %5210
    %v5220 = vadd.f32 %v5180, %v5197
    %v5221 = vadd.f32 %v5181, %v5199
    %v5222 = vadd.f32 %v5182, %v5201
    %v5223 = vadd.f32 %v5183, %v5203
    %v5224 = vadd.f32 %v5184, %v5205
    %v5225 = vadd.f32 %v5185, %v5207
    %v5226 = vadd.f32 %v5186, %v5209
    %v5227 = vadd.f32 %v5187, %v5211
    %5228 = vrot.lane.b32.xlu0 %v4991, 64
    %v5229 = vpop.permute.xlu0 %5228
    %5230 = vrot.lane.b32.xlu0 %v5003, 64
    %v5231 = vpop.permute.xlu0 %5230
    %5232 = vrot.lane.b32.xlu0 %v5015, 64
    %v5233 = vpop.permute.xlu0 %5232
    %5234 = vrot.lane.b32.xlu0 %v5027, 64
    %v5235 = vpop.permute.xlu0 %5234
    %5236 = vrot.lane.b32.xlu0 %v5039, 64
    %v5237 = vpop.permute.xlu0 %5236
    %5238 = vrot.lane.b32.xlu0 %v5051, 64
    %v5239 = vpop.permute.xlu0 %5238
    %5240 = vrot.lane.b32.xlu0 %v5063, 64
    %v5241 = vpop.permute.xlu0 %5240
    %5242 = vrot.lane.b32.xlu0 %v5075, 64
    %v5243 = vpop.permute.xlu0 %5242
    %v5252 = vadd.f32 %v5220, %v5229
    %v5253 = vadd.f32 %v5221, %v5231
    %v5254 = vadd.f32 %v5222, %v5233
    %v5255 = vadd.f32 %v5223, %v5235
    %v5256 = vadd.f32 %v5224, %v5237
    %v5257 = vadd.f32 %v5225, %v5239
    %v5258 = vadd.f32 %v5226, %v5241
    %v5259 = vadd.f32 %v5227, %v5243
    %5260 = vrot.lane.b32.xlu0 %v4991, 32
    %v5261 = vpop.permute.xlu0 %5260
    %5262 = vrot.lane.b32.xlu0 %v5003, 32
    %v5263 = vpop.permute.xlu0 %5262
    %5264 = vrot.lane.b32.xlu0 %v5015, 32
    %v5265 = vpop.permute.xlu0 %5264
    %5266 = vrot.lane.b32.xlu0 %v5027, 32
    %v5267 = vpop.permute.xlu0 %5266
    %5268 = vrot.lane.b32.xlu0 %v5039, 32
    %v5269 = vpop.permute.xlu0 %5268
    %5270 = vrot.lane.b32.xlu0 %v5051, 32
    %v5271 = vpop.permute.xlu0 %5270
    %5272 = vrot.lane.b32.xlu0 %v5063, 32
    %v5273 = vpop.permute.xlu0 %5272
    %5274 = vrot.lane.b32.xlu0 %v5075, 32
    %v5275 = vpop.permute.xlu0 %5274
    %v5284 = vadd.f32 %v5252, %v5261
    %v5285 = vadd.f32 %v5253, %v5263
    %v5286 = vadd.f32 %v5254, %v5265
    %v5287 = vadd.f32 %v5255, %v5267
    %v5288 = vadd.f32 %v5256, %v5269
    %v5289 = vadd.f32 %v5257, %v5271
    %v5290 = vadd.f32 %v5258, %v5273
    %v5291 = vadd.f32 %v5259, %v5275
    %v5292 = vmul.f32 %v5284, 0.015625
    %v5293 = vmul.f32 %v5285, 0.015625
    %v5294 = vmul.f32 %v5286, 0.015625
    %v5295 = vmul.f32 %v5287, 0.015625
    %v5296 = vmul.f32 %v5288, 0.015625
    %v5297 = vmul.f32 %v5289, 0.015625
    %v5298 = vmul.f32 %v5290, 0.015625
    %v5299 = vmul.f32 %v5291, 0.015625
    %v5300 = vld [vmem:[%s3] sm:$0xff]
    %v5301 = vld [vmem:[%s3 + $0x8] sm:$0xff]
    %v5302 = vld [vmem:[%s3 + $0x10] sm:$0xff]
    %v5303 = vld [vmem:[%s3 + $0x18] sm:$0xff]
    %v5304 = vld [vmem:[#allocation10] sm:$0x1]
    %v5306 = vlaneseq
    %v5307 = vshrl.u32 %v5306, 7
    %v5308 = vsub.s32 0, %v5307
    %v5309 = vrot.slane %v5304, %v5308
    %v5319 = vrot.slane %v5293, 7
    %vm5320 = vcmask 1041409
    %v5321 = vsel %vm5320, %v5319, %v5292
    %v5322 = vrot.slane %v5294, 6
    %vm5323 = vcmask 1042434
    %v5324 = vsel %vm5323, %v5322, %v5321
    %v5325 = vrot.slane %v5295, 5
    %vm5326 = vcmask 1043459
    %v5327 = vsel %vm5326, %v5325, %v5324
    %v5328 = vrot.slane %v5296, 4
    %vm5329 = vcmask 1044484
    %v5330 = vsel %vm5329, %v5328, %v5327
    %v5331 = vrot.slane %v5297, 3
    %vm5332 = vcmask 1045509
    %v5333 = vsel %vm5332, %v5331, %v5330
    %v5334 = vrot.slane %v5298, 2
    %vm5335 = vcmask 1046534
    %v5336 = vsel %vm5335, %v5334, %v5333
    %v5337 = vrot.slane %v5299, 1
    %vm5338 = vcmask 1047559
    %v5339 = vsel %vm5338, %v5337, %v5336
    %vm5340 = vcmask 261120
    %v5341 = vsel %vm5340, %v5339, 0
    %5343 = vmatprep.subr.mxu0 0.0
    %5344 = vmatpush1.msra.mxu0 0.0
    %5345 = vmatprep.subr.mxu0 0.0
    %5346 = vmatpush1.msra.mxu0 0.0
    %5347 = vmatprep.subr.mxu0 0.0
    %5348 = vmatpush1.msra.mxu0 0.0
    %5349 = vmatprep.subr.mxu0 0.0
    %5350 = vmatpush1.msra.mxu0 0.0
    %5351 = vmatprep.subr.mxu0 0.0
    %5352 = vmatpush1.msra.mxu0 0.0
    %5353 = vmatprep.subr.mxu0 0.0
    %5354 = vmatpush1.msra.mxu0 0.0
    %5355 = vmatprep.subr.mxu0 0.0
    %5356 = vmatpush1.msra.mxu0 0.0
    %5357 = vmatprep.subr.mxu0 0.0
    %5358 = vmatpush1.msra.mxu0 0.0
    %5359 = vmatprep.subr.mxu0 0.0
    %5360 = vmatpush1.msra.mxu0 0.0
    %5361 = vmatprep.subr.mxu0 0.0
    %5362 = vmatpush1.msra.mxu0 0.0
    %5363 = vmatprep.subr.mxu0 0.0
    %5364 = vmatpush1.msra.mxu0 0.0
    %5365 = vmatprep.subr.mxu0 0.0
    %5366 = vmatpush1.msra.mxu0 0.0
    %5367 = vmatprep.subr.mxu0 0.0
    %5368 = vmatpush1.msra.mxu0 %v5303
    %5369 = vmatprep.subr.mxu0 0.0
    %5370 = vmatpush1.msra.mxu0 %v5302
    %5371 = vmatprep.subr.mxu0 0.0
    %5372 = vmatpush1.msra.mxu0 %v5301
    %5373 = vmatprep.subr.mxu0 0.0
    %5374 = vmatpush1.msra.mxu0 %v5300
    %5375 = vmatprep.subr.mxu0 0.0
    %5376 = vmatpush2.msra.mxu0 0.0
    %5377 = vmatprep.subr.mxu0 0.0
    %5378 = vmatpush2.msra.mxu0 0.0
    %5379 = vmatprep.subr.mxu0 0.0
    %5380 = vmatpush2.msra.mxu0 0.0
    %5381 = vmatprep.subr.mxu0 0.0
    %5382 = vmatpush2.msra.mxu0 0.0
    %5383 = vmatprep.subr.mxu0 0.0
    %5384 = vmatpush2.msra.mxu0 0.0
    %5385 = vmatprep.subr.mxu0 0.0
    %5386 = vmatpush2.msra.mxu0 0.0
    %5387 = vmatprep.subr.mxu0 0.0
    %5388 = vmatpush2.msra.mxu0 0.0
    %5389 = vmatprep.subr.mxu0 0.0
    %5390 = vmatpush2.msra.mxu0 0.0
    %5391 = vmatprep.subr.mxu0 0.0
    %5392 = vmatpush2.msra.mxu0 0.0
    %5393 = vmatprep.subr.mxu0 0.0
    %5394 = vmatpush2.msra.mxu0 0.0
    %5395 = vmatprep.subr.mxu0 0.0
    %5396 = vmatpush2.msra.mxu0 0.0
    %5397 = vmatprep.subr.mxu0 0.0
    %5398 = vmatpush2.msra.mxu0 0.0
    %5399 = vmatprep.subr.mxu0 0.0
    %5400 = vmatpush2.msra.mxu0 0.0
    %5401 = vmatprep.subr.mxu0 0.0
    %5402 = vmatpush2.msra.mxu0 0.0
    %5403 = vmatprep.subr.mxu0 0.0
    %5404 = vmatpush2.msra.mxu0 0.0
    %5405 = vmatprep.subr.mxu0 0.0
    %5406 = vmatpush2.msra.mxu0 0.0
    %5407 = vmatprep.mubr.f32.mxu0 0.0
    %5408 = vmatmul.mubr.f32.gmra.mxu0 %v5341
    %v5409 = vpop.f32.mrf.mxu0
    %v5410 = vadd.f32 %v5309, %v5409
    %v5411 = vpop.f32.mrf.mxu0
    %5412 = vdwg.mxu0
    %v5413 = vld [vmem:[#allocation12] sm:$0x3]
    %v5414 = vld [vmem:[#allocation13] sm:$0x1]
    %v5416 = vlaneseq
    %v5417 = vshrl.u32 %v5416, 7
    %v5418 = vsub.s32 0, %v5417
    %v5419 = vrot.slane %v5414, %v5418
    %vm5421 = vcmask 15360
    %v5423 = vsel %vm5421, %v5410, 0
    %vm5425 = vcmask 1041408
    %v5427 = vsel %vm5425, %v5413, 0
    %5429 = vmatprep.subr.mxu0 0.0
    %5430 = vmatpush1.msra.mxu0 0.0
    %5431 = vmatprep.subr.mxu0 0.0
    %5432 = vmatpush1.msra.mxu0 0.0
    %5433 = vmatprep.subr.mxu0 0.0
    %5434 = vmatpush1.msra.mxu0 0.0
    %5435 = vmatprep.subr.mxu0 0.0
    %5436 = vmatpush1.msra.mxu0 0.0
    %5437 = vmatprep.subr.mxu0 0.0
    %5438 = vmatpush1.msra.mxu0 0.0
    %5439 = vmatprep.subr.mxu0 0.0
    %5440 = vmatpush1.msra.mxu0 0.0
    %5441 = vmatprep.subr.mxu0 0.0
    %5442 = vmatpush1.msra.mxu0 0.0
    %5443 = vmatprep.subr.mxu0 0.0
    %5444 = vmatpush1.msra.mxu0 0.0
    %5445 = vmatprep.subr.mxu0 0.0
    %5446 = vmatpush1.msra.mxu0 0.0
    %5447 = vmatprep.subr.mxu0 0.0
    %5448 = vmatpush1.msra.mxu0 0.0
    %5449 = vmatprep.subr.mxu0 0.0
    %5450 = vmatpush1.msra.mxu0 0.0
    %5451 = vmatprep.subr.mxu0 0.0
    %5452 = vmatpush1.msra.mxu0 0.0
    %5453 = vmatprep.subr.mxu0 0.0
    %5454 = vmatpush1.msra.mxu0 0.0
    %5455 = vmatprep.subr.mxu0 0.0
    %5456 = vmatpush1.msra.mxu0 0.0
    %5457 = vmatprep.subr.mxu0 0.0
    %5458 = vmatpush1.msra.mxu0 0.0
    %5459 = vmatprep.subr.mxu0 0.0
    %5460 = vmatpush1.msra.mxu0 %v5427
    %5461 = vmatprep.subr.mxu0 0.0
    %5462 = vmatpush2.msra.mxu0 0.0
    %5463 = vmatprep.subr.mxu0 0.0
    %5464 = vmatpush2.msra.mxu0 0.0
    %5465 = vmatprep.subr.mxu0 0.0
    %5466 = vmatpush2.msra.mxu0 0.0
    %5467 = vmatprep.subr.mxu0 0.0
    %5468 = vmatpush2.msra.mxu0 0.0
    %5469 = vmatprep.subr.mxu0 0.0
    %5470 = vmatpush2.msra.mxu0 0.0
    %5471 = vmatprep.subr.mxu0 0.0
    %5472 = vmatpush2.msra.mxu0 0.0
    %5473 = vmatprep.subr.mxu0 0.0
    %5474 = vmatpush2.msra.mxu0 0.0
    %5475 = vmatprep.subr.mxu0 0.0
    %5476 = vmatpush2.msra.mxu0 0.0
    %5477 = vmatprep.subr.mxu0 0.0
    %5478 = vmatpush2.msra.mxu0 0.0
    %5479 = vmatprep.subr.mxu0 0.0
    %5480 = vmatpush2.msra.mxu0 0.0
    %5481 = vmatprep.subr.mxu0 0.0
    %5482 = vmatpush2.msra.mxu0 0.0
    %5483 = vmatprep.subr.mxu0 0.0
    %5484 = vmatpush2.msra.mxu0 0.0
    %5485 = vmatprep.subr.mxu0 0.0
    %5486 = vmatpush2.msra.mxu0 0.0
    %5487 = vmatprep.subr.mxu0 0.0
    %5488 = vmatpush2.msra.mxu0 0.0
    %5489 = vmatprep.subr.mxu0 0.0
    %5490 = vmatpush2.msra.mxu0 0.0
    %5491 = vmatprep.subr.mxu0 0.0
    %5492 = vmatpush2.msra.mxu0 0.0
    %5493 = vmatprep.mubr.f32.mxu0 0.0
    %5494 = vmatmul.mubr.f32.gmra.mxu0 %v5423
    %v5495 = vpop.f32.mrf.mxu0
    %v5496 = vadd.f32 %v5419, %v5495
    %v5497 = vpop.f32.mrf.mxu0
    %5498 = vdwg.mxu0
    %5500 = vrot.lane.b32.xlu0 %v5496, 96
    %v5501 = vpop.permute.xlu0 %5500
    %v5503 = vmax.f32 %v5496, %v5501
    %v5504 = vsub.f32 %v5496, %v5503
    %v5505 = vmul.f32 %v5504, 1.442695
    %v5506 = vpow.pop %v5505
    %5508 = vrot.lane.b32.xlu0 %v5503, 32
    %v5509 = vpop.permute.xlu0 %5508
    %v5511 = vsub.f32 %v5496, %v5509
    %v5512 = vmul.f32 %v5511, 1.442695
    %v5513 = vpow.pop %v5512
    %5515 = vrot.lane.b32.xlu0 %v5513, 96
    %v5516 = vpop.permute.xlu0 %5515
    %v5518 = vadd.f32 %v5506, %v5516
    %v5519 = vrcp.pop %v5518
    %v5520 = vmul.f32 %v5506, %v5519
    %5522 = vrot.lane.b32.xlu0 %v5519, 32
    %v5523 = vpop.permute.xlu0 %5522
    %v5525 = vmul.f32 %v5513, %v5523
    %5527 = vrot.lane.b32.xlu0 %v5520, 32
    %v5528 = vpop.permute.xlu0 %5527
    %5530 = vrot.lane.b32.xlu0 %v5520, 64
    %v5531 = vpop.permute.xlu0 %5530
    %5533 = vrot.lane.b32.xlu0 %v5520, 96
    %v5534 = vpop.permute.xlu0 %5533
    %v5536 = vsel %vm5340, %v5520, %v5528
    %v5537 = vsel %vm265, %v5536, %v5531
    %vm5538 = vcmask 785408
    %v5539 = vsel %vm5538, %v5537, %v5534
    %v5541 = vcombine.low %v5539, %v5539
    %v5542 = vcombine.high %v5539, %v5539
    %v5544 = vunpack.c.l.s4 1966171168
    %v5545 = vunpack.c.0.s8 %v5544
    %v5546 = vlaneseq
    %v5547 = vshrl.u32 %v5546, 7
    %v5548 = vsub.s32 %v5545, %v5547
    %v5549 = vrot.slane %v5541, %v5548
    %v5551 = vunpack.c.l.s4 1966171168
    %v5552 = vunpack.c.0.s8 %v5551
    %v5553 = vlaneseq
    %v5554 = vshrl.u32 %v5553, 7
    %v5555 = vsub.s32 %v5552, %v5554
    %v5556 = vrot.slane %v5542, %v5555
    %v5557 = vcombine.high %v5549, %v5549
    %v5558 = vcombine.high %v5556, %v5556
    %v5560 = vunpack.c.l.s4 1966171168
    %v5561 = vunpack.c.0.s8 %v5560
    %v5562 = vlaneseq
    %v5563 = vshrl.u32 %v5562, 7
    %v5564 = vsub.s32 %v5561, %v5563
    %v5565 = vrot.slane %v5549, %v5564
    %v5567 = vunpack.c.l.s4 1966171168
    %v5568 = vunpack.c.0.s8 %v5567
    %v5569 = vlaneseq
    %v5570 = vshrl.u32 %v5569, 7
    %v5571 = vsub.s32 %v5568, %v5570
    %v5572 = vrot.slane %v5556, %v5571
    %v5574 = vunpack.c.l.s4 1966171168
    %v5575 = vunpack.c.0.s8 %v5574
    %v5576 = vlaneseq
    %v5577 = vshrl.u32 %v5576, 7
    %v5578 = vsub.s32 %v5575, %v5577
    %v5579 = vrot.slane %v5557, %v5578
    %v5581 = vunpack.c.l.s4 1966171168
    %v5582 = vunpack.c.0.s8 %v5581
    %v5583 = vlaneseq
    %v5584 = vshrl.u32 %v5583, 7
    %v5585 = vsub.s32 %v5582, %v5584
    %v5586 = vrot.slane %v5558, %v5585
    %v5587 = vcombine.high %v5565, %v5565
    %v5588 = vcombine.high %v5572, %v5572
    %v5589 = vcombine.high %v5579, %v5579
    %v5590 = vcombine.high %v5586, %v5586
    %5592 = vrot.lane.b32.xlu0 %v5525, 96
    %v5593 = vpop.permute.xlu0 %5592
    %5595 = vrot.lane.b32.xlu0 %v5525, 32
    %v5596 = vpop.permute.xlu0 %5595
    %5598 = vrot.lane.b32.xlu0 %v5525, 64
    %v5599 = vpop.permute.xlu0 %5598
    %v5601 = vsel %vm5340, %v5593, %v5525
    %v5602 = vsel %vm265, %v5601, %v5596
    %v5603 = vsel %vm5538, %v5602, %v5599
    %v5605 = vcombine.low %v5603, %v5603
    %v5606 = vcombine.high %v5603, %v5603
    %v5608 = vunpack.c.l.s4 1966171168
    %v5609 = vunpack.c.0.s8 %v5608
    %v5610 = vlaneseq
    %v5611 = vshrl.u32 %v5610, 7
    %v5612 = vsub.s32 %v5609, %v5611
    %v5613 = vrot.slane %v5605, %v5612
    %v5615 = vunpack.c.l.s4 1966171168
    %v5616 = vunpack.c.0.s8 %v5615
    %v5617 = vlaneseq
    %v5618 = vshrl.u32 %v5617, 7
    %v5619 = vsub.s32 %v5616, %v5618
    %v5620 = vrot.slane %v5606, %v5619
    %v5621 = vcombine.high %v5613, %v5613
    %v5622 = vcombine.high %v5620, %v5620
    %v5624 = vunpack.c.l.s4 1966171168
    %v5625 = vunpack.c.0.s8 %v5624
    %v5626 = vlaneseq
    %v5627 = vshrl.u32 %v5626, 7
    %v5628 = vsub.s32 %v5625, %v5627
    %v5629 = vrot.slane %v5613, %v5628
    %v5631 = vunpack.c.l.s4 1966171168
    %v5632 = vunpack.c.0.s8 %v5631
    %v5633 = vlaneseq
    %v5634 = vshrl.u32 %v5633, 7
    %v5635 = vsub.s32 %v5632, %v5634
    %v5636 = vrot.slane %v5620, %v5635
    %v5638 = vunpack.c.l.s4 1966171168
    %v5639 = vunpack.c.0.s8 %v5638
    %v5640 = vlaneseq
    %v5641 = vshrl.u32 %v5640, 7
    %v5642 = vsub.s32 %v5639, %v5641
    %v5643 = vrot.slane %v5621, %v5642
    %v5645 = vunpack.c.l.s4 1966171168
    %v5646 = vunpack.c.0.s8 %v5645
    %v5647 = vlaneseq
    %v5648 = vshrl.u32 %v5647, 7
    %v5649 = vsub.s32 %v5646, %v5648
    %v5650 = vrot.slane %v5622, %v5649
    %v5651 = vcombine.high %v5629, %v5629
    %v5652 = vcombine.high %v5636, %v5636
    %v5653 = vcombine.high %v5643, %v5643
    %v5654 = vcombine.high %v5650, %v5650
    %v5655 = vlaneseq
    %v5656 = vshrl.u32 %v5655, 7
    %v5657 = vsub.s32 0, %v5656
    %v5658 = vrot.slane %v5565, %v5657
    %v5659 = vlaneseq
    %v5660 = vshrl.u32 %v5659, 7
    %v5661 = vsub.s32 1, %v5660
    %v5662 = vrot.slane %v5565, %v5661
    %v5663 = vlaneseq
    %v5664 = vshrl.u32 %v5663, 7
    %v5665 = vsub.s32 0, %v5664
    %v5666 = vrot.slane %v5579, %v5665
    %v5667 = vlaneseq
    %v5668 = vshrl.u32 %v5667, 7
    %v5669 = vsub.s32 1, %v5668
    %v5670 = vrot.slane %v5579, %v5669
    %v5671 = vlaneseq
    %v5672 = vshrl.u32 %v5671, 7
    %v5673 = vsub.s32 0, %v5672
    %v5674 = vrot.slane %v5587, %v5673
    %v5675 = vlaneseq
    %v5676 = vshrl.u32 %v5675, 7
    %v5677 = vsub.s32 1, %v5676
    %v5678 = vrot.slane %v5587, %v5677
    %v5679 = vlaneseq
    %v5680 = vshrl.u32 %v5679, 7
    %v5681 = vsub.s32 0, %v5680
    %v5682 = vrot.slane %v5589, %v5681
    %v5683 = vlaneseq
    %v5684 = vshrl.u32 %v5683, 7
    %v5685 = vsub.s32 1, %v5684
    %v5686 = vrot.slane %v5589, %v5685
    %v5687 = vlaneseq
    %v5688 = vshrl.u32 %v5687, 7
    %v5689 = vsub.s32 0, %v5688
    %v5690 = vrot.slane %v5572, %v5689
    %v5691 = vlaneseq
    %v5692 = vshrl.u32 %v5691, 7
    %v5693 = vsub.s32 1, %v5692
    %v5694 = vrot.slane %v5572, %v5693
    %v5695 = vlaneseq
    %v5696 = vshrl.u32 %v5695, 7
    %v5697 = vsub.s32 0, %v5696
    %v5698 = vrot.slane %v5586, %v5697
    %v5699 = vlaneseq
    %v5700 = vshrl.u32 %v5699, 7
    %v5701 = vsub.s32 1, %v5700
    %v5702 = vrot.slane %v5586, %v5701
    %v5703 = vlaneseq
    %v5704 = vshrl.u32 %v5703, 7
    %v5705 = vsub.s32 0, %v5704
    %v5706 = vrot.slane %v5588, %v5705
    %v5707 = vlaneseq
    %v5708 = vshrl.u32 %v5707, 7
    %v5709 = vsub.s32 1, %v5708
    %v5710 = vrot.slane %v5588, %v5709
    %v5711 = vlaneseq
    %v5712 = vshrl.u32 %v5711, 7
    %v5713 = vsub.s32 0, %v5712
    %v5714 = vrot.slane %v5590, %v5713
    %v5715 = vlaneseq
    %v5716 = vshrl.u32 %v5715, 7
    %v5717 = vsub.s32 1, %v5716
    %v5718 = vrot.slane %v5590, %v5717
    %v5735 = vmul.f32 %v4932, %v5658
    %v5736 = vmul.f32 %v4933, %v5662
    %v5737 = vmul.f32 %v4936, %v5666
    %v5738 = vmul.f32 %v4937, %v5670
    %v5739 = vmul.f32 %v4940, %v5674
    %v5740 = vmul.f32 %v4941, %v5678
    %v5741 = vmul.f32 %v4944, %v5682
    %v5742 = vmul.f32 %v4945, %v5686
    %v5743 = vmul.f32 %v4948, %v5690
    %v5744 = vmul.f32 %v4949, %v5694
    %v5745 = vmul.f32 %v4952, %v5698
    %v5746 = vmul.f32 %v4953, %v5702
    %v5747 = vmul.f32 %v4956, %v5706
    %v5748 = vmul.f32 %v4957, %v5710
    %v5749 = vmul.f32 %v4960, %v5714
    %v5750 = vmul.f32 %v4961, %v5718
    %v5751 = vlaneseq
    %v5752 = vshrl.u32 %v5751, 7
    %v5753 = vsub.s32 0, %v5752
    %v5754 = vrot.slane %v5629, %v5753
    %v5755 = vlaneseq
    %v5756 = vshrl.u32 %v5755, 7
    %v5757 = vsub.s32 1, %v5756
    %v5758 = vrot.slane %v5629, %v5757
    %v5759 = vlaneseq
    %v5760 = vshrl.u32 %v5759, 7
    %v5761 = vsub.s32 0, %v5760
    %v5762 = vrot.slane %v5643, %v5761
    %v5763 = vlaneseq
    %v5764 = vshrl.u32 %v5763, 7
    %v5765 = vsub.s32 1, %v5764
    %v5766 = vrot.slane %v5643, %v5765
    %v5767 = vlaneseq
    %v5768 = vshrl.u32 %v5767, 7
    %v5769 = vsub.s32 0, %v5768
    %v5770 = vrot.slane %v5651, %v5769
    %v5771 = vlaneseq
    %v5772 = vshrl.u32 %v5771, 7
    %v5773 = vsub.s32 1, %v5772
    %v5774 = vrot.slane %v5651, %v5773
    %v5775 = vlaneseq
    %v5776 = vshrl.u32 %v5775, 7
    %v5777 = vsub.s32 0, %v5776
    %v5778 = vrot.slane %v5653, %v5777
    %v5779 = vlaneseq
    %v5780 = vshrl.u32 %v5779, 7
    %v5781 = vsub.s32 1, %v5780
    %v5782 = vrot.slane %v5653, %v5781
    %v5783 = vlaneseq
    %v5784 = vshrl.u32 %v5783, 7
    %v5785 = vsub.s32 0, %v5784
    %v5786 = vrot.slane %v5636, %v5785
    %v5787 = vlaneseq
    %v5788 = vshrl.u32 %v5787, 7
    %v5789 = vsub.s32 1, %v5788
    %v5790 = vrot.slane %v5636, %v5789
    %v5791 = vlaneseq
    %v5792 = vshrl.u32 %v5791, 7
    %v5793 = vsub.s32 0, %v5792
    %v5794 = vrot.slane %v5650, %v5793
    %v5795 = vlaneseq
    %v5796 = vshrl.u32 %v5795, 7
    %v5797 = vsub.s32 1, %v5796
    %v5798 = vrot.slane %v5650, %v5797
    %v5799 = vlaneseq
    %v5800 = vshrl.u32 %v5799, 7
    %v5801 = vsub.s32 0, %v5800
    %v5802 = vrot.slane %v5652, %v5801
    %v5803 = vlaneseq
    %v5804 = vshrl.u32 %v5803, 7
    %v5805 = vsub.s32 1, %v5804
    %v5806 = vrot.slane %v5652, %v5805
    %v5807 = vlaneseq
    %v5808 = vshrl.u32 %v5807, 7
    %v5809 = vsub.s32 0, %v5808
    %v5810 = vrot.slane %v5654, %v5809
    %v5811 = vlaneseq
    %v5812 = vshrl.u32 %v5811, 7
    %v5813 = vsub.s32 1, %v5812
    %v5814 = vrot.slane %v5654, %v5813
    %v5831 = vmul.f32 %v4934, %v5754
    %v5832 = vmul.f32 %v4935, %v5758
    %v5833 = vmul.f32 %v4938, %v5762
    %v5834 = vmul.f32 %v4939, %v5766
    %v5835 = vmul.f32 %v4942, %v5770
    %v5836 = vmul.f32 %v4943, %v5774
    %v5837 = vmul.f32 %v4946, %v5778
    %v5838 = vmul.f32 %v4947, %v5782
    %v5839 = vmul.f32 %v4950, %v5786
    %v5840 = vmul.f32 %v4951, %v5790
    %v5841 = vmul.f32 %v4954, %v5794
    %v5842 = vmul.f32 %v4955, %v5798
    %v5843 = vmul.f32 %v4958, %v5802
    %v5844 = vmul.f32 %v4959, %v5806
    %v5845 = vmul.f32 %v4962, %v5810
    %v5846 = vmul.f32 %v4963, %v5814
    %v5847 = vadd.f32 %v5735, %v5831
    %v5848 = vadd.f32 %v5736, %v5832
    %v5849 = vadd.f32 %v5737, %v5833
    %v5850 = vadd.f32 %v5738, %v5834
    %v5851 = vadd.f32 %v5739, %v5835
    %v5852 = vadd.f32 %v5740, %v5836
    %v5853 = vadd.f32 %v5741, %v5837
    %v5854 = vadd.f32 %v5742, %v5838
    %v5855 = vadd.f32 %v5743, %v5839
    %v5856 = vadd.f32 %v5744, %v5840
    %v5857 = vadd.f32 %v5745, %v5841
    %v5858 = vadd.f32 %v5746, %v5842
    %v5859 = vadd.f32 %v5747, %v5843
    %v5860 = vadd.f32 %v5748, %v5844
    %v5861 = vadd.f32 %v5749, %v5845
    %v5862 = vadd.f32 %v5750, %v5846
    %5863 = vst [vmem:[#allocation15] sm:$0xff] %v5847
    %5864 = vst [vmem:[#allocation15 + $0x8] sm:$0xff] %v5848
    %5865 = vst [vmem:[#allocation15 + $0x10] sm:$0xff] %v5849
    %5866 = vst [vmem:[#allocation15 + $0x18] sm:$0xff] %v5850
    %5867 = vst [vmem:[#allocation15 + $0x20] sm:$0xff] %v5851
    %5868 = vst [vmem:[#allocation15 + $0x28] sm:$0xff] %v5852
    %5869 = vst [vmem:[#allocation15 + $0x30] sm:$0xff] %v5853
    %5870 = vst [vmem:[#allocation15 + $0x38] sm:$0xff] %v5854
    %5871 = vst [vmem:[#allocation15 + $0x40] sm:$0xff] %v5855
    %5872 = vst [vmem:[#allocation15 + $0x48] sm:$0xff] %v5856
    %5873 = vst [vmem:[#allocation15 + $0x50] sm:$0xff] %v5857
    %5874 = vst [vmem:[#allocation15 + $0x58] sm:$0xff] %v5858
    %5875 = vst [vmem:[#allocation15 + $0x60] sm:$0xff] %v5859
    %5876 = vst [vmem:[#allocation15 + $0x68] sm:$0xff] %v5860
    %5877 = vst [vmem:[#allocation15 + $0x70] sm:$0xff] %v5861
    %5878 = vst [vmem:[#allocation15 + $0x78] sm:$0xff] %v5862
    // Predicated region
    $region54: #{tpu_custom_call.1} parent=1 // pred_check
      _
    $region55: #{tpu_custom_call.1} parent=1 // pred_check_branch
      %5880 = sbr.rel (0) target = $region57
    $region56: #{tpu_custom_call.1} parent=1 // pred_region
      %s5882 = ssub.s32 2048, 2048
      %5883 = vsyncadd [#allocation6], %s5882
      %s5884 = sshll.u32 [#allocation15], 4
      %s5885 = int_to_ptr.vmem [resolvable:$true] %s5884
      %5890 = dma.vmem_to_hbm [thread:$0]  %s5885, 2048, %s7, [#allocation6], 256, 256, 16
    $region57: #{tpu_custom_call.1} parent=1 // pred_fallthru
      _
    // Predicated region
    $region58: #{tpu_custom_call.1} parent=1 // pred_check
      _
    $region59: #{tpu_custom_call.1} parent=1 // pred_check_branch
      %5892 = sbr.rel (0) target = $region61
    $region60: #{tpu_custom_call.1} parent=1 // pred_region
      %5893 = dma.done [#allocation6], 2048
    $region61: #{tpu_custom_call.1} parent=1 // pred_fallthru
      _
    %5894 = vsyncpa [#allocation5], 1
    %5895 = vsyncpa [#allocation8], 1
    %5896 = vsyncpa [#allocation11], 1
    %5897 = vsyncpa [#allocation14], 1
    %5898 = vsyncpa [#allocation6], 1

</llo_original>
